<compile_context>
chip_gen: v5e
topology: v5e:2x2
jax: 0.10.0
libtpu: 0.0.40
codegen_flags: <defaults>
</compile_context>

<pallas_src>
import functools

import jax
import jax.numpy as jnp
from jax import lax
from jax.experimental import pallas as pl
from jax.experimental.pallas import tpu as pltpu


# --------------------------- hardware-aware knobs ---------------------------

@functools.lru_cache(maxsize=None)
def _vmem_capacity_bytes():
    try:
        return int(pltpu.get_tpu_info().vmem_capacity_bytes)
    except Exception:
        return 64 * 1024 * 1024          # conservative (v7x-sized) default


def _vmem_limit_bytes():
    # ~48 MiB on v7x (64 MiB physical), ~96 MiB on v5e/v6e (128 MiB physical).
    return min(100 * 1024 * 1024, (_vmem_capacity_bytes() * 3) // 4)


def _scratch_budget_bytes():
    # Budget for the per-chunk im2col + pool-stage scratch.
    return max(2 * 1024 * 1024, min(8 * 1024 * 1024, _vmem_capacity_bytes() // 16))


def _compiler_params(n_grid_dims):
    return pltpu.CompilerParams(
        dimension_semantics=("parallel",) * n_grid_dims,
        vmem_limit_bytes=_vmem_limit_bytes(),
    )


def _choose_cout_tile(cout, n_batch):
    """Output-channel tile: wide enough for the MXU / lane-dense stores (>=128),
    small enough to give >=4 grid steps (v7x megacore with batch=1/2)."""
    t = 256 if (cout % 256 == 0) else cout
    while (n_batch * (cout // t) < 4 and t % 2 == 0 and t // 2 >= 128
           and cout % (t // 2) == 0):
        t //= 2
    return t


def _choose_chunk_rows(h, wp, cin, tcout, pool, has_taps):
    """Output rows per in-kernel matmul: a divisor of h (even when pooling),
    sized so the im2col and pool-stage scratches fit the scratch budget."""
    per_row = wp * ((9 * cin * 2 if has_taps else 0) + (tcout * 2 if pool else 0))
    if per_row == 0:
        return h
    cap = max(1, _scratch_budget_bytes() // per_row)
    step = 2 if pool else 1
    best = None
    for cr in range(step, h + 1, step):
        if h % cr == 0 and cr <= cap:
            best = cr
    return best if best is not None else step


# ------------------------------ Pallas kernel --------------------------------

def _make_conv_kernel(*, h, w, cin, taps, cr, pool):
    """3x3 conv + bias + ReLU (+ fused 2x2 max-pool) over the padded layout.

    Block shapes (per grid step (batch, cout-tile)):
      x_ref : (1, (h+4)*(w+2), Ck)  bf16   full padded input plane (resident)
      w_ref : (K, tcout)            bf16   K = 9*cin (or padded im2col depth)
      b_ref : (1, tcout)            f32
      o_ref : (1, (h'+4)*(w'+2), tcout) bf16   padded output plane slice
      scratch: [ (cr*(w+2), 9*cin) bf16 im2col ]  (when taps is not None)
               [ (cr*(w+2), tcout) bf16 stage  ]  (when pool)
    """
    wp = w + 2
    m = cr * wp                      # flattened conv rows per chunk (incl. pad cols)
    n_chunks = h // cr
    if pool:
        ho, wo = h // 2, w // 2
    else:
        ho, wo = h, w
    wpo = wo + 2

    def kernel(x_ref, w_ref, b_ref, o_ref, *scratch):
        tcout = o_ref.shape[-1]

        # Zero the 2 top / 2 bottom pad rows of the padded output layout.
        zrows = jnp.zeros((2 * wpo, tcout), o_ref.dtype)
        o_ref[0, 0:2 * wpo, :] = zrows
        o_ref[0, (ho + 2) * wpo:(ho + 4) * wpo, :] = zrows

        if not pool:
            # Mask that zeroes the 2 pad columns of every output row (hoisted).
            col_idx = lax.broadcasted_iota(jnp.int32, (m, 1), 0) % wp
            keep = jnp.logical_and(col_idx != 0, col_idx != wp - 1)

        for ci in range(n_chunks):
            r0 = ci * cr
            q0 = (r0 + 2) * wp                       # output flat offset of chunk

            if taps is None:
                xin = x_ref[0, q0:q0 + m, :]          # im2col already done outside
            else:
                col_ref = scratch[0]
                for k, (dy, dx) in enumerate(taps):   # static offsets
                    src = (r0 + 1 + dy) * wp + dx - 1
                    col_ref[:, k * cin:(k + 1) * cin] = x_ref[0, src:src + m, :]
                xin = col_ref[...]

            y = jnp.dot(xin, w_ref[...], preferred_element_type=jnp.float32)
            y = jnp.maximum(y + b_ref[...], 0.0)

            if not pool:
                y = jnp.where(keep, y, 0.0)           # zero the pad columns
                o_ref[0, q0:q0 + m, :] = y.astype(o_ref.dtype)
            else:
                # bf16(max(a,b)) == max(bf16(a), bf16(b)): cast before staging.
                stage = scratch[-1]
                stage[...] = y.astype(jnp.bfloat16)
                zc = jnp.zeros((1, tcout), o_ref.dtype)
                for pr in range(cr // 2):             # pooled rows of this chunk
                    t = 2 * pr * wp
                    p00 = stage[pl.ds(t + 1, wo, stride=2), :]
                    p01 = stage[pl.ds(t + 2, wo, stride=2), :]
                    p10 = stage[pl.ds(t + wp + 1, wo, stride=2), :]
                    p11 = stage[pl.ds(t + wp + 2, wo, stride=2), :]
                    row = jnp.maximum(jnp.maximum(p00, p01), jnp.maximum(p10, p11))
                    dst = (r0 // 2 + pr + 2) * wpo
                    o_ref[0, dst:dst + wpo, :] = jnp.concatenate([zc, row, zc], axis=0)

    return kernel


# --------------------------------- wrapper ------------------------------------

def conv3x3(x_pad, wk, b, *, h, w, cin, pool=False, first=False,
            cout_tile=None, chunk_rows=None):
    """3x3 "same" conv + bias + ReLU (+ optional fused 2x2 max-pool).

    x_pad: (N, (h+4)*(w+2), Ck) bf16 activations in the persistent padded layout
           (Ck = cin; for the first layer Ck is the padded wrapper-side im2col
            depth and the in-kernel im2col is skipped).
    wk   : (K, cout) bf16 packed weights;  b: (1, cout) f32.
    Returns (N, (h'+4)*(w'+2), cout) bf16 in the same padded layout.
    """
    n = x_pad.shape[0]
    ck = x_pad.shape[-1]
    kdim, cout = wk.shape
    wp = w + 2
    s_in = (h + 4) * wp
    assert x_pad.shape[1] == s_in, (x_pad.shape, h, w)

    if pool:
        assert h % 2 == 0 and w % 2 == 0, "fused pool needs even H, W"
        ho, wo = h // 2, w // 2
    else:
        ho, wo = h, w
    wpo = wo + 2
    s_out = (ho + 4) * wpo

    tcout = cout_tile or _choose_cout_tile(cout, n)
    assert cout % tcout == 0
    nct = cout // tcout
    taps = None if first else tuple((dy, dx) for dy in range(3) for dx in range(3))
    cr = chunk_rows or _choose_chunk_rows(h, wp, cin, tcout, pool, taps is not None)
    assert h % cr == 0 and (not pool or cr % 2 == 0), (h, cr, pool)

    scratch = []
    if taps is not None:
        scratch.append(pltpu.VMEM((cr * wp, 9 * cin), jnp.bfloat16))
    if pool:
        scratch.append(pltpu.VMEM((cr * wp, tcout), jnp.bfloat16))

    kernel = _make_conv_kernel(h=h, w=w, cin=cin, taps=taps, cr=cr, pool=pool)

    cost = pl.CostEstimate(
        flops=2 * n * (h * wp) * kdim * cout,
        transcendentals=0,
        bytes_accessed=n * (s_in * ck * 2 + s_out * cout * 2 + kdim * cout * 2),
    )

    return pl.pallas_call(
        kernel,
        out_shape=jax.ShapeDtypeStruct((n, s_out, cout), jnp.bfloat16),
        grid_spec=pltpu.PrefetchScalarGridSpec(
            num_scalar_prefetch=0,
            grid=(n, nct),
            in_specs=[
                # Full padded input plane: constant index along the cout axis,
                # so it is fetched once per batch item and stays resident.
                pl.BlockSpec((1, s_in, ck), lambda i, j: (i, 0, 0)),
                pl.BlockSpec((kdim, tcout), lambda i, j: (0, j)),
                pl.BlockSpec((1, tcout), lambda i, j: (0, j)),
            ],
            out_specs=pl.BlockSpec((1, s_out, tcout), lambda i, j: (i, 0, j)),
            scratch_shapes=scratch,
        ),
        compiler_params=_compiler_params(2),
        cost_estimate=cost,
    )(x_pad, wk, b)


# ------------------------- padded-layout conversions --------------------------

def to_padded_layout(x_nhwc):
    n, h, w, c = x_nhwc.shape
    xp = jnp.pad(x_nhwc.astype(jnp.bfloat16), ((0, 0), (2, 2), (1, 1), (0, 0)))
    return xp.reshape(n, (h + 4) * (w + 2), c)


def from_padded_layout(x_pad, h, w):
    n, _, c = x_pad.shape
    return x_pad.reshape(n, h + 4, w + 2, c)[:, 2:2 + h, 1:1 + w, :]


_FIRST_KDIM = 32                      # 9*3 im2col depth, zero-padded to 32


def prep_first_conv_input(x_nhwc):
    """Wrapper-side im2col for the Cin=3 first conv, emitted directly in the
    padded layout (cheap at 3 channels; done once per forward)."""
    n, h, w, c = x_nhwc.shape
    xb = x_nhwc.astype(jnp.bfloat16)
    xp = jnp.pad(xb, ((0, 0), (1, 1), (1, 1), (0, 0)))
    cols = [xp[:, dy:dy + h, dx:dx + w, :] for dy in range(3) for dx in range(3)]
    im = jnp.concatenate(cols, axis=-1)                         # (n, h, w, 27)
    im = jnp.pad(im, ((0, 0), (2, 2), (1, 1), (0, _FIRST_KDIM - 9 * c)))
    return im.reshape(n, (h + 4) * (w + 2), _FIRST_KDIM)


# --------------------------- VGG19 feature slices ----------------------------

# torchvision vgg19.features[0:30]; "out" marks a slice boundary (h_relu1..5).
PLAN = ["conv", "out",
        "conv", "pool", "conv", "out",
        "conv", "pool", "conv", "out",
        "conv", "conv", "conv", "pool", "conv", "out",
        "conv", "conv", "conv", "pool", "conv", "out"]

CONV_CFG = [(3, 64), (64, 64), (64, 128), (128, 128), (128, 256),
            (256, 256), (256, 256), (256, 256), (256, 512),
            (512, 512), (512, 512), (512, 512), (512, 512)]


def init_vgg19_params(key):
    """Deterministic stand-in for the pretrained weights (PyTorch layout, f32)."""
    params = []
    for cin, cout in CONV_CFG:
        key, kw, kb = jax.random.split(key, 3)
        scale = (2.0 / (9.0 * cin)) ** 0.5
        w = jax.random.normal(kw, (cout, cin, 3, 3), jnp.float32) * scale
        b = jax.random.normal(kb, (cout,), jnp.float32) * 0.01
        params.append((w, b))
    return params


def pack_conv_params(w, b):
    cout, cin = w.shape[0], w.shape[1]
    wk = jnp.transpose(w, (2, 3, 1, 0)).reshape(9 * cin, cout).astype(jnp.bfloat16)
    return wk, b.reshape(1, cout).astype(jnp.float32)


def pack_first_conv_params(w, b):
    cout, cin = w.shape[0], w.shape[1]
    wk = jnp.transpose(w, (2, 3, 1, 0)).reshape(9 * cin, cout)
    wk = jnp.pad(wk, ((0, _FIRST_KDIM - 9 * cin), (0, 0))).astype(jnp.bfloat16)
    return wk, b.reshape(1, cout).astype(jnp.float32)


def pack_vgg19_params(raw_params):
    packed = [pack_first_conv_params(*raw_params[0])]
    packed += [pack_conv_params(w, b) for (w, b) in raw_params[1:]]
    return packed


# -------------------------------- forward ------------------------------------

def vgg19_forward(x_nchw, packed_params):
    """Returns [h_relu1, h_relu2, h_relu3, h_relu4, h_relu5] in NCHW (f32)."""
    n, _, h, w = x_nchw.shape
    x_nhwc = jnp.transpose(x_nchw, (0, 2, 3, 1))
    act = prep_first_conv_input(x_nhwc)             # persistent padded layout
    cur_h, cur_w = h, w
    outs = []
    pi, i = 0, 0
    while i < len(PLAN):
        op = PLAN[i]
        if op == "conv":
            fuse_pool = (i + 1 < len(PLAN) and PLAN[i + 1] == "pool")
            wk, bk = packed_params[pi]
            cin = CONV_CFG[pi][0]
            act = conv3x3(act, wk, bk, h=cur_h, w=cur_w, cin=cin,
                          pool=fuse_pool, first=(pi == 0))
            if fuse_pool:
                cur_h //= 2
                cur_w //= 2
            pi += 1
            i += 2 if fuse_pool else 1
        elif op == "pool":          # never reached: every pool is fused above
            i += 1
        else:                       # "out"
            o = from_padded_layout(act, cur_h, cur_w)
            outs.append(jnp.transpose(o, (0, 3, 1, 2)).astype(jnp.float32))
            i += 1
    return outs


# ----------------------- pure-JAX reference (checks) -------------------------

def _conv_ref(x_nhwc, w, b):
    xb = x_nhwc.astype(jnp.bfloat16)
    wb = jnp.transpose(w, (2, 3, 1, 0)).astype(jnp.bfloat16)
    y = lax.conv_general_dilated(
        xb, wb, window_strides=(1, 1), padding="SAME",
        dimension_numbers=("NHWC", "HWIO", "NHWC"),
        preferred_element_type=jnp.float32)
    y = jnp.maximum(y + b[None, None, None, :].astype(jnp.float32), 0.0)
    return y.astype(jnp.bfloat16)


def _pool_ref(x_nhwc):
    return lax.reduce_window(x_nhwc, jnp.array(-jnp.inf, dtype=x_nhwc.dtype),
                             lax.max, (1, 2, 2, 1), (1, 2, 2, 1), "VALID")


def vgg19_forward_ref(x_nchw, raw_params):
    x = jnp.transpose(x_nchw, (0, 2, 3, 1))
    outs = []
    pi = 0
    for op in PLAN:
        if op == "conv":
            w, b = raw_params[pi]
            pi += 1
            x = _conv_ref(x, w, b)
        elif op == "pool":
            x = _pool_ref(x)
        else:
            outs.append(jnp.transpose(x, (0, 3, 1, 2)).astype(jnp.float32))
    return outs


def _assert_close(got, want, tol=3e-2):
    got = got.astype(jnp.float32)
    want = want.astype(jnp.float32)
    err = float(jnp.max(jnp.abs(got - want)))
    scale = float(jnp.max(jnp.abs(want))) + 1e-6
    assert err <= tol * scale, (err, scale)


# ----------------------------------- main ------------------------------------

if __name__ == "__main__":
    key = jax.random.PRNGKey(0)
    kx, kp, kc = jax.random.split(key, 3)
    x = jax.random.normal(kx, (2, 3, 32, 32), jnp.float32)      # NCHW, like PyTorch
    raw_params = init_vgg19_params(kp)
    packed_params = pack_vgg19_params(raw_params)

    # Unit checks: single conv layer exercising multi-chunk / multi-cout-tile
    # paths, with and without the fused pool, against a pure-JAX reference.
    kk1, kk2, kk3 = jax.random.split(kc, 3)
    xt = jax.random.normal(kk1, (1, 16, 16, 64), jnp.float32)
    wt = jax.random.normal(kk2, (256, 64, 3, 3), jnp.float32) * (2.0 / (9 * 64)) ** 0.5
    bt = jax.random.normal(kk3, (256,), jnp.float32) * 0.01
    wtk, btk = pack_conv_params(wt, bt)
    xt_pad = to_padded_layout(xt)

    got = conv3x3(xt_pad, wtk, btk, h=16, w=16, cin=64, pool=False,
                  cout_tile=128, chunk_rows=4)
    got = jax.block_until_ready(from_padded_layout(got, 16, 16))
    _assert_close(got, _conv_ref(xt, wt, bt))

    got = conv3x3(xt_pad, wtk, btk, h=16, w=16, cin=64, pool=True,
                  cout_tile=128, chunk_rows=4)
    got = jax.block_until_ready(from_padded_layout(got, 8, 8))
    _assert_close(got, _pool_ref(_conv_ref(xt, wt, bt)))

    # Full VGG19 feature extractor.
    fwd = jax.jit(vgg19_forward)
    outs = jax.block_until_ready(fwd(x, packed_params))

    expected = [(2, 64, 32, 32), (2, 128, 16, 16), (2, 256, 8, 8),
                (2, 512, 4, 4), (2, 512, 2, 2)]
    assert [tuple(o.shape) for o in outs] == expected, [tuple(o.shape) for o in outs]
    assert all(bool(jnp.all(jnp.isfinite(o))) for o in outs)

    refs = vgg19_forward_ref(x, raw_params)
    for o, r in zip(outs, refs):
        _assert_close(o, r)

    print("KERNEL_OK")
</pallas_src>

<mosaic_0001>
module attributes {stable_mosaic.version = 11 : i64} {
  func.func @kernel(%arg0: i32, %arg1: i32, %arg2: memref<1x360x64xbf16, #tpu.memory_space<vmem>>, %arg3: memref<576x128xbf16, #tpu.memory_space<vmem>>, %arg4: memref<1x128xf32, #tpu.memory_space<vmem>>, %arg5: memref<1x360x128xbf16, #tpu.memory_space<vmem>>, %arg6: memref<72x576xbf16, #tpu.memory_space<vmem>>) attributes {dimension_semantics = [#tpu.dimension_semantics<parallel>, #tpu.dimension_semantics<parallel>], iteration_bounds = array<i64: 1, 2>, scalar_prefetch = 0 : i64, scratch_operands = 1 : i64, tpu.core_type = #tpu.core_type<tc>, window_params = [{transform_indices = @transform_0, window_bounds = array<i64: 1, 360, 64>}, {transform_indices = @transform_1, window_bounds = array<i64: 576, 128>}, {transform_indices = @transform_2, window_bounds = array<i64: 1, 128>}, {transform_indices = @transform_3, window_bounds = array<i64: 1, 360, 128>}]} {
    %cst = arith.constant 0.000000e+00 : bf16
    %0 = vector.broadcast %cst : bf16 to vector<36x128xbf16>
    %c0 = arith.constant 0 : index
    %c0_0 = arith.constant 0 : index
    %c0_1 = arith.constant 0 : index
    %1 = vector.load %arg5[%c0, %c0_0, %c0_1] : memref<1x360x128xbf16, #tpu.memory_space<vmem>>, vector<1x36x128xbf16>
    %2 = vector.shape_cast %1 : vector<1x36x128xbf16> to vector<36x128xbf16>
    %3 = vector.shape_cast %0 : vector<36x128xbf16> to vector<1x36x128xbf16>
    tpu.vector_store %arg5[%c0, %c0_0, %c0_1], %3 {strides = array<i32>} : memref<1x360x128xbf16, #tpu.memory_space<vmem>>, vector<1x36x128xbf16>,
    %c0_2 = arith.constant 0 : index
    %c324 = arith.constant 324 : index
    %c0_3 = arith.constant 0 : index
    %4 = vector.load %arg5[%c0_2, %c324, %c0_3] : memref<1x360x128xbf16, #tpu.memory_space<vmem>>, vector<1x36x128xbf16>
    %5 = vector.shape_cast %4 : vector<1x36x128xbf16> to vector<36x128xbf16>
    %6 = vector.shape_cast %0 : vector<36x128xbf16> to vector<1x36x128xbf16>
    tpu.vector_store %arg5[%c0_2, %c324, %c0_3], %6 {strides = array<i32>} : memref<1x360x128xbf16, #tpu.memory_space<vmem>>, vector<1x36x128xbf16>,
    %7 = tpu.iota {dimensions = array<i32: 0>} : vector<72x1xi32>
    %c18_i32 = arith.constant 18 : i32
    %c0_i32 = arith.constant 0 : i32
    %8 = arith.cmpi eq, %c18_i32, %c0_i32 : i32
    %c1_i32 = arith.constant 1 : i32
    %9 = arith.select %8, %c1_i32, %c18_i32 : i32
    %10 = vector.broadcast %9 : i32 to vector<72x1xi32>
    %11 = arith.remsi %7, %10 : vector<72x1xi32>
    %c0_i32_4 = arith.constant 0 : i32
    %12 = vector.broadcast %c0_i32_4 : i32 to vector<72x1xi32>
    %13 = arith.cmpi ne, %11, %12 : vector<72x1xi32>
    %c0_i32_5 = arith.constant 0 : i32
    %14 = vector.broadcast %c0_i32_5 : i32 to vector<72x1xi32>
    %15 = arith.cmpi slt, %11, %14 : vector<72x1xi32>
    %c0_i32_6 = arith.constant 0 : i32
    %16 = arith.cmpi slt, %9, %c0_i32_6 : i32
    %17 = vector.broadcast %16 : i1 to vector<72x1xi1>
    %18 = vector.broadcast %17 : vector<72x1xi1> to vector<72x1xi1>
    %19 = arith.xori %15, %18 : vector<72x1xi1>
    %20 = arith.andi %19, %13 : vector<72x1xi1>
    %21 = vector.broadcast %9 : i32 to vector<72x1xi32>
    %22 = arith.addi %11, %21 : vector<72x1xi32>
    %23 = arith.select %20, %22, %11 : vector<72x1xi1>, vector<72x1xi32>
    %c0_i32_7 = arith.constant 0 : i32
    %24 = vector.broadcast %c0_i32_7 : i32 to vector<72x1xi32>
    %25 = arith.cmpi ne, %23, %24 : vector<72x1xi32>
    %c17_i32 = arith.constant 17 : i32
    %26 = vector.broadcast %c17_i32 : i32 to vector<72x1xi32>
    %27 = arith.cmpi ne, %23, %26 : vector<72x1xi32>
    %28 = arith.andi %25, %27 : vector<72x1xi1>
    %c0_8 = arith.constant 0 : index
    %c17 = arith.constant 17 : index
    %c0_9 = arith.constant 0 : index
    %29 = vector.load %arg2[%c0_8, %c17, %c0_9] : memref<1x360x64xbf16, #tpu.memory_space<vmem>>, vector<1x72x64xbf16>
    %30 = vector.shape_cast %29 : vector<1x72x64xbf16> to vector<72x64xbf16>
    %c0_10 = arith.constant 0 : index
    %c0_11 = arith.constant 0 : index
    %31 = vector.load %arg6[%c0_10, %c0_11] : memref<72x576xbf16, #tpu.memory_space<vmem>>, vector<72x64xbf16>
    tpu.vector_store %arg6[%c0_10, %c0_11], %30 {strides = array<i32>} : memref<72x576xbf16, #tpu.memory_space<vmem>>, vector<72x64xbf16>,
    %c0_12 = arith.constant 0 : index
    %c18 = arith.constant 18 : index
    %c0_13 = arith.constant 0 : index
    %32 = vector.load %arg2[%c0_12, %c18, %c0_13] : memref<1x360x64xbf16, #tpu.memory_space<vmem>>, vector<1x72x64xbf16>
    %33 = vector.shape_cast %32 : vector<1x72x64xbf16> to vector<72x64xbf16>
    %c0_14 = arith.constant 0 : index
    %c64 = arith.constant 64 : index
    %34 = vector.load %arg6[%c0_14, %c64] : memref<72x576xbf16, #tpu.memory_space<vmem>>, vector<72x64xbf16>
    tpu.vector_store %arg6[%c0_14, %c64], %33 {strides = array<i32>} : memref<72x576xbf16, #tpu.memory_space<vmem>>, vector<72x64xbf16>,
    %c0_15 = arith.constant 0 : index
    %c19 = arith.constant 19 : index
    %c0_16 = arith.constant 0 : index
    %35 = vector.load %arg2[%c0_15, %c19, %c0_16] : memref<1x360x64xbf16, #tpu.memory_space<vmem>>, vector<1x72x64xbf16>
    %36 = vector.shape_cast %35 : vector<1x72x64xbf16> to vector<72x64xbf16>
    %c0_17 = arith.constant 0 : index
    %c128 = arith.constant 128 : index
    %37 = vector.load %arg6[%c0_17, %c128] : memref<72x576xbf16, #tpu.memory_space<vmem>>, vector<72x64xbf16>
    tpu.vector_store %arg6[%c0_17, %c128], %36 {strides = array<i32>} : memref<72x576xbf16, #tpu.memory_space<vmem>>, vector<72x64xbf16>,
    %c0_18 = arith.constant 0 : index
    %c35 = arith.constant 35 : index
    %c0_19 = arith.constant 0 : index
    %38 = vector.load %arg2[%c0_18, %c35, %c0_19] : memref<1x360x64xbf16, #tpu.memory_space<vmem>>, vector<1x72x64xbf16>
    %39 = vector.shape_cast %38 : vector<1x72x64xbf16> to vector<72x64xbf16>
    %c0_20 = arith.constant 0 : index
    %c192 = arith.constant 192 : index
    %40 = vector.load %arg6[%c0_20, %c192] : memref<72x576xbf16, #tpu.memory_space<vmem>>, vector<72x64xbf16>
    tpu.vector_store %arg6[%c0_20, %c192], %39 {strides = array<i32>} : memref<72x576xbf16, #tpu.memory_space<vmem>>, vector<72x64xbf16>,
    %c0_21 = arith.constant 0 : index
    %c36 = arith.constant 36 : index
    %c0_22 = arith.constant 0 : index
    %41 = vector.load %arg2[%c0_21, %c36, %c0_22] : memref<1x360x64xbf16, #tpu.memory_space<vmem>>, vector<1x72x64xbf16>
    %42 = vector.shape_cast %41 : vector<1x72x64xbf16> to vector<72x64xbf16>
    %c0_23 = arith.constant 0 : index
    %c256 = arith.constant 256 : index
    %43 = vector.load %arg6[%c0_23, %c256] : memref<72x576xbf16, #tpu.memory_space<vmem>>, vector<72x64xbf16>
    tpu.vector_store %arg6[%c0_23, %c256], %42 {strides = array<i32>} : memref<72x576xbf16, #tpu.memory_space<vmem>>, vector<72x64xbf16>,
    %c0_24 = arith.constant 0 : index
    %c37 = arith.constant 37 : index
    %c0_25 = arith.constant 0 : index
    %44 = vector.load %arg2[%c0_24, %c37, %c0_25] : memref<1x360x64xbf16, #tpu.memory_space<vmem>>, vector<1x72x64xbf16>
    %45 = vector.shape_cast %44 : vector<1x72x64xbf16> to vector<72x64xbf16>
    %c0_26 = arith.constant 0 : index
    %c320 = arith.constant 320 : index
    %46 = vector.load %arg6[%c0_26, %c320] : memref<72x576xbf16, #tpu.memory_space<vmem>>, vector<72x64xbf16>
    tpu.vector_store %arg6[%c0_26, %c320], %45 {strides = array<i32>} : memref<72x576xbf16, #tpu.memory_space<vmem>>, vector<72x64xbf16>,
    %c0_27 = arith.constant 0 : index
    %c53 = arith.constant 53 : index
    %c0_28 = arith.constant 0 : index
    %47 = vector.load %arg2[%c0_27, %c53, %c0_28] : memref<1x360x64xbf16, #tpu.memory_space<vmem>>, vector<1x72x64xbf16>
    %48 = vector.shape_cast %47 : vector<1x72x64xbf16> to vector<72x64xbf16>
    %c0_29 = arith.constant 0 : index
    %c384 = arith.constant 384 : index
    %49 = vector.load %arg6[%c0_29, %c384] : memref<72x576xbf16, #tpu.memory_space<vmem>>, vector<72x64xbf16>
    tpu.vector_store %arg6[%c0_29, %c384], %48 {strides = array<i32>} : memref<72x576xbf16, #tpu.memory_space<vmem>>, vector<72x64xbf16>,
    %c0_30 = arith.constant 0 : index
    %c54 = arith.constant 54 : index
    %c0_31 = arith.constant 0 : index
    %50 = vector.load %arg2[%c0_30, %c54, %c0_31] : memref<1x360x64xbf16, #tpu.memory_space<vmem>>, vector<1x72x64xbf16>
    %51 = vector.shape_cast %50 : vector<1x72x64xbf16> to vector<72x64xbf16>
    %c0_32 = arith.constant 0 : index
    %c448 = arith.constant 448 : index
    %52 = vector.load %arg6[%c0_32, %c448] : memref<72x576xbf16, #tpu.memory_space<vmem>>, vector<72x64xbf16>
    tpu.vector_store %arg6[%c0_32, %c448], %51 {strides = array<i32>} : memref<72x576xbf16, #tpu.memory_space<vmem>>, vector<72x64xbf16>,
    %c0_33 = arith.constant 0 : index
    %c55 = arith.constant 55 : index
    %c0_34 = arith.constant 0 : index
    %53 = vector.load %arg2[%c0_33, %c55, %c0_34] : memref<1x360x64xbf16, #tpu.memory_space<vmem>>, vector<1x72x64xbf16>
    %54 = vector.shape_cast %53 : vector<1x72x64xbf16> to vector<72x64xbf16>
    %c0_35 = arith.constant 0 : index
    %c512 = arith.constant 512 : index
    %55 = vector.load %arg6[%c0_35, %c512] : memref<72x576xbf16, #tpu.memory_space<vmem>>, vector<72x64xbf16>
    tpu.vector_store %arg6[%c0_35, %c512], %54 {strides = array<i32>} : memref<72x576xbf16, #tpu.memory_space<vmem>>, vector<72x64xbf16>,
    %c0_36 = arith.constant 0 : index
    %c0_37 = arith.constant 0 : index
    %56 = vector.load %arg6[%c0_36, %c0_37] : memref<72x576xbf16, #tpu.memory_space<vmem>>, vector<72x576xbf16>
    %c0_38 = arith.constant 0 : index
    %c0_39 = arith.constant 0 : index
    %57 = vector.load %arg3[%c0_38, %c0_39] : memref<576x128xbf16, #tpu.memory_space<vmem>>, vector<576x128xbf16>
    %cst_40 = arith.constant dense<0.000000e+00> : vector<72x128xf32>
    %58 = tpu.matmul %56, %57, %cst_40 {dimension_numbers = #tpu.dot_dimension_numbers<[1], [0], [0], [1], [0, 0, 1, 1], [], []>} : vector<72x576xbf16>, vector<576x128xbf16>, vector<72x128xf32> -> vector<72x128xf32>
    %c0_41 = arith.constant 0 : index
    %c0_42 = arith.constant 0 : index
    %59 = vector.load %arg4[%c0_41, %c0_42] : memref<1x128xf32, #tpu.memory_space<vmem>>, vector<1x128xf32>
    %60 = vector.broadcast %59 : vector<1x128xf32> to vector<72x128xf32>
    %61 = arith.addf %58, %60 : vector<72x128xf32>
    %cst_43 = arith.constant 0.000000e+00 : f32
    %62 = vector.broadcast %cst_43 : f32 to vector<72x128xf32>
    %63 = arith.maximumf %61, %62 : vector<72x128xf32>
    %cst_44 = arith.constant 0.000000e+00 : f32
    %64 = vector.shape_cast %28 : vector<72x1xi1> to vector<72x1xi1>
    %65 = vector.broadcast %64 : vector<72x1xi1> to vector<72x128xi1>
    %66 = vector.broadcast %cst_44 : f32 to vector<72x128xf32>
    %67 = arith.select %65, %63, %66 : vector<72x128xi1>, vector<72x128xf32>
    %68 = arith.truncf %67 : vector<72x128xf32> to vector<72x128xbf16>
    %c0_45 = arith.constant 0 : index
    %c36_46 = arith.constant 36 : index
    %c0_47 = arith.constant 0 : index
    %69 = vector.load %arg5[%c0_45, %c36_46, %c0_47] : memref<1x360x128xbf16, #tpu.memory_space<vmem>>, vector<1x72x128xbf16>
    %70 = vector.shape_cast %69 : vector<1x72x128xbf16> to vector<72x128xbf16>
    %71 = vector.shape_cast %68 : vector<72x128xbf16> to vector<1x72x128xbf16>
    tpu.vector_store %arg5[%c0_45, %c36_46, %c0_47], %71 {strides = array<i32>} : memref<1x360x128xbf16, #tpu.memory_space<vmem>>, vector<1x72x128xbf16>,
    %c0_48 = arith.constant 0 : index
    %c89 = arith.constant 89 : index
    %c0_49 = arith.constant 0 : index
    %72 = vector.load %arg2[%c0_48, %c89, %c0_49] : memref<1x360x64xbf16, #tpu.memory_space<vmem>>, vector<1x72x64xbf16>
    %73 = vector.shape_cast %72 : vector<1x72x64xbf16> to vector<72x64xbf16>
    %c0_50 = arith.constant 0 : index
    %c0_51 = arith.constant 0 : index
    %74 = vector.load %arg6[%c0_50, %c0_51] : memref<72x576xbf16, #tpu.memory_space<vmem>>, vector<72x64xbf16>
    tpu.vector_store %arg6[%c0_50, %c0_51], %73 {strides = array<i32>} : memref<72x576xbf16, #tpu.memory_space<vmem>>, vector<72x64xbf16>,
    %c0_52 = arith.constant 0 : index
    %c90 = arith.constant 90 : index
    %c0_53 = arith.constant 0 : index
    %75 = vector.load %arg2[%c0_52, %c90, %c0_53] : memref<1x360x64xbf16, #tpu.memory_space<vmem>>, vector<1x72x64xbf16>
    %76 = vector.shape_cast %75 : vector<1x72x64xbf16> to vector<72x64xbf16>
    %c0_54 = arith.constant 0 : index
    %c64_55 = arith.constant 64 : index
    %77 = vector.load %arg6[%c0_54, %c64_55] : memref<72x576xbf16, #tpu.memory_space<vmem>>, vector<72x64xbf16>
    tpu.vector_store %arg6[%c0_54, %c64_55], %76 {strides = array<i32>} : memref<72x576xbf16, #tpu.memory_space<vmem>>, vector<72x64xbf16>,
    %c0_56 = arith.constant 0 : index
    %c91 = arith.constant 91 : index
    %c0_57 = arith.constant 0 : index
    %78 = vector.load %arg2[%c0_56, %c91, %c0_57] : memref<1x360x64xbf16, #tpu.memory_space<vmem>>, vector<1x72x64xbf16>
    %79 = vector.shape_cast %78 : vector<1x72x64xbf16> to vector<72x64xbf16>
    %c0_58 = arith.constant 0 : index
    %c128_59 = arith.constant 128 : index
    %80 = vector.load %arg6[%c0_58, %c128_59] : memref<72x576xbf16, #tpu.memory_space<vmem>>, vector<72x64xbf16>
    tpu.vector_store %arg6[%c0_58, %c128_59], %79 {strides = array<i32>} : memref<72x576xbf16, #tpu.memory_space<vmem>>, vector<72x64xbf16>,
    %c0_60 = arith.constant 0 : index
    %c107 = arith.constant 107 : index
    %c0_61 = arith.constant 0 : index
    %81 = vector.load %arg2[%c0_60, %c107, %c0_61] : memref<1x360x64xbf16, #tpu.memory_space<vmem>>, vector<1x72x64xbf16>
    %82 = vector.shape_cast %81 : vector<1x72x64xbf16> to vector<72x64xbf16>
    %c0_62 = arith.constant 0 : index
    %c192_63 = arith.constant 192 : index
    %83 = vector.load %arg6[%c0_62, %c192_63] : memref<72x576xbf16, #tpu.memory_space<vmem>>, vector<72x64xbf16>
    tpu.vector_store %arg6[%c0_62, %c192_63], %82 {strides = array<i32>} : memref<72x576xbf16, #tpu.memory_space<vmem>>, vector<72x64xbf16>,
    %c0_64 = arith.constant 0 : index
    %c108 = arith.constant 108 : index
    %c0_65 = arith.constant 0 : index
    %84 = vector.load %arg2[%c0_64, %c108, %c0_65] : memref<1x360x64xbf16, #tpu.memory_space<vmem>>, vector<1x72x64xbf16>
    %85 = vector.shape_cast %84 : vector<1x72x64xbf16> to vector<72x64xbf16>
    %c0_66 = arith.constant 0 : index
    %c256_67 = arith.constant 256 : index
    %86 = vector.load %arg6[%c0_66, %c256_67] : memref<72x576xbf16, #tpu.memory_space<vmem>>, vector<72x64xbf16>
    tpu.vector_store %arg6[%c0_66, %c256_67], %85 {strides = array<i32>} : memref<72x576xbf16, #tpu.memory_space<vmem>>, vector<72x64xbf16>,
    %c0_68 = arith.constant 0 : index
    %c109 = arith.constant 109 : index
    %c0_69 = arith.constant 0 : index
    %87 = vector.load %arg2[%c0_68, %c109, %c0_69] : memref<1x360x64xbf16, #tpu.memory_space<vmem>>, vector<1x72x64xbf16>
    %88 = vector.shape_cast %87 : vector<1x72x64xbf16> to vector<72x64xbf16>
    %c0_70 = arith.constant 0 : index
    %c320_71 = arith.constant 320 : index
    %89 = vector.load %arg6[%c0_70, %c320_71] : memref<72x576xbf16, #tpu.memory_space<vmem>>, vector<72x64xbf16>
    tpu.vector_store %arg6[%c0_70, %c320_71], %88 {strides = array<i32>} : memref<72x576xbf16, #tpu.memory_space<vmem>>, vector<72x64xbf16>,
    %c0_72 = arith.constant 0 : index
    %c125 = arith.constant 125 : index
    %c0_73 = arith.constant 0 : index
    %90 = vector.load %arg2[%c0_72, %c125, %c0_73] : memref<1x360x64xbf16, #tpu.memory_space<vmem>>, vector<1x72x64xbf16>
    %91 = vector.shape_cast %90 : vector<1x72x64xbf16> to vector<72x64xbf16>
    %c0_74 = arith.constant 0 : index
    %c384_75 = arith.constant 384 : index
    %92 = vector.load %arg6[%c0_74, %c384_75] : memref<72x576xbf16, #tpu.memory_space<vmem>>, vector<72x64xbf16>
    tpu.vector_store %arg6[%c0_74, %c384_75], %91 {strides = array<i32>} : memref<72x576xbf16, #tpu.memory_space<vmem>>, vector<72x64xbf16>,
    %c0_76 = arith.constant 0 : index
    %c126 = arith.constant 126 : index
    %c0_77 = arith.constant 0 : index
    %93 = vector.load %arg2[%c0_76, %c126, %c0_77] : memref<1x360x64xbf16, #tpu.memory_space<vmem>>, vector<1x72x64xbf16>
    %94 = vector.shape_cast %93 : vector<1x72x64xbf16> to vector<72x64xbf16>
    %c0_78 = arith.constant 0 : index
    %c448_79 = arith.constant 448 : index
    %95 = vector.load %arg6[%c0_78, %c448_79] : memref<72x576xbf16, #tpu.memory_space<vmem>>, vector<72x64xbf16>
    tpu.vector_store %arg6[%c0_78, %c448_79], %94 {strides = array<i32>} : memref<72x576xbf16, #tpu.memory_space<vmem>>, vector<72x64xbf16>,
    %c0_80 = arith.constant 0 : index
    %c127 = arith.constant 127 : index
    %c0_81 = arith.constant 0 : index
    %96 = vector.load %arg2[%c0_80, %c127, %c0_81] : memref<1x360x64xbf16, #tpu.memory_space<vmem>>, vector<1x72x64xbf16>
    %97 = vector.shape_cast %96 : vector<1x72x64xbf16> to vector<72x64xbf16>
    %c0_82 = arith.constant 0 : index
    %c512_83 = arith.constant 512 : index
    %98 = vector.load %arg6[%c0_82, %c512_83] : memref<72x576xbf16, #tpu.memory_space<vmem>>, vector<72x64xbf16>
    tpu.vector_store %arg6[%c0_82, %c512_83], %97 {strides = array<i32>} : memref<72x576xbf16, #tpu.memory_space<vmem>>, vector<72x64xbf16>,
    %c0_84 = arith.constant 0 : index
    %c0_85 = arith.constant 0 : index
    %99 = vector.load %arg6[%c0_84, %c0_85] : memref<72x576xbf16, #tpu.memory_space<vmem>>, vector<72x576xbf16>
    %c0_86 = arith.constant 0 : index
    %c0_87 = arith.constant 0 : index
    %100 = vector.load %arg3[%c0_86, %c0_87] : memref<576x128xbf16, #tpu.memory_space<vmem>>, vector<576x128xbf16>
    %cst_88 = arith.constant dense<0.000000e+00> : vector<72x128xf32>
    %101 = tpu.matmul %99, %100, %cst_88 {dimension_numbers = #tpu.dot_dimension_numbers<[1], [0], [0], [1], [0, 0, 1, 1], [], []>} : vector<72x576xbf16>, vector<576x128xbf16>, vector<72x128xf32> -> vector<72x128xf32>
    %c0_89 = arith.constant 0 : index
    %c0_90 = arith.constant 0 : index
    %102 = vector.load %arg4[%c0_89, %c0_90] : memref<1x128xf32, #tpu.memory_space<vmem>>, vector<1x128xf32>
    %103 = vector.broadcast %102 : vector<1x128xf32> to vector<72x128xf32>
    %104 = arith.addf %101, %103 : vector<72x128xf32>
    %cst_91 = arith.constant 0.000000e+00 : f32
    %105 = vector.broadcast %cst_91 : f32 to vector<72x128xf32>
    %106 = arith.maximumf %104, %105 : vector<72x128xf32>
    %cst_92 = arith.constant 0.000000e+00 : f32
    %107 = vector.shape_cast %28 : vector<72x1xi1> to vector<72x1xi1>
    %108 = vector.broadcast %107 : vector<72x1xi1> to vector<72x128xi1>
    %109 = vector.broadcast %cst_92 : f32 to vector<72x128xf32>
    %110 = arith.select %108, %106, %109 : vector<72x128xi1>, vector<72x128xf32>
    %111 = arith.truncf %110 : vector<72x128xf32> to vector<72x128xbf16>
    %c0_93 = arith.constant 0 : index
    %c108_94 = arith.constant 108 : index
    %c0_95 = arith.constant 0 : index
    %112 = vector.load %arg5[%c0_93, %c108_94, %c0_95] : memref<1x360x128xbf16, #tpu.memory_space<vmem>>, vector<1x72x128xbf16>
    %113 = vector.shape_cast %112 : vector<1x72x128xbf16> to vector<72x128xbf16>
    %114 = vector.shape_cast %111 : vector<72x128xbf16> to vector<1x72x128xbf16>
    tpu.vector_store %arg5[%c0_93, %c108_94, %c0_95], %114 {strides = array<i32>} : memref<1x360x128xbf16, #tpu.memory_space<vmem>>, vector<1x72x128xbf16>,
    %c0_96 = arith.constant 0 : index
    %c161 = arith.constant 161 : index
    %c0_97 = arith.constant 0 : index
    %115 = vector.load %arg2[%c0_96, %c161, %c0_97] : memref<1x360x64xbf16, #tpu.memory_space<vmem>>, vector<1x72x64xbf16>
    %116 = vector.shape_cast %115 : vector<1x72x64xbf16> to vector<72x64xbf16>
    %c0_98 = arith.constant 0 : index
    %c0_99 = arith.constant 0 : index
    %117 = vector.load %arg6[%c0_98, %c0_99] : memref<72x576xbf16, #tpu.memory_space<vmem>>, vector<72x64xbf16>
    tpu.vector_store %arg6[%c0_98, %c0_99], %116 {strides = array<i32>} : memref<72x576xbf16, #tpu.memory_space<vmem>>, vector<72x64xbf16>,
    %c0_100 = arith.constant 0 : index
    %c162 = arith.constant 162 : index
    %c0_101 = arith.constant 0 : index
    %118 = vector.load %arg2[%c0_100, %c162, %c0_101] : memref<1x360x64xbf16, #tpu.memory_space<vmem>>, vector<1x72x64xbf16>
    %119 = vector.shape_cast %118 : vector<1x72x64xbf16> to vector<72x64xbf16>
    %c0_102 = arith.constant 0 : index
    %c64_103 = arith.constant 64 : index
    %120 = vector.load %arg6[%c0_102, %c64_103] : memref<72x576xbf16, #tpu.memory_space<vmem>>, vector<72x64xbf16>
    tpu.vector_store %arg6[%c0_102, %c64_103], %119 {strides = array<i32>} : memref<72x576xbf16, #tpu.memory_space<vmem>>, vector<72x64xbf16>,
    %c0_104 = arith.constant 0 : index
    %c163 = arith.constant 163 : index
    %c0_105 = arith.constant 0 : index
    %121 = vector.load %arg2[%c0_104, %c163, %c0_105] : memref<1x360x64xbf16, #tpu.memory_space<vmem>>, vector<1x72x64xbf16>
    %122 = vector.shape_cast %121 : vector<1x72x64xbf16> to vector<72x64xbf16>
    %c0_106 = arith.constant 0 : index
    %c128_107 = arith.constant 128 : index
    %123 = vector.load %arg6[%c0_106, %c128_107] : memref<72x576xbf16, #tpu.memory_space<vmem>>, vector<72x64xbf16>
    tpu.vector_store %arg6[%c0_106, %c128_107], %122 {strides = array<i32>} : memref<72x576xbf16, #tpu.memory_space<vmem>>, vector<72x64xbf16>,
    %c0_108 = arith.constant 0 : index
    %c179 = arith.constant 179 : index
    %c0_109 = arith.constant 0 : index
    %124 = vector.load %arg2[%c0_108, %c179, %c0_109] : memref<1x360x64xbf16, #tpu.memory_space<vmem>>, vector<1x72x64xbf16>
    %125 = vector.shape_cast %124 : vector<1x72x64xbf16> to vector<72x64xbf16>
    %c0_110 = arith.constant 0 : index
    %c192_111 = arith.constant 192 : index
    %126 = vector.load %arg6[%c0_110, %c192_111] : memref<72x576xbf16, #tpu.memory_space<vmem>>, vector<72x64xbf16>
    tpu.vector_store %arg6[%c0_110, %c192_111], %125 {strides = array<i32>} : memref<72x576xbf16, #tpu.memory_space<vmem>>, vector<72x64xbf16>,
    %c0_112 = arith.constant 0 : index
    %c180 = arith.constant 180 : index
    %c0_113 = arith.constant 0 : index
    %127 = vector.load %arg2[%c0_112, %c180, %c0_113] : memref<1x360x64xbf16, #tpu.memory_space<vmem>>, vector<1x72x64xbf16>
    %128 = vector.shape_cast %127 : vector<1x72x64xbf16> to vector<72x64xbf16>
    %c0_114 = arith.constant 0 : index
    %c256_115 = arith.constant 256 : index
    %129 = vector.load %arg6[%c0_114, %c256_115] : memref<72x576xbf16, #tpu.memory_space<vmem>>, vector<72x64xbf16>
    tpu.vector_store %arg6[%c0_114, %c256_115], %128 {strides = array<i32>} : memref<72x576xbf16, #tpu.memory_space<vmem>>, vector<72x64xbf16>,
    %c0_116 = arith.constant 0 : index
    %c181 = arith.constant 181 : index
    %c0_117 = arith.constant 0 : index
    %130 = vector.load %arg2[%c0_116, %c181, %c0_117] : memref<1x360x64xbf16, #tpu.memory_space<vmem>>, vector<1x72x64xbf16>
    %131 = vector.shape_cast %130 : vector<1x72x64xbf16> to vector<72x64xbf16>
    %c0_118 = arith.constant 0 : index
    %c320_119 = arith.constant 320 : index
    %132 = vector.load %arg6[%c0_118, %c320_119] : memref<72x576xbf16, #tpu.memory_space<vmem>>, vector<72x64xbf16>
    tpu.vector_store %arg6[%c0_118, %c320_119], %131 {strides = array<i32>} : memref<72x576xbf16, #tpu.memory_space<vmem>>, vector<72x64xbf16>,
    %c0_120 = arith.constant 0 : index
    %c197 = arith.constant 197 : index
    %c0_121 = arith.constant 0 : index
    %133 = vector.load %arg2[%c0_120, %c197, %c0_121] : memref<1x360x64xbf16, #tpu.memory_space<vmem>>, vector<1x72x64xbf16>
    %134 = vector.shape_cast %133 : vector<1x72x64xbf16> to vector<72x64xbf16>
    %c0_122 = arith.constant 0 : index
    %c384_123 = arith.constant 384 : index
    %135 = vector.load %arg6[%c0_122, %c384_123] : memref<72x576xbf16, #tpu.memory_space<vmem>>, vector<72x64xbf16>
    tpu.vector_store %arg6[%c0_122, %c384_123], %134 {strides = array<i32>} : memref<72x576xbf16, #tpu.memory_space<vmem>>, vector<72x64xbf16>,
    %c0_124 = arith.constant 0 : index
    %c198 = arith.constant 198 : index
    %c0_125 = arith.constant 0 : index
    %136 = vector.load %arg2[%c0_124, %c198, %c0_125] : memref<1x360x64xbf16, #tpu.memory_space<vmem>>, vector<1x72x64xbf16>
    %137 = vector.shape_cast %136 : vector<1x72x64xbf16> to vector<72x64xbf16>
    %c0_126 = arith.constant 0 : index
    %c448_127 = arith.constant 448 : index
    %138 = vector.load %arg6[%c0_126, %c448_127] : memref<72x576xbf16, #tpu.memory_space<vmem>>, vector<72x64xbf16>
    tpu.vector_store %arg6[%c0_126, %c448_127], %137 {strides = array<i32>} : memref<72x576xbf16, #tpu.memory_space<vmem>>, vector<72x64xbf16>,
    %c0_128 = arith.constant 0 : index
    %c199 = arith.constant 199 : index
    %c0_129 = arith.constant 0 : index
    %139 = vector.load %arg2[%c0_128, %c199, %c0_129] : memref<1x360x64xbf16, #tpu.memory_space<vmem>>, vector<1x72x64xbf16>
    %140 = vector.shape_cast %139 : vector<1x72x64xbf16> to vector<72x64xbf16>
    %c0_130 = arith.constant 0 : index
    %c512_131 = arith.constant 512 : index
    %141 = vector.load %arg6[%c0_130, %c512_131] : memref<72x576xbf16, #tpu.memory_space<vmem>>, vector<72x64xbf16>
    tpu.vector_store %arg6[%c0_130, %c512_131], %140 {strides = array<i32>} : memref<72x576xbf16, #tpu.memory_space<vmem>>, vector<72x64xbf16>,
    %c0_132 = arith.constant 0 : index
    %c0_133 = arith.constant 0 : index
    %142 = vector.load %arg6[%c0_132, %c0_133] : memref<72x576xbf16, #tpu.memory_space<vmem>>, vector<72x576xbf16>
    %c0_134 = arith.constant 0 : index
    %c0_135 = arith.constant 0 : index
    %143 = vector.load %arg3[%c0_134, %c0_135] : memref<576x128xbf16, #tpu.memory_space<vmem>>, vector<576x128xbf16>
    %cst_136 = arith.constant dense<0.000000e+00> : vector<72x128xf32>
    %144 = tpu.matmul %142, %143, %cst_136 {dimension_numbers = #tpu.dot_dimension_numbers<[1], [0], [0], [1], [0, 0, 1, 1], [], []>} : vector<72x576xbf16>, vector<576x128xbf16>, vector<72x128xf32> -> vector<72x128xf32>
    %c0_137 = arith.constant 0 : index
    %c0_138 = arith.constant 0 : index
    %145 = vector.load %arg4[%c0_137, %c0_138] : memref<1x128xf32, #tpu.memory_space<vmem>>, vector<1x128xf32>
    %146 = vector.broadcast %145 : vector<1x128xf32> to vector<72x128xf32>
    %147 = arith.addf %144, %146 : vector<72x128xf32>
    %cst_139 = arith.constant 0.000000e+00 : f32
    %148 = vector.broadcast %cst_139 : f32 to vector<72x128xf32>
    %149 = arith.maximumf %147, %148 : vector<72x128xf32>
    %cst_140 = arith.constant 0.000000e+00 : f32
    %150 = vector.shape_cast %28 : vector<72x1xi1> to vector<72x1xi1>
    %151 = vector.broadcast %150 : vector<72x1xi1> to vector<72x128xi1>
    %152 = vector.broadcast %cst_140 : f32 to vector<72x128xf32>
    %153 = arith.select %151, %149, %152 : vector<72x128xi1>, vector<72x128xf32>
    %154 = arith.truncf %153 : vector<72x128xf32> to vector<72x128xbf16>
    %c0_141 = arith.constant 0 : index
    %c180_142 = arith.constant 180 : index
    %c0_143 = arith.constant 0 : index
    %155 = vector.load %arg5[%c0_141, %c180_142, %c0_143] : memref<1x360x128xbf16, #tpu.memory_space<vmem>>, vector<1x72x128xbf16>
    %156 = vector.shape_cast %155 : vector<1x72x128xbf16> to vector<72x128xbf16>
    %157 = vector.shape_cast %154 : vector<72x128xbf16> to vector<1x72x128xbf16>
    tpu.vector_store %arg5[%c0_141, %c180_142, %c0_143], %157 {strides = array<i32>} : memref<1x360x128xbf16, #tpu.memory_space<vmem>>, vector<1x72x128xbf16>,
    %c0_144 = arith.constant 0 : index
    %c233 = arith.constant 233 : index
    %c0_145 = arith.constant 0 : index
    %158 = vector.load %arg2[%c0_144, %c233, %c0_145] : memref<1x360x64xbf16, #tpu.memory_space<vmem>>, vector<1x72x64xbf16>
    %159 = vector.shape_cast %158 : vector<1x72x64xbf16> to vector<72x64xbf16>
    %c0_146 = arith.constant 0 : index
    %c0_147 = arith.constant 0 : index
    %160 = vector.load %arg6[%c0_146, %c0_147] : memref<72x576xbf16, #tpu.memory_space<vmem>>, vector<72x64xbf16>
    tpu.vector_store %arg6[%c0_146, %c0_147], %159 {strides = array<i32>} : memref<72x576xbf16, #tpu.memory_space<vmem>>, vector<72x64xbf16>,
    %c0_148 = arith.constant 0 : index
    %c234 = arith.constant 234 : index
    %c0_149 = arith.constant 0 : index
    %161 = vector.load %arg2[%c0_148, %c234, %c0_149] : memref<1x360x64xbf16, #tpu.memory_space<vmem>>, vector<1x72x64xbf16>
    %162 = vector.shape_cast %161 : vector<1x72x64xbf16> to vector<72x64xbf16>
    %c0_150 = arith.constant 0 : index
    %c64_151 = arith.constant 64 : index
    %163 = vector.load %arg6[%c0_150, %c64_151] : memref<72x576xbf16, #tpu.memory_space<vmem>>, vector<72x64xbf16>
    tpu.vector_store %arg6[%c0_150, %c64_151], %162 {strides = array<i32>} : memref<72x576xbf16, #tpu.memory_space<vmem>>, vector<72x64xbf16>,
    %c0_152 = arith.constant 0 : index
    %c235 = arith.constant 235 : index
    %c0_153 = arith.constant 0 : index
    %164 = vector.load %arg2[%c0_152, %c235, %c0_153] : memref<1x360x64xbf16, #tpu.memory_space<vmem>>, vector<1x72x64xbf16>
    %165 = vector.shape_cast %164 : vector<1x72x64xbf16> to vector<72x64xbf16>
    %c0_154 = arith.constant 0 : index
    %c128_155 = arith.constant 128 : index
    %166 = vector.load %arg6[%c0_154, %c128_155] : memref<72x576xbf16, #tpu.memory_space<vmem>>, vector<72x64xbf16>
    tpu.vector_store %arg6[%c0_154, %c128_155], %165 {strides = array<i32>} : memref<72x576xbf16, #tpu.memory_space<vmem>>, vector<72x64xbf16>,
    %c0_156 = arith.constant 0 : index
    %c251 = arith.constant 251 : index
    %c0_157 = arith.constant 0 : index
    %167 = vector.load %arg2[%c0_156, %c251, %c0_157] : memref<1x360x64xbf16, #tpu.memory_space<vmem>>, vector<1x72x64xbf16>
    %168 = vector.shape_cast %167 : vector<1x72x64xbf16> to vector<72x64xbf16>
    %c0_158 = arith.constant 0 : index
    %c192_159 = arith.constant 192 : index
    %169 = vector.load %arg6[%c0_158, %c192_159] : memref<72x576xbf16, #tpu.memory_space<vmem>>, vector<72x64xbf16>
    tpu.vector_store %arg6[%c0_158, %c192_159], %168 {strides = array<i32>} : memref<72x576xbf16, #tpu.memory_space<vmem>>, vector<72x64xbf16>,
    %c0_160 = arith.constant 0 : index
    %c252 = arith.constant 252 : index
    %c0_161 = arith.constant 0 : index
    %170 = vector.load %arg2[%c0_160, %c252, %c0_161] : memref<1x360x64xbf16, #tpu.memory_space<vmem>>, vector<1x72x64xbf16>
    %171 = vector.shape_cast %170 : vector<1x72x64xbf16> to vector<72x64xbf16>
    %c0_162 = arith.constant 0 : index
    %c256_163 = arith.constant 256 : index
    %172 = vector.load %arg6[%c0_162, %c256_163] : memref<72x576xbf16, #tpu.memory_space<vmem>>, vector<72x64xbf16>
    tpu.vector_store %arg6[%c0_162, %c256_163], %171 {strides = array<i32>} : memref<72x576xbf16, #tpu.memory_space<vmem>>, vector<72x64xbf16>,
    %c0_164 = arith.constant 0 : index
    %c253 = arith.constant 253 : index
    %c0_165 = arith.constant 0 : index
    %173 = vector.load %arg2[%c0_164, %c253, %c0_165] : memref<1x360x64xbf16, #tpu.memory_space<vmem>>, vector<1x72x64xbf16>
    %174 = vector.shape_cast %173 : vector<1x72x64xbf16> to vector<72x64xbf16>
    %c0_166 = arith.constant 0 : index
    %c320_167 = arith.constant 320 : index
    %175 = vector.load %arg6[%c0_166, %c320_167] : memref<72x576xbf16, #tpu.memory_space<vmem>>, vector<72x64xbf16>
    tpu.vector_store %arg6[%c0_166, %c320_167], %174 {strides = array<i32>} : memref<72x576xbf16, #tpu.memory_space<vmem>>, vector<72x64xbf16>,
    %c0_168 = arith.constant 0 : index
    %c269 = arith.constant 269 : index
    %c0_169 = arith.constant 0 : index
    %176 = vector.load %arg2[%c0_168, %c269, %c0_169] : memref<1x360x64xbf16, #tpu.memory_space<vmem>>, vector<1x72x64xbf16>
    %177 = vector.shape_cast %176 : vector<1x72x64xbf16> to vector<72x64xbf16>
    %c0_170 = arith.constant 0 : index
    %c384_171 = arith.constant 384 : index
    %178 = vector.load %arg6[%c0_170, %c384_171] : memref<72x576xbf16, #tpu.memory_space<vmem>>, vector<72x64xbf16>
    tpu.vector_store %arg6[%c0_170, %c384_171], %177 {strides = array<i32>} : memref<72x576xbf16, #tpu.memory_space<vmem>>, vector<72x64xbf16>,
    %c0_172 = arith.constant 0 : index
    %c270 = arith.constant 270 : index
    %c0_173 = arith.constant 0 : index
    %179 = vector.load %arg2[%c0_172, %c270, %c0_173] : memref<1x360x64xbf16, #tpu.memory_space<vmem>>, vector<1x72x64xbf16>
    %180 = vector.shape_cast %179 : vector<1x72x64xbf16> to vector<72x64xbf16>
    %c0_174 = arith.constant 0 : index
    %c448_175 = arith.constant 448 : index
    %181 = vector.load %arg6[%c0_174, %c448_175] : memref<72x576xbf16, #tpu.memory_space<vmem>>, vector<72x64xbf16>
    tpu.vector_store %arg6[%c0_174, %c448_175], %180 {strides = array<i32>} : memref<72x576xbf16, #tpu.memory_space<vmem>>, vector<72x64xbf16>,
    %c0_176 = arith.constant 0 : index
    %c271 = arith.constant 271 : index
    %c0_177 = arith.constant 0 : index
    %182 = vector.load %arg2[%c0_176, %c271, %c0_177] : memref<1x360x64xbf16, #tpu.memory_space<vmem>>, vector<1x72x64xbf16>
    %183 = vector.shape_cast %182 : vector<1x72x64xbf16> to vector<72x64xbf16>
    %c0_178 = arith.constant 0 : index
    %c512_179 = arith.constant 512 : index
    %184 = vector.load %arg6[%c0_178, %c512_179] : memref<72x576xbf16, #tpu.memory_space<vmem>>, vector<72x64xbf16>
    tpu.vector_store %arg6[%c0_178, %c512_179], %183 {strides = array<i32>} : memref<72x576xbf16, #tpu.memory_space<vmem>>, vector<72x64xbf16>,
    %c0_180 = arith.constant 0 : index
    %c0_181 = arith.constant 0 : index
    %185 = vector.load %arg6[%c0_180, %c0_181] : memref<72x576xbf16, #tpu.memory_space<vmem>>, vector<72x576xbf16>
    %c0_182 = arith.constant 0 : index
    %c0_183 = arith.constant 0 : index
    %186 = vector.load %arg3[%c0_182, %c0_183] : memref<576x128xbf16, #tpu.memory_space<vmem>>, vector<576x128xbf16>
    %cst_184 = arith.constant dense<0.000000e+00> : vector<72x128xf32>
    %187 = tpu.matmul %185, %186, %cst_184 {dimension_numbers = #tpu.dot_dimension_numbers<[1], [0], [0], [1], [0, 0, 1, 1], [], []>} : vector<72x576xbf16>, vector<576x128xbf16>, vector<72x128xf32> -> vector<72x128xf32>
    %c0_185 = arith.constant 0 : index
    %c0_186 = arith.constant 0 : index
    %188 = vector.load %arg4[%c0_185, %c0_186] : memref<1x128xf32, #tpu.memory_space<vmem>>, vector<1x128xf32>
    %189 = vector.broadcast %188 : vector<1x128xf32> to vector<72x128xf32>
    %190 = arith.addf %187, %189 : vector<72x128xf32>
    %cst_187 = arith.constant 0.000000e+00 : f32
    %191 = vector.broadcast %cst_187 : f32 to vector<72x128xf32>
    %192 = arith.maximumf %190, %191 : vector<72x128xf32>
    %cst_188 = arith.constant 0.000000e+00 : f32
    %193 = vector.shape_cast %28 : vector<72x1xi1> to vector<72x1xi1>
    %194 = vector.broadcast %193 : vector<72x1xi1> to vector<72x128xi1>
    %195 = vector.broadcast %cst_188 : f32 to vector<72x128xf32>
    %196 = arith.select %194, %192, %195 : vector<72x128xi1>, vector<72x128xf32>
    %197 = arith.truncf %196 : vector<72x128xf32> to vector<72x128xbf16>
    %c0_189 = arith.constant 0 : index
    %c252_190 = arith.constant 252 : index
    %c0_191 = arith.constant 0 : index
    %198 = vector.load %arg5[%c0_189, %c252_190, %c0_191] : memref<1x360x128xbf16, #tpu.memory_space<vmem>>, vector<1x72x128xbf16>
    %199 = vector.shape_cast %198 : vector<1x72x128xbf16> to vector<72x128xbf16>
    %200 = vector.shape_cast %197 : vector<72x128xbf16> to vector<1x72x128xbf16>
    tpu.vector_store %arg5[%c0_189, %c252_190, %c0_191], %200 {strides = array<i32>} : memref<1x360x128xbf16, #tpu.memory_space<vmem>>, vector<1x72x128xbf16>,
    return
  }
  func.func @transform_0(%arg0: i32, %arg1: i32) -> (i32, i32, i32) {
    %c0_i32 = arith.constant 0 : i32
    %c0_i32_0 = arith.constant 0 : i32
    %c0_i32_1 = arith.constant 0 : i32
    return %arg0, %c0_i32, %c0_i32_0 : i32, i32, i32
  }
  func.func @transform_1(%arg0: i32, %arg1: i32) -> (i32, i32) {
    %c0_i32 = arith.constant 0 : i32
    %c0_i32_0 = arith.constant 0 : i32
    return %c0_i32, %arg1 : i32, i32
  }
  func.func @transform_2(%arg0: i32, %arg1: i32) -> (i32, i32) {
    %c0_i32 = arith.constant 0 : i32
    %c0_i32_0 = arith.constant 0 : i32
    return %c0_i32, %arg1 : i32, i32
  }
  func.func @transform_3(%arg0: i32, %arg1: i32) -> (i32, i32, i32) {
    %c0_i32 = arith.constant 0 : i32
    %c0_i32_0 = arith.constant 0 : i32
    return %arg0, %c0_i32, %arg1 : i32, i32, i32
  }
}

</mosaic_0001>

<llo_original>
// kernel: tpu_custom_call.1
$region0: #{tpu_custom_call.1}
  #allocation0 [shape = 'u32[]', space=smem, size = 0x4, offset = 0x4, fixed_abs, tag = 'smem constant byte address 0x4 - core index']
  #allocation1 [shape = 'u32[72,128]{1,0:T(1,128)}', space=vmem, size = 0x9000, scoped, tag = 'internal scratch']
  #allocation2 [shape = 'bf16[72,576]{1,0:T(8,128)(2,1)}', space=vmem, size = 0x16800, scoped, tag = 'scratch operand']
  %s0 = inlined_call_operand.vmem [shape: bf16[1,360,64], index: 0, kind: input, shape index: {}]
  %s1 = inlined_call_operand.hbm [shape: bf16[576,256], index: 1, kind: input, shape index: {}]
  %s2 = inlined_call_operand.vmem [shape: f32[1,256], index: 2, kind: input, shape index: {}]
  %s3 = inlined_call_operand.hbm [shape: bf16[1,360,256], index: 3, kind: output, shape index: {}]
  %s4 = sld [smem:[#allocation0]]
  $region49: #{tpu_custom_call.1} parent=0
    _
  %s6 = ssub.s32 1, %s4
  %s7 = scalar_select 0, %s6, %s4
  $region1: #{tpu_custom_call.1} parent=0
    #allocation3 [shape = 'u8[294912]{0}', space=vmem, size = 0x48000, scoped, tag = 'input window, operand 1']
    #allocation4 [shape = 's32[2]{0}', space=sflag, size = 0x8, scoped, tag = 'scoped memory for tpu_custom_call.1']
    #allocation5 [shape = 's32[2]{0}', space=sflag, size = 0x8, scoped, tag = 'scoped memory for tpu_custom_call.1']
    #allocation6 [shape = 'u8[184320]{0}', space=vmem, size = 0x2d000, scoped, tag = 'output window, operand 0']
    %8 = vsyncpa [#allocation4], 0
    %s9 = scalar_lea.sflag [#allocation4], 1
    %10 = vsyncpa %s9, 0
    %11 = vsyncpa [#allocation5], 0
    %s12 = scalar_lea.sflag [#allocation5], 1
    %13 = vsyncpa %s12, 0
    loop: start=0, step=1, limit=4
    $region2: #{tpu_custom_call.1} parent=1 // loop_pre_header
      _
    $region3: #{tpu_custom_call.1} parent=1 // loop_header
      %s15 = sphi 0, %s19
      %p16 = scmp.ge.s32.totalorder %s15, 4
      %s22 = sphi 0, %s34
      %s23 = sphi 0, %s30
      %s24 = sphi 0, %s22
      %s25 = sphi 0, %s23
      %s26 = sphi 0, %s24
      %s27 = sphi 0, %s25
      %s37 = sphi 0, %s39
      %s40 = sphi 0, %s37
      %s41 = sphi 0, %s40
      %s57 = sphi 0, %s41
      %s63 = sphi 0, %s65
      %s66 = sphi 0, %s63
      %s67 = sphi 0, %s66
      %s83 = sphi 0, %s67
      %s89 = sphi 0, %s91
      %s92 = sphi 0, %s89
      %s93 = sphi 0, %s92
      %s109 = sphi 0, %s93
      %s117 = sphi 0, %s119
      %s120 = sphi 0, %s117
      %s121 = sphi 0, %s120
      %s137 = sphi 0, %s121
    $region4: #{tpu_custom_call.1} parent=1 // loop_header_branch
      %18 = sbr.rel (%p16) target = $region8
    $region5: #{tpu_custom_call.1} parent=1 // loop_body
      %s20 = ssub.s32 %s15, 1
      %s21 = ssub.s32 %s15, 2
      %s28 = sadd.s32 1, %s23
      %p29 = scmp.ge.s32.totalorder %s28, 2
      %s30 = scalar_select %p29, 0, %s28
      %s31 = sadd.s32 1, %s22
      %s32 = scalar_select %p29, %s31, %s22
      %p33 = scmp.ge.s32.totalorder %s32, 1
      %s34 = scalar_select %p33, 0, %s32
      %s35 = ssub.s32 %s22, %s34
      %p36 = scmp.eq.s32.totalorder %s35, 0
      %s38 = sadd.s32 %s37, 1
      %s39 = scalar_select %p36, %s37, %s38
      %p42 = pneg %p36
      %p43 = scmp.eq.s32.totalorder %s15, 1
      %p44 = por %p42, %p43
      %p45 = scmp.ne.s32.totalorder %s37, %s40
      %p46 = scmp.eq.s32.totalorder %s15, 0
      %p47 = por %p45, %p46
      %p48 = scmp.ne.s32.totalorder %s37, %s40
      %p49 = scmp.eq.s32.totalorder %s20, 1
      %p50 = por %p48, %p49
      %p51 = scmp.ne.s32.totalorder %s40, %s41
      %p52 = scmp.eq.s32.totalorder %s20, 0
      %p53 = por %p51, %p52
      %p54 = scmp.ne.s32.totalorder %s40, %s41
      %p55 = scmp.eq.s32.totalorder %s21, 1
      %p56 = por %p54, %p55
      %p58 = scmp.ne.s32.totalorder %s41, %s57
      %p59 = scmp.eq.s32.totalorder %s21, 0
      %p60 = por %p58, %p59
      %s61 = ssub.s32 %s23, %s30
      %p62 = scmp.eq.s32.totalorder %s61, 0
      %s64 = sadd.s32 %s63, 1
      %s65 = scalar_select %p62, %s63, %s64
      %p68 = pneg %p62
      %p69 = scmp.eq.s32.totalorder %s15, 1
      %p70 = por %p68, %p69
      %p71 = scmp.ne.s32.totalorder %s63, %s66
      %p72 = scmp.eq.s32.totalorder %s15, 0
      %p73 = por %p71, %p72
      %p74 = scmp.ne.s32.totalorder %s63, %s66
      %p75 = scmp.eq.s32.totalorder %s20, 1
      %p76 = por %p74, %p75
      %p77 = scmp.ne.s32.totalorder %s66, %s67
      %p78 = scmp.eq.s32.totalorder %s20, 0
      %p79 = por %p77, %p78
      %p80 = scmp.ne.s32.totalorder %s66, %s67
      %p81 = scmp.eq.s32.totalorder %s21, 1
      %p82 = por %p80, %p81
      %p84 = scmp.ne.s32.totalorder %s67, %s83
      %p85 = scmp.eq.s32.totalorder %s21, 0
      %p86 = por %p84, %p85
      %s87 = ssub.s32 %s23, %s30
      %p88 = scmp.eq.s32.totalorder %s87, 0
      %s90 = sadd.s32 %s89, 1
      %s91 = scalar_select %p88, %s89, %s90
      %p94 = pneg %p88
      %p95 = scmp.eq.s32.totalorder %s15, 1
      %p96 = por %p94, %p95
      %p97 = scmp.ne.s32.totalorder %s89, %s92
      %p98 = scmp.eq.s32.totalorder %s15, 0
      %p99 = por %p97, %p98
      %p100 = scmp.ne.s32.totalorder %s89, %s92
      %p101 = scmp.eq.s32.totalorder %s20, 1
      %p102 = por %p100, %p101
      %p103 = scmp.ne.s32.totalorder %s92, %s93
      %p104 = scmp.eq.s32.totalorder %s20, 0
      %p105 = por %p103, %p104
      %p106 = scmp.ne.s32.totalorder %s92, %s93
      %p107 = scmp.eq.s32.totalorder %s21, 1
      %p108 = por %p106, %p107
      %p110 = scmp.ne.s32.totalorder %s93, %s109
      %p111 = scmp.eq.s32.totalorder %s21, 0
      %p112 = por %p110, %p111
      %s113 = ssub.s32 %s22, %s34
      %s114 = ssub.s32 %s23, %s30
      %s115 = sor.u32 %s113, %s114
      %p116 = scmp.eq.s32.totalorder %s115, 0
      %s118 = sadd.s32 %s117, 1
      %s119 = scalar_select %p116, %s117, %s118
      %p122 = pneg %p116
      %p123 = scmp.eq.s32.totalorder %s15, 1
      %p124 = por %p122, %p123
      %p125 = scmp.ne.s32.totalorder %s117, %s120
      %p126 = scmp.eq.s32.totalorder %s15, 0
      %p127 = por %p125, %p126
      %p128 = scmp.ne.s32.totalorder %s117, %s120
      %p129 = scmp.eq.s32.totalorder %s20, 1
      %p130 = por %p128, %p129
      %p131 = scmp.ne.s32.totalorder %s120, %s121
      %p132 = scmp.eq.s32.totalorder %s20, 0
      %p133 = por %p131, %p132
      %p134 = scmp.ne.s32.totalorder %s120, %s121
      %p135 = scmp.eq.s32.totalorder %s21, 1
      %p136 = por %p134, %p135
      %p138 = scmp.ne.s32.totalorder %s121, %s137
      %p139 = scmp.eq.s32.totalorder %s21, 0
      %p140 = por %p138, %p139
      %p141 = scmp.le.s32.totalorder 1, %s15
      %p142 = scmp.lt.s32.totalorder %s15, 3
      %p143 = pnand %p141, %p142
      %p144 = pneg %p143
      // Predicated region
      $region9: #{tpu_custom_call.1} parent=5 // pred_check
        _
      $region10: #{tpu_custom_call.1} parent=5 // pred_check_branch
        %146 = sbr.rel (%p143) target = $region12
      $region11: #{tpu_custom_call.1} parent=5 // pred_region
        %s147 = ssub.s32 %s15, 1
        // Predicated region
        $region13: #{tpu_custom_call.1} parent=11 // pred_check
          %p148 = pneg %p53
        $region14: #{tpu_custom_call.1} parent=11 // pred_check_branch
          %150 = sbr.rel (%p148) target = $region16
        $region15: #{tpu_custom_call.1} parent=11 // pred_region
          %p151 = scmp.lt.s32.totalorder %s24, 0
          %s152 = scalar_select %p151, %s24, 0
          %s153 = smul.addr %s152, 45
          %s154 = smul.addr %s153, 4
          %s155 = scalar_lea.vmem %s0, %s154
        $region16: #{tpu_custom_call.1} parent=11 // pred_fallthru
          _
      $region12: #{tpu_custom_call.1} parent=5 // pred_fallthru
        _
      %p156 = scmp.lt.s32.totalorder %s15, 2
      // Predicated region
      $region17: #{tpu_custom_call.1} parent=5 // pred_check
        %p157 = pneg %p156
      $region18: #{tpu_custom_call.1} parent=5 // pred_check_branch
        %159 = sbr.rel (%p157) target = $region20
      $region19: #{tpu_custom_call.1} parent=5 // pred_region
        // Predicated region
        $region21: #{tpu_custom_call.1} parent=19 // pred_check
          %p160 = pneg %p73
        $region22: #{tpu_custom_call.1} parent=19 // pred_check_branch
          %162 = sbr.rel (%p160) target = $region24
        $region23: #{tpu_custom_call.1} parent=19 // pred_region
          %s163 = sand.u32 %s63, 1
          %s164 = scalar_lea.sflag [#allocation4], %s163
          %s165 = sand.u32 %s63, 1
          %s166 = smul.addr %s165, 288
          %s167 = scalar_lea.vmem [#allocation3], %s166
          %169 = vsyncadd %s164, 0
          %s170 = smul.addr %s23, 4
          %s171 = scalar_lea.hbm %s1, %s170
          %s172 = sshll.u32 %s171, 4
          %s173 = int_to_ptr.hbm [resolvable:$true] %s172
          %s174 = sshll.u32 %s167, 4
          %s175 = int_to_ptr.vmem [resolvable:$true] %s174
          %180 = dma.hbm_to_vmem [thread:$0]  %s173, 4608, %s175, %s164, 128, 64, 4
        $region24: #{tpu_custom_call.1} parent=19 // pred_fallthru
          _
        // Predicated region
        $region25: #{tpu_custom_call.1} parent=19 // pred_check
          %p181 = pneg %p99
        $region26: #{tpu_custom_call.1} parent=19 // pred_check_branch
          %183 = sbr.rel (%p181) target = $region28
        $region27: #{tpu_custom_call.1} parent=19 // pred_region
          %p184 = scmp.lt.s32.totalorder %s23, 1
          %s185 = scalar_select %p184, %s23, 1
          %s186 = scalar_lea.vmem %s2, %s185
        $region28: #{tpu_custom_call.1} parent=19 // pred_fallthru
          _
      $region20: #{tpu_custom_call.1} parent=5 // pred_fallthru
        _
      %p187 = scmp.le.s32.totalorder 1, %s15
      %p188 = scmp.lt.s32.totalorder %s15, 3
      %p189 = pnand %p187, %p188
      %p190 = pneg %p189
      // Predicated region
      $region29: #{tpu_custom_call.1} parent=5 // pred_check
        _
      $region30: #{tpu_custom_call.1} parent=5 // pred_check_branch
        %192 = sbr.rel (%p189) target = $region32
      $region31: #{tpu_custom_call.1} parent=5 // pred_region
        %s193 = ssub.s32 %s15, 1
        %s194 = sand.u32 %s66, 1
        %s195 = scalar_lea.sflag [#allocation4], %s194
        %s196 = sand.u32 %s66, 1
        %s197 = smul.addr %s196, 288
        %s198 = scalar_lea.vmem [#allocation3], %s197
        // Predicated region
        $region33: #{tpu_custom_call.1} parent=31 // pred_check
          %p199 = pneg %p79
        $region34: #{tpu_custom_call.1} parent=31 // pred_check_branch
          %201 = sbr.rel (%p199) target = $region36
        $region35: #{tpu_custom_call.1} parent=31 // pred_region
          %203 = dma.done %s195, 4608
        $region36: #{tpu_custom_call.1} parent=31 // pred_fallthru
          _
        %p204 = scmp.lt.s32.totalorder %s24, 0
        %s205 = scalar_select %p204, %s24, 0
        %s206 = smul.addr %s205, 45
        %s207 = smul.addr %s206, 4
        %s208 = scalar_lea.vmem %s0, %s207
        %p209 = pneg %p53
        %p210 = pneg %p50
        %s211 = sand.u32 %s66, 1
        %s212 = scalar_lea.sflag [#allocation4], %s211
        %s213 = sand.u32 %s66, 1
        %s214 = smul.addr %s213, 288
        %s215 = scalar_lea.vmem [#allocation3], %s214
        %p216 = pneg %p79
        %p217 = pneg %p76
        %p218 = scmp.lt.s32.totalorder %s25, 1
        %s219 = scalar_select %p218, %s25, 1
        %s220 = scalar_lea.vmem %s2, %s219
        %p221 = pneg %p105
        %p222 = pneg %p102
        %p223 = pneg %p133
        %p224 = pneg %p130
        %s225 = sand.u32 %s120, 1
        %s226 = scalar_lea.sflag [#allocation5], %s225
        %s227 = sand.u32 %s120, 1
        %s228 = smul.addr %s227, 180
        %s229 = scalar_lea.vmem [#allocation6], %s228
        %p230 = scmp.lt.s32.totalorder %s24, 0
        %s231 = scalar_select %p230, %s24, 0
        %s232 = smul.addr %s231, 45
        %s233 = smul.addr %s232, 4
        %s234 = scalar_lea.vmem %s0, %s233
        %p235 = scmp.lt.s32.totalorder %s25, 1
        %s236 = scalar_select %p235, %s25, 1
        %s237 = scalar_lea.vmem %s2, %s236
        %239 = vst [vmem:[%s229] sm:$0xf] 0
        %240 = vst [vmem:[%s229 + $0x4] sm:$0xf] 0
        %241 = vst [vmem:[%s229 + $0x8] sm:$0xf] 0
        %242 = vst [vmem:[%s229 + $0xc] sm:$0xf] 0
        %243 = vst [vmem:[%s229 + $0x10] sm:$0x3] 0
        %244 = vst [vmem:[%s229 + $0xa0] sm:$0xc] 0
        %245 = vst [vmem:[%s229 + $0xa4] sm:$0xf] 0
        %246 = vst [vmem:[%s229 + $0xa8] sm:$0xf] 0
        %247 = vst [vmem:[%s229 + $0xac] sm:$0xf] 0
        %248 = vst [vmem:[%s229 + $0xb0] sm:$0xf] 0
        %v249 = vlaneseq
        %v250 = vshrl.u32 %v249, 7
        %v251 = vadd.s32 %v250, 8
        %v252 = vadd.s32 %v250, 16
        %v253 = vadd.s32 %v250, 24
        %v254 = vadd.s32 %v250, 32
        %v255 = vadd.s32 %v250, 40
        %v256 = vadd.s32 %v250, 48
        %v257 = vadd.s32 %v250, 56
        %v258 = vadd.s32 %v250, 64
        %vm259 = vcmp.lt.s32.totalorder %v250, 0
        %v260 = vsub.s32 0, %v250
        %v261 = vsel %vm259, %v260, %v250
        %v262 = vand.u32 %v261, 65535
        %v263 = vshrl.u32 %v261, 16
        %v265 = vmul.u32 %v262, 14564
        %v266 = vmul.u32 %v262, 58254
        %v267 = vmul.u32 %v263, 14564
        %v268 = vmul.u32 %v263, 58254
        %v269 = vshll.u32 %v266, 16
        %v270 = vshrl.u32 %v266, 16
        %v271 = vshll.u32 %v267, 16
        %v272 = vshrl.u32 %v267, 16
        %vm273 = vc.u32 %v265, %v269
        %v274 = vsel %vm273, 1, 0
        %v275 = vadd.s32 %v265, %v269
        %v276 = vadd.s32 %v268, %v274
        %vm277 = vc.u32 %v275, %v271
        %v278 = vsel %vm277, 1, 0
        %v279 = vadd.s32 %v275, %v271
        %v280 = vadd.s32 %v276, %v278
        %v281 = vadd.s32 %v280, %v270
        %v282 = vadd.s32 %v281, %v272
        %v283 = vshrl.u32 %v282, 4
        %v284 = vmul.u32 %v283, 18
        %v285 = vsub.s32 %v261, %v284
        %v286 = vsub.s32 0, %v285
        %v287 = vsel %vm259, %v286, %v285
        %vm288 = vcmp.lt.s32.totalorder %v251, 0
        %v289 = vsub.s32 0, %v251
        %v290 = vsel %vm288, %v289, %v251
        %v291 = vand.u32 %v290, 65535
        %v292 = vshrl.u32 %v290, 16
        %v294 = vmul.u32 %v291, 14564
        %v295 = vmul.u32 %v291, 58254
        %v296 = vmul.u32 %v292, 14564
        %v297 = vmul.u32 %v292, 58254
        %v298 = vshll.u32 %v295, 16
        %v299 = vshrl.u32 %v295, 16
        %v300 = vshll.u32 %v296, 16
        %v301 = vshrl.u32 %v296, 16
        %vm302 = vc.u32 %v294, %v298
        %v303 = vsel %vm302, 1, 0
        %v304 = vadd.s32 %v294, %v298
        %v305 = vadd.s32 %v297, %v303
        %vm306 = vc.u32 %v304, %v300
        %v307 = vsel %vm306, 1, 0
        %v308 = vadd.s32 %v304, %v300
        %v309 = vadd.s32 %v305, %v307
        %v310 = vadd.s32 %v309, %v299
        %v311 = vadd.s32 %v310, %v301
        %v312 = vshrl.u32 %v311, 4
        %v313 = vmul.u32 %v312, 18
        %v314 = vsub.s32 %v290, %v313
        %v315 = vsub.s32 0, %v314
        %v316 = vsel %vm288, %v315, %v314
        %vm317 = vcmp.lt.s32.totalorder %v252, 0
        %v318 = vsub.s32 0, %v252
        %v319 = vsel %vm317, %v318, %v252
        %v320 = vand.u32 %v319, 65535
        %v321 = vshrl.u32 %v319, 16
        %v323 = vmul.u32 %v320, 14564
        %v324 = vmul.u32 %v320, 58254
        %v325 = vmul.u32 %v321, 14564
        %v326 = vmul.u32 %v321, 58254
        %v327 = vshll.u32 %v324, 16
        %v328 = vshrl.u32 %v324, 16
        %v329 = vshll.u32 %v325, 16
        %v330 = vshrl.u32 %v325, 16
        %vm331 = vc.u32 %v323, %v327
        %v332 = vsel %vm331, 1, 0
        %v333 = vadd.s32 %v323, %v327
        %v334 = vadd.s32 %v326, %v332
        %vm335 = vc.u32 %v333, %v329
        %v336 = vsel %vm335, 1, 0
        %v337 = vadd.s32 %v333, %v329
        %v338 = vadd.s32 %v334, %v336
        %v339 = vadd.s32 %v338, %v328
        %v340 = vadd.s32 %v339, %v330
        %v341 = vshrl.u32 %v340, 4
        %v342 = vmul.u32 %v341, 18
        %v343 = vsub.s32 %v319, %v342
        %v344 = vsub.s32 0, %v343
        %v345 = vsel %vm317, %v344, %v343
        %vm346 = vcmp.lt.s32.totalorder %v253, 0
        %v347 = vsub.s32 0, %v253
        %v348 = vsel %vm346, %v347, %v253
        %v349 = vand.u32 %v348, 65535
        %v350 = vshrl.u32 %v348, 16
        %v352 = vmul.u32 %v349, 14564
        %v353 = vmul.u32 %v349, 58254
        %v354 = vmul.u32 %v350, 14564
        %v355 = vmul.u32 %v350, 58254
        %v356 = vshll.u32 %v353, 16
        %v357 = vshrl.u32 %v353, 16
        %v358 = vshll.u32 %v354, 16
        %v359 = vshrl.u32 %v354, 16
        %vm360 = vc.u32 %v352, %v356
        %v361 = vsel %vm360, 1, 0
        %v362 = vadd.s32 %v352, %v356
        %v363 = vadd.s32 %v355, %v361
        %vm364 = vc.u32 %v362, %v358
        %v365 = vsel %vm364, 1, 0
        %v366 = vadd.s32 %v362, %v358
        %v367 = vadd.s32 %v363, %v365
        %v368 = vadd.s32 %v367, %v357
        %v369 = vadd.s32 %v368, %v359
        %v370 = vshrl.u32 %v369, 4
        %v371 = vmul.u32 %v370, 18
        %v372 = vsub.s32 %v348, %v371
        %v373 = vsub.s32 0, %v372
        %v374 = vsel %vm346, %v373, %v372
        %vm375 = vcmp.lt.s32.totalorder %v254, 0
        %v376 = vsub.s32 0, %v254
        %v377 = vsel %vm375, %v376, %v254
        %v378 = vand.u32 %v377, 65535
        %v379 = vshrl.u32 %v377, 16
        %v381 = vmul.u32 %v378, 14564
        %v382 = vmul.u32 %v378, 58254
        %v383 = vmul.u32 %v379, 14564
        %v384 = vmul.u32 %v379, 58254
        %v385 = vshll.u32 %v382, 16
        %v386 = vshrl.u32 %v382, 16
        %v387 = vshll.u32 %v383, 16
        %v388 = vshrl.u32 %v383, 16
        %vm389 = vc.u32 %v381, %v385
        %v390 = vsel %vm389, 1, 0
        %v391 = vadd.s32 %v381, %v385
        %v392 = vadd.s32 %v384, %v390
        %vm393 = vc.u32 %v391, %v387
        %v394 = vsel %vm393, 1, 0
        %v395 = vadd.s32 %v391, %v387
        %v396 = vadd.s32 %v392, %v394
        %v397 = vadd.s32 %v396, %v386
        %v398 = vadd.s32 %v397, %v388
        %v399 = vshrl.u32 %v398, 4
        %v400 = vmul.u32 %v399, 18
        %v401 = vsub.s32 %v377, %v400
        %v402 = vsub.s32 0, %v401
        %v403 = vsel %vm375, %v402, %v401
        %vm404 = vcmp.lt.s32.totalorder %v255, 0
        %v405 = vsub.s32 0, %v255
        %v406 = vsel %vm404, %v405, %v255
        %v407 = vand.u32 %v406, 65535
        %v408 = vshrl.u32 %v406, 16
        %v410 = vmul.u32 %v407, 14564
        %v411 = vmul.u32 %v407, 58254
        %v412 = vmul.u32 %v408, 14564
        %v413 = vmul.u32 %v408, 58254
        %v414 = vshll.u32 %v411, 16
        %v415 = vshrl.u32 %v411, 16
        %v416 = vshll.u32 %v412, 16
        %v417 = vshrl.u32 %v412, 16
        %vm418 = vc.u32 %v410, %v414
        %v419 = vsel %vm418, 1, 0
        %v420 = vadd.s32 %v410, %v414
        %v421 = vadd.s32 %v413, %v419
        %vm422 = vc.u32 %v420, %v416
        %v423 = vsel %vm422, 1, 0
        %v424 = vadd.s32 %v420, %v416
        %v425 = vadd.s32 %v421, %v423
        %v426 = vadd.s32 %v425, %v415
        %v427 = vadd.s32 %v426, %v417
        %v428 = vshrl.u32 %v427, 4
        %v429 = vmul.u32 %v428, 18
        %v430 = vsub.s32 %v406, %v429
        %v431 = vsub.s32 0, %v430
        %v432 = vsel %vm404, %v431, %v430
        %vm433 = vcmp.lt.s32.totalorder %v256, 0
        %v434 = vsub.s32 0, %v256
        %v435 = vsel %vm433, %v434, %v256
        %v436 = vand.u32 %v435, 65535
        %v437 = vshrl.u32 %v435, 16
        %v439 = vmul.u32 %v436, 14564
        %v440 = vmul.u32 %v436, 58254
        %v441 = vmul.u32 %v437, 14564
        %v442 = vmul.u32 %v437, 58254
        %v443 = vshll.u32 %v440, 16
        %v444 = vshrl.u32 %v440, 16
        %v445 = vshll.u32 %v441, 16
        %v446 = vshrl.u32 %v441, 16
        %vm447 = vc.u32 %v439, %v443
        %v448 = vsel %vm447, 1, 0
        %v449 = vadd.s32 %v439, %v443
        %v450 = vadd.s32 %v442, %v448
        %vm451 = vc.u32 %v449, %v445
        %v452 = vsel %vm451, 1, 0
        %v453 = vadd.s32 %v449, %v445
        %v454 = vadd.s32 %v450, %v452
        %v455 = vadd.s32 %v454, %v444
        %v456 = vadd.s32 %v455, %v446
        %v457 = vshrl.u32 %v456, 4
        %v458 = vmul.u32 %v457, 18
        %v459 = vsub.s32 %v435, %v458
        %v460 = vsub.s32 0, %v459
        %v461 = vsel %vm433, %v460, %v459
        %vm462 = vcmp.lt.s32.totalorder %v257, 0
        %v463 = vsub.s32 0, %v257
        %v464 = vsel %vm462, %v463, %v257
        %v465 = vand.u32 %v464, 65535
        %v466 = vshrl.u32 %v464, 16
        %v468 = vmul.u32 %v465, 14564
        %v469 = vmul.u32 %v465, 58254
        %v470 = vmul.u32 %v466, 14564
        %v471 = vmul.u32 %v466, 58254
        %v472 = vshll.u32 %v469, 16
        %v473 = vshrl.u32 %v469, 16
        %v474 = vshll.u32 %v470, 16
        %v475 = vshrl.u32 %v470, 16
        %vm476 = vc.u32 %v468, %v472
        %v477 = vsel %vm476, 1, 0
        %v478 = vadd.s32 %v468, %v472
        %v479 = vadd.s32 %v471, %v477
        %vm480 = vc.u32 %v478, %v474
        %v481 = vsel %vm480, 1, 0
        %v482 = vadd.s32 %v478, %v474
        %v483 = vadd.s32 %v479, %v481
        %v484 = vadd.s32 %v483, %v473
        %v485 = vadd.s32 %v484, %v475
        %v486 = vshrl.u32 %v485, 4
        %v487 = vmul.u32 %v486, 18
        %v488 = vsub.s32 %v464, %v487
        %v489 = vsub.s32 0, %v488
        %v490 = vsel %vm462, %v489, %v488
        %vm491 = vcmp.lt.s32.totalorder %v258, 0
        %v492 = vsub.s32 0, %v258
        %v493 = vsel %vm491, %v492, %v258
        %v494 = vand.u32 %v493, 65535
        %v495 = vshrl.u32 %v493, 16
        %v497 = vmul.u32 %v494, 14564
        %v498 = vmul.u32 %v494, 58254
        %v499 = vmul.u32 %v495, 14564
        %v500 = vmul.u32 %v495, 58254
        %v501 = vshll.u32 %v498, 16
        %v502 = vshrl.u32 %v498, 16
        %v503 = vshll.u32 %v499, 16
        %v504 = vshrl.u32 %v499, 16
        %vm505 = vc.u32 %v497, %v501
        %v506 = vsel %vm505, 1, 0
        %v507 = vadd.s32 %v497, %v501
        %v508 = vadd.s32 %v500, %v506
        %vm509 = vc.u32 %v507, %v503
        %v510 = vsel %vm509, 1, 0
        %v511 = vadd.s32 %v507, %v503
        %v512 = vadd.s32 %v508, %v510
        %v513 = vadd.s32 %v512, %v502
        %v514 = vadd.s32 %v513, %v504
        %v515 = vshrl.u32 %v514, 4
        %v516 = vmul.u32 %v515, 18
        %v517 = vsub.s32 %v493, %v516
        %v518 = vsub.s32 0, %v517
        %v519 = vsel %vm491, %v518, %v517
        %vm520 = vcmp.ne.s32.totalorder %v287, 0
        %vm521 = vcmp.ne.s32.totalorder %v316, 0
        %vm522 = vcmp.ne.s32.totalorder %v345, 0
        %vm523 = vcmp.ne.s32.totalorder %v374, 0
        %vm524 = vcmp.ne.s32.totalorder %v403, 0
        %vm525 = vcmp.ne.s32.totalorder %v432, 0
        %vm526 = vcmp.ne.s32.totalorder %v461, 0
        %vm527 = vcmp.ne.s32.totalorder %v490, 0
        %vm528 = vcmp.ne.s32.totalorder %v519, 0
        %vm529 = vcmp.lt.s32.totalorder %v287, 0
        %vm530 = vcmp.lt.s32.totalorder %v316, 0
        %vm531 = vcmp.lt.s32.totalorder %v345, 0
        %vm532 = vcmp.lt.s32.totalorder %v374, 0
        %vm533 = vcmp.lt.s32.totalorder %v403, 0
        %vm534 = vcmp.lt.s32.totalorder %v432, 0
        %vm535 = vcmp.lt.s32.totalorder %v461, 0
        %vm536 = vcmp.lt.s32.totalorder %v490, 0
        %vm537 = vcmp.lt.s32.totalorder %v519, 0
        %vm538 = vmand %vm529, %vm520
        %vm539 = vmand %vm530, %vm521
        %vm540 = vmand %vm531, %vm522
        %vm541 = vmand %vm532, %vm523
        %vm542 = vmand %vm533, %vm524
        %vm543 = vmand %vm534, %vm525
        %vm544 = vmand %vm535, %vm526
        %vm545 = vmand %vm536, %vm527
        %vm546 = vmand %vm537, %vm528
        %v547 = vadd.s32 %v287, 18
        %v548 = vadd.s32 %v316, 18
        %v549 = vadd.s32 %v345, 18
        %v550 = vadd.s32 %v374, 18
        %v551 = vadd.s32 %v403, 18
        %v552 = vadd.s32 %v432, 18
        %v553 = vadd.s32 %v461, 18
        %v554 = vadd.s32 %v490, 18
        %v555 = vadd.s32 %v519, 18
        %v556 = vsel %vm538, %v547, %v287
        %v557 = vsel %vm539, %v548, %v316
        %v558 = vsel %vm540, %v549, %v345
        %v559 = vsel %vm541, %v550, %v374
        %v560 = vsel %vm542, %v551, %v403
        %v561 = vsel %vm543, %v552, %v432
        %v562 = vsel %vm544, %v553, %v461
        %v563 = vsel %vm545, %v554, %v490
        %v564 = vsel %vm546, %v555, %v519
        %vm565 = vcmp.ne.s32.totalorder %v556, 0
        %vm566 = vcmp.ne.s32.totalorder %v557, 0
        %vm567 = vcmp.ne.s32.totalorder %v558, 0
        %vm568 = vcmp.ne.s32.totalorder %v559, 0
        %vm569 = vcmp.ne.s32.totalorder %v560, 0
        %vm570 = vcmp.ne.s32.totalorder %v561, 0
        %vm571 = vcmp.ne.s32.totalorder %v562, 0
        %vm572 = vcmp.ne.s32.totalorder %v563, 0
        %vm573 = vcmp.ne.s32.totalorder %v564, 0
        %vm574 = vcmp.ne.s32.totalorder %v556, 17
        %vm575 = vcmp.ne.s32.totalorder %v557, 17
        %vm576 = vcmp.ne.s32.totalorder %v558, 17
        %vm577 = vcmp.ne.s32.totalorder %v559, 17
        %vm578 = vcmp.ne.s32.totalorder %v560, 17
        %vm579 = vcmp.ne.s32.totalorder %v561, 17
        %vm580 = vcmp.ne.s32.totalorder %v562, 17
        %vm581 = vcmp.ne.s32.totalorder %v563, 17
        %vm582 = vcmp.ne.s32.totalorder %v564, 17
        %vm583 = vmand %vm565, %vm574
        %vm584 = vmand %vm566, %vm575
        %vm585 = vmand %vm567, %vm576
        %vm586 = vmand %vm568, %vm577
        %vm587 = vmand %vm569, %vm578
        %vm588 = vmand %vm570, %vm579
        %vm589 = vmand %vm571, %vm580
        %vm590 = vmand %vm572, %vm581
        %vm591 = vmand %vm573, %vm582
        %v592 = vld [vmem:[%s234 + $0x8] sm:$0xf]
        %v593 = vld [vmem:[%s234 + $0xc] sm:$0xf]
        %v594 = vld [vmem:[%s234 + $0x10] sm:$0xf]
        %v595 = vld [vmem:[%s234 + $0x14] sm:$0xf]
        %v596 = vld [vmem:[%s234 + $0x18] sm:$0xf]
        %v597 = vld [vmem:[%s234 + $0x1c] sm:$0xf]
        %v598 = vld [vmem:[%s234 + $0x20] sm:$0xf]
        %v599 = vld [vmem:[%s234 + $0x24] sm:$0xf]
        %v600 = vld [vmem:[%s234 + $0x28] sm:$0xf]
        %v601 = vld [vmem:[%s234 + $0x2c] sm:$0x1]
        %vm602 = vsmask.f32 3328
        %vm603 = vsmask.f32 7440
        %vm604 = vmor %vm602, %vm603
        %v606 = vshrl.u32 %v592, 16
        %v608 = vrot.slane %v606, 4
        %v609 = vshll.u32 %v592, 16
        %v611 = vrot.slane %v609, 5
        %v612 = vor.u32 %v608, %v611
        %v613 = vrot.slane %v612, 4
        %v615 = vshll.u32 %v593, 16
        %v617 = vrot.slane %v615, 5
        %v618 = vsel %vm604, %v613, %v617
        %v619 = vshrl.u32 %v593, 16
        %v621 = vrot.slane %v619, 4
        %v622 = vor.u32 %v621, %v617
        %v623 = vrot.slane %v622, 4
        %v625 = vshll.u32 %v594, 16
        %v627 = vrot.slane %v625, 5
        %v628 = vsel %vm604, %v623, %v627
        %v629 = vshrl.u32 %v594, 16
        %v631 = vrot.slane %v629, 4
        %v632 = vor.u32 %v631, %v627
        %v633 = vrot.slane %v632, 4
        %v635 = vshll.u32 %v595, 16
        %v637 = vrot.slane %v635, 5
        %v638 = vsel %vm604, %v633, %v637
        %v639 = vshrl.u32 %v595, 16
        %v641 = vrot.slane %v639, 4
        %v642 = vor.u32 %v641, %v637
        %v643 = vrot.slane %v642, 4
        %v645 = vshll.u32 %v596, 16
        %v647 = vrot.slane %v645, 5
        %v648 = vsel %vm604, %v643, %v647
        %v649 = vshrl.u32 %v596, 16
        %v651 = vrot.slane %v649, 4
        %v652 = vor.u32 %v651, %v647
        %v653 = vrot.slane %v652, 4
        %v655 = vshll.u32 %v597, 16
        %v657 = vrot.slane %v655, 5
        %v658 = vsel %vm604, %v653, %v657
        %v659 = vshrl.u32 %v597, 16
        %v661 = vrot.slane %v659, 4
        %v662 = vor.u32 %v661, %v657
        %v663 = vrot.slane %v662, 4
        %v665 = vshll.u32 %v598, 16
        %v667 = vrot.slane %v665, 5
        %v668 = vsel %vm604, %v663, %v667
        %v669 = vshrl.u32 %v598, 16
        %v671 = vrot.slane %v669, 4
        %v672 = vor.u32 %v671, %v667
        %v673 = vrot.slane %v672, 4
        %v675 = vshll.u32 %v599, 16
        %v677 = vrot.slane %v675, 5
        %v678 = vsel %vm604, %v673, %v677
        %v679 = vshrl.u32 %v599, 16
        %v681 = vrot.slane %v679, 4
        %v682 = vor.u32 %v681, %v677
        %v683 = vrot.slane %v682, 4
        %v685 = vshll.u32 %v600, 16
        %v687 = vrot.slane %v685, 5
        %v688 = vsel %vm604, %v683, %v687
        %v689 = vshrl.u32 %v600, 16
        %v691 = vrot.slane %v689, 4
        %v692 = vor.u32 %v691, %v687
        %v693 = vrot.slane %v692, 4
        %v695 = vshll.u32 %v601, 16
        %v697 = vrot.slane %v695, 5
        %v698 = vsel %vm604, %v693, %v697
        %vm708 = vcmask 519168
        %709 = vst.msk [vmem:[#allocation2] sm:$0xf] %vm708, %v618
        %710 = vst.msk [vmem:[#allocation2 + $0x14] sm:$0xf] %vm708, %v628
        %711 = vst.msk [vmem:[#allocation2 + $0x28] sm:$0xf] %vm708, %v638
        %712 = vst.msk [vmem:[#allocation2 + $0x3c] sm:$0xf] %vm708, %v648
        %713 = vst.msk [vmem:[#allocation2 + $0x50] sm:$0xf] %vm708, %v658
        %714 = vst.msk [vmem:[#allocation2 + $0x64] sm:$0xf] %vm708, %v668
        %715 = vst.msk [vmem:[#allocation2 + $0x78] sm:$0xf] %vm708, %v678
        %716 = vst.msk [vmem:[#allocation2 + $0x8c] sm:$0xf] %vm708, %v688
        %717 = vst.msk [vmem:[#allocation2 + $0xa0] sm:$0xf] %vm708, %v698
        %v718 = vld [vmem:[%s234 + $0x8] sm:$0xe]
        %v719 = vld [vmem:[%s234 + $0xc] sm:$0xf]
        %v720 = vld [vmem:[%s234 + $0x10] sm:$0xf]
        %v721 = vld [vmem:[%s234 + $0x14] sm:$0xf]
        %v722 = vld [vmem:[%s234 + $0x18] sm:$0xf]
        %v723 = vld [vmem:[%s234 + $0x1c] sm:$0xf]
        %v724 = vld [vmem:[%s234 + $0x20] sm:$0xf]
        %v725 = vld [vmem:[%s234 + $0x24] sm:$0xf]
        %v726 = vld [vmem:[%s234 + $0x28] sm:$0xf]
        %v727 = vld [vmem:[%s234 + $0x2c] sm:$0x1]
        %vm738 = vcmask 1042432
        %vm739 = vcmask 1046532
        %vm740 = vmor %vm738, %vm739
        %v741 = vrot.slane %v718, 5
        %v742 = vrot.slane %v741, 4
        %v743 = vrot.slane %v719, 5
        %v744 = vsel %vm740, %v742, %v743
        %v745 = vrot.slane %v743, 4
        %v746 = vrot.slane %v720, 5
        %v747 = vsel %vm740, %v745, %v746
        %v748 = vrot.slane %v746, 4
        %v749 = vrot.slane %v721, 5
        %v750 = vsel %vm740, %v748, %v749
        %v751 = vrot.slane %v749, 4
        %v752 = vrot.slane %v722, 5
        %v753 = vsel %vm740, %v751, %v752
        %v754 = vrot.slane %v752, 4
        %v755 = vrot.slane %v723, 5
        %v756 = vsel %vm740, %v754, %v755
        %v757 = vrot.slane %v755, 4
        %v758 = vrot.slane %v724, 5
        %v759 = vsel %vm740, %v757, %v758
        %v760 = vrot.slane %v758, 4
        %v761 = vrot.slane %v725, 5
        %v762 = vsel %vm740, %v760, %v761
        %v763 = vrot.slane %v761, 4
        %v764 = vrot.slane %v726, 5
        %v765 = vsel %vm740, %v763, %v764
        %v766 = vrot.slane %v764, 4
        %v767 = vrot.slane %v727, 5
        %v768 = vsel %vm740, %v766, %v767
        %769 = vrot.lane.b32.xlu0 %v744, 64
        %v770 = vpop.permute.xlu0 %769
        %771 = vrot.lane.b32.xlu0 %v747, 64
        %v772 = vpop.permute.xlu0 %771
        %773 = vrot.lane.b32.xlu0 %v750, 64
        %v774 = vpop.permute.xlu0 %773
        %775 = vrot.lane.b32.xlu0 %v753, 64
        %v776 = vpop.permute.xlu0 %775
        %777 = vrot.lane.b32.xlu0 %v756, 64
        %v778 = vpop.permute.xlu0 %777
        %779 = vrot.lane.b32.xlu0 %v759, 64
        %v780 = vpop.permute.xlu0 %779
        %781 = vrot.lane.b32.xlu0 %v762, 64
        %v782 = vpop.permute.xlu0 %781
        %783 = vrot.lane.b32.xlu0 %v765, 64
        %v784 = vpop.permute.xlu0 %783
        %785 = vrot.lane.b32.xlu0 %v768, 64
        %v786 = vpop.permute.xlu0 %785
        %vm796 = vcmask 1043968
        %797 = vst.msk [vmem:[#allocation2] sm:$0xf] %vm796, %v770
        %798 = vst.msk [vmem:[#allocation2 + $0x14] sm:$0xf] %vm796, %v772
        %799 = vst.msk [vmem:[#allocation2 + $0x28] sm:$0xf] %vm796, %v774
        %800 = vst.msk [vmem:[#allocation2 + $0x3c] sm:$0xf] %vm796, %v776
        %801 = vst.msk [vmem:[#allocation2 + $0x50] sm:$0xf] %vm796, %v778
        %802 = vst.msk [vmem:[#allocation2 + $0x64] sm:$0xf] %vm796, %v780
        %803 = vst.msk [vmem:[#allocation2 + $0x78] sm:$0xf] %vm796, %v782
        %804 = vst.msk [vmem:[#allocation2 + $0x8c] sm:$0xf] %vm796, %v784
        %805 = vst.msk [vmem:[#allocation2 + $0xa0] sm:$0xf] %vm796, %v786
        %v806 = vld [vmem:[%s234 + $0x8] sm:$0xe]
        %v807 = vld [vmem:[%s234 + $0xc] sm:$0xf]
        %v808 = vld [vmem:[%s234 + $0x10] sm:$0xf]
        %v809 = vld [vmem:[%s234 + $0x14] sm:$0xf]
        %v810 = vld [vmem:[%s234 + $0x18] sm:$0xf]
        %v811 = vld [vmem:[%s234 + $0x1c] sm:$0xf]
        %v812 = vld [vmem:[%s234 + $0x20] sm:$0xf]
        %v813 = vld [vmem:[%s234 + $0x24] sm:$0xf]
        %v814 = vld [vmem:[%s234 + $0x28] sm:$0xf]
        %v815 = vld [vmem:[%s234 + $0x2c] sm:$0x3]
        %vm816 = vsmask.f32 2304
        %vm817 = vsmask.f32 6416
        %vm818 = vmor %vm816, %vm817
        %v820 = vshrl.u32 %v806, 16
        %v822 = vrot.slane %v820, 5
        %v823 = vshll.u32 %v806, 16
        %v825 = vrot.slane %v823, 6
        %v826 = vor.u32 %v822, %v825
        %v827 = vrot.slane %v826, 4
        %v829 = vshrl.u32 %v807, 16
        %v831 = vrot.slane %v829, 5
        %v832 = vshll.u32 %v807, 16
        %v834 = vrot.slane %v832, 6
        %v835 = vor.u32 %v831, %v834
        %v836 = vsel %vm818, %v827, %v835
        %v837 = vrot.slane %v835, 4
        %v839 = vshrl.u32 %v808, 16
        %v841 = vrot.slane %v839, 5
        %v842 = vshll.u32 %v808, 16
        %v844 = vrot.slane %v842, 6
        %v845 = vor.u32 %v841, %v844
        %v846 = vsel %vm818, %v837, %v845
        %v847 = vrot.slane %v845, 4
        %v849 = vshrl.u32 %v809, 16
        %v851 = vrot.slane %v849, 5
        %v852 = vshll.u32 %v809, 16
        %v854 = vrot.slane %v852, 6
        %v855 = vor.u32 %v851, %v854
        %v856 = vsel %vm818, %v847, %v855
        %v857 = vrot.slane %v855, 4
        %v859 = vshrl.u32 %v810, 16
        %v861 = vrot.slane %v859, 5
        %v862 = vshll.u32 %v810, 16
        %v864 = vrot.slane %v862, 6
        %v865 = vor.u32 %v861, %v864
        %v866 = vsel %vm818, %v857, %v865
        %v867 = vrot.slane %v865, 4
        %v869 = vshrl.u32 %v811, 16
        %v871 = vrot.slane %v869, 5
        %v872 = vshll.u32 %v811, 16
        %v874 = vrot.slane %v872, 6
        %v875 = vor.u32 %v871, %v874
        %v876 = vsel %vm818, %v867, %v875
        %v877 = vrot.slane %v875, 4
        %v879 = vshrl.u32 %v812, 16
        %v881 = vrot.slane %v879, 5
        %v882 = vshll.u32 %v812, 16
        %v884 = vrot.slane %v882, 6
        %v885 = vor.u32 %v881, %v884
        %v886 = vsel %vm818, %v877, %v885
        %v887 = vrot.slane %v885, 4
        %v889 = vshrl.u32 %v813, 16
        %v891 = vrot.slane %v889, 5
        %v892 = vshll.u32 %v813, 16
        %v894 = vrot.slane %v892, 6
        %v895 = vor.u32 %v891, %v894
        %v896 = vsel %vm818, %v887, %v895
        %v897 = vrot.slane %v895, 4
        %v899 = vshrl.u32 %v814, 16
        %v901 = vrot.slane %v899, 5
        %v902 = vshll.u32 %v814, 16
        %v904 = vrot.slane %v902, 6
        %v905 = vor.u32 %v901, %v904
        %v906 = vsel %vm818, %v897, %v905
        %v907 = vrot.slane %v905, 4
        %v909 = vshrl.u32 %v815, 16
        %v911 = vrot.slane %v909, 5
        %v912 = vshll.u32 %v815, 16
        %v914 = vrot.slane %v912, 6
        %v915 = vor.u32 %v911, %v914
        %v916 = vsel %vm818, %v907, %v915
        %926 = vst.msk [vmem:[#allocation2 + $0x4] sm:$0xf] %vm708, %v836
        %927 = vst.msk [vmem:[#allocation2 + $0x18] sm:$0xf] %vm708, %v846
        %928 = vst.msk [vmem:[#allocation2 + $0x2c] sm:$0xf] %vm708, %v856
        %929 = vst.msk [vmem:[#allocation2 + $0x40] sm:$0xf] %vm708, %v866
        %930 = vst.msk [vmem:[#allocation2 + $0x54] sm:$0xf] %vm708, %v876
        %931 = vst.msk [vmem:[#allocation2 + $0x68] sm:$0xf] %vm708, %v886
        %932 = vst.msk [vmem:[#allocation2 + $0x7c] sm:$0xf] %vm708, %v896
        %933 = vst.msk [vmem:[#allocation2 + $0x90] sm:$0xf] %vm708, %v906
        %934 = vst.msk [vmem:[#allocation2 + $0xa4] sm:$0xf] %vm708, %v916
        %v935 = vld [vmem:[%s234 + $0x10] sm:$0xe]
        %v936 = vld [vmem:[%s234 + $0x14] sm:$0xf]
        %v937 = vld [vmem:[%s234 + $0x18] sm:$0xf]
        %v938 = vld [vmem:[%s234 + $0x1c] sm:$0xf]
        %v939 = vld [vmem:[%s234 + $0x20] sm:$0xf]
        %v940 = vld [vmem:[%s234 + $0x24] sm:$0xf]
        %v941 = vld [vmem:[%s234 + $0x28] sm:$0xf]
        %v942 = vld [vmem:[%s234 + $0x2c] sm:$0xf]
        %v943 = vld [vmem:[%s234 + $0x30] sm:$0xf]
        %v944 = vld [vmem:[%s234 + $0x34] sm:$0x3]
        %v946 = vshrl.u32 %v935, 16
        %v948 = vrot.slane %v946, 5
        %v949 = vshll.u32 %v935, 16
        %v951 = vrot.slane %v949, 6
        %v952 = vor.u32 %v948, %v951
        %v953 = vrot.slane %v952, 4
        %v955 = vshrl.u32 %v936, 16
        %v957 = vrot.slane %v955, 5
        %v958 = vshll.u32 %v936, 16
        %v960 = vrot.slane %v958, 6
        %v961 = vor.u32 %v957, %v960
        %v962 = vsel %vm818, %v953, %v961
        %v963 = vrot.slane %v961, 4
        %v965 = vshrl.u32 %v937, 16
        %v967 = vrot.slane %v965, 5
        %v968 = vshll.u32 %v937, 16
        %v970 = vrot.slane %v968, 6
        %v971 = vor.u32 %v967, %v970
        %v972 = vsel %vm818, %v963, %v971
        %v973 = vrot.slane %v971, 4
        %v975 = vshrl.u32 %v938, 16
        %v977 = vrot.slane %v975, 5
        %v978 = vshll.u32 %v938, 16
        %v980 = vrot.slane %v978, 6
        %v981 = vor.u32 %v977, %v980
        %v982 = vsel %vm818, %v973, %v981
        %v983 = vrot.slane %v981, 4
        %v985 = vshrl.u32 %v939, 16
        %v987 = vrot.slane %v985, 5
        %v988 = vshll.u32 %v939, 16
        %v990 = vrot.slane %v988, 6
        %v991 = vor.u32 %v987, %v990
        %v992 = vsel %vm818, %v983, %v991
        %v993 = vrot.slane %v991, 4
        %v995 = vshrl.u32 %v940, 16
        %v997 = vrot.slane %v995, 5
        %v998 = vshll.u32 %v940, 16
        %v1000 = vrot.slane %v998, 6
        %v1001 = vor.u32 %v997, %v1000
        %v1002 = vsel %vm818, %v993, %v1001
        %v1003 = vrot.slane %v1001, 4
        %v1005 = vshrl.u32 %v941, 16
        %v1007 = vrot.slane %v1005, 5
        %v1008 = vshll.u32 %v941, 16
        %v1010 = vrot.slane %v1008, 6
        %v1011 = vor.u32 %v1007, %v1010
        %v1012 = vsel %vm818, %v1003, %v1011
        %v1013 = vrot.slane %v1011, 4
        %v1015 = vshrl.u32 %v942, 16
        %v1017 = vrot.slane %v1015, 5
        %v1018 = vshll.u32 %v942, 16
        %v1020 = vrot.slane %v1018, 6
        %v1021 = vor.u32 %v1017, %v1020
        %v1022 = vsel %vm818, %v1013, %v1021
        %v1023 = vrot.slane %v1021, 4
        %v1025 = vshrl.u32 %v943, 16
        %v1027 = vrot.slane %v1025, 5
        %v1028 = vshll.u32 %v943, 16
        %v1030 = vrot.slane %v1028, 6
        %v1031 = vor.u32 %v1027, %v1030
        %v1032 = vsel %vm818, %v1023, %v1031
        %v1033 = vrot.slane %v1031, 4
        %v1035 = vshrl.u32 %v944, 16
        %v1037 = vrot.slane %v1035, 5
        %v1038 = vshll.u32 %v944, 16
        %v1040 = vrot.slane %v1038, 6
        %v1041 = vor.u32 %v1037, %v1040
        %v1042 = vsel %vm818, %v1033, %v1041
        %1043 = vrot.lane.b32.xlu0 %v962, 64
        %v1044 = vpop.permute.xlu0 %1043
        %1045 = vrot.lane.b32.xlu0 %v972, 64
        %v1046 = vpop.permute.xlu0 %1045
        %1047 = vrot.lane.b32.xlu0 %v982, 64
        %v1048 = vpop.permute.xlu0 %1047
        %1049 = vrot.lane.b32.xlu0 %v992, 64
        %v1050 = vpop.permute.xlu0 %1049
        %1051 = vrot.lane.b32.xlu0 %v1002, 64
        %v1052 = vpop.permute.xlu0 %1051
        %1053 = vrot.lane.b32.xlu0 %v1012, 64
        %v1054 = vpop.permute.xlu0 %1053
        %1055 = vrot.lane.b32.xlu0 %v1022, 64
        %v1056 = vpop.permute.xlu0 %1055
        %1057 = vrot.lane.b32.xlu0 %v1032, 64
        %v1058 = vpop.permute.xlu0 %1057
        %1059 = vrot.lane.b32.xlu0 %v1042, 64
        %v1060 = vpop.permute.xlu0 %1059
        %1070 = vst.msk [vmem:[#allocation2 + $0x4] sm:$0xf] %vm796, %v1044
        %1071 = vst.msk [vmem:[#allocation2 + $0x18] sm:$0xf] %vm796, %v1046
        %1072 = vst.msk [vmem:[#allocation2 + $0x2c] sm:$0xf] %vm796, %v1048
        %1073 = vst.msk [vmem:[#allocation2 + $0x40] sm:$0xf] %vm796, %v1050
        %1074 = vst.msk [vmem:[#allocation2 + $0x54] sm:$0xf] %vm796, %v1052
        %1075 = vst.msk [vmem:[#allocation2 + $0x68] sm:$0xf] %vm796, %v1054
        %1076 = vst.msk [vmem:[#allocation2 + $0x7c] sm:$0xf] %vm796, %v1056
        %1077 = vst.msk [vmem:[#allocation2 + $0x90] sm:$0xf] %vm796, %v1058
        %1078 = vst.msk [vmem:[#allocation2 + $0xa4] sm:$0xf] %vm796, %v1060
        %v1079 = vld [vmem:[%s234 + $0x10] sm:$0xc]
        %v1080 = vld [vmem:[%s234 + $0x14] sm:$0xf]
        %v1081 = vld [vmem:[%s234 + $0x18] sm:$0xf]
        %v1082 = vld [vmem:[%s234 + $0x1c] sm:$0xf]
        %v1083 = vld [vmem:[%s234 + $0x20] sm:$0xf]
        %v1084 = vld [vmem:[%s234 + $0x24] sm:$0xf]
        %v1085 = vld [vmem:[%s234 + $0x28] sm:$0xf]
        %v1086 = vld [vmem:[%s234 + $0x2c] sm:$0xf]
        %v1087 = vld [vmem:[%s234 + $0x30] sm:$0xf]
        %v1088 = vld [vmem:[%s234 + $0x34] sm:$0x3]
        %vm1099 = vcmask 1041408
        %vm1100 = vcmask 1045508
        %vm1101 = vmor %vm1099, %vm1100
        %v1102 = vrot.slane %v1079, 6
        %v1103 = vrot.slane %v1102, 4
        %v1104 = vrot.slane %v1080, 6
        %v1105 = vsel %vm1101, %v1103, %v1104
        %v1106 = vrot.slane %v1104, 4
        %v1107 = vrot.slane %v1081, 6
        %v1108 = vsel %vm1101, %v1106, %v1107
        %v1109 = vrot.slane %v1107, 4
        %v1110 = vrot.slane %v1082, 6
        %v1111 = vsel %vm1101, %v1109, %v1110
        %v1112 = vrot.slane %v1110, 4
        %v1113 = vrot.slane %v1083, 6
        %v1114 = vsel %vm1101, %v1112, %v1113
        %v1115 = vrot.slane %v1113, 4
        %v1116 = vrot.slane %v1084, 6
        %v1117 = vsel %vm1101, %v1115, %v1116
        %v1118 = vrot.slane %v1116, 4
        %v1119 = vrot.slane %v1085, 6
        %v1120 = vsel %vm1101, %v1118, %v1119
        %v1121 = vrot.slane %v1119, 4
        %v1122 = vrot.slane %v1086, 6
        %v1123 = vsel %vm1101, %v1121, %v1122
        %v1124 = vrot.slane %v1122, 4
        %v1125 = vrot.slane %v1087, 6
        %v1126 = vsel %vm1101, %v1124, %v1125
        %v1127 = vrot.slane %v1125, 4
        %v1128 = vrot.slane %v1088, 6
        %v1129 = vsel %vm1101, %v1127, %v1128
        %1139 = vst.msk [vmem:[#allocation2 + $0x8] sm:$0xf] %vm708, %v1105
        %1140 = vst.msk [vmem:[#allocation2 + $0x1c] sm:$0xf] %vm708, %v1108
        %1141 = vst.msk [vmem:[#allocation2 + $0x30] sm:$0xf] %vm708, %v1111
        %1142 = vst.msk [vmem:[#allocation2 + $0x44] sm:$0xf] %vm708, %v1114
        %1143 = vst.msk [vmem:[#allocation2 + $0x58] sm:$0xf] %vm708, %v1117
        %1144 = vst.msk [vmem:[#allocation2 + $0x6c] sm:$0xf] %vm708, %v1120
        %1145 = vst.msk [vmem:[#allocation2 + $0x80] sm:$0xf] %vm708, %v1123
        %1146 = vst.msk [vmem:[#allocation2 + $0x94] sm:$0xf] %vm708, %v1126
        %1147 = vst.msk [vmem:[#allocation2 + $0xa8] sm:$0xf] %vm708, %v1129
        %v1148 = vld [vmem:[%s234 + $0x10] sm:$0xc]
        %v1149 = vld [vmem:[%s234 + $0x14] sm:$0xf]
        %v1150 = vld [vmem:[%s234 + $0x18] sm:$0xf]
        %v1151 = vld [vmem:[%s234 + $0x1c] sm:$0xf]
        %v1152 = vld [vmem:[%s234 + $0x20] sm:$0xf]
        %v1153 = vld [vmem:[%s234 + $0x24] sm:$0xf]
        %v1154 = vld [vmem:[%s234 + $0x28] sm:$0xf]
        %v1155 = vld [vmem:[%s234 + $0x2c] sm:$0xf]
        %v1156 = vld [vmem:[%s234 + $0x30] sm:$0xf]
        %v1157 = vld [vmem:[%s234 + $0x34] sm:$0x7]
        %vm1158 = vsmask.f32 1280
        %vm1159 = vsmask.f32 5392
        %vm1160 = vmor %vm1158, %vm1159
        %v1162 = vshrl.u32 %v1148, 16
        %v1164 = vrot.slane %v1162, 6
        %v1165 = vshll.u32 %v1148, 16
        %v1167 = vrot.slane %v1165, 7
        %v1168 = vor.u32 %v1164, %v1167
        %v1169 = vrot.slane %v1168, 4
        %v1171 = vshrl.u32 %v1149, 16
        %v1173 = vrot.slane %v1171, 6
        %v1174 = vshll.u32 %v1149, 16
        %v1176 = vrot.slane %v1174, 7
        %v1177 = vor.u32 %v1173, %v1176
        %v1178 = vsel %vm1160, %v1169, %v1177
        %v1179 = vrot.slane %v1177, 4
        %v1181 = vshrl.u32 %v1150, 16
        %v1183 = vrot.slane %v1181, 6
        %v1184 = vshll.u32 %v1150, 16
        %v1186 = vrot.slane %v1184, 7
        %v1187 = vor.u32 %v1183, %v1186
        %v1188 = vsel %vm1160, %v1179, %v1187
        %v1189 = vrot.slane %v1187, 4
        %v1191 = vshrl.u32 %v1151, 16
        %v1193 = vrot.slane %v1191, 6
        %v1194 = vshll.u32 %v1151, 16
        %v1196 = vrot.slane %v1194, 7
        %v1197 = vor.u32 %v1193, %v1196
        %v1198 = vsel %vm1160, %v1189, %v1197
        %v1199 = vrot.slane %v1197, 4
        %v1201 = vshrl.u32 %v1152, 16
        %v1203 = vrot.slane %v1201, 6
        %v1204 = vshll.u32 %v1152, 16
        %v1206 = vrot.slane %v1204, 7
        %v1207 = vor.u32 %v1203, %v1206
        %v1208 = vsel %vm1160, %v1199, %v1207
        %v1209 = vrot.slane %v1207, 4
        %v1211 = vshrl.u32 %v1153, 16
        %v1213 = vrot.slane %v1211, 6
        %v1214 = vshll.u32 %v1153, 16
        %v1216 = vrot.slane %v1214, 7
        %v1217 = vor.u32 %v1213, %v1216
        %v1218 = vsel %vm1160, %v1209, %v1217
        %v1219 = vrot.slane %v1217, 4
        %v1221 = vshrl.u32 %v1154, 16
        %v1223 = vrot.slane %v1221, 6
        %v1224 = vshll.u32 %v1154, 16
        %v1226 = vrot.slane %v1224, 7
        %v1227 = vor.u32 %v1223, %v1226
        %v1228 = vsel %vm1160, %v1219, %v1227
        %v1229 = vrot.slane %v1227, 4
        %v1231 = vshrl.u32 %v1155, 16
        %v1233 = vrot.slane %v1231, 6
        %v1234 = vshll.u32 %v1155, 16
        %v1236 = vrot.slane %v1234, 7
        %v1237 = vor.u32 %v1233, %v1236
        %v1238 = vsel %vm1160, %v1229, %v1237
        %v1239 = vrot.slane %v1237, 4
        %v1241 = vshrl.u32 %v1156, 16
        %v1243 = vrot.slane %v1241, 6
        %v1244 = vshll.u32 %v1156, 16
        %v1246 = vrot.slane %v1244, 7
        %v1247 = vor.u32 %v1243, %v1246
        %v1248 = vsel %vm1160, %v1239, %v1247
        %v1249 = vrot.slane %v1247, 4
        %v1251 = vshrl.u32 %v1157, 16
        %v1253 = vrot.slane %v1251, 6
        %v1254 = vshll.u32 %v1157, 16
        %v1256 = vrot.slane %v1254, 7
        %v1257 = vor.u32 %v1253, %v1256
        %v1258 = vsel %vm1160, %v1249, %v1257
        %1259 = vrot.lane.b32.xlu0 %v1178, 64
        %v1260 = vpop.permute.xlu0 %1259
        %1261 = vrot.lane.b32.xlu0 %v1188, 64
        %v1262 = vpop.permute.xlu0 %1261
        %1263 = vrot.lane.b32.xlu0 %v1198, 64
        %v1264 = vpop.permute.xlu0 %1263
        %1265 = vrot.lane.b32.xlu0 %v1208, 64
        %v1266 = vpop.permute.xlu0 %1265
        %1267 = vrot.lane.b32.xlu0 %v1218, 64
        %v1268 = vpop.permute.xlu0 %1267
        %1269 = vrot.lane.b32.xlu0 %v1228, 64
        %v1270 = vpop.permute.xlu0 %1269
        %1271 = vrot.lane.b32.xlu0 %v1238, 64
        %v1272 = vpop.permute.xlu0 %1271
        %1273 = vrot.lane.b32.xlu0 %v1248, 64
        %v1274 = vpop.permute.xlu0 %1273
        %1275 = vrot.lane.b32.xlu0 %v1258, 64
        %v1276 = vpop.permute.xlu0 %1275
        %1286 = vst.msk [vmem:[#allocation2 + $0x8] sm:$0xf] %vm796, %v1260
        %1287 = vst.msk [vmem:[#allocation2 + $0x1c] sm:$0xf] %vm796, %v1262
        %1288 = vst.msk [vmem:[#allocation2 + $0x30] sm:$0xf] %vm796, %v1264
        %1289 = vst.msk [vmem:[#allocation2 + $0x44] sm:$0xf] %vm796, %v1266
        %1290 = vst.msk [vmem:[#allocation2 + $0x58] sm:$0xf] %vm796, %v1268
        %1291 = vst.msk [vmem:[#allocation2 + $0x6c] sm:$0xf] %vm796, %v1270
        %1292 = vst.msk [vmem:[#allocation2 + $0x80] sm:$0xf] %vm796, %v1272
        %1293 = vst.msk [vmem:[#allocation2 + $0x94] sm:$0xf] %vm796, %v1274
        %1294 = vst.msk [vmem:[#allocation2 + $0xa8] sm:$0xf] %vm796, %v1276
        %v1295 = vld [vmem:[%s234 + $0x18] sm:$0xc]
        %v1296 = vld [vmem:[%s234 + $0x1c] sm:$0xf]
        %v1297 = vld [vmem:[%s234 + $0x20] sm:$0xf]
        %v1298 = vld [vmem:[%s234 + $0x24] sm:$0xf]
        %v1299 = vld [vmem:[%s234 + $0x28] sm:$0xf]
        %v1300 = vld [vmem:[%s234 + $0x2c] sm:$0xf]
        %v1301 = vld [vmem:[%s234 + $0x30] sm:$0xf]
        %v1302 = vld [vmem:[%s234 + $0x34] sm:$0xf]
        %v1303 = vld [vmem:[%s234 + $0x38] sm:$0xf]
        %v1304 = vld [vmem:[%s234 + $0x3c] sm:$0x7]
        %v1306 = vshrl.u32 %v1295, 16
        %v1308 = vrot.slane %v1306, 6
        %v1309 = vshll.u32 %v1295, 16
        %v1311 = vrot.slane %v1309, 7
        %v1312 = vor.u32 %v1308, %v1311
        %v1313 = vrot.slane %v1312, 4
        %v1315 = vshrl.u32 %v1296, 16
        %v1317 = vrot.slane %v1315, 6
        %v1318 = vshll.u32 %v1296, 16
        %v1320 = vrot.slane %v1318, 7
        %v1321 = vor.u32 %v1317, %v1320
        %v1322 = vsel %vm1160, %v1313, %v1321
        %v1323 = vrot.slane %v1321, 4
        %v1325 = vshrl.u32 %v1297, 16
        %v1327 = vrot.slane %v1325, 6
        %v1328 = vshll.u32 %v1297, 16
        %v1330 = vrot.slane %v1328, 7
        %v1331 = vor.u32 %v1327, %v1330
        %v1332 = vsel %vm1160, %v1323, %v1331
        %v1333 = vrot.slane %v1331, 4
        %v1335 = vshrl.u32 %v1298, 16
        %v1337 = vrot.slane %v1335, 6
        %v1338 = vshll.u32 %v1298, 16
        %v1340 = vrot.slane %v1338, 7
        %v1341 = vor.u32 %v1337, %v1340
        %v1342 = vsel %vm1160, %v1333, %v1341
        %v1343 = vrot.slane %v1341, 4
        %v1345 = vshrl.u32 %v1299, 16
        %v1347 = vrot.slane %v1345, 6
        %v1348 = vshll.u32 %v1299, 16
        %v1350 = vrot.slane %v1348, 7
        %v1351 = vor.u32 %v1347, %v1350
        %v1352 = vsel %vm1160, %v1343, %v1351
        %v1353 = vrot.slane %v1351, 4
        %v1355 = vshrl.u32 %v1300, 16
        %v1357 = vrot.slane %v1355, 6
        %v1358 = vshll.u32 %v1300, 16
        %v1360 = vrot.slane %v1358, 7
        %v1361 = vor.u32 %v1357, %v1360
        %v1362 = vsel %vm1160, %v1353, %v1361
        %v1363 = vrot.slane %v1361, 4
        %v1365 = vshrl.u32 %v1301, 16
        %v1367 = vrot.slane %v1365, 6
        %v1368 = vshll.u32 %v1301, 16
        %v1370 = vrot.slane %v1368, 7
        %v1371 = vor.u32 %v1367, %v1370
        %v1372 = vsel %vm1160, %v1363, %v1371
        %v1373 = vrot.slane %v1371, 4
        %v1375 = vshrl.u32 %v1302, 16
        %v1377 = vrot.slane %v1375, 6
        %v1378 = vshll.u32 %v1302, 16
        %v1380 = vrot.slane %v1378, 7
        %v1381 = vor.u32 %v1377, %v1380
        %v1382 = vsel %vm1160, %v1373, %v1381
        %v1383 = vrot.slane %v1381, 4
        %v1385 = vshrl.u32 %v1303, 16
        %v1387 = vrot.slane %v1385, 6
        %v1388 = vshll.u32 %v1303, 16
        %v1390 = vrot.slane %v1388, 7
        %v1391 = vor.u32 %v1387, %v1390
        %v1392 = vsel %vm1160, %v1383, %v1391
        %v1393 = vrot.slane %v1391, 4
        %v1395 = vshrl.u32 %v1304, 16
        %v1397 = vrot.slane %v1395, 6
        %v1398 = vshll.u32 %v1304, 16
        %v1400 = vrot.slane %v1398, 7
        %v1401 = vor.u32 %v1397, %v1400
        %v1402 = vsel %vm1160, %v1393, %v1401
        %1412 = vst.msk [vmem:[#allocation2 + $0xc] sm:$0xf] %vm708, %v1322
        %1413 = vst.msk [vmem:[#allocation2 + $0x20] sm:$0xf] %vm708, %v1332
        %1414 = vst.msk [vmem:[#allocation2 + $0x34] sm:$0xf] %vm708, %v1342
        %1415 = vst.msk [vmem:[#allocation2 + $0x48] sm:$0xf] %vm708, %v1352
        %1416 = vst.msk [vmem:[#allocation2 + $0x5c] sm:$0xf] %vm708, %v1362
        %1417 = vst.msk [vmem:[#allocation2 + $0x70] sm:$0xf] %vm708, %v1372
        %1418 = vst.msk [vmem:[#allocation2 + $0x84] sm:$0xf] %vm708, %v1382
        %1419 = vst.msk [vmem:[#allocation2 + $0x98] sm:$0xf] %vm708, %v1392
        %1420 = vst.msk [vmem:[#allocation2 + $0xac] sm:$0xf] %vm708, %v1402
        %v1421 = vld [vmem:[%s234 + $0x18] sm:$0x8]
        %v1422 = vld [vmem:[%s234 + $0x1c] sm:$0xf]
        %v1423 = vld [vmem:[%s234 + $0x20] sm:$0xf]
        %v1424 = vld [vmem:[%s234 + $0x24] sm:$0xf]
        %v1425 = vld [vmem:[%s234 + $0x28] sm:$0xf]
        %v1426 = vld [vmem:[%s234 + $0x2c] sm:$0xf]
        %v1427 = vld [vmem:[%s234 + $0x30] sm:$0xf]
        %v1428 = vld [vmem:[%s234 + $0x34] sm:$0xf]
        %v1429 = vld [vmem:[%s234 + $0x38] sm:$0xf]
        %v1430 = vld [vmem:[%s234 + $0x3c] sm:$0x7]
        %vm1441 = vcmask 1040384
        %vm1442 = vcmask 1044484
        %vm1443 = vmor %vm1441, %vm1442
        %v1444 = vrot.slane %v1421, 7
        %v1445 = vrot.slane %v1444, 4
        %v1446 = vrot.slane %v1422, 7
        %v1447 = vsel %vm1443, %v1445, %v1446
        %v1448 = vrot.slane %v1446, 4
        %v1449 = vrot.slane %v1423, 7
        %v1450 = vsel %vm1443, %v1448, %v1449
        %v1451 = vrot.slane %v1449, 4
        %v1452 = vrot.slane %v1424, 7
        %v1453 = vsel %vm1443, %v1451, %v1452
        %v1454 = vrot.slane %v1452, 4
        %v1455 = vrot.slane %v1425, 7
        %v1456 = vsel %vm1443, %v1454, %v1455
        %v1457 = vrot.slane %v1455, 4
        %v1458 = vrot.slane %v1426, 7
        %v1459 = vsel %vm1443, %v1457, %v1458
        %v1460 = vrot.slane %v1458, 4
        %v1461 = vrot.slane %v1427, 7
        %v1462 = vsel %vm1443, %v1460, %v1461
        %v1463 = vrot.slane %v1461, 4
        %v1464 = vrot.slane %v1428, 7
        %v1465 = vsel %vm1443, %v1463, %v1464
        %v1466 = vrot.slane %v1464, 4
        %v1467 = vrot.slane %v1429, 7
        %v1468 = vsel %vm1443, %v1466, %v1467
        %v1469 = vrot.slane %v1467, 4
        %v1470 = vrot.slane %v1430, 7
        %v1471 = vsel %vm1443, %v1469, %v1470
        %1472 = vrot.lane.b32.xlu0 %v1447, 64
        %v1473 = vpop.permute.xlu0 %1472
        %1474 = vrot.lane.b32.xlu0 %v1450, 64
        %v1475 = vpop.permute.xlu0 %1474
        %1476 = vrot.lane.b32.xlu0 %v1453, 64
        %v1477 = vpop.permute.xlu0 %1476
        %1478 = vrot.lane.b32.xlu0 %v1456, 64
        %v1479 = vpop.permute.xlu0 %1478
        %1480 = vrot.lane.b32.xlu0 %v1459, 64
        %v1481 = vpop.permute.xlu0 %1480
        %1482 = vrot.lane.b32.xlu0 %v1462, 64
        %v1483 = vpop.permute.xlu0 %1482
        %1484 = vrot.lane.b32.xlu0 %v1465, 64
        %v1485 = vpop.permute.xlu0 %1484
        %1486 = vrot.lane.b32.xlu0 %v1468, 64
        %v1487 = vpop.permute.xlu0 %1486
        %1488 = vrot.lane.b32.xlu0 %v1471, 64
        %v1489 = vpop.permute.xlu0 %1488
        %1499 = vst.msk [vmem:[#allocation2 + $0xc] sm:$0xf] %vm796, %v1473
        %1500 = vst.msk [vmem:[#allocation2 + $0x20] sm:$0xf] %vm796, %v1475
        %1501 = vst.msk [vmem:[#allocation2 + $0x34] sm:$0xf] %vm796, %v1477
        %1502 = vst.msk [vmem:[#allocation2 + $0x48] sm:$0xf] %vm796, %v1479
        %1503 = vst.msk [vmem:[#allocation2 + $0x5c] sm:$0xf] %vm796, %v1481
        %1504 = vst.msk [vmem:[#allocation2 + $0x70] sm:$0xf] %vm796, %v1483
        %1505 = vst.msk [vmem:[#allocation2 + $0x84] sm:$0xf] %vm796, %v1485
        %1506 = vst.msk [vmem:[#allocation2 + $0x98] sm:$0xf] %vm796, %v1487
        %1507 = vst.msk [vmem:[#allocation2 + $0xac] sm:$0xf] %vm796, %v1489
        %v1508 = vld [vmem:[%s234 + $0x18] sm:$0x8]
        %v1509 = vld [vmem:[%s234 + $0x1c] sm:$0xf]
        %v1510 = vld [vmem:[%s234 + $0x20] sm:$0xf]
        %v1511 = vld [vmem:[%s234 + $0x24] sm:$0xf]
        %v1512 = vld [vmem:[%s234 + $0x28] sm:$0xf]
        %v1513 = vld [vmem:[%s234 + $0x2c] sm:$0xf]
        %v1514 = vld [vmem:[%s234 + $0x30] sm:$0xf]
        %v1515 = vld [vmem:[%s234 + $0x34] sm:$0xf]
        %v1516 = vld [vmem:[%s234 + $0x38] sm:$0xf]
        %v1517 = vld [vmem:[%s234 + $0x3c] sm:$0xf]
        %vm1518 = vsmask.f32 256
        %vm1519 = vsmask.f32 4368
        %vm1520 = vmor %vm1518, %vm1519
        %v1522 = vshrl.u32 %v1508, 16
        %v1524 = vrot.slane %v1522, 7
        %v1525 = vrot.slane %v1524, 4
        %v1527 = vshrl.u32 %v1509, 16
        %v1529 = vrot.slane %v1527, 7
        %v1530 = vshll.u32 %v1509, 16
        %v1532 = vor.u32 %v1529, %v1530
        %v1533 = vsel %vm1520, %v1525, %v1532
        %v1534 = vrot.slane %v1529, 4
        %v1536 = vshrl.u32 %v1510, 16
        %v1538 = vrot.slane %v1536, 7
        %v1539 = vshll.u32 %v1510, 16
        %v1541 = vor.u32 %v1538, %v1539
        %v1542 = vsel %vm1520, %v1534, %v1541
        %v1543 = vrot.slane %v1538, 4
        %v1545 = vshrl.u32 %v1511, 16
        %v1547 = vrot.slane %v1545, 7
        %v1548 = vshll.u32 %v1511, 16
        %v1550 = vor.u32 %v1547, %v1548
        %v1551 = vsel %vm1520, %v1543, %v1550
        %v1552 = vrot.slane %v1547, 4
        %v1554 = vshrl.u32 %v1512, 16
        %v1556 = vrot.slane %v1554, 7
        %v1557 = vshll.u32 %v1512, 16
        %v1559 = vor.u32 %v1556, %v1557
        %v1560 = vsel %vm1520, %v1552, %v1559
        %v1561 = vrot.slane %v1556, 4
        %v1563 = vshrl.u32 %v1513, 16
        %v1565 = vrot.slane %v1563, 7
        %v1566 = vshll.u32 %v1513, 16
        %v1568 = vor.u32 %v1565, %v1566
        %v1569 = vsel %vm1520, %v1561, %v1568
        %v1570 = vrot.slane %v1565, 4
        %v1572 = vshrl.u32 %v1514, 16
        %v1574 = vrot.slane %v1572, 7
        %v1575 = vshll.u32 %v1514, 16
        %v1577 = vor.u32 %v1574, %v1575
        %v1578 = vsel %vm1520, %v1570, %v1577
        %v1579 = vrot.slane %v1574, 4
        %v1581 = vshrl.u32 %v1515, 16
        %v1583 = vrot.slane %v1581, 7
        %v1584 = vshll.u32 %v1515, 16
        %v1586 = vor.u32 %v1583, %v1584
        %v1587 = vsel %vm1520, %v1579, %v1586
        %v1588 = vrot.slane %v1583, 4
        %v1590 = vshrl.u32 %v1516, 16
        %v1592 = vrot.slane %v1590, 7
        %v1593 = vshll.u32 %v1516, 16
        %v1595 = vor.u32 %v1592, %v1593
        %v1596 = vsel %vm1520, %v1588, %v1595
        %v1597 = vrot.slane %v1592, 4
        %v1599 = vshrl.u32 %v1517, 16
        %v1601 = vrot.slane %v1599, 7
        %v1602 = vshll.u32 %v1517, 16
        %v1604 = vor.u32 %v1601, %v1602
        %v1605 = vsel %vm1520, %v1597, %v1604
        %1615 = vst.msk [vmem:[#allocation2 + $0x10] sm:$0xf] %vm708, %v1533
        %1616 = vst.msk [vmem:[#allocation2 + $0x24] sm:$0xf] %vm708, %v1542
        %1617 = vst.msk [vmem:[#allocation2 + $0x38] sm:$0xf] %vm708, %v1551
        %1618 = vst.msk [vmem:[#allocation2 + $0x4c] sm:$0xf] %vm708, %v1560
        %1619 = vst.msk [vmem:[#allocation2 + $0x60] sm:$0xf] %vm708, %v1569
        %1620 = vst.msk [vmem:[#allocation2 + $0x74] sm:$0xf] %vm708, %v1578
        %1621 = vst.msk [vmem:[#allocation2 + $0x88] sm:$0xf] %vm708, %v1587
        %1622 = vst.msk [vmem:[#allocation2 + $0x9c] sm:$0xf] %vm708, %v1596
        %1623 = vst.msk [vmem:[#allocation2 + $0xb0] sm:$0xf] %vm708, %v1605
        %v1624 = vld [vmem:[#allocation2] sm:$0xff]
        %v1625 = vld [vmem:[#allocation2 + $0x8] sm:$0xff]
        %v1626 = vld [vmem:[#allocation2 + $0x10] sm:$0xf]
        %v1627 = vld [vmem:[#allocation2 + $0x14] sm:$0xff]
        %v1628 = vld [vmem:[#allocation2 + $0x1c] sm:$0xff]
        %v1629 = vld [vmem:[#allocation2 + $0x24] sm:$0xf]
        %v1630 = vld [vmem:[#allocation2 + $0x28] sm:$0xff]
        %v1631 = vld [vmem:[#allocation2 + $0x30] sm:$0xff]
        %v1632 = vld [vmem:[#allocation2 + $0x38] sm:$0xf]
        %v1633 = vld [vmem:[#allocation2 + $0x3c] sm:$0xff]
        %v1634 = vld [vmem:[#allocation2 + $0x44] sm:$0xff]
        %v1635 = vld [vmem:[#allocation2 + $0x4c] sm:$0xf]
        %v1636 = vld [vmem:[#allocation2 + $0x50] sm:$0xff]
        %v1637 = vld [vmem:[#allocation2 + $0x58] sm:$0xff]
        %v1638 = vld [vmem:[#allocation2 + $0x60] sm:$0xf]
        %v1639 = vld [vmem:[#allocation2 + $0x64] sm:$0xff]
        %v1640 = vld [vmem:[#allocation2 + $0x6c] sm:$0xff]
        %v1641 = vld [vmem:[#allocation2 + $0x74] sm:$0xf]
        %v1642 = vld [vmem:[#allocation2 + $0x78] sm:$0xff]
        %v1643 = vld [vmem:[#allocation2 + $0x80] sm:$0xff]
        %v1644 = vld [vmem:[#allocation2 + $0x88] sm:$0xf]
        %v1645 = vld [vmem:[#allocation2 + $0x8c] sm:$0xff]
        %v1646 = vld [vmem:[#allocation2 + $0x94] sm:$0xff]
        %v1647 = vld [vmem:[#allocation2 + $0x9c] sm:$0xf]
        %v1648 = vld [vmem:[#allocation2 + $0xa0] sm:$0xff]
        %v1649 = vld [vmem:[#allocation2 + $0xa8] sm:$0xff]
        %v1650 = vld [vmem:[#allocation2 + $0xb0] sm:$0xf]
        %v1651 = vld [vmem:[%s198] sm:$0xf]
        %v1652 = vld [vmem:[%s198 + $0x4] sm:$0xf]
        %v1653 = vld [vmem:[%s198 + $0x8] sm:$0xf]
        %v1654 = vld [vmem:[%s198 + $0xc] sm:$0xf]
        %v1655 = vld [vmem:[%s198 + $0x10] sm:$0xf]
        %v1656 = vld [vmem:[%s198 + $0x14] sm:$0xf]
        %v1657 = vld [vmem:[%s198 + $0x18] sm:$0xf]
        %v1658 = vld [vmem:[%s198 + $0x1c] sm:$0xf]
        %v1659 = vld [vmem:[%s198 + $0x20] sm:$0xf]
        %v1660 = vld [vmem:[%s198 + $0x24] sm:$0xf]
        %v1661 = vld [vmem:[%s198 + $0x28] sm:$0xf]
        %v1662 = vld [vmem:[%s198 + $0x2c] sm:$0xf]
        %v1663 = vld [vmem:[%s198 + $0x30] sm:$0xf]
        %v1664 = vld [vmem:[%s198 + $0x34] sm:$0xf]
        %v1665 = vld [vmem:[%s198 + $0x38] sm:$0xf]
        %v1666 = vld [vmem:[%s198 + $0x3c] sm:$0xf]
        %v1667 = vld [vmem:[%s198 + $0x40] sm:$0xf]
        %v1668 = vld [vmem:[%s198 + $0x44] sm:$0xf]
        %v1669 = vld [vmem:[%s198 + $0x48] sm:$0xf]
        %v1670 = vld [vmem:[%s198 + $0x4c] sm:$0xf]
        %v1671 = vld [vmem:[%s198 + $0x50] sm:$0xf]
        %v1672 = vld [vmem:[%s198 + $0x54] sm:$0xf]
        %v1673 = vld [vmem:[%s198 + $0x58] sm:$0xf]
        %v1674 = vld [vmem:[%s198 + $0x5c] sm:$0xf]
        %v1675 = vld [vmem:[%s198 + $0x60] sm:$0xf]
        %v1676 = vld [vmem:[%s198 + $0x64] sm:$0xf]
        %v1677 = vld [vmem:[%s198 + $0x68] sm:$0xf]
        %v1678 = vld [vmem:[%s198 + $0x6c] sm:$0xf]
        %v1679 = vld [vmem:[%s198 + $0x70] sm:$0xf]
        %v1680 = vld [vmem:[%s198 + $0x74] sm:$0xf]
        %v1681 = vld [vmem:[%s198 + $0x78] sm:$0xf]
        %v1682 = vld [vmem:[%s198 + $0x7c] sm:$0xf]
        %v1683 = vld [vmem:[%s198 + $0x80] sm:$0xf]
        %v1684 = vld [vmem:[%s198 + $0x84] sm:$0xf]
        %v1685 = vld [vmem:[%s198 + $0x88] sm:$0xf]
        %v1686 = vld [vmem:[%s198 + $0x8c] sm:$0xf]
        %v1687 = vld [vmem:[%s198 + $0x90] sm:$0xf]
        %v1688 = vld [vmem:[%s198 + $0x94] sm:$0xf]
        %v1689 = vld [vmem:[%s198 + $0x98] sm:$0xf]
        %v1690 = vld [vmem:[%s198 + $0x9c] sm:$0xf]
        %v1691 = vld [vmem:[%s198 + $0xa0] sm:$0xf]
        %v1692 = vld [vmem:[%s198 + $0xa4] sm:$0xf]
        %v1693 = vld [vmem:[%s198 + $0xa8] sm:$0xf]
        %v1694 = vld [vmem:[%s198 + $0xac] sm:$0xf]
        %v1695 = vld [vmem:[%s198 + $0xb0] sm:$0xf]
        %v1696 = vld [vmem:[%s198 + $0xb4] sm:$0xf]
        %v1697 = vld [vmem:[%s198 + $0xb8] sm:$0xf]
        %v1698 = vld [vmem:[%s198 + $0xbc] sm:$0xf]
        %v1699 = vld [vmem:[%s198 + $0xc0] sm:$0xf]
        %v1700 = vld [vmem:[%s198 + $0xc4] sm:$0xf]
        %v1701 = vld [vmem:[%s198 + $0xc8] sm:$0xf]
        %v1702 = vld [vmem:[%s198 + $0xcc] sm:$0xf]
        %v1703 = vld [vmem:[%s198 + $0xd0] sm:$0xf]
        %v1704 = vld [vmem:[%s198 + $0xd4] sm:$0xf]
        %v1705 = vld [vmem:[%s198 + $0xd8] sm:$0xf]
        %v1706 = vld [vmem:[%s198 + $0xdc] sm:$0xf]
        %v1707 = vld [vmem:[%s198 + $0xe0] sm:$0xf]
        %v1708 = vld [vmem:[%s198 + $0xe4] sm:$0xf]
        %v1709 = vld [vmem:[%s198 + $0xe8] sm:$0xf]
        %v1710 = vld [vmem:[%s198 + $0xec] sm:$0xf]
        %v1711 = vld [vmem:[%s198 + $0xf0] sm:$0xf]
        %v1712 = vld [vmem:[%s198 + $0xf4] sm:$0xf]
        %v1713 = vld [vmem:[%s198 + $0xf8] sm:$0xf]
        %v1714 = vld [vmem:[%s198 + $0xfc] sm:$0xf]
        %v1715 = vld [vmem:[%s198 + $0x100] sm:$0xf]
        %v1716 = vld [vmem:[%s198 + $0x104] sm:$0xf]
        %v1717 = vld [vmem:[%s198 + $0x108] sm:$0xf]
        %v1718 = vld [vmem:[%s198 + $0x10c] sm:$0xf]
        %v1719 = vld [vmem:[%s198 + $0x110] sm:$0xf]
        %v1720 = vld [vmem:[%s198 + $0x114] sm:$0xf]
        %v1721 = vld [vmem:[%s198 + $0x118] sm:$0xf]
        %v1722 = vld [vmem:[%s198 + $0x11c] sm:$0xf]
        %v1723 = vld [vmem:[%s237] sm:$0x1]
        %v1725 = vperm.slane %v1723, 0
        %v1754 = vunpack.c.l.b16 %v1624
        %v1755 = vunpack.c.h.b16 %v1624
        %v1756 = vunpack.c.l.b16 %v1625
        %v1757 = vunpack.c.h.b16 %v1625
        %v1758 = vunpack.c.l.b16 %v1626
        %v1759 = vunpack.c.l.b16 %v1627
        %v1760 = vunpack.c.h.b16 %v1627
        %v1761 = vunpack.c.l.b16 %v1628
        %v1762 = vunpack.c.h.b16 %v1628
        %v1763 = vunpack.c.l.b16 %v1629
        %v1764 = vunpack.c.l.b16 %v1630
        %v1765 = vunpack.c.h.b16 %v1630
        %v1766 = vunpack.c.l.b16 %v1631
        %v1767 = vunpack.c.h.b16 %v1631
        %v1768 = vunpack.c.l.b16 %v1632
        %v1769 = vunpack.c.l.b16 %v1633
        %v1770 = vunpack.c.h.b16 %v1633
        %v1771 = vunpack.c.l.b16 %v1634
        %v1772 = vunpack.c.h.b16 %v1634
        %v1773 = vunpack.c.l.b16 %v1635
        %v1774 = vunpack.c.l.b16 %v1636
        %v1775 = vunpack.c.h.b16 %v1636
        %v1776 = vunpack.c.l.b16 %v1637
        %v1777 = vunpack.c.h.b16 %v1637
        %v1778 = vunpack.c.l.b16 %v1638
        %v1779 = vunpack.c.l.b16 %v1639
        %v1780 = vunpack.c.h.b16 %v1639
        %v1781 = vunpack.c.l.b16 %v1640
        %v1782 = vunpack.c.h.b16 %v1640
        %v1783 = vunpack.c.l.b16 %v1641
        %v1784 = vunpack.c.l.b16 %v1642
        %v1785 = vunpack.c.h.b16 %v1642
        %v1786 = vunpack.c.l.b16 %v1643
        %v1787 = vunpack.c.h.b16 %v1643
        %v1788 = vunpack.c.l.b16 %v1644
        %v1789 = vunpack.c.l.b16 %v1645
        %v1790 = vunpack.c.h.b16 %v1645
        %v1791 = vunpack.c.l.b16 %v1646
        %v1792 = vunpack.c.h.b16 %v1646
        %v1793 = vunpack.c.l.b16 %v1647
        %v1794 = vunpack.c.l.b16 %v1648
        %v1795 = vunpack.c.h.b16 %v1648
        %v1796 = vunpack.c.l.b16 %v1649
        %v1797 = vunpack.c.h.b16 %v1649
        %v1798 = vunpack.c.l.b16 %v1650
        %v1799 = vpack.c.b16 %v1759, %v1754
        %v1800 = vpack.c.b16 %v1760, %v1755
        %v1801 = vpack.c.b16 %v1761, %v1756
        %v1802 = vpack.c.b16 %v1762, %v1757
        %v1803 = vpack.c.b16 %v1763, %v1758
        %v1804 = vpack.c.b16 %v1769, %v1764
        %v1805 = vpack.c.b16 %v1770, %v1765
        %v1806 = vpack.c.b16 %v1771, %v1766
        %v1807 = vpack.c.b16 %v1772, %v1767
        %v1808 = vpack.c.b16 %v1773, %v1768
        %v1809 = vpack.c.b16 %v1779, %v1774
        %v1810 = vpack.c.b16 %v1780, %v1775
        %v1811 = vpack.c.b16 %v1781, %v1776
        %v1812 = vpack.c.b16 %v1782, %v1777
        %v1813 = vpack.c.b16 %v1783, %v1778
        %v1814 = vpack.c.b16 %v1789, %v1784
        %v1815 = vpack.c.b16 %v1790, %v1785
        %v1816 = vpack.c.b16 %v1791, %v1786
        %v1817 = vpack.c.b16 %v1792, %v1787
        %v1818 = vpack.c.b16 %v1793, %v1788
        %v1819 = vpack.c.b16 %v1794, %v1794
        %v1820 = vpack.c.b16 %v1795, %v1795
        %v1821 = vpack.c.b16 %v1796, %v1796
        %v1822 = vpack.c.b16 %v1797, %v1797
        %v1823 = vpack.c.b16 %v1798, %v1798
        %v1916 = vunpack.c.l.b16 %v1651
        %v1917 = vunpack.c.l.b16 %v1652
        %v1918 = vunpack.c.l.b16 %v1653
        %v1919 = vunpack.c.l.b16 %v1654
        %v1920 = vunpack.c.l.b16 %v1655
        %v1921 = vunpack.c.l.b16 %v1656
        %v1922 = vunpack.c.l.b16 %v1657
        %v1923 = vunpack.c.l.b16 %v1658
        %v1924 = vunpack.c.l.b16 %v1659
        %v1925 = vunpack.c.l.b16 %v1660
        %v1926 = vunpack.c.l.b16 %v1661
        %v1927 = vunpack.c.l.b16 %v1662
        %v1928 = vunpack.c.l.b16 %v1663
        %v1929 = vunpack.c.l.b16 %v1664
        %v1930 = vunpack.c.l.b16 %v1665
        %v1931 = vunpack.c.l.b16 %v1666
        %v1932 = vunpack.c.l.b16 %v1667
        %v1933 = vunpack.c.l.b16 %v1668
        %v1934 = vunpack.c.l.b16 %v1669
        %v1935 = vunpack.c.l.b16 %v1670
        %v1936 = vunpack.c.l.b16 %v1671
        %v1937 = vunpack.c.l.b16 %v1672
        %v1938 = vunpack.c.l.b16 %v1673
        %v1939 = vunpack.c.l.b16 %v1674
        %v1940 = vunpack.c.l.b16 %v1675
        %v1941 = vunpack.c.l.b16 %v1676
        %v1942 = vunpack.c.l.b16 %v1677
        %v1943 = vunpack.c.l.b16 %v1678
        %v1944 = vunpack.c.l.b16 %v1679
        %v1945 = vunpack.c.l.b16 %v1680
        %v1946 = vunpack.c.l.b16 %v1681
        %v1947 = vunpack.c.l.b16 %v1682
        %v1948 = vunpack.c.l.b16 %v1683
        %v1949 = vunpack.c.l.b16 %v1684
        %v1950 = vunpack.c.l.b16 %v1685
        %v1951 = vunpack.c.l.b16 %v1686
        %v1952 = vunpack.c.l.b16 %v1687
        %v1953 = vunpack.c.l.b16 %v1688
        %v1954 = vunpack.c.l.b16 %v1689
        %v1955 = vunpack.c.l.b16 %v1690
        %v1956 = vunpack.c.l.b16 %v1691
        %v1957 = vunpack.c.l.b16 %v1692
        %v1958 = vunpack.c.l.b16 %v1693
        %v1959 = vunpack.c.l.b16 %v1694
        %v1960 = vunpack.c.l.b16 %v1695
        %v1961 = vunpack.c.l.b16 %v1696
        %v1962 = vunpack.c.l.b16 %v1697
        %v1963 = vunpack.c.l.b16 %v1698
        %v1964 = vunpack.c.l.b16 %v1699
        %v1965 = vunpack.c.l.b16 %v1700
        %v1966 = vunpack.c.l.b16 %v1701
        %v1967 = vunpack.c.l.b16 %v1702
        %v1968 = vunpack.c.l.b16 %v1703
        %v1969 = vunpack.c.l.b16 %v1704
        %v1970 = vunpack.c.l.b16 %v1705
        %v1971 = vunpack.c.l.b16 %v1706
        %v1972 = vunpack.c.l.b16 %v1707
        %v1973 = vunpack.c.l.b16 %v1708
        %v1974 = vunpack.c.l.b16 %v1709
        %v1975 = vunpack.c.l.b16 %v1710
        %v1976 = vunpack.c.l.b16 %v1711
        %v1977 = vunpack.c.l.b16 %v1712
        %v1978 = vunpack.c.l.b16 %v1713
        %v1979 = vunpack.c.l.b16 %v1714
        %v1980 = vunpack.c.l.b16 %v1715
        %v1981 = vunpack.c.l.b16 %v1716
        %v1982 = vunpack.c.l.b16 %v1717
        %v1983 = vunpack.c.l.b16 %v1718
        %v1984 = vunpack.c.l.b16 %v1719
        %v1985 = vunpack.c.l.b16 %v1720
        %v1986 = vunpack.c.l.b16 %v1721
        %v1987 = vunpack.c.l.b16 %v1722
        %v1988 = vpack.c.b16 %v1917, %v1916
        %v1989 = vpack.c.b16 %v1919, %v1918
        %v1990 = vpack.c.b16 %v1921, %v1920
        %v1991 = vpack.c.b16 %v1923, %v1922
        %v1992 = vpack.c.b16 %v1925, %v1924
        %v1993 = vpack.c.b16 %v1927, %v1926
        %v1994 = vpack.c.b16 %v1929, %v1928
        %v1995 = vpack.c.b16 %v1931, %v1930
        %v1996 = vpack.c.b16 %v1933, %v1932
        %v1997 = vpack.c.b16 %v1935, %v1934
        %v1998 = vpack.c.b16 %v1937, %v1936
        %v1999 = vpack.c.b16 %v1939, %v1938
        %v2000 = vpack.c.b16 %v1941, %v1940
        %v2001 = vpack.c.b16 %v1943, %v1942
        %v2002 = vpack.c.b16 %v1945, %v1944
        %v2003 = vpack.c.b16 %v1947, %v1946
        %v2004 = vpack.c.b16 %v1949, %v1948
        %v2005 = vpack.c.b16 %v1951, %v1950
        %v2006 = vpack.c.b16 %v1953, %v1952
        %v2007 = vpack.c.b16 %v1955, %v1954
        %v2008 = vpack.c.b16 %v1957, %v1956
        %v2009 = vpack.c.b16 %v1959, %v1958
        %v2010 = vpack.c.b16 %v1961, %v1960
        %v2011 = vpack.c.b16 %v1963, %v1962
        %v2012 = vpack.c.b16 %v1965, %v1964
        %v2013 = vpack.c.b16 %v1967, %v1966
        %v2014 = vpack.c.b16 %v1969, %v1968
        %v2015 = vpack.c.b16 %v1971, %v1970
        %v2016 = vpack.c.b16 %v1973, %v1972
        %v2017 = vpack.c.b16 %v1975, %v1974
        %v2018 = vpack.c.b16 %v1977, %v1976
        %v2019 = vpack.c.b16 %v1979, %v1978
        %v2020 = vpack.c.b16 %v1981, %v1980
        %v2021 = vpack.c.b16 %v1983, %v1982
        %v2022 = vpack.c.b16 %v1985, %v1984
        %v2023 = vpack.c.b16 %v1987, %v1986
        %vm2060 = vcmask 523264
        %v2062 = vsel %vm2060, %v1803, 0
        %v2065 = vsel %vm2060, %v1808, 0
        %v2068 = vsel %vm2060, %v1813, 0
        %v2071 = vsel %vm2060, %v1818, 0
        %v2074 = vsel %vm2060, %v1823, 0
        %2076 = vmatpush.bf16.msra.mxu0 %v1995
        %2077 = vmatpush.bf16.msra.mxu0 %v1994
        %2078 = vmatpush.bf16.msra.mxu0 %v1993
        %2079 = vmatpush.bf16.msra.mxu0 %v1992
        %2080 = vmatpush.bf16.msra.mxu0 %v1991
        %2081 = vmatpush.bf16.msra.mxu0 %v1990
        %2082 = vmatpush.bf16.msra.mxu0 %v1989
        %2083 = vmatpush.bf16.msra.mxu0 %v1988
        %2084 = vmatmul.bf16.gmra.mxu0 %v1799
        %v2085 = vpop.f32.mrf.mxu0
        %v2086 = vadd.f32 %v1725, %v2085
        %v2087 = vpop.f32.mrf.mxu0
        %v2088 = vadd.f32 %v1725, %v2087
        %2089 = vmatmul.bf16.gmra.mxu0 %v1804
        %v2090 = vpop.f32.mrf.mxu0
        %v2091 = vadd.f32 %v1725, %v2090
        %v2092 = vpop.f32.mrf.mxu0
        %v2093 = vadd.f32 %v1725, %v2092
        %2094 = vmatmul.bf16.gmra.mxu0 %v1809
        %v2095 = vpop.f32.mrf.mxu0
        %v2096 = vadd.f32 %v1725, %v2095
        %v2097 = vpop.f32.mrf.mxu0
        %v2098 = vadd.f32 %v1725, %v2097
        %2099 = vmatmul.bf16.gmra.mxu0 %v1814
        %v2100 = vpop.f32.mrf.mxu0
        %v2101 = vadd.f32 %v1725, %v2100
        %v2102 = vpop.f32.mrf.mxu0
        %v2103 = vadd.f32 %v1725, %v2102
        %2104 = vmatmul.bf16.gmra.mxu0 %v1819
        %v2105 = vpop.f32.mrf.mxu0
        %v2106 = vadd.f32 %v1725, %v2105
        %v2107 = vpop.f32.mrf.mxu0
        %2108 = vdwg.mxu0
        %2109 = vmatpush.bf16.msra.mxu0 %v2003
        %2110 = vmatpush.bf16.msra.mxu0 %v2002
        %2111 = vmatpush.bf16.msra.mxu0 %v2001
        %2112 = vmatpush.bf16.msra.mxu0 %v2000
        %2113 = vmatpush.bf16.msra.mxu0 %v1999
        %2114 = vmatpush.bf16.msra.mxu0 %v1998
        %2115 = vmatpush.bf16.msra.mxu0 %v1997
        %2116 = vmatpush.bf16.msra.mxu0 %v1996
        %2117 = vmatmul.bf16.gmra.mxu0 %v1800
        %v2118 = vpop.f32.mrf.mxu0
        %v2119 = vadd.f32 %v2086, %v2118
        %v2120 = vpop.f32.mrf.mxu0
        %v2121 = vadd.f32 %v2088, %v2120
        %2122 = vmatmul.bf16.gmra.mxu0 %v1805
        %v2123 = vpop.f32.mrf.mxu0
        %v2124 = vadd.f32 %v2091, %v2123
        %v2125 = vpop.f32.mrf.mxu0
        %v2126 = vadd.f32 %v2093, %v2125
        %2127 = vmatmul.bf16.gmra.mxu0 %v1810
        %v2128 = vpop.f32.mrf.mxu0
        %v2129 = vadd.f32 %v2096, %v2128
        %v2130 = vpop.f32.mrf.mxu0
        %v2131 = vadd.f32 %v2098, %v2130
        %2132 = vmatmul.bf16.gmra.mxu0 %v1815
        %v2133 = vpop.f32.mrf.mxu0
        %v2134 = vadd.f32 %v2101, %v2133
        %v2135 = vpop.f32.mrf.mxu0
        %v2136 = vadd.f32 %v2103, %v2135
        %2137 = vmatmul.bf16.gmra.mxu0 %v1820
        %v2138 = vpop.f32.mrf.mxu0
        %v2139 = vadd.f32 %v2106, %v2138
        %v2140 = vpop.f32.mrf.mxu0
        %2141 = vdwg.mxu0
        %2142 = vmatpush.bf16.msra.mxu0 %v2011
        %2143 = vmatpush.bf16.msra.mxu0 %v2010
        %2144 = vmatpush.bf16.msra.mxu0 %v2009
        %2145 = vmatpush.bf16.msra.mxu0 %v2008
        %2146 = vmatpush.bf16.msra.mxu0 %v2007
        %2147 = vmatpush.bf16.msra.mxu0 %v2006
        %2148 = vmatpush.bf16.msra.mxu0 %v2005
        %2149 = vmatpush.bf16.msra.mxu0 %v2004
        %2150 = vmatmul.bf16.gmra.mxu0 %v1801
        %v2151 = vpop.f32.mrf.mxu0
        %v2152 = vadd.f32 %v2119, %v2151
        %v2153 = vpop.f32.mrf.mxu0
        %v2154 = vadd.f32 %v2121, %v2153
        %2155 = vmatmul.bf16.gmra.mxu0 %v1806
        %v2156 = vpop.f32.mrf.mxu0
        %v2157 = vadd.f32 %v2124, %v2156
        %v2158 = vpop.f32.mrf.mxu0
        %v2159 = vadd.f32 %v2126, %v2158
        %2160 = vmatmul.bf16.gmra.mxu0 %v1811
        %v2161 = vpop.f32.mrf.mxu0
        %v2162 = vadd.f32 %v2129, %v2161
        %v2163 = vpop.f32.mrf.mxu0
        %v2164 = vadd.f32 %v2131, %v2163
        %2165 = vmatmul.bf16.gmra.mxu0 %v1816
        %v2166 = vpop.f32.mrf.mxu0
        %v2167 = vadd.f32 %v2134, %v2166
        %v2168 = vpop.f32.mrf.mxu0
        %v2169 = vadd.f32 %v2136, %v2168
        %2170 = vmatmul.bf16.gmra.mxu0 %v1821
        %v2171 = vpop.f32.mrf.mxu0
        %v2172 = vadd.f32 %v2139, %v2171
        %v2173 = vpop.f32.mrf.mxu0
        %2174 = vdwg.mxu0
        %2175 = vmatpush.bf16.msra.mxu0 %v2019
        %2176 = vmatpush.bf16.msra.mxu0 %v2018
        %2177 = vmatpush.bf16.msra.mxu0 %v2017
        %2178 = vmatpush.bf16.msra.mxu0 %v2016
        %2179 = vmatpush.bf16.msra.mxu0 %v2015
        %2180 = vmatpush.bf16.msra.mxu0 %v2014
        %2181 = vmatpush.bf16.msra.mxu0 %v2013
        %2182 = vmatpush.bf16.msra.mxu0 %v2012
        %2183 = vmatmul.bf16.gmra.mxu0 %v1802
        %v2184 = vpop.f32.mrf.mxu0
        %v2185 = vadd.f32 %v2152, %v2184
        %v2186 = vpop.f32.mrf.mxu0
        %v2187 = vadd.f32 %v2154, %v2186
        %2188 = vmatmul.bf16.gmra.mxu0 %v1807
        %v2189 = vpop.f32.mrf.mxu0
        %v2190 = vadd.f32 %v2157, %v2189
        %v2191 = vpop.f32.mrf.mxu0
        %v2192 = vadd.f32 %v2159, %v2191
        %2193 = vmatmul.bf16.gmra.mxu0 %v1812
        %v2194 = vpop.f32.mrf.mxu0
        %v2195 = vadd.f32 %v2162, %v2194
        %v2196 = vpop.f32.mrf.mxu0
        %v2197 = vadd.f32 %v2164, %v2196
        %2198 = vmatmul.bf16.gmra.mxu0 %v1817
        %v2199 = vpop.f32.mrf.mxu0
        %v2200 = vadd.f32 %v2167, %v2199
        %v2201 = vpop.f32.mrf.mxu0
        %v2202 = vadd.f32 %v2169, %v2201
        %2203 = vmatmul.bf16.gmra.mxu0 %v1822
        %v2204 = vpop.f32.mrf.mxu0
        %v2205 = vadd.f32 %v2172, %v2204
        %v2206 = vpop.f32.mrf.mxu0
        %2207 = vdwg.mxu0
        %2208 = vmatpush.bf16.msra.mxu0 0
        %2209 = vmatpush.bf16.msra.mxu0 0
        %2210 = vmatpush.bf16.msra.mxu0 0
        %2211 = vmatpush.bf16.msra.mxu0 0
        %2212 = vmatpush.bf16.msra.mxu0 %v2023
        %2213 = vmatpush.bf16.msra.mxu0 %v2022
        %2214 = vmatpush.bf16.msra.mxu0 %v2021
        %2215 = vmatpush.bf16.msra.mxu0 %v2020
        %2216 = vmatmul.bf16.gmra.mxu0 %v2062
        %v2217 = vpop.f32.mrf.mxu0
        %v2218 = vadd.f32 %v2185, %v2217
        %v2219 = vpop.f32.mrf.mxu0
        %v2220 = vadd.f32 %v2187, %v2219
        %2221 = vmatmul.bf16.gmra.mxu0 %v2065
        %v2222 = vpop.f32.mrf.mxu0
        %v2223 = vadd.f32 %v2190, %v2222
        %v2224 = vpop.f32.mrf.mxu0
        %v2225 = vadd.f32 %v2192, %v2224
        %2226 = vmatmul.bf16.gmra.mxu0 %v2068
        %v2227 = vpop.f32.mrf.mxu0
        %v2228 = vadd.f32 %v2195, %v2227
        %v2229 = vpop.f32.mrf.mxu0
        %v2230 = vadd.f32 %v2197, %v2229
        %2231 = vmatmul.bf16.gmra.mxu0 %v2071
        %v2232 = vpop.f32.mrf.mxu0
        %v2233 = vadd.f32 %v2200, %v2232
        %v2234 = vpop.f32.mrf.mxu0
        %v2235 = vadd.f32 %v2202, %v2234
        %2236 = vmatmul.bf16.gmra.mxu0 %v2074
        %v2237 = vpop.f32.mrf.mxu0
        %v2238 = vadd.f32 %v2205, %v2237
        %v2239 = vpop.f32.mrf.mxu0
        %2240 = vdwg.mxu0
        %v2241 = vmax.f32 %v2218, 0.0
        %v2242 = vmax.f32 %v2220, 0.0
        %v2243 = vmax.f32 %v2223, 0.0
        %v2244 = vmax.f32 %v2225, 0.0
        %v2245 = vmax.f32 %v2228, 0.0
        %v2246 = vmax.f32 %v2230, 0.0
        %v2247 = vmax.f32 %v2233, 0.0
        %v2248 = vmax.f32 %v2235, 0.0
        %v2249 = vmax.f32 %v2238, 0.0
        %v2250 = vsel %vm583, 1, 0
        %v2251 = vsel %vm584, 1, 0
        %v2252 = vsel %vm585, 1, 0
        %v2253 = vsel %vm586, 1, 0
        %v2254 = vsel %vm587, 1, 0
        %v2255 = vsel %vm588, 1, 0
        %v2256 = vsel %vm589, 1, 0
        %v2257 = vsel %vm590, 1, 0
        %v2258 = vsel %vm591, 1, 0
        %vm2259 = vcmp.eq.s32.totalorder %v2250, 1
        %vm2260 = vcmp.eq.s32.totalorder %v2251, 1
        %vm2261 = vcmp.eq.s32.totalorder %v2252, 1
        %vm2262 = vcmp.eq.s32.totalorder %v2253, 1
        %vm2263 = vcmp.eq.s32.totalorder %v2254, 1
        %vm2264 = vcmp.eq.s32.totalorder %v2255, 1
        %vm2265 = vcmp.eq.s32.totalorder %v2256, 1
        %vm2266 = vcmp.eq.s32.totalorder %v2257, 1
        %vm2267 = vcmp.eq.s32.totalorder %v2258, 1
        %v2268 = vsel %vm2259, %v2241, 0.0
        %v2269 = vsel %vm2260, %v2242, 0.0
        %v2270 = vsel %vm2261, %v2243, 0.0
        %v2271 = vsel %vm2262, %v2244, 0.0
        %v2272 = vsel %vm2263, %v2245, 0.0
        %v2273 = vsel %vm2264, %v2246, 0.0
        %v2274 = vsel %vm2265, %v2247, 0.0
        %v2275 = vsel %vm2266, %v2248, 0.0
        %v2276 = vsel %vm2267, %v2249, 0.0
        %v2277 = vpack.c.bf16 %v2268, %v2268
        %v2278 = vpack.c.bf16 %v2269, %v2269
        %v2279 = vpack.c.bf16 %v2270, %v2270
        %v2280 = vpack.c.bf16 %v2271, %v2271
        %v2281 = vpack.c.bf16 %v2272, %v2272
        %v2282 = vpack.c.bf16 %v2273, %v2273
        %v2283 = vpack.c.bf16 %v2274, %v2274
        %v2284 = vpack.c.bf16 %v2275, %v2275
        %v2285 = vpack.c.bf16 %v2276, %v2276
        %v2295 = vrot.slane %v2277, 6
        %v2296 = vrot.slane %v2295, 4
        %v2297 = vrot.slane %v2278, 6
        %v2298 = vsel %vm1101, %v2296, %v2297
        %v2299 = vrot.slane %v2297, 4
        %v2300 = vrot.slane %v2279, 6
        %v2301 = vsel %vm1101, %v2299, %v2300
        %v2302 = vrot.slane %v2300, 4
        %v2303 = vrot.slane %v2280, 6
        %v2304 = vsel %vm1101, %v2302, %v2303
        %v2305 = vrot.slane %v2303, 4
        %v2306 = vrot.slane %v2281, 6
        %v2307 = vsel %vm1101, %v2305, %v2306
        %v2308 = vrot.slane %v2306, 4
        %v2309 = vrot.slane %v2282, 6
        %v2310 = vsel %vm1101, %v2308, %v2309
        %v2311 = vrot.slane %v2309, 4
        %v2312 = vrot.slane %v2283, 6
        %v2313 = vsel %vm1101, %v2311, %v2312
        %v2314 = vrot.slane %v2312, 4
        %v2315 = vrot.slane %v2284, 6
        %v2316 = vsel %vm1101, %v2314, %v2315
        %v2317 = vrot.slane %v2315, 4
        %v2318 = vrot.slane %v2285, 6
        %v2319 = vsel %vm1101, %v2317, %v2318
        %v2320 = vrot.slane %v2318, 4
        %2331 = vst [vmem:[%s229 + $0x10] sm:$0xc] %v2295
        %2332 = vst [vmem:[%s229 + $0x14] sm:$0xf] %v2298
        %2333 = vst [vmem:[%s229 + $0x18] sm:$0xf] %v2301
        %2334 = vst [vmem:[%s229 + $0x1c] sm:$0xf] %v2304
        %2335 = vst [vmem:[%s229 + $0x20] sm:$0xf] %v2307
        %2336 = vst [vmem:[%s229 + $0x24] sm:$0xf] %v2310
        %2337 = vst [vmem:[%s229 + $0x28] sm:$0xf] %v2313
        %2338 = vst [vmem:[%s229 + $0x2c] sm:$0xf] %v2316
        %2339 = vst [vmem:[%s229 + $0x30] sm:$0xf] %v2319
        %2340 = vst [vmem:[%s229 + $0x34] sm:$0x3] %v2320
        %v2341 = vld [vmem:[%s234 + $0x2c] sm:$0xf]
        %v2342 = vld [vmem:[%s234 + $0x30] sm:$0xf]
        %v2343 = vld [vmem:[%s234 + $0x34] sm:$0xf]
        %v2344 = vld [vmem:[%s234 + $0x38] sm:$0xf]
        %v2345 = vld [vmem:[%s234 + $0x3c] sm:$0xf]
        %v2346 = vld [vmem:[%s234 + $0x40] sm:$0xf]
        %v2347 = vld [vmem:[%s234 + $0x44] sm:$0xf]
        %v2348 = vld [vmem:[%s234 + $0x48] sm:$0xf]
        %v2349 = vld [vmem:[%s234 + $0x4c] sm:$0xf]
        %v2350 = vld [vmem:[%s234 + $0x50] sm:$0x1]
        %v2352 = vshrl.u32 %v2341, 16
        %v2354 = vrot.slane %v2352, 4
        %v2355 = vshll.u32 %v2341, 16
        %v2357 = vrot.slane %v2355, 5
        %v2358 = vor.u32 %v2354, %v2357
        %v2359 = vrot.slane %v2358, 4
        %v2361 = vshll.u32 %v2342, 16
        %v2363 = vrot.slane %v2361, 5
        %v2364 = vsel %vm604, %v2359, %v2363
        %v2365 = vshrl.u32 %v2342, 16
        %v2367 = vrot.slane %v2365, 4
        %v2368 = vor.u32 %v2367, %v2363
        %v2369 = vrot.slane %v2368, 4
        %v2371 = vshll.u32 %v2343, 16
        %v2373 = vrot.slane %v2371, 5
        %v2374 = vsel %vm604, %v2369, %v2373
        %v2375 = vshrl.u32 %v2343, 16
        %v2377 = vrot.slane %v2375, 4
        %v2378 = vor.u32 %v2377, %v2373
        %v2379 = vrot.slane %v2378, 4
        %v2381 = vshll.u32 %v2344, 16
        %v2383 = vrot.slane %v2381, 5
        %v2384 = vsel %vm604, %v2379, %v2383
        %v2385 = vshrl.u32 %v2344, 16
        %v2387 = vrot.slane %v2385, 4
        %v2388 = vor.u32 %v2387, %v2383
        %v2389 = vrot.slane %v2388, 4
        %v2391 = vshll.u32 %v2345, 16
        %v2393 = vrot.slane %v2391, 5
        %v2394 = vsel %vm604, %v2389, %v2393
        %v2395 = vshrl.u32 %v2345, 16
        %v2397 = vrot.slane %v2395, 4
        %v2398 = vor.u32 %v2397, %v2393
        %v2399 = vrot.slane %v2398, 4
        %v2401 = vshll.u32 %v2346, 16
        %v2403 = vrot.slane %v2401, 5
        %v2404 = vsel %vm604, %v2399, %v2403
        %v2405 = vshrl.u32 %v2346, 16
        %v2407 = vrot.slane %v2405, 4
        %v2408 = vor.u32 %v2407, %v2403
        %v2409 = vrot.slane %v2408, 4
        %v2411 = vshll.u32 %v2347, 16
        %v2413 = vrot.slane %v2411, 5
        %v2414 = vsel %vm604, %v2409, %v2413
        %v2415 = vshrl.u32 %v2347, 16
        %v2417 = vrot.slane %v2415, 4
        %v2418 = vor.u32 %v2417, %v2413
        %v2419 = vrot.slane %v2418, 4
        %v2421 = vshll.u32 %v2348, 16
        %v2423 = vrot.slane %v2421, 5
        %v2424 = vsel %vm604, %v2419, %v2423
        %v2425 = vshrl.u32 %v2348, 16
        %v2427 = vrot.slane %v2425, 4
        %v2428 = vor.u32 %v2427, %v2423
        %v2429 = vrot.slane %v2428, 4
        %v2431 = vshll.u32 %v2349, 16
        %v2433 = vrot.slane %v2431, 5
        %v2434 = vsel %vm604, %v2429, %v2433
        %v2435 = vshrl.u32 %v2349, 16
        %v2437 = vrot.slane %v2435, 4
        %v2438 = vor.u32 %v2437, %v2433
        %v2439 = vrot.slane %v2438, 4
        %v2441 = vshll.u32 %v2350, 16
        %v2443 = vrot.slane %v2441, 5
        %v2444 = vsel %vm604, %v2439, %v2443
        %2454 = vst.msk [vmem:[#allocation2] sm:$0xf] %vm708, %v2364
        %2455 = vst.msk [vmem:[#allocation2 + $0x14] sm:$0xf] %vm708, %v2374
        %2456 = vst.msk [vmem:[#allocation2 + $0x28] sm:$0xf] %vm708, %v2384
        %2457 = vst.msk [vmem:[#allocation2 + $0x3c] sm:$0xf] %vm708, %v2394
        %2458 = vst.msk [vmem:[#allocation2 + $0x50] sm:$0xf] %vm708, %v2404
        %2459 = vst.msk [vmem:[#allocation2 + $0x64] sm:$0xf] %vm708, %v2414
        %2460 = vst.msk [vmem:[#allocation2 + $0x78] sm:$0xf] %vm708, %v2424
        %2461 = vst.msk [vmem:[#allocation2 + $0x8c] sm:$0xf] %vm708, %v2434
        %2462 = vst.msk [vmem:[#allocation2 + $0xa0] sm:$0xf] %vm708, %v2444
        %v2463 = vld [vmem:[%s234 + $0x2c] sm:$0xe]
        %v2464 = vld [vmem:[%s234 + $0x30] sm:$0xf]
        %v2465 = vld [vmem:[%s234 + $0x34] sm:$0xf]
        %v2466 = vld [vmem:[%s234 + $0x38] sm:$0xf]
        %v2467 = vld [vmem:[%s234 + $0x3c] sm:$0xf]
        %v2468 = vld [vmem:[%s234 + $0x40] sm:$0xf]
        %v2469 = vld [vmem:[%s234 + $0x44] sm:$0xf]
        %v2470 = vld [vmem:[%s234 + $0x48] sm:$0xf]
        %v2471 = vld [vmem:[%s234 + $0x4c] sm:$0xf]
        %v2472 = vld [vmem:[%s234 + $0x50] sm:$0x1]
        %v2483 = vrot.slane %v2463, 5
        %v2484 = vrot.slane %v2483, 4
        %v2485 = vrot.slane %v2464, 5
        %v2486 = vsel %vm740, %v2484, %v2485
        %v2487 = vrot.slane %v2485, 4
        %v2488 = vrot.slane %v2465, 5
        %v2489 = vsel %vm740, %v2487, %v2488
        %v2490 = vrot.slane %v2488, 4
        %v2491 = vrot.slane %v2466, 5
        %v2492 = vsel %vm740, %v2490, %v2491
        %v2493 = vrot.slane %v2491, 4
        %v2494 = vrot.slane %v2467, 5
        %v2495 = vsel %vm740, %v2493, %v2494
        %v2496 = vrot.slane %v2494, 4
        %v2497 = vrot.slane %v2468, 5
        %v2498 = vsel %vm740, %v2496, %v2497
        %v2499 = vrot.slane %v2497, 4
        %v2500 = vrot.slane %v2469, 5
        %v2501 = vsel %vm740, %v2499, %v2500
        %v2502 = vrot.slane %v2500, 4
        %v2503 = vrot.slane %v2470, 5
        %v2504 = vsel %vm740, %v2502, %v2503
        %v2505 = vrot.slane %v2503, 4
        %v2506 = vrot.slane %v2471, 5
        %v2507 = vsel %vm740, %v2505, %v2506
        %v2508 = vrot.slane %v2506, 4
        %v2509 = vrot.slane %v2472, 5
        %v2510 = vsel %vm740, %v2508, %v2509
        %2511 = vrot.lane.b32.xlu0 %v2486, 64
        %v2512 = vpop.permute.xlu0 %2511
        %2513 = vrot.lane.b32.xlu0 %v2489, 64
        %v2514 = vpop.permute.xlu0 %2513
        %2515 = vrot.lane.b32.xlu0 %v2492, 64
        %v2516 = vpop.permute.xlu0 %2515
        %2517 = vrot.lane.b32.xlu0 %v2495, 64
        %v2518 = vpop.permute.xlu0 %2517
        %2519 = vrot.lane.b32.xlu0 %v2498, 64
        %v2520 = vpop.permute.xlu0 %2519
        %2521 = vrot.lane.b32.xlu0 %v2501, 64
        %v2522 = vpop.permute.xlu0 %2521
        %2523 = vrot.lane.b32.xlu0 %v2504, 64
        %v2524 = vpop.permute.xlu0 %2523
        %2525 = vrot.lane.b32.xlu0 %v2507, 64
        %v2526 = vpop.permute.xlu0 %2525
        %2527 = vrot.lane.b32.xlu0 %v2510, 64
        %v2528 = vpop.permute.xlu0 %2527
        %2538 = vst.msk [vmem:[#allocation2] sm:$0xf] %vm796, %v2512
        %2539 = vst.msk [vmem:[#allocation2 + $0x14] sm:$0xf] %vm796, %v2514
        %2540 = vst.msk [vmem:[#allocation2 + $0x28] sm:$0xf] %vm796, %v2516
        %2541 = vst.msk [vmem:[#allocation2 + $0x3c] sm:$0xf] %vm796, %v2518
        %2542 = vst.msk [vmem:[#allocation2 + $0x50] sm:$0xf] %vm796, %v2520
        %2543 = vst.msk [vmem:[#allocation2 + $0x64] sm:$0xf] %vm796, %v2522
        %2544 = vst.msk [vmem:[#allocation2 + $0x78] sm:$0xf] %vm796, %v2524
        %2545 = vst.msk [vmem:[#allocation2 + $0x8c] sm:$0xf] %vm796, %v2526
        %2546 = vst.msk [vmem:[#allocation2 + $0xa0] sm:$0xf] %vm796, %v2528
        %v2547 = vld [vmem:[%s234 + $0x2c] sm:$0xe]
        %v2548 = vld [vmem:[%s234 + $0x30] sm:$0xf]
        %v2549 = vld [vmem:[%s234 + $0x34] sm:$0xf]
        %v2550 = vld [vmem:[%s234 + $0x38] sm:$0xf]
        %v2551 = vld [vmem:[%s234 + $0x3c] sm:$0xf]
        %v2552 = vld [vmem:[%s234 + $0x40] sm:$0xf]
        %v2553 = vld [vmem:[%s234 + $0x44] sm:$0xf]
        %v2554 = vld [vmem:[%s234 + $0x48] sm:$0xf]
        %v2555 = vld [vmem:[%s234 + $0x4c] sm:$0xf]
        %v2556 = vld [vmem:[%s234 + $0x50] sm:$0x3]
        %v2558 = vshrl.u32 %v2547, 16
        %v2560 = vrot.slane %v2558, 5
        %v2561 = vshll.u32 %v2547, 16
        %v2563 = vrot.slane %v2561, 6
        %v2564 = vor.u32 %v2560, %v2563
        %v2565 = vrot.slane %v2564, 4
        %v2567 = vshrl.u32 %v2548, 16
        %v2569 = vrot.slane %v2567, 5
        %v2570 = vshll.u32 %v2548, 16
        %v2572 = vrot.slane %v2570, 6
        %v2573 = vor.u32 %v2569, %v2572
        %v2574 = vsel %vm818, %v2565, %v2573
        %v2575 = vrot.slane %v2573, 4
        %v2577 = vshrl.u32 %v2549, 16
        %v2579 = vrot.slane %v2577, 5
        %v2580 = vshll.u32 %v2549, 16
        %v2582 = vrot.slane %v2580, 6
        %v2583 = vor.u32 %v2579, %v2582
        %v2584 = vsel %vm818, %v2575, %v2583
        %v2585 = vrot.slane %v2583, 4
        %v2587 = vshrl.u32 %v2550, 16
        %v2589 = vrot.slane %v2587, 5
        %v2590 = vshll.u32 %v2550, 16
        %v2592 = vrot.slane %v2590, 6
        %v2593 = vor.u32 %v2589, %v2592
        %v2594 = vsel %vm818, %v2585, %v2593
        %v2595 = vrot.slane %v2593, 4
        %v2597 = vshrl.u32 %v2551, 16
        %v2599 = vrot.slane %v2597, 5
        %v2600 = vshll.u32 %v2551, 16
        %v2602 = vrot.slane %v2600, 6
        %v2603 = vor.u32 %v2599, %v2602
        %v2604 = vsel %vm818, %v2595, %v2603
        %v2605 = vrot.slane %v2603, 4
        %v2607 = vshrl.u32 %v2552, 16
        %v2609 = vrot.slane %v2607, 5
        %v2610 = vshll.u32 %v2552, 16
        %v2612 = vrot.slane %v2610, 6
        %v2613 = vor.u32 %v2609, %v2612
        %v2614 = vsel %vm818, %v2605, %v2613
        %v2615 = vrot.slane %v2613, 4
        %v2617 = vshrl.u32 %v2553, 16
        %v2619 = vrot.slane %v2617, 5
        %v2620 = vshll.u32 %v2553, 16
        %v2622 = vrot.slane %v2620, 6
        %v2623 = vor.u32 %v2619, %v2622
        %v2624 = vsel %vm818, %v2615, %v2623
        %v2625 = vrot.slane %v2623, 4
        %v2627 = vshrl.u32 %v2554, 16
        %v2629 = vrot.slane %v2627, 5
        %v2630 = vshll.u32 %v2554, 16
        %v2632 = vrot.slane %v2630, 6
        %v2633 = vor.u32 %v2629, %v2632
        %v2634 = vsel %vm818, %v2625, %v2633
        %v2635 = vrot.slane %v2633, 4
        %v2637 = vshrl.u32 %v2555, 16
        %v2639 = vrot.slane %v2637, 5
        %v2640 = vshll.u32 %v2555, 16
        %v2642 = vrot.slane %v2640, 6
        %v2643 = vor.u32 %v2639, %v2642
        %v2644 = vsel %vm818, %v2635, %v2643
        %v2645 = vrot.slane %v2643, 4
        %v2647 = vshrl.u32 %v2556, 16
        %v2649 = vrot.slane %v2647, 5
        %v2650 = vshll.u32 %v2556, 16
        %v2652 = vrot.slane %v2650, 6
        %v2653 = vor.u32 %v2649, %v2652
        %v2654 = vsel %vm818, %v2645, %v2653
        %2664 = vst.msk [vmem:[#allocation2 + $0x4] sm:$0xf] %vm708, %v2574
        %2665 = vst.msk [vmem:[#allocation2 + $0x18] sm:$0xf] %vm708, %v2584
        %2666 = vst.msk [vmem:[#allocation2 + $0x2c] sm:$0xf] %vm708, %v2594
        %2667 = vst.msk [vmem:[#allocation2 + $0x40] sm:$0xf] %vm708, %v2604
        %2668 = vst.msk [vmem:[#allocation2 + $0x54] sm:$0xf] %vm708, %v2614
        %2669 = vst.msk [vmem:[#allocation2 + $0x68] sm:$0xf] %vm708, %v2624
        %2670 = vst.msk [vmem:[#allocation2 + $0x7c] sm:$0xf] %vm708, %v2634
        %2671 = vst.msk [vmem:[#allocation2 + $0x90] sm:$0xf] %vm708, %v2644
        %2672 = vst.msk [vmem:[#allocation2 + $0xa4] sm:$0xf] %vm708, %v2654
        %v2673 = vld [vmem:[%s234 + $0x34] sm:$0xe]
        %v2674 = vld [vmem:[%s234 + $0x38] sm:$0xf]
        %v2675 = vld [vmem:[%s234 + $0x3c] sm:$0xf]
        %v2676 = vld [vmem:[%s234 + $0x40] sm:$0xf]
        %v2677 = vld [vmem:[%s234 + $0x44] sm:$0xf]
        %v2678 = vld [vmem:[%s234 + $0x48] sm:$0xf]
        %v2679 = vld [vmem:[%s234 + $0x4c] sm:$0xf]
        %v2680 = vld [vmem:[%s234 + $0x50] sm:$0xf]
        %v2681 = vld [vmem:[%s234 + $0x54] sm:$0xf]
        %v2682 = vld [vmem:[%s234 + $0x58] sm:$0x3]
        %v2684 = vshrl.u32 %v2673, 16
        %v2686 = vrot.slane %v2684, 5
        %v2687 = vshll.u32 %v2673, 16
        %v2689 = vrot.slane %v2687, 6
        %v2690 = vor.u32 %v2686, %v2689
        %v2691 = vrot.slane %v2690, 4
        %v2693 = vshrl.u32 %v2674, 16
        %v2695 = vrot.slane %v2693, 5
        %v2696 = vshll.u32 %v2674, 16
        %v2698 = vrot.slane %v2696, 6
        %v2699 = vor.u32 %v2695, %v2698
        %v2700 = vsel %vm818, %v2691, %v2699
        %v2701 = vrot.slane %v2699, 4
        %v2703 = vshrl.u32 %v2675, 16
        %v2705 = vrot.slane %v2703, 5
        %v2706 = vshll.u32 %v2675, 16
        %v2708 = vrot.slane %v2706, 6
        %v2709 = vor.u32 %v2705, %v2708
        %v2710 = vsel %vm818, %v2701, %v2709
        %v2711 = vrot.slane %v2709, 4
        %v2713 = vshrl.u32 %v2676, 16
        %v2715 = vrot.slane %v2713, 5
        %v2716 = vshll.u32 %v2676, 16
        %v2718 = vrot.slane %v2716, 6
        %v2719 = vor.u32 %v2715, %v2718
        %v2720 = vsel %vm818, %v2711, %v2719
        %v2721 = vrot.slane %v2719, 4
        %v2723 = vshrl.u32 %v2677, 16
        %v2725 = vrot.slane %v2723, 5
        %v2726 = vshll.u32 %v2677, 16
        %v2728 = vrot.slane %v2726, 6
        %v2729 = vor.u32 %v2725, %v2728
        %v2730 = vsel %vm818, %v2721, %v2729
        %v2731 = vrot.slane %v2729, 4
        %v2733 = vshrl.u32 %v2678, 16
        %v2735 = vrot.slane %v2733, 5
        %v2736 = vshll.u32 %v2678, 16
        %v2738 = vrot.slane %v2736, 6
        %v2739 = vor.u32 %v2735, %v2738
        %v2740 = vsel %vm818, %v2731, %v2739
        %v2741 = vrot.slane %v2739, 4
        %v2743 = vshrl.u32 %v2679, 16
        %v2745 = vrot.slane %v2743, 5
        %v2746 = vshll.u32 %v2679, 16
        %v2748 = vrot.slane %v2746, 6
        %v2749 = vor.u32 %v2745, %v2748
        %v2750 = vsel %vm818, %v2741, %v2749
        %v2751 = vrot.slane %v2749, 4
        %v2753 = vshrl.u32 %v2680, 16
        %v2755 = vrot.slane %v2753, 5
        %v2756 = vshll.u32 %v2680, 16
        %v2758 = vrot.slane %v2756, 6
        %v2759 = vor.u32 %v2755, %v2758
        %v2760 = vsel %vm818, %v2751, %v2759
        %v2761 = vrot.slane %v2759, 4
        %v2763 = vshrl.u32 %v2681, 16
        %v2765 = vrot.slane %v2763, 5
        %v2766 = vshll.u32 %v2681, 16
        %v2768 = vrot.slane %v2766, 6
        %v2769 = vor.u32 %v2765, %v2768
        %v2770 = vsel %vm818, %v2761, %v2769
        %v2771 = vrot.slane %v2769, 4
        %v2773 = vshrl.u32 %v2682, 16
        %v2775 = vrot.slane %v2773, 5
        %v2776 = vshll.u32 %v2682, 16
        %v2778 = vrot.slane %v2776, 6
        %v2779 = vor.u32 %v2775, %v2778
        %v2780 = vsel %vm818, %v2771, %v2779
        %2781 = vrot.lane.b32.xlu0 %v2700, 64
        %v2782 = vpop.permute.xlu0 %2781
        %2783 = vrot.lane.b32.xlu0 %v2710, 64
        %v2784 = vpop.permute.xlu0 %2783
        %2785 = vrot.lane.b32.xlu0 %v2720, 64
        %v2786 = vpop.permute.xlu0 %2785
        %2787 = vrot.lane.b32.xlu0 %v2730, 64
        %v2788 = vpop.permute.xlu0 %2787
        %2789 = vrot.lane.b32.xlu0 %v2740, 64
        %v2790 = vpop.permute.xlu0 %2789
        %2791 = vrot.lane.b32.xlu0 %v2750, 64
        %v2792 = vpop.permute.xlu0 %2791
        %2793 = vrot.lane.b32.xlu0 %v2760, 64
        %v2794 = vpop.permute.xlu0 %2793
        %2795 = vrot.lane.b32.xlu0 %v2770, 64
        %v2796 = vpop.permute.xlu0 %2795
        %2797 = vrot.lane.b32.xlu0 %v2780, 64
        %v2798 = vpop.permute.xlu0 %2797
        %2808 = vst.msk [vmem:[#allocation2 + $0x4] sm:$0xf] %vm796, %v2782
        %2809 = vst.msk [vmem:[#allocation2 + $0x18] sm:$0xf] %vm796, %v2784
        %2810 = vst.msk [vmem:[#allocation2 + $0x2c] sm:$0xf] %vm796, %v2786
        %2811 = vst.msk [vmem:[#allocation2 + $0x40] sm:$0xf] %vm796, %v2788
        %2812 = vst.msk [vmem:[#allocation2 + $0x54] sm:$0xf] %vm796, %v2790
        %2813 = vst.msk [vmem:[#allocation2 + $0x68] sm:$0xf] %vm796, %v2792
        %2814 = vst.msk [vmem:[#allocation2 + $0x7c] sm:$0xf] %vm796, %v2794
        %2815 = vst.msk [vmem:[#allocation2 + $0x90] sm:$0xf] %vm796, %v2796
        %2816 = vst.msk [vmem:[#allocation2 + $0xa4] sm:$0xf] %vm796, %v2798
        %v2817 = vld [vmem:[%s234 + $0x34] sm:$0xc]
        %v2818 = vld [vmem:[%s234 + $0x38] sm:$0xf]
        %v2819 = vld [vmem:[%s234 + $0x3c] sm:$0xf]
        %v2820 = vld [vmem:[%s234 + $0x40] sm:$0xf]
        %v2821 = vld [vmem:[%s234 + $0x44] sm:$0xf]
        %v2822 = vld [vmem:[%s234 + $0x48] sm:$0xf]
        %v2823 = vld [vmem:[%s234 + $0x4c] sm:$0xf]
        %v2824 = vld [vmem:[%s234 + $0x50] sm:$0xf]
        %v2825 = vld [vmem:[%s234 + $0x54] sm:$0xf]
        %v2826 = vld [vmem:[%s234 + $0x58] sm:$0x3]
        %v2837 = vrot.slane %v2817, 6
        %v2838 = vrot.slane %v2837, 4
        %v2839 = vrot.slane %v2818, 6
        %v2840 = vsel %vm1101, %v2838, %v2839
        %v2841 = vrot.slane %v2839, 4
        %v2842 = vrot.slane %v2819, 6
        %v2843 = vsel %vm1101, %v2841, %v2842
        %v2844 = vrot.slane %v2842, 4
        %v2845 = vrot.slane %v2820, 6
        %v2846 = vsel %vm1101, %v2844, %v2845
        %v2847 = vrot.slane %v2845, 4
        %v2848 = vrot.slane %v2821, 6
        %v2849 = vsel %vm1101, %v2847, %v2848
        %v2850 = vrot.slane %v2848, 4
        %v2851 = vrot.slane %v2822, 6
        %v2852 = vsel %vm1101, %v2850, %v2851
        %v2853 = vrot.slane %v2851, 4
        %v2854 = vrot.slane %v2823, 6
        %v2855 = vsel %vm1101, %v2853, %v2854
        %v2856 = vrot.slane %v2854, 4
        %v2857 = vrot.slane %v2824, 6
        %v2858 = vsel %vm1101, %v2856, %v2857
        %v2859 = vrot.slane %v2857, 4
        %v2860 = vrot.slane %v2825, 6
        %v2861 = vsel %vm1101, %v2859, %v2860
        %v2862 = vrot.slane %v2860, 4
        %v2863 = vrot.slane %v2826, 6
        %v2864 = vsel %vm1101, %v2862, %v2863
        %2874 = vst.msk [vmem:[#allocation2 + $0x8] sm:$0xf] %vm708, %v2840
        %2875 = vst.msk [vmem:[#allocation2 + $0x1c] sm:$0xf] %vm708, %v2843
        %2876 = vst.msk [vmem:[#allocation2 + $0x30] sm:$0xf] %vm708, %v2846
        %2877 = vst.msk [vmem:[#allocation2 + $0x44] sm:$0xf] %vm708, %v2849
        %2878 = vst.msk [vmem:[#allocation2 + $0x58] sm:$0xf] %vm708, %v2852
        %2879 = vst.msk [vmem:[#allocation2 + $0x6c] sm:$0xf] %vm708, %v2855
        %2880 = vst.msk [vmem:[#allocation2 + $0x80] sm:$0xf] %vm708, %v2858
        %2881 = vst.msk [vmem:[#allocation2 + $0x94] sm:$0xf] %vm708, %v2861
        %2882 = vst.msk [vmem:[#allocation2 + $0xa8] sm:$0xf] %vm708, %v2864
        %v2883 = vld [vmem:[%s234 + $0x34] sm:$0xc]
        %v2884 = vld [vmem:[%s234 + $0x38] sm:$0xf]
        %v2885 = vld [vmem:[%s234 + $0x3c] sm:$0xf]
        %v2886 = vld [vmem:[%s234 + $0x40] sm:$0xf]
        %v2887 = vld [vmem:[%s234 + $0x44] sm:$0xf]
        %v2888 = vld [vmem:[%s234 + $0x48] sm:$0xf]
        %v2889 = vld [vmem:[%s234 + $0x4c] sm:$0xf]
        %v2890 = vld [vmem:[%s234 + $0x50] sm:$0xf]
        %v2891 = vld [vmem:[%s234 + $0x54] sm:$0xf]
        %v2892 = vld [vmem:[%s234 + $0x58] sm:$0x7]
        %v2894 = vshrl.u32 %v2883, 16
        %v2896 = vrot.slane %v2894, 6
        %v2897 = vshll.u32 %v2883, 16
        %v2899 = vrot.slane %v2897, 7
        %v2900 = vor.u32 %v2896, %v2899
        %v2901 = vrot.slane %v2900, 4
        %v2903 = vshrl.u32 %v2884, 16
        %v2905 = vrot.slane %v2903, 6
        %v2906 = vshll.u32 %v2884, 16
        %v2908 = vrot.slane %v2906, 7
        %v2909 = vor.u32 %v2905, %v2908
        %v2910 = vsel %vm1160, %v2901, %v2909
        %v2911 = vrot.slane %v2909, 4
        %v2913 = vshrl.u32 %v2885, 16
        %v2915 = vrot.slane %v2913, 6
        %v2916 = vshll.u32 %v2885, 16
        %v2918 = vrot.slane %v2916, 7
        %v2919 = vor.u32 %v2915, %v2918
        %v2920 = vsel %vm1160, %v2911, %v2919
        %v2921 = vrot.slane %v2919, 4
        %v2923 = vshrl.u32 %v2886, 16
        %v2925 = vrot.slane %v2923, 6
        %v2926 = vshll.u32 %v2886, 16
        %v2928 = vrot.slane %v2926, 7
        %v2929 = vor.u32 %v2925, %v2928
        %v2930 = vsel %vm1160, %v2921, %v2929
        %v2931 = vrot.slane %v2929, 4
        %v2933 = vshrl.u32 %v2887, 16
        %v2935 = vrot.slane %v2933, 6
        %v2936 = vshll.u32 %v2887, 16
        %v2938 = vrot.slane %v2936, 7
        %v2939 = vor.u32 %v2935, %v2938
        %v2940 = vsel %vm1160, %v2931, %v2939
        %v2941 = vrot.slane %v2939, 4
        %v2943 = vshrl.u32 %v2888, 16
        %v2945 = vrot.slane %v2943, 6
        %v2946 = vshll.u32 %v2888, 16
        %v2948 = vrot.slane %v2946, 7
        %v2949 = vor.u32 %v2945, %v2948
        %v2950 = vsel %vm1160, %v2941, %v2949
        %v2951 = vrot.slane %v2949, 4
        %v2953 = vshrl.u32 %v2889, 16
        %v2955 = vrot.slane %v2953, 6
        %v2956 = vshll.u32 %v2889, 16
        %v2958 = vrot.slane %v2956, 7
        %v2959 = vor.u32 %v2955, %v2958
        %v2960 = vsel %vm1160, %v2951, %v2959
        %v2961 = vrot.slane %v2959, 4
        %v2963 = vshrl.u32 %v2890, 16
        %v2965 = vrot.slane %v2963, 6
        %v2966 = vshll.u32 %v2890, 16
        %v2968 = vrot.slane %v2966, 7
        %v2969 = vor.u32 %v2965, %v2968
        %v2970 = vsel %vm1160, %v2961, %v2969
        %v2971 = vrot.slane %v2969, 4
        %v2973 = vshrl.u32 %v2891, 16
        %v2975 = vrot.slane %v2973, 6
        %v2976 = vshll.u32 %v2891, 16
        %v2978 = vrot.slane %v2976, 7
        %v2979 = vor.u32 %v2975, %v2978
        %v2980 = vsel %vm1160, %v2971, %v2979
        %v2981 = vrot.slane %v2979, 4
        %v2983 = vshrl.u32 %v2892, 16
        %v2985 = vrot.slane %v2983, 6
        %v2986 = vshll.u32 %v2892, 16
        %v2988 = vrot.slane %v2986, 7
        %v2989 = vor.u32 %v2985, %v2988
        %v2990 = vsel %vm1160, %v2981, %v2989
        %2991 = vrot.lane.b32.xlu0 %v2910, 64
        %v2992 = vpop.permute.xlu0 %2991
        %2993 = vrot.lane.b32.xlu0 %v2920, 64
        %v2994 = vpop.permute.xlu0 %2993
        %2995 = vrot.lane.b32.xlu0 %v2930, 64
        %v2996 = vpop.permute.xlu0 %2995
        %2997 = vrot.lane.b32.xlu0 %v2940, 64
        %v2998 = vpop.permute.xlu0 %2997
        %2999 = vrot.lane.b32.xlu0 %v2950, 64
        %v3000 = vpop.permute.xlu0 %2999
        %3001 = vrot.lane.b32.xlu0 %v2960, 64
        %v3002 = vpop.permute.xlu0 %3001
        %3003 = vrot.lane.b32.xlu0 %v2970, 64
        %v3004 = vpop.permute.xlu0 %3003
        %3005 = vrot.lane.b32.xlu0 %v2980, 64
        %v3006 = vpop.permute.xlu0 %3005
        %3007 = vrot.lane.b32.xlu0 %v2990, 64
        %v3008 = vpop.permute.xlu0 %3007
        %3018 = vst.msk [vmem:[#allocation2 + $0x8] sm:$0xf] %vm796, %v2992
        %3019 = vst.msk [vmem:[#allocation2 + $0x1c] sm:$0xf] %vm796, %v2994
        %3020 = vst.msk [vmem:[#allocation2 + $0x30] sm:$0xf] %vm796, %v2996
        %3021 = vst.msk [vmem:[#allocation2 + $0x44] sm:$0xf] %vm796, %v2998
        %3022 = vst.msk [vmem:[#allocation2 + $0x58] sm:$0xf] %vm796, %v3000
        %3023 = vst.msk [vmem:[#allocation2 + $0x6c] sm:$0xf] %vm796, %v3002
        %3024 = vst.msk [vmem:[#allocation2 + $0x80] sm:$0xf] %vm796, %v3004
        %3025 = vst.msk [vmem:[#allocation2 + $0x94] sm:$0xf] %vm796, %v3006
        %3026 = vst.msk [vmem:[#allocation2 + $0xa8] sm:$0xf] %vm796, %v3008
        %v3027 = vld [vmem:[%s234 + $0x3c] sm:$0xc]
        %v3028 = vld [vmem:[%s234 + $0x40] sm:$0xf]
        %v3029 = vld [vmem:[%s234 + $0x44] sm:$0xf]
        %v3030 = vld [vmem:[%s234 + $0x48] sm:$0xf]
        %v3031 = vld [vmem:[%s234 + $0x4c] sm:$0xf]
        %v3032 = vld [vmem:[%s234 + $0x50] sm:$0xf]
        %v3033 = vld [vmem:[%s234 + $0x54] sm:$0xf]
        %v3034 = vld [vmem:[%s234 + $0x58] sm:$0xf]
        %v3035 = vld [vmem:[%s234 + $0x5c] sm:$0xf]
        %v3036 = vld [vmem:[%s234 + $0x60] sm:$0x7]
        %v3038 = vshrl.u32 %v3027, 16
        %v3040 = vrot.slane %v3038, 6
        %v3041 = vshll.u32 %v3027, 16
        %v3043 = vrot.slane %v3041, 7
        %v3044 = vor.u32 %v3040, %v3043
        %v3045 = vrot.slane %v3044, 4
        %v3047 = vshrl.u32 %v3028, 16
        %v3049 = vrot.slane %v3047, 6
        %v3050 = vshll.u32 %v3028, 16
        %v3052 = vrot.slane %v3050, 7
        %v3053 = vor.u32 %v3049, %v3052
        %v3054 = vsel %vm1160, %v3045, %v3053
        %v3055 = vrot.slane %v3053, 4
        %v3057 = vshrl.u32 %v3029, 16
        %v3059 = vrot.slane %v3057, 6
        %v3060 = vshll.u32 %v3029, 16
        %v3062 = vrot.slane %v3060, 7
        %v3063 = vor.u32 %v3059, %v3062
        %v3064 = vsel %vm1160, %v3055, %v3063
        %v3065 = vrot.slane %v3063, 4
        %v3067 = vshrl.u32 %v3030, 16
        %v3069 = vrot.slane %v3067, 6
        %v3070 = vshll.u32 %v3030, 16
        %v3072 = vrot.slane %v3070, 7
        %v3073 = vor.u32 %v3069, %v3072
        %v3074 = vsel %vm1160, %v3065, %v3073
        %v3075 = vrot.slane %v3073, 4
        %v3077 = vshrl.u32 %v3031, 16
        %v3079 = vrot.slane %v3077, 6
        %v3080 = vshll.u32 %v3031, 16
        %v3082 = vrot.slane %v3080, 7
        %v3083 = vor.u32 %v3079, %v3082
        %v3084 = vsel %vm1160, %v3075, %v3083
        %v3085 = vrot.slane %v3083, 4
        %v3087 = vshrl.u32 %v3032, 16
        %v3089 = vrot.slane %v3087, 6
        %v3090 = vshll.u32 %v3032, 16
        %v3092 = vrot.slane %v3090, 7
        %v3093 = vor.u32 %v3089, %v3092
        %v3094 = vsel %vm1160, %v3085, %v3093
        %v3095 = vrot.slane %v3093, 4
        %v3097 = vshrl.u32 %v3033, 16
        %v3099 = vrot.slane %v3097, 6
        %v3100 = vshll.u32 %v3033, 16
        %v3102 = vrot.slane %v3100, 7
        %v3103 = vor.u32 %v3099, %v3102
        %v3104 = vsel %vm1160, %v3095, %v3103
        %v3105 = vrot.slane %v3103, 4
        %v3107 = vshrl.u32 %v3034, 16
        %v3109 = vrot.slane %v3107, 6
        %v3110 = vshll.u32 %v3034, 16
        %v3112 = vrot.slane %v3110, 7
        %v3113 = vor.u32 %v3109, %v3112
        %v3114 = vsel %vm1160, %v3105, %v3113
        %v3115 = vrot.slane %v3113, 4
        %v3117 = vshrl.u32 %v3035, 16
        %v3119 = vrot.slane %v3117, 6
        %v3120 = vshll.u32 %v3035, 16
        %v3122 = vrot.slane %v3120, 7
        %v3123 = vor.u32 %v3119, %v3122
        %v3124 = vsel %vm1160, %v3115, %v3123
        %v3125 = vrot.slane %v3123, 4
        %v3127 = vshrl.u32 %v3036, 16
        %v3129 = vrot.slane %v3127, 6
        %v3130 = vshll.u32 %v3036, 16
        %v3132 = vrot.slane %v3130, 7
        %v3133 = vor.u32 %v3129, %v3132
        %v3134 = vsel %vm1160, %v3125, %v3133
        %3144 = vst.msk [vmem:[#allocation2 + $0xc] sm:$0xf] %vm708, %v3054
        %3145 = vst.msk [vmem:[#allocation2 + $0x20] sm:$0xf] %vm708, %v3064
        %3146 = vst.msk [vmem:[#allocation2 + $0x34] sm:$0xf] %vm708, %v3074
        %3147 = vst.msk [vmem:[#allocation2 + $0x48] sm:$0xf] %vm708, %v3084
        %3148 = vst.msk [vmem:[#allocation2 + $0x5c] sm:$0xf] %vm708, %v3094
        %3149 = vst.msk [vmem:[#allocation2 + $0x70] sm:$0xf] %vm708, %v3104
        %3150 = vst.msk [vmem:[#allocation2 + $0x84] sm:$0xf] %vm708, %v3114
        %3151 = vst.msk [vmem:[#allocation2 + $0x98] sm:$0xf] %vm708, %v3124
        %3152 = vst.msk [vmem:[#allocation2 + $0xac] sm:$0xf] %vm708, %v3134
        %v3153 = vld [vmem:[%s234 + $0x3c] sm:$0x8]
        %v3154 = vld [vmem:[%s234 + $0x40] sm:$0xf]
        %v3155 = vld [vmem:[%s234 + $0x44] sm:$0xf]
        %v3156 = vld [vmem:[%s234 + $0x48] sm:$0xf]
        %v3157 = vld [vmem:[%s234 + $0x4c] sm:$0xf]
        %v3158 = vld [vmem:[%s234 + $0x50] sm:$0xf]
        %v3159 = vld [vmem:[%s234 + $0x54] sm:$0xf]
        %v3160 = vld [vmem:[%s234 + $0x58] sm:$0xf]
        %v3161 = vld [vmem:[%s234 + $0x5c] sm:$0xf]
        %v3162 = vld [vmem:[%s234 + $0x60] sm:$0x7]
        %v3173 = vrot.slane %v3153, 7
        %v3174 = vrot.slane %v3173, 4
        %v3175 = vrot.slane %v3154, 7
        %v3176 = vsel %vm1443, %v3174, %v3175
        %v3177 = vrot.slane %v3175, 4
        %v3178 = vrot.slane %v3155, 7
        %v3179 = vsel %vm1443, %v3177, %v3178
        %v3180 = vrot.slane %v3178, 4
        %v3181 = vrot.slane %v3156, 7
        %v3182 = vsel %vm1443, %v3180, %v3181
        %v3183 = vrot.slane %v3181, 4
        %v3184 = vrot.slane %v3157, 7
        %v3185 = vsel %vm1443, %v3183, %v3184
        %v3186 = vrot.slane %v3184, 4
        %v3187 = vrot.slane %v3158, 7
        %v3188 = vsel %vm1443, %v3186, %v3187
        %v3189 = vrot.slane %v3187, 4
        %v3190 = vrot.slane %v3159, 7
        %v3191 = vsel %vm1443, %v3189, %v3190
        %v3192 = vrot.slane %v3190, 4
        %v3193 = vrot.slane %v3160, 7
        %v3194 = vsel %vm1443, %v3192, %v3193
        %v3195 = vrot.slane %v3193, 4
        %v3196 = vrot.slane %v3161, 7
        %v3197 = vsel %vm1443, %v3195, %v3196
        %v3198 = vrot.slane %v3196, 4
        %v3199 = vrot.slane %v3162, 7
        %v3200 = vsel %vm1443, %v3198, %v3199
        %3201 = vrot.lane.b32.xlu0 %v3176, 64
        %v3202 = vpop.permute.xlu0 %3201
        %3203 = vrot.lane.b32.xlu0 %v3179, 64
        %v3204 = vpop.permute.xlu0 %3203
        %3205 = vrot.lane.b32.xlu0 %v3182, 64
        %v3206 = vpop.permute.xlu0 %3205
        %3207 = vrot.lane.b32.xlu0 %v3185, 64
        %v3208 = vpop.permute.xlu0 %3207
        %3209 = vrot.lane.b32.xlu0 %v3188, 64
        %v3210 = vpop.permute.xlu0 %3209
        %3211 = vrot.lane.b32.xlu0 %v3191, 64
        %v3212 = vpop.permute.xlu0 %3211
        %3213 = vrot.lane.b32.xlu0 %v3194, 64
        %v3214 = vpop.permute.xlu0 %3213
        %3215 = vrot.lane.b32.xlu0 %v3197, 64
        %v3216 = vpop.permute.xlu0 %3215
        %3217 = vrot.lane.b32.xlu0 %v3200, 64
        %v3218 = vpop.permute.xlu0 %3217
        %3228 = vst.msk [vmem:[#allocation2 + $0xc] sm:$0xf] %vm796, %v3202
        %3229 = vst.msk [vmem:[#allocation2 + $0x20] sm:$0xf] %vm796, %v3204
        %3230 = vst.msk [vmem:[#allocation2 + $0x34] sm:$0xf] %vm796, %v3206
        %3231 = vst.msk [vmem:[#allocation2 + $0x48] sm:$0xf] %vm796, %v3208
        %3232 = vst.msk [vmem:[#allocation2 + $0x5c] sm:$0xf] %vm796, %v3210
        %3233 = vst.msk [vmem:[#allocation2 + $0x70] sm:$0xf] %vm796, %v3212
        %3234 = vst.msk [vmem:[#allocation2 + $0x84] sm:$0xf] %vm796, %v3214
        %3235 = vst.msk [vmem:[#allocation2 + $0x98] sm:$0xf] %vm796, %v3216
        %3236 = vst.msk [vmem:[#allocation2 + $0xac] sm:$0xf] %vm796, %v3218
        %v3237 = vld [vmem:[%s234 + $0x3c] sm:$0x8]
        %v3238 = vld [vmem:[%s234 + $0x40] sm:$0xf]
        %v3239 = vld [vmem:[%s234 + $0x44] sm:$0xf]
        %v3240 = vld [vmem:[%s234 + $0x48] sm:$0xf]
        %v3241 = vld [vmem:[%s234 + $0x4c] sm:$0xf]
        %v3242 = vld [vmem:[%s234 + $0x50] sm:$0xf]
        %v3243 = vld [vmem:[%s234 + $0x54] sm:$0xf]
        %v3244 = vld [vmem:[%s234 + $0x58] sm:$0xf]
        %v3245 = vld [vmem:[%s234 + $0x5c] sm:$0xf]
        %v3246 = vld [vmem:[%s234 + $0x60] sm:$0xf]
        %v3248 = vshrl.u32 %v3237, 16
        %v3250 = vrot.slane %v3248, 7
        %v3251 = vrot.slane %v3250, 4
        %v3253 = vshrl.u32 %v3238, 16
        %v3255 = vrot.slane %v3253, 7
        %v3256 = vshll.u32 %v3238, 16
        %v3258 = vor.u32 %v3255, %v3256
        %v3259 = vsel %vm1520, %v3251, %v3258
        %v3260 = vrot.slane %v3255, 4
        %v3262 = vshrl.u32 %v3239, 16
        %v3264 = vrot.slane %v3262, 7
        %v3265 = vshll.u32 %v3239, 16
        %v3267 = vor.u32 %v3264, %v3265
        %v3268 = vsel %vm1520, %v3260, %v3267
        %v3269 = vrot.slane %v3264, 4
        %v3271 = vshrl.u32 %v3240, 16
        %v3273 = vrot.slane %v3271, 7
        %v3274 = vshll.u32 %v3240, 16
        %v3276 = vor.u32 %v3273, %v3274
        %v3277 = vsel %vm1520, %v3269, %v3276
        %v3278 = vrot.slane %v3273, 4
        %v3280 = vshrl.u32 %v3241, 16
        %v3282 = vrot.slane %v3280, 7
        %v3283 = vshll.u32 %v3241, 16
        %v3285 = vor.u32 %v3282, %v3283
        %v3286 = vsel %vm1520, %v3278, %v3285
        %v3287 = vrot.slane %v3282, 4
        %v3289 = vshrl.u32 %v3242, 16
        %v3291 = vrot.slane %v3289, 7
        %v3292 = vshll.u32 %v3242, 16
        %v3294 = vor.u32 %v3291, %v3292
        %v3295 = vsel %vm1520, %v3287, %v3294
        %v3296 = vrot.slane %v3291, 4
        %v3298 = vshrl.u32 %v3243, 16
        %v3300 = vrot.slane %v3298, 7
        %v3301 = vshll.u32 %v3243, 16
        %v3303 = vor.u32 %v3300, %v3301
        %v3304 = vsel %vm1520, %v3296, %v3303
        %v3305 = vrot.slane %v3300, 4
        %v3307 = vshrl.u32 %v3244, 16
        %v3309 = vrot.slane %v3307, 7
        %v3310 = vshll.u32 %v3244, 16
        %v3312 = vor.u32 %v3309, %v3310
        %v3313 = vsel %vm1520, %v3305, %v3312
        %v3314 = vrot.slane %v3309, 4
        %v3316 = vshrl.u32 %v3245, 16
        %v3318 = vrot.slane %v3316, 7
        %v3319 = vshll.u32 %v3245, 16
        %v3321 = vor.u32 %v3318, %v3319
        %v3322 = vsel %vm1520, %v3314, %v3321
        %v3323 = vrot.slane %v3318, 4
        %v3325 = vshrl.u32 %v3246, 16
        %v3327 = vrot.slane %v3325, 7
        %v3328 = vshll.u32 %v3246, 16
        %v3330 = vor.u32 %v3327, %v3328
        %v3331 = vsel %vm1520, %v3323, %v3330
        %3341 = vst.msk [vmem:[#allocation2 + $0x10] sm:$0xf] %vm708, %v3259
        %3342 = vst.msk [vmem:[#allocation2 + $0x24] sm:$0xf] %vm708, %v3268
        %3343 = vst.msk [vmem:[#allocation2 + $0x38] sm:$0xf] %vm708, %v3277
        %3344 = vst.msk [vmem:[#allocation2 + $0x4c] sm:$0xf] %vm708, %v3286
        %3345 = vst.msk [vmem:[#allocation2 + $0x60] sm:$0xf] %vm708, %v3295
        %3346 = vst.msk [vmem:[#allocation2 + $0x74] sm:$0xf] %vm708, %v3304
        %3347 = vst.msk [vmem:[#allocation2 + $0x88] sm:$0xf] %vm708, %v3313
        %3348 = vst.msk [vmem:[#allocation2 + $0x9c] sm:$0xf] %vm708, %v3322
        %3349 = vst.msk [vmem:[#allocation2 + $0xb0] sm:$0xf] %vm708, %v3331
        %v3350 = vld [vmem:[#allocation2] sm:$0xff]
        %v3351 = vld [vmem:[#allocation2 + $0x8] sm:$0xff]
        %v3352 = vld [vmem:[#allocation2 + $0x10] sm:$0xf]
        %v3353 = vld [vmem:[#allocation2 + $0x14] sm:$0xff]
        %v3354 = vld [vmem:[#allocation2 + $0x1c] sm:$0xff]
        %v3355 = vld [vmem:[#allocation2 + $0x24] sm:$0xf]
        %v3356 = vld [vmem:[#allocation2 + $0x28] sm:$0xff]
        %v3357 = vld [vmem:[#allocation2 + $0x30] sm:$0xff]
        %v3358 = vld [vmem:[#allocation2 + $0x38] sm:$0xf]
        %v3359 = vld [vmem:[#allocation2 + $0x3c] sm:$0xff]
        %v3360 = vld [vmem:[#allocation2 + $0x44] sm:$0xff]
        %v3361 = vld [vmem:[#allocation2 + $0x4c] sm:$0xf]
        %v3362 = vld [vmem:[#allocation2 + $0x50] sm:$0xff]
        %v3363 = vld [vmem:[#allocation2 + $0x58] sm:$0xff]
        %v3364 = vld [vmem:[#allocation2 + $0x60] sm:$0xf]
        %v3365 = vld [vmem:[#allocation2 + $0x64] sm:$0xff]
        %v3366 = vld [vmem:[#allocation2 + $0x6c] sm:$0xff]
        %v3367 = vld [vmem:[#allocation2 + $0x74] sm:$0xf]
        %v3368 = vld [vmem:[#allocation2 + $0x78] sm:$0xff]
        %v3369 = vld [vmem:[#allocation2 + $0x80] sm:$0xff]
        %v3370 = vld [vmem:[#allocation2 + $0x88] sm:$0xf]
        %v3371 = vld [vmem:[#allocation2 + $0x8c] sm:$0xff]
        %v3372 = vld [vmem:[#allocation2 + $0x94] sm:$0xff]
        %v3373 = vld [vmem:[#allocation2 + $0x9c] sm:$0xf]
        %v3374 = vld [vmem:[#allocation2 + $0xa0] sm:$0xff]
        %v3375 = vld [vmem:[#allocation2 + $0xa8] sm:$0xff]
        %v3376 = vld [vmem:[#allocation2 + $0xb0] sm:$0xf]
        %v3377 = vld [vmem:[%s198] sm:$0xf]
        %v3378 = vld [vmem:[%s198 + $0x4] sm:$0xf]
        %v3379 = vld [vmem:[%s198 + $0x8] sm:$0xf]
        %v3380 = vld [vmem:[%s198 + $0xc] sm:$0xf]
        %v3381 = vld [vmem:[%s198 + $0x10] sm:$0xf]
        %v3382 = vld [vmem:[%s198 + $0x14] sm:$0xf]
        %v3383 = vld [vmem:[%s198 + $0x18] sm:$0xf]
        %v3384 = vld [vmem:[%s198 + $0x1c] sm:$0xf]
        %v3385 = vld [vmem:[%s198 + $0x20] sm:$0xf]
        %v3386 = vld [vmem:[%s198 + $0x24] sm:$0xf]
        %v3387 = vld [vmem:[%s198 + $0x28] sm:$0xf]
        %v3388 = vld [vmem:[%s198 + $0x2c] sm:$0xf]
        %v3389 = vld [vmem:[%s198 + $0x30] sm:$0xf]
        %v3390 = vld [vmem:[%s198 + $0x34] sm:$0xf]
        %v3391 = vld [vmem:[%s198 + $0x38] sm:$0xf]
        %v3392 = vld [vmem:[%s198 + $0x3c] sm:$0xf]
        %v3393 = vld [vmem:[%s198 + $0x40] sm:$0xf]
        %v3394 = vld [vmem:[%s198 + $0x44] sm:$0xf]
        %v3395 = vld [vmem:[%s198 + $0x48] sm:$0xf]
        %v3396 = vld [vmem:[%s198 + $0x4c] sm:$0xf]
        %v3397 = vld [vmem:[%s198 + $0x50] sm:$0xf]
        %v3398 = vld [vmem:[%s198 + $0x54] sm:$0xf]
        %v3399 = vld [vmem:[%s198 + $0x58] sm:$0xf]
        %v3400 = vld [vmem:[%s198 + $0x5c] sm:$0xf]
        %v3401 = vld [vmem:[%s198 + $0x60] sm:$0xf]
        %v3402 = vld [vmem:[%s198 + $0x64] sm:$0xf]
        %v3403 = vld [vmem:[%s198 + $0x68] sm:$0xf]
        %v3404 = vld [vmem:[%s198 + $0x6c] sm:$0xf]
        %v3405 = vld [vmem:[%s198 + $0x70] sm:$0xf]
        %v3406 = vld [vmem:[%s198 + $0x74] sm:$0xf]
        %v3407 = vld [vmem:[%s198 + $0x78] sm:$0xf]
        %v3408 = vld [vmem:[%s198 + $0x7c] sm:$0xf]
        %v3409 = vld [vmem:[%s198 + $0x80] sm:$0xf]
        %v3410 = vld [vmem:[%s198 + $0x84] sm:$0xf]
        %v3411 = vld [vmem:[%s198 + $0x88] sm:$0xf]
        %v3412 = vld [vmem:[%s198 + $0x8c] sm:$0xf]
        %v3413 = vld [vmem:[%s198 + $0x90] sm:$0xf]
        %v3414 = vld [vmem:[%s198 + $0x94] sm:$0xf]
        %v3415 = vld [vmem:[%s198 + $0x98] sm:$0xf]
        %v3416 = vld [vmem:[%s198 + $0x9c] sm:$0xf]
        %v3417 = vld [vmem:[%s198 + $0xa0] sm:$0xf]
        %v3418 = vld [vmem:[%s198 + $0xa4] sm:$0xf]
        %v3419 = vld [vmem:[%s198 + $0xa8] sm:$0xf]
        %v3420 = vld [vmem:[%s198 + $0xac] sm:$0xf]
        %v3421 = vld [vmem:[%s198 + $0xb0] sm:$0xf]
        %v3422 = vld [vmem:[%s198 + $0xb4] sm:$0xf]
        %v3423 = vld [vmem:[%s198 + $0xb8] sm:$0xf]
        %v3424 = vld [vmem:[%s198 + $0xbc] sm:$0xf]
        %v3425 = vld [vmem:[%s198 + $0xc0] sm:$0xf]
        %v3426 = vld [vmem:[%s198 + $0xc4] sm:$0xf]
        %v3427 = vld [vmem:[%s198 + $0xc8] sm:$0xf]
        %v3428 = vld [vmem:[%s198 + $0xcc] sm:$0xf]
        %v3429 = vld [vmem:[%s198 + $0xd0] sm:$0xf]
        %v3430 = vld [vmem:[%s198 + $0xd4] sm:$0xf]
        %v3431 = vld [vmem:[%s198 + $0xd8] sm:$0xf]
        %v3432 = vld [vmem:[%s198 + $0xdc] sm:$0xf]
        %v3433 = vld [vmem:[%s198 + $0xe0] sm:$0xf]
        %v3434 = vld [vmem:[%s198 + $0xe4] sm:$0xf]
        %v3435 = vld [vmem:[%s198 + $0xe8] sm:$0xf]
        %v3436 = vld [vmem:[%s198 + $0xec] sm:$0xf]
        %v3437 = vld [vmem:[%s198 + $0xf0] sm:$0xf]
        %v3438 = vld [vmem:[%s198 + $0xf4] sm:$0xf]
        %v3439 = vld [vmem:[%s198 + $0xf8] sm:$0xf]
        %v3440 = vld [vmem:[%s198 + $0xfc] sm:$0xf]
        %v3441 = vld [vmem:[%s198 + $0x100] sm:$0xf]
        %v3442 = vld [vmem:[%s198 + $0x104] sm:$0xf]
        %v3443 = vld [vmem:[%s198 + $0x108] sm:$0xf]
        %v3444 = vld [vmem:[%s198 + $0x10c] sm:$0xf]
        %v3445 = vld [vmem:[%s198 + $0x110] sm:$0xf]
        %v3446 = vld [vmem:[%s198 + $0x114] sm:$0xf]
        %v3447 = vld [vmem:[%s198 + $0x118] sm:$0xf]
        %v3448 = vld [vmem:[%s198 + $0x11c] sm:$0xf]
        %v3449 = vld [vmem:[%s237] sm:$0x1]
        %v3451 = vperm.slane %v3449, 0
        %v3480 = vunpack.c.l.b16 %v3350
        %v3481 = vunpack.c.h.b16 %v3350
        %v3482 = vunpack.c.l.b16 %v3351
        %v3483 = vunpack.c.h.b16 %v3351
        %v3484 = vunpack.c.l.b16 %v3352
        %v3485 = vunpack.c.l.b16 %v3353
        %v3486 = vunpack.c.h.b16 %v3353
        %v3487 = vunpack.c.l.b16 %v3354
        %v3488 = vunpack.c.h.b16 %v3354
        %v3489 = vunpack.c.l.b16 %v3355
        %v3490 = vunpack.c.l.b16 %v3356
        %v3491 = vunpack.c.h.b16 %v3356
        %v3492 = vunpack.c.l.b16 %v3357
        %v3493 = vunpack.c.h.b16 %v3357
        %v3494 = vunpack.c.l.b16 %v3358
        %v3495 = vunpack.c.l.b16 %v3359
        %v3496 = vunpack.c.h.b16 %v3359
        %v3497 = vunpack.c.l.b16 %v3360
        %v3498 = vunpack.c.h.b16 %v3360
        %v3499 = vunpack.c.l.b16 %v3361
        %v3500 = vunpack.c.l.b16 %v3362
        %v3501 = vunpack.c.h.b16 %v3362
        %v3502 = vunpack.c.l.b16 %v3363
        %v3503 = vunpack.c.h.b16 %v3363
        %v3504 = vunpack.c.l.b16 %v3364
        %v3505 = vunpack.c.l.b16 %v3365
        %v3506 = vunpack.c.h.b16 %v3365
        %v3507 = vunpack.c.l.b16 %v3366
        %v3508 = vunpack.c.h.b16 %v3366
        %v3509 = vunpack.c.l.b16 %v3367
        %v3510 = vunpack.c.l.b16 %v3368
        %v3511 = vunpack.c.h.b16 %v3368
        %v3512 = vunpack.c.l.b16 %v3369
        %v3513 = vunpack.c.h.b16 %v3369
        %v3514 = vunpack.c.l.b16 %v3370
        %v3515 = vunpack.c.l.b16 %v3371
        %v3516 = vunpack.c.h.b16 %v3371
        %v3517 = vunpack.c.l.b16 %v3372
        %v3518 = vunpack.c.h.b16 %v3372
        %v3519 = vunpack.c.l.b16 %v3373
        %v3520 = vunpack.c.l.b16 %v3374
        %v3521 = vunpack.c.h.b16 %v3374
        %v3522 = vunpack.c.l.b16 %v3375
        %v3523 = vunpack.c.h.b16 %v3375
        %v3524 = vunpack.c.l.b16 %v3376
        %v3525 = vpack.c.b16 %v3485, %v3480
        %v3526 = vpack.c.b16 %v3486, %v3481
        %v3527 = vpack.c.b16 %v3487, %v3482
        %v3528 = vpack.c.b16 %v3488, %v3483
        %v3529 = vpack.c.b16 %v3489, %v3484
        %v3530 = vpack.c.b16 %v3495, %v3490
        %v3531 = vpack.c.b16 %v3496, %v3491
        %v3532 = vpack.c.b16 %v3497, %v3492
        %v3533 = vpack.c.b16 %v3498, %v3493
        %v3534 = vpack.c.b16 %v3499, %v3494
        %v3535 = vpack.c.b16 %v3505, %v3500
        %v3536 = vpack.c.b16 %v3506, %v3501
        %v3537 = vpack.c.b16 %v3507, %v3502
        %v3538 = vpack.c.b16 %v3508, %v3503
        %v3539 = vpack.c.b16 %v3509, %v3504
        %v3540 = vpack.c.b16 %v3515, %v3510
        %v3541 = vpack.c.b16 %v3516, %v3511
        %v3542 = vpack.c.b16 %v3517, %v3512
        %v3543 = vpack.c.b16 %v3518, %v3513
        %v3544 = vpack.c.b16 %v3519, %v3514
        %v3545 = vpack.c.b16 %v3520, %v3520
        %v3546 = vpack.c.b16 %v3521, %v3521
        %v3547 = vpack.c.b16 %v3522, %v3522
        %v3548 = vpack.c.b16 %v3523, %v3523
        %v3549 = vpack.c.b16 %v3524, %v3524
        %v3642 = vunpack.c.l.b16 %v3377
        %v3643 = vunpack.c.l.b16 %v3378
        %v3644 = vunpack.c.l.b16 %v3379
        %v3645 = vunpack.c.l.b16 %v3380
        %v3646 = vunpack.c.l.b16 %v3381
        %v3647 = vunpack.c.l.b16 %v3382
        %v3648 = vunpack.c.l.b16 %v3383
        %v3649 = vunpack.c.l.b16 %v3384
        %v3650 = vunpack.c.l.b16 %v3385
        %v3651 = vunpack.c.l.b16 %v3386
        %v3652 = vunpack.c.l.b16 %v3387
        %v3653 = vunpack.c.l.b16 %v3388
        %v3654 = vunpack.c.l.b16 %v3389
        %v3655 = vunpack.c.l.b16 %v3390
        %v3656 = vunpack.c.l.b16 %v3391
        %v3657 = vunpack.c.l.b16 %v3392
        %v3658 = vunpack.c.l.b16 %v3393
        %v3659 = vunpack.c.l.b16 %v3394
        %v3660 = vunpack.c.l.b16 %v3395
        %v3661 = vunpack.c.l.b16 %v3396
        %v3662 = vunpack.c.l.b16 %v3397
        %v3663 = vunpack.c.l.b16 %v3398
        %v3664 = vunpack.c.l.b16 %v3399
        %v3665 = vunpack.c.l.b16 %v3400
        %v3666 = vunpack.c.l.b16 %v3401
        %v3667 = vunpack.c.l.b16 %v3402
        %v3668 = vunpack.c.l.b16 %v3403
        %v3669 = vunpack.c.l.b16 %v3404
        %v3670 = vunpack.c.l.b16 %v3405
        %v3671 = vunpack.c.l.b16 %v3406
        %v3672 = vunpack.c.l.b16 %v3407
        %v3673 = vunpack.c.l.b16 %v3408
        %v3674 = vunpack.c.l.b16 %v3409
        %v3675 = vunpack.c.l.b16 %v3410
        %v3676 = vunpack.c.l.b16 %v3411
        %v3677 = vunpack.c.l.b16 %v3412
        %v3678 = vunpack.c.l.b16 %v3413
        %v3679 = vunpack.c.l.b16 %v3414
        %v3680 = vunpack.c.l.b16 %v3415
        %v3681 = vunpack.c.l.b16 %v3416
        %v3682 = vunpack.c.l.b16 %v3417
        %v3683 = vunpack.c.l.b16 %v3418
        %v3684 = vunpack.c.l.b16 %v3419
        %v3685 = vunpack.c.l.b16 %v3420
        %v3686 = vunpack.c.l.b16 %v3421
        %v3687 = vunpack.c.l.b16 %v3422
        %v3688 = vunpack.c.l.b16 %v3423
        %v3689 = vunpack.c.l.b16 %v3424
        %v3690 = vunpack.c.l.b16 %v3425
        %v3691 = vunpack.c.l.b16 %v3426
        %v3692 = vunpack.c.l.b16 %v3427
        %v3693 = vunpack.c.l.b16 %v3428
        %v3694 = vunpack.c.l.b16 %v3429
        %v3695 = vunpack.c.l.b16 %v3430
        %v3696 = vunpack.c.l.b16 %v3431
        %v3697 = vunpack.c.l.b16 %v3432
        %v3698 = vunpack.c.l.b16 %v3433
        %v3699 = vunpack.c.l.b16 %v3434
        %v3700 = vunpack.c.l.b16 %v3435
        %v3701 = vunpack.c.l.b16 %v3436
        %v3702 = vunpack.c.l.b16 %v3437
        %v3703 = vunpack.c.l.b16 %v3438
        %v3704 = vunpack.c.l.b16 %v3439
        %v3705 = vunpack.c.l.b16 %v3440
        %v3706 = vunpack.c.l.b16 %v3441
        %v3707 = vunpack.c.l.b16 %v3442
        %v3708 = vunpack.c.l.b16 %v3443
        %v3709 = vunpack.c.l.b16 %v3444
        %v3710 = vunpack.c.l.b16 %v3445
        %v3711 = vunpack.c.l.b16 %v3446
        %v3712 = vunpack.c.l.b16 %v3447
        %v3713 = vunpack.c.l.b16 %v3448
        %v3714 = vpack.c.b16 %v3643, %v3642
        %v3715 = vpack.c.b16 %v3645, %v3644
        %v3716 = vpack.c.b16 %v3647, %v3646
        %v3717 = vpack.c.b16 %v3649, %v3648
        %v3718 = vpack.c.b16 %v3651, %v3650
        %v3719 = vpack.c.b16 %v3653, %v3652
        %v3720 = vpack.c.b16 %v3655, %v3654
        %v3721 = vpack.c.b16 %v3657, %v3656
        %v3722 = vpack.c.b16 %v3659, %v3658
        %v3723 = vpack.c.b16 %v3661, %v3660
        %v3724 = vpack.c.b16 %v3663, %v3662
        %v3725 = vpack.c.b16 %v3665, %v3664
        %v3726 = vpack.c.b16 %v3667, %v3666
        %v3727 = vpack.c.b16 %v3669, %v3668
        %v3728 = vpack.c.b16 %v3671, %v3670
        %v3729 = vpack.c.b16 %v3673, %v3672
        %v3730 = vpack.c.b16 %v3675, %v3674
        %v3731 = vpack.c.b16 %v3677, %v3676
        %v3732 = vpack.c.b16 %v3679, %v3678
        %v3733 = vpack.c.b16 %v3681, %v3680
        %v3734 = vpack.c.b16 %v3683, %v3682
        %v3735 = vpack.c.b16 %v3685, %v3684
        %v3736 = vpack.c.b16 %v3687, %v3686
        %v3737 = vpack.c.b16 %v3689, %v3688
        %v3738 = vpack.c.b16 %v3691, %v3690
        %v3739 = vpack.c.b16 %v3693, %v3692
        %v3740 = vpack.c.b16 %v3695, %v3694
        %v3741 = vpack.c.b16 %v3697, %v3696
        %v3742 = vpack.c.b16 %v3699, %v3698
        %v3743 = vpack.c.b16 %v3701, %v3700
        %v3744 = vpack.c.b16 %v3703, %v3702
        %v3745 = vpack.c.b16 %v3705, %v3704
        %v3746 = vpack.c.b16 %v3707, %v3706
        %v3747 = vpack.c.b16 %v3709, %v3708
        %v3748 = vpack.c.b16 %v3711, %v3710
        %v3749 = vpack.c.b16 %v3713, %v3712
        %v3787 = vsel %vm2060, %v3529, 0
        %v3790 = vsel %vm2060, %v3534, 0
        %v3793 = vsel %vm2060, %v3539, 0
        %v3796 = vsel %vm2060, %v3544, 0
        %v3799 = vsel %vm2060, %v3549, 0
        %3801 = vmatpush.bf16.msra.mxu0 %v3721
        %3802 = vmatpush.bf16.msra.mxu0 %v3720
        %3803 = vmatpush.bf16.msra.mxu0 %v3719
        %3804 = vmatpush.bf16.msra.mxu0 %v3718
        %3805 = vmatpush.bf16.msra.mxu0 %v3717
        %3806 = vmatpush.bf16.msra.mxu0 %v3716
        %3807 = vmatpush.bf16.msra.mxu0 %v3715
        %3808 = vmatpush.bf16.msra.mxu0 %v3714
        %3809 = vmatmul.bf16.gmra.mxu0 %v3525
        %v3810 = vpop.f32.mrf.mxu0
        %v3811 = vadd.f32 %v3451, %v3810
        %v3812 = vpop.f32.mrf.mxu0
        %v3813 = vadd.f32 %v3451, %v3812
        %3814 = vmatmul.bf16.gmra.mxu0 %v3530
        %v3815 = vpop.f32.mrf.mxu0
        %v3816 = vadd.f32 %v3451, %v3815
        %v3817 = vpop.f32.mrf.mxu0
        %v3818 = vadd.f32 %v3451, %v3817
        %3819 = vmatmul.bf16.gmra.mxu0 %v3535
        %v3820 = vpop.f32.mrf.mxu0
        %v3821 = vadd.f32 %v3451, %v3820
        %v3822 = vpop.f32.mrf.mxu0
        %v3823 = vadd.f32 %v3451, %v3822
        %3824 = vmatmul.bf16.gmra.mxu0 %v3540
        %v3825 = vpop.f32.mrf.mxu0
        %v3826 = vadd.f32 %v3451, %v3825
        %v3827 = vpop.f32.mrf.mxu0
        %v3828 = vadd.f32 %v3451, %v3827
        %3829 = vmatmul.bf16.gmra.mxu0 %v3545
        %v3830 = vpop.f32.mrf.mxu0
        %v3831 = vadd.f32 %v3451, %v3830
        %v3832 = vpop.f32.mrf.mxu0
        %3833 = vdwg.mxu0
        %3834 = vmatpush.bf16.msra.mxu0 %v3729
        %3835 = vmatpush.bf16.msra.mxu0 %v3728
        %3836 = vmatpush.bf16.msra.mxu0 %v3727
        %3837 = vmatpush.bf16.msra.mxu0 %v3726
        %3838 = vmatpush.bf16.msra.mxu0 %v3725
        %3839 = vmatpush.bf16.msra.mxu0 %v3724
        %3840 = vmatpush.bf16.msra.mxu0 %v3723
        %3841 = vmatpush.bf16.msra.mxu0 %v3722
        %3842 = vmatmul.bf16.gmra.mxu0 %v3526
        %v3843 = vpop.f32.mrf.mxu0
        %v3844 = vadd.f32 %v3811, %v3843
        %v3845 = vpop.f32.mrf.mxu0
        %v3846 = vadd.f32 %v3813, %v3845
        %3847 = vmatmul.bf16.gmra.mxu0 %v3531
        %v3848 = vpop.f32.mrf.mxu0
        %v3849 = vadd.f32 %v3816, %v3848
        %v3850 = vpop.f32.mrf.mxu0
        %v3851 = vadd.f32 %v3818, %v3850
        %3852 = vmatmul.bf16.gmra.mxu0 %v3536
        %v3853 = vpop.f32.mrf.mxu0
        %v3854 = vadd.f32 %v3821, %v3853
        %v3855 = vpop.f32.mrf.mxu0
        %v3856 = vadd.f32 %v3823, %v3855
        %3857 = vmatmul.bf16.gmra.mxu0 %v3541
        %v3858 = vpop.f32.mrf.mxu0
        %v3859 = vadd.f32 %v3826, %v3858
        %v3860 = vpop.f32.mrf.mxu0
        %v3861 = vadd.f32 %v3828, %v3860
        %3862 = vmatmul.bf16.gmra.mxu0 %v3546
        %v3863 = vpop.f32.mrf.mxu0
        %v3864 = vadd.f32 %v3831, %v3863
        %v3865 = vpop.f32.mrf.mxu0
        %3866 = vdwg.mxu0
        %3867 = vmatpush.bf16.msra.mxu0 %v3737
        %3868 = vmatpush.bf16.msra.mxu0 %v3736
        %3869 = vmatpush.bf16.msra.mxu0 %v3735
        %3870 = vmatpush.bf16.msra.mxu0 %v3734
        %3871 = vmatpush.bf16.msra.mxu0 %v3733
        %3872 = vmatpush.bf16.msra.mxu0 %v3732
        %3873 = vmatpush.bf16.msra.mxu0 %v3731
        %3874 = vmatpush.bf16.msra.mxu0 %v3730
        %3875 = vmatmul.bf16.gmra.mxu0 %v3527
        %v3876 = vpop.f32.mrf.mxu0
        %v3877 = vadd.f32 %v3844, %v3876
        %v3878 = vpop.f32.mrf.mxu0
        %v3879 = vadd.f32 %v3846, %v3878
        %3880 = vmatmul.bf16.gmra.mxu0 %v3532
        %v3881 = vpop.f32.mrf.mxu0
        %v3882 = vadd.f32 %v3849, %v3881
        %v3883 = vpop.f32.mrf.mxu0
        %v3884 = vadd.f32 %v3851, %v3883
        %3885 = vmatmul.bf16.gmra.mxu0 %v3537
        %v3886 = vpop.f32.mrf.mxu0
        %v3887 = vadd.f32 %v3854, %v3886
        %v3888 = vpop.f32.mrf.mxu0
        %v3889 = vadd.f32 %v3856, %v3888
        %3890 = vmatmul.bf16.gmra.mxu0 %v3542
        %v3891 = vpop.f32.mrf.mxu0
        %v3892 = vadd.f32 %v3859, %v3891
        %v3893 = vpop.f32.mrf.mxu0
        %v3894 = vadd.f32 %v3861, %v3893
        %3895 = vmatmul.bf16.gmra.mxu0 %v3547
        %v3896 = vpop.f32.mrf.mxu0
        %v3897 = vadd.f32 %v3864, %v3896
        %v3898 = vpop.f32.mrf.mxu0
        %3899 = vdwg.mxu0
        %3900 = vmatpush.bf16.msra.mxu0 %v3745
        %3901 = vmatpush.bf16.msra.mxu0 %v3744
        %3902 = vmatpush.bf16.msra.mxu0 %v3743
        %3903 = vmatpush.bf16.msra.mxu0 %v3742
        %3904 = vmatpush.bf16.msra.mxu0 %v3741
        %3905 = vmatpush.bf16.msra.mxu0 %v3740
        %3906 = vmatpush.bf16.msra.mxu0 %v3739
        %3907 = vmatpush.bf16.msra.mxu0 %v3738
        %3908 = vmatmul.bf16.gmra.mxu0 %v3528
        %v3909 = vpop.f32.mrf.mxu0
        %v3910 = vadd.f32 %v3877, %v3909
        %v3911 = vpop.f32.mrf.mxu0
        %v3912 = vadd.f32 %v3879, %v3911
        %3913 = vmatmul.bf16.gmra.mxu0 %v3533
        %v3914 = vpop.f32.mrf.mxu0
        %v3915 = vadd.f32 %v3882, %v3914
        %v3916 = vpop.f32.mrf.mxu0
        %v3917 = vadd.f32 %v3884, %v3916
        %3918 = vmatmul.bf16.gmra.mxu0 %v3538
        %v3919 = vpop.f32.mrf.mxu0
        %v3920 = vadd.f32 %v3887, %v3919
        %v3921 = vpop.f32.mrf.mxu0
        %v3922 = vadd.f32 %v3889, %v3921
        %3923 = vmatmul.bf16.gmra.mxu0 %v3543
        %v3924 = vpop.f32.mrf.mxu0
        %v3925 = vadd.f32 %v3892, %v3924
        %v3926 = vpop.f32.mrf.mxu0
        %v3927 = vadd.f32 %v3894, %v3926
        %3928 = vmatmul.bf16.gmra.mxu0 %v3548
        %v3929 = vpop.f32.mrf.mxu0
        %v3930 = vadd.f32 %v3897, %v3929
        %v3931 = vpop.f32.mrf.mxu0
        %3932 = vdwg.mxu0
        %3933 = vmatpush.bf16.msra.mxu0 0
        %3934 = vmatpush.bf16.msra.mxu0 0
        %3935 = vmatpush.bf16.msra.mxu0 0
        %3936 = vmatpush.bf16.msra.mxu0 0
        %3937 = vmatpush.bf16.msra.mxu0 %v3749
        %3938 = vmatpush.bf16.msra.mxu0 %v3748
        %3939 = vmatpush.bf16.msra.mxu0 %v3747
        %3940 = vmatpush.bf16.msra.mxu0 %v3746
        %3941 = vmatmul.bf16.gmra.mxu0 %v3787
        %v3942 = vpop.f32.mrf.mxu0
        %v3943 = vadd.f32 %v3910, %v3942
        %v3944 = vpop.f32.mrf.mxu0
        %v3945 = vadd.f32 %v3912, %v3944
        %3946 = vmatmul.bf16.gmra.mxu0 %v3790
        %v3947 = vpop.f32.mrf.mxu0
        %v3948 = vadd.f32 %v3915, %v3947
        %v3949 = vpop.f32.mrf.mxu0
        %v3950 = vadd.f32 %v3917, %v3949
        %3951 = vmatmul.bf16.gmra.mxu0 %v3793
        %v3952 = vpop.f32.mrf.mxu0
        %v3953 = vadd.f32 %v3920, %v3952
        %v3954 = vpop.f32.mrf.mxu0
        %v3955 = vadd.f32 %v3922, %v3954
        %3956 = vmatmul.bf16.gmra.mxu0 %v3796
        %v3957 = vpop.f32.mrf.mxu0
        %v3958 = vadd.f32 %v3925, %v3957
        %v3959 = vpop.f32.mrf.mxu0
        %v3960 = vadd.f32 %v3927, %v3959
        %3961 = vmatmul.bf16.gmra.mxu0 %v3799
        %v3962 = vpop.f32.mrf.mxu0
        %v3963 = vadd.f32 %v3930, %v3962
        %v3964 = vpop.f32.mrf.mxu0
        %3965 = vdwg.mxu0
        %v3966 = vmax.f32 %v3943, 0.0
        %v3967 = vmax.f32 %v3945, 0.0
        %v3968 = vmax.f32 %v3948, 0.0
        %v3969 = vmax.f32 %v3950, 0.0
        %v3970 = vmax.f32 %v3953, 0.0
        %v3971 = vmax.f32 %v3955, 0.0
        %v3972 = vmax.f32 %v3958, 0.0
        %v3973 = vmax.f32 %v3960, 0.0
        %v3974 = vmax.f32 %v3963, 0.0
        %v3975 = vsel %vm2259, %v3966, 0.0
        %v3976 = vsel %vm2260, %v3967, 0.0
        %v3977 = vsel %vm2261, %v3968, 0.0
        %v3978 = vsel %vm2262, %v3969, 0.0
        %v3979 = vsel %vm2263, %v3970, 0.0
        %v3980 = vsel %vm2264, %v3971, 0.0
        %v3981 = vsel %vm2265, %v3972, 0.0
        %v3982 = vsel %vm2266, %v3973, 0.0
        %v3983 = vsel %vm2267, %v3974, 0.0
        %v3984 = vpack.c.bf16 %v3975, %v3975
        %v3985 = vpack.c.bf16 %v3976, %v3976
        %v3986 = vpack.c.bf16 %v3977, %v3977
        %v3987 = vpack.c.bf16 %v3978, %v3978
        %v3988 = vpack.c.bf16 %v3979, %v3979
        %v3989 = vpack.c.bf16 %v3980, %v3980
        %v3990 = vpack.c.bf16 %v3981, %v3981
        %v3991 = vpack.c.bf16 %v3982, %v3982
        %v3992 = vpack.c.bf16 %v3983, %v3983
        %v4002 = vrot.slane %v3984, 6
        %v4003 = vrot.slane %v4002, 4
        %v4004 = vrot.slane %v3985, 6
        %v4005 = vsel %vm1101, %v4003, %v4004
        %v4006 = vrot.slane %v4004, 4
        %v4007 = vrot.slane %v3986, 6
        %v4008 = vsel %vm1101, %v4006, %v4007
        %v4009 = vrot.slane %v4007, 4
        %v4010 = vrot.slane %v3987, 6
        %v4011 = vsel %vm1101, %v4009, %v4010
        %v4012 = vrot.slane %v4010, 4
        %v4013 = vrot.slane %v3988, 6
        %v4014 = vsel %vm1101, %v4012, %v4013
        %v4015 = vrot.slane %v4013, 4
        %v4016 = vrot.slane %v3989, 6
        %v4017 = vsel %vm1101, %v4015, %v4016
        %v4018 = vrot.slane %v4016, 4
        %v4019 = vrot.slane %v3990, 6
        %v4020 = vsel %vm1101, %v4018, %v4019
        %v4021 = vrot.slane %v4019, 4
        %v4022 = vrot.slane %v3991, 6
        %v4023 = vsel %vm1101, %v4021, %v4022
        %v4024 = vrot.slane %v4022, 4
        %v4025 = vrot.slane %v3992, 6
        %v4026 = vsel %vm1101, %v4024, %v4025
        %v4027 = vrot.slane %v4025, 4
        %4038 = vst [vmem:[%s229 + $0x34] sm:$0xc] %v4002
        %4039 = vst [vmem:[%s229 + $0x38] sm:$0xf] %v4005
        %4040 = vst [vmem:[%s229 + $0x3c] sm:$0xf] %v4008
        %4041 = vst [vmem:[%s229 + $0x40] sm:$0xf] %v4011
        %4042 = vst [vmem:[%s229 + $0x44] sm:$0xf] %v4014
        %4043 = vst [vmem:[%s229 + $0x48] sm:$0xf] %v4017
        %4044 = vst [vmem:[%s229 + $0x4c] sm:$0xf] %v4020
        %4045 = vst [vmem:[%s229 + $0x50] sm:$0xf] %v4023
        %4046 = vst [vmem:[%s229 + $0x54] sm:$0xf] %v4026
        %4047 = vst [vmem:[%s229 + $0x58] sm:$0x3] %v4027
        %v4048 = vld [vmem:[%s234 + $0x50] sm:$0xf]
        %v4049 = vld [vmem:[%s234 + $0x54] sm:$0xf]
        %v4050 = vld [vmem:[%s234 + $0x58] sm:$0xf]
        %v4051 = vld [vmem:[%s234 + $0x5c] sm:$0xf]
        %v4052 = vld [vmem:[%s234 + $0x60] sm:$0xf]
        %v4053 = vld [vmem:[%s234 + $0x64] sm:$0xf]
        %v4054 = vld [vmem:[%s234 + $0x68] sm:$0xf]
        %v4055 = vld [vmem:[%s234 + $0x6c] sm:$0xf]
        %v4056 = vld [vmem:[%s234 + $0x70] sm:$0xf]
        %v4057 = vld [vmem:[%s234 + $0x74] sm:$0x1]
        %v4059 = vshrl.u32 %v4048, 16
        %v4061 = vrot.slane %v4059, 4
        %v4062 = vshll.u32 %v4048, 16
        %v4064 = vrot.slane %v4062, 5
        %v4065 = vor.u32 %v4061, %v4064
        %v4066 = vrot.slane %v4065, 4
        %v4068 = vshll.u32 %v4049, 16
        %v4070 = vrot.slane %v4068, 5
        %v4071 = vsel %vm604, %v4066, %v4070
        %v4072 = vshrl.u32 %v4049, 16
        %v4074 = vrot.slane %v4072, 4
        %v4075 = vor.u32 %v4074, %v4070
        %v4076 = vrot.slane %v4075, 4
        %v4078 = vshll.u32 %v4050, 16
        %v4080 = vrot.slane %v4078, 5
        %v4081 = vsel %vm604, %v4076, %v4080
        %v4082 = vshrl.u32 %v4050, 16
        %v4084 = vrot.slane %v4082, 4
        %v4085 = vor.u32 %v4084, %v4080
        %v4086 = vrot.slane %v4085, 4
        %v4088 = vshll.u32 %v4051, 16
        %v4090 = vrot.slane %v4088, 5
        %v4091 = vsel %vm604, %v4086, %v4090
        %v4092 = vshrl.u32 %v4051, 16
        %v4094 = vrot.slane %v4092, 4
        %v4095 = vor.u32 %v4094, %v4090
        %v4096 = vrot.slane %v4095, 4
        %v4098 = vshll.u32 %v4052, 16
        %v4100 = vrot.slane %v4098, 5
        %v4101 = vsel %vm604, %v4096, %v4100
        %v4102 = vshrl.u32 %v4052, 16
        %v4104 = vrot.slane %v4102, 4
        %v4105 = vor.u32 %v4104, %v4100
        %v4106 = vrot.slane %v4105, 4
        %v4108 = vshll.u32 %v4053, 16
        %v4110 = vrot.slane %v4108, 5
        %v4111 = vsel %vm604, %v4106, %v4110
        %v4112 = vshrl.u32 %v4053, 16
        %v4114 = vrot.slane %v4112, 4
        %v4115 = vor.u32 %v4114, %v4110
        %v4116 = vrot.slane %v4115, 4
        %v4118 = vshll.u32 %v4054, 16
        %v4120 = vrot.slane %v4118, 5
        %v4121 = vsel %vm604, %v4116, %v4120
        %v4122 = vshrl.u32 %v4054, 16
        %v4124 = vrot.slane %v4122, 4
        %v4125 = vor.u32 %v4124, %v4120
        %v4126 = vrot.slane %v4125, 4
        %v4128 = vshll.u32 %v4055, 16
        %v4130 = vrot.slane %v4128, 5
        %v4131 = vsel %vm604, %v4126, %v4130
        %v4132 = vshrl.u32 %v4055, 16
        %v4134 = vrot.slane %v4132, 4
        %v4135 = vor.u32 %v4134, %v4130
        %v4136 = vrot.slane %v4135, 4
        %v4138 = vshll.u32 %v4056, 16
        %v4140 = vrot.slane %v4138, 5
        %v4141 = vsel %vm604, %v4136, %v4140
        %v4142 = vshrl.u32 %v4056, 16
        %v4144 = vrot.slane %v4142, 4
        %v4145 = vor.u32 %v4144, %v4140
        %v4146 = vrot.slane %v4145, 4
        %v4148 = vshll.u32 %v4057, 16
        %v4150 = vrot.slane %v4148, 5
        %v4151 = vsel %vm604, %v4146, %v4150
        %4161 = vst.msk [vmem:[#allocation2] sm:$0xf] %vm708, %v4071
        %4162 = vst.msk [vmem:[#allocation2 + $0x14] sm:$0xf] %vm708, %v4081
        %4163 = vst.msk [vmem:[#allocation2 + $0x28] sm:$0xf] %vm708, %v4091
        %4164 = vst.msk [vmem:[#allocation2 + $0x3c] sm:$0xf] %vm708, %v4101
        %4165 = vst.msk [vmem:[#allocation2 + $0x50] sm:$0xf] %vm708, %v4111
        %4166 = vst.msk [vmem:[#allocation2 + $0x64] sm:$0xf] %vm708, %v4121
        %4167 = vst.msk [vmem:[#allocation2 + $0x78] sm:$0xf] %vm708, %v4131
        %4168 = vst.msk [vmem:[#allocation2 + $0x8c] sm:$0xf] %vm708, %v4141
        %4169 = vst.msk [vmem:[#allocation2 + $0xa0] sm:$0xf] %vm708, %v4151
        %v4170 = vld [vmem:[%s234 + $0x50] sm:$0xe]
        %v4171 = vld [vmem:[%s234 + $0x54] sm:$0xf]
        %v4172 = vld [vmem:[%s234 + $0x58] sm:$0xf]
        %v4173 = vld [vmem:[%s234 + $0x5c] sm:$0xf]
        %v4174 = vld [vmem:[%s234 + $0x60] sm:$0xf]
        %v4175 = vld [vmem:[%s234 + $0x64] sm:$0xf]
        %v4176 = vld [vmem:[%s234 + $0x68] sm:$0xf]
        %v4177 = vld [vmem:[%s234 + $0x6c] sm:$0xf]
        %v4178 = vld [vmem:[%s234 + $0x70] sm:$0xf]
        %v4179 = vld [vmem:[%s234 + $0x74] sm:$0x1]
        %v4190 = vrot.slane %v4170, 5
        %v4191 = vrot.slane %v4190, 4
        %v4192 = vrot.slane %v4171, 5
        %v4193 = vsel %vm740, %v4191, %v4192
        %v4194 = vrot.slane %v4192, 4
        %v4195 = vrot.slane %v4172, 5
        %v4196 = vsel %vm740, %v4194, %v4195
        %v4197 = vrot.slane %v4195, 4
        %v4198 = vrot.slane %v4173, 5
        %v4199 = vsel %vm740, %v4197, %v4198
        %v4200 = vrot.slane %v4198, 4
        %v4201 = vrot.slane %v4174, 5
        %v4202 = vsel %vm740, %v4200, %v4201
        %v4203 = vrot.slane %v4201, 4
        %v4204 = vrot.slane %v4175, 5
        %v4205 = vsel %vm740, %v4203, %v4204
        %v4206 = vrot.slane %v4204, 4
        %v4207 = vrot.slane %v4176, 5
        %v4208 = vsel %vm740, %v4206, %v4207
        %v4209 = vrot.slane %v4207, 4
        %v4210 = vrot.slane %v4177, 5
        %v4211 = vsel %vm740, %v4209, %v4210
        %v4212 = vrot.slane %v4210, 4
        %v4213 = vrot.slane %v4178, 5
        %v4214 = vsel %vm740, %v4212, %v4213
        %v4215 = vrot.slane %v4213, 4
        %v4216 = vrot.slane %v4179, 5
        %v4217 = vsel %vm740, %v4215, %v4216
        %4218 = vrot.lane.b32.xlu0 %v4193, 64
        %v4219 = vpop.permute.xlu0 %4218
        %4220 = vrot.lane.b32.xlu0 %v4196, 64
        %v4221 = vpop.permute.xlu0 %4220
        %4222 = vrot.lane.b32.xlu0 %v4199, 64
        %v4223 = vpop.permute.xlu0 %4222
        %4224 = vrot.lane.b32.xlu0 %v4202, 64
        %v4225 = vpop.permute.xlu0 %4224
        %4226 = vrot.lane.b32.xlu0 %v4205, 64
        %v4227 = vpop.permute.xlu0 %4226
        %4228 = vrot.lane.b32.xlu0 %v4208, 64
        %v4229 = vpop.permute.xlu0 %4228
        %4230 = vrot.lane.b32.xlu0 %v4211, 64
        %v4231 = vpop.permute.xlu0 %4230
        %4232 = vrot.lane.b32.xlu0 %v4214, 64
        %v4233 = vpop.permute.xlu0 %4232
        %4234 = vrot.lane.b32.xlu0 %v4217, 64
        %v4235 = vpop.permute.xlu0 %4234
        %4245 = vst.msk [vmem:[#allocation2] sm:$0xf] %vm796, %v4219
        %4246 = vst.msk [vmem:[#allocation2 + $0x14] sm:$0xf] %vm796, %v4221
        %4247 = vst.msk [vmem:[#allocation2 + $0x28] sm:$0xf] %vm796, %v4223
        %4248 = vst.msk [vmem:[#allocation2 + $0x3c] sm:$0xf] %vm796, %v4225
        %4249 = vst.msk [vmem:[#allocation2 + $0x50] sm:$0xf] %vm796, %v4227
        %4250 = vst.msk [vmem:[#allocation2 + $0x64] sm:$0xf] %vm796, %v4229
        %4251 = vst.msk [vmem:[#allocation2 + $0x78] sm:$0xf] %vm796, %v4231
        %4252 = vst.msk [vmem:[#allocation2 + $0x8c] sm:$0xf] %vm796, %v4233
        %4253 = vst.msk [vmem:[#allocation2 + $0xa0] sm:$0xf] %vm796, %v4235
        %v4254 = vld [vmem:[%s234 + $0x50] sm:$0xe]
        %v4255 = vld [vmem:[%s234 + $0x54] sm:$0xf]
        %v4256 = vld [vmem:[%s234 + $0x58] sm:$0xf]
        %v4257 = vld [vmem:[%s234 + $0x5c] sm:$0xf]
        %v4258 = vld [vmem:[%s234 + $0x60] sm:$0xf]
        %v4259 = vld [vmem:[%s234 + $0x64] sm:$0xf]
        %v4260 = vld [vmem:[%s234 + $0x68] sm:$0xf]
        %v4261 = vld [vmem:[%s234 + $0x6c] sm:$0xf]
        %v4262 = vld [vmem:[%s234 + $0x70] sm:$0xf]
        %v4263 = vld [vmem:[%s234 + $0x74] sm:$0x3]
        %v4265 = vshrl.u32 %v4254, 16
        %v4267 = vrot.slane %v4265, 5
        %v4268 = vshll.u32 %v4254, 16
        %v4270 = vrot.slane %v4268, 6
        %v4271 = vor.u32 %v4267, %v4270
        %v4272 = vrot.slane %v4271, 4
        %v4274 = vshrl.u32 %v4255, 16
        %v4276 = vrot.slane %v4274, 5
        %v4277 = vshll.u32 %v4255, 16
        %v4279 = vrot.slane %v4277, 6
        %v4280 = vor.u32 %v4276, %v4279
        %v4281 = vsel %vm818, %v4272, %v4280
        %v4282 = vrot.slane %v4280, 4
        %v4284 = vshrl.u32 %v4256, 16
        %v4286 = vrot.slane %v4284, 5
        %v4287 = vshll.u32 %v4256, 16
        %v4289 = vrot.slane %v4287, 6
        %v4290 = vor.u32 %v4286, %v4289
        %v4291 = vsel %vm818, %v4282, %v4290
        %v4292 = vrot.slane %v4290, 4
        %v4294 = vshrl.u32 %v4257, 16
        %v4296 = vrot.slane %v4294, 5
        %v4297 = vshll.u32 %v4257, 16
        %v4299 = vrot.slane %v4297, 6
        %v4300 = vor.u32 %v4296, %v4299
        %v4301 = vsel %vm818, %v4292, %v4300
        %v4302 = vrot.slane %v4300, 4
        %v4304 = vshrl.u32 %v4258, 16
        %v4306 = vrot.slane %v4304, 5
        %v4307 = vshll.u32 %v4258, 16
        %v4309 = vrot.slane %v4307, 6
        %v4310 = vor.u32 %v4306, %v4309
        %v4311 = vsel %vm818, %v4302, %v4310
        %v4312 = vrot.slane %v4310, 4
        %v4314 = vshrl.u32 %v4259, 16
        %v4316 = vrot.slane %v4314, 5
        %v4317 = vshll.u32 %v4259, 16
        %v4319 = vrot.slane %v4317, 6
        %v4320 = vor.u32 %v4316, %v4319
        %v4321 = vsel %vm818, %v4312, %v4320
        %v4322 = vrot.slane %v4320, 4
        %v4324 = vshrl.u32 %v4260, 16
        %v4326 = vrot.slane %v4324, 5
        %v4327 = vshll.u32 %v4260, 16
        %v4329 = vrot.slane %v4327, 6
        %v4330 = vor.u32 %v4326, %v4329
        %v4331 = vsel %vm818, %v4322, %v4330
        %v4332 = vrot.slane %v4330, 4
        %v4334 = vshrl.u32 %v4261, 16
        %v4336 = vrot.slane %v4334, 5
        %v4337 = vshll.u32 %v4261, 16
        %v4339 = vrot.slane %v4337, 6
        %v4340 = vor.u32 %v4336, %v4339
        %v4341 = vsel %vm818, %v4332, %v4340
        %v4342 = vrot.slane %v4340, 4
        %v4344 = vshrl.u32 %v4262, 16
        %v4346 = vrot.slane %v4344, 5
        %v4347 = vshll.u32 %v4262, 16
        %v4349 = vrot.slane %v4347, 6
        %v4350 = vor.u32 %v4346, %v4349
        %v4351 = vsel %vm818, %v4342, %v4350
        %v4352 = vrot.slane %v4350, 4
        %v4354 = vshrl.u32 %v4263, 16
        %v4356 = vrot.slane %v4354, 5
        %v4357 = vshll.u32 %v4263, 16
        %v4359 = vrot.slane %v4357, 6
        %v4360 = vor.u32 %v4356, %v4359
        %v4361 = vsel %vm818, %v4352, %v4360
        %4371 = vst.msk [vmem:[#allocation2 + $0x4] sm:$0xf] %vm708, %v4281
        %4372 = vst.msk [vmem:[#allocation2 + $0x18] sm:$0xf] %vm708, %v4291
        %4373 = vst.msk [vmem:[#allocation2 + $0x2c] sm:$0xf] %vm708, %v4301
        %4374 = vst.msk [vmem:[#allocation2 + $0x40] sm:$0xf] %vm708, %v4311
        %4375 = vst.msk [vmem:[#allocation2 + $0x54] sm:$0xf] %vm708, %v4321
        %4376 = vst.msk [vmem:[#allocation2 + $0x68] sm:$0xf] %vm708, %v4331
        %4377 = vst.msk [vmem:[#allocation2 + $0x7c] sm:$0xf] %vm708, %v4341
        %4378 = vst.msk [vmem:[#allocation2 + $0x90] sm:$0xf] %vm708, %v4351
        %4379 = vst.msk [vmem:[#allocation2 + $0xa4] sm:$0xf] %vm708, %v4361
        %v4380 = vld [vmem:[%s234 + $0x58] sm:$0xe]
        %v4381 = vld [vmem:[%s234 + $0x5c] sm:$0xf]
        %v4382 = vld [vmem:[%s234 + $0x60] sm:$0xf]
        %v4383 = vld [vmem:[%s234 + $0x64] sm:$0xf]
        %v4384 = vld [vmem:[%s234 + $0x68] sm:$0xf]
        %v4385 = vld [vmem:[%s234 + $0x6c] sm:$0xf]
        %v4386 = vld [vmem:[%s234 + $0x70] sm:$0xf]
        %v4387 = vld [vmem:[%s234 + $0x74] sm:$0xf]
        %v4388 = vld [vmem:[%s234 + $0x78] sm:$0xf]
        %v4389 = vld [vmem:[%s234 + $0x7c] sm:$0x3]
        %v4391 = vshrl.u32 %v4380, 16
        %v4393 = vrot.slane %v4391, 5
        %v4394 = vshll.u32 %v4380, 16
        %v4396 = vrot.slane %v4394, 6
        %v4397 = vor.u32 %v4393, %v4396
        %v4398 = vrot.slane %v4397, 4
        %v4400 = vshrl.u32 %v4381, 16
        %v4402 = vrot.slane %v4400, 5
        %v4403 = vshll.u32 %v4381, 16
        %v4405 = vrot.slane %v4403, 6
        %v4406 = vor.u32 %v4402, %v4405
        %v4407 = vsel %vm818, %v4398, %v4406
        %v4408 = vrot.slane %v4406, 4
        %v4410 = vshrl.u32 %v4382, 16
        %v4412 = vrot.slane %v4410, 5
        %v4413 = vshll.u32 %v4382, 16
        %v4415 = vrot.slane %v4413, 6
        %v4416 = vor.u32 %v4412, %v4415
        %v4417 = vsel %vm818, %v4408, %v4416
        %v4418 = vrot.slane %v4416, 4
        %v4420 = vshrl.u32 %v4383, 16
        %v4422 = vrot.slane %v4420, 5
        %v4423 = vshll.u32 %v4383, 16
        %v4425 = vrot.slane %v4423, 6
        %v4426 = vor.u32 %v4422, %v4425
        %v4427 = vsel %vm818, %v4418, %v4426
        %v4428 = vrot.slane %v4426, 4
        %v4430 = vshrl.u32 %v4384, 16
        %v4432 = vrot.slane %v4430, 5
        %v4433 = vshll.u32 %v4384, 16
        %v4435 = vrot.slane %v4433, 6
        %v4436 = vor.u32 %v4432, %v4435
        %v4437 = vsel %vm818, %v4428, %v4436
        %v4438 = vrot.slane %v4436, 4
        %v4440 = vshrl.u32 %v4385, 16
        %v4442 = vrot.slane %v4440, 5
        %v4443 = vshll.u32 %v4385, 16
        %v4445 = vrot.slane %v4443, 6
        %v4446 = vor.u32 %v4442, %v4445
        %v4447 = vsel %vm818, %v4438, %v4446
        %v4448 = vrot.slane %v4446, 4
        %v4450 = vshrl.u32 %v4386, 16
        %v4452 = vrot.slane %v4450, 5
        %v4453 = vshll.u32 %v4386, 16
        %v4455 = vrot.slane %v4453, 6
        %v4456 = vor.u32 %v4452, %v4455
        %v4457 = vsel %vm818, %v4448, %v4456
        %v4458 = vrot.slane %v4456, 4
        %v4460 = vshrl.u32 %v4387, 16
        %v4462 = vrot.slane %v4460, 5
        %v4463 = vshll.u32 %v4387, 16
        %v4465 = vrot.slane %v4463, 6
        %v4466 = vor.u32 %v4462, %v4465
        %v4467 = vsel %vm818, %v4458, %v4466
        %v4468 = vrot.slane %v4466, 4
        %v4470 = vshrl.u32 %v4388, 16
        %v4472 = vrot.slane %v4470, 5
        %v4473 = vshll.u32 %v4388, 16
        %v4475 = vrot.slane %v4473, 6
        %v4476 = vor.u32 %v4472, %v4475
        %v4477 = vsel %vm818, %v4468, %v4476
        %v4478 = vrot.slane %v4476, 4
        %v4480 = vshrl.u32 %v4389, 16
        %v4482 = vrot.slane %v4480, 5
        %v4483 = vshll.u32 %v4389, 16
        %v4485 = vrot.slane %v4483, 6
        %v4486 = vor.u32 %v4482, %v4485
        %v4487 = vsel %vm818, %v4478, %v4486
        %4488 = vrot.lane.b32.xlu0 %v4407, 64
        %v4489 = vpop.permute.xlu0 %4488
        %4490 = vrot.lane.b32.xlu0 %v4417, 64
        %v4491 = vpop.permute.xlu0 %4490
        %4492 = vrot.lane.b32.xlu0 %v4427, 64
        %v4493 = vpop.permute.xlu0 %4492
        %4494 = vrot.lane.b32.xlu0 %v4437, 64
        %v4495 = vpop.permute.xlu0 %4494
        %4496 = vrot.lane.b32.xlu0 %v4447, 64
        %v4497 = vpop.permute.xlu0 %4496
        %4498 = vrot.lane.b32.xlu0 %v4457, 64
        %v4499 = vpop.permute.xlu0 %4498
        %4500 = vrot.lane.b32.xlu0 %v4467, 64
        %v4501 = vpop.permute.xlu0 %4500
        %4502 = vrot.lane.b32.xlu0 %v4477, 64
        %v4503 = vpop.permute.xlu0 %4502
        %4504 = vrot.lane.b32.xlu0 %v4487, 64
        %v4505 = vpop.permute.xlu0 %4504
        %4515 = vst.msk [vmem:[#allocation2 + $0x4] sm:$0xf] %vm796, %v4489
        %4516 = vst.msk [vmem:[#allocation2 + $0x18] sm:$0xf] %vm796, %v4491
        %4517 = vst.msk [vmem:[#allocation2 + $0x2c] sm:$0xf] %vm796, %v4493
        %4518 = vst.msk [vmem:[#allocation2 + $0x40] sm:$0xf] %vm796, %v4495
        %4519 = vst.msk [vmem:[#allocation2 + $0x54] sm:$0xf] %vm796, %v4497
        %4520 = vst.msk [vmem:[#allocation2 + $0x68] sm:$0xf] %vm796, %v4499
        %4521 = vst.msk [vmem:[#allocation2 + $0x7c] sm:$0xf] %vm796, %v4501
        %4522 = vst.msk [vmem:[#allocation2 + $0x90] sm:$0xf] %vm796, %v4503
        %4523 = vst.msk [vmem:[#allocation2 + $0xa4] sm:$0xf] %vm796, %v4505
        %v4524 = vld [vmem:[%s234 + $0x58] sm:$0xc]
        %v4525 = vld [vmem:[%s234 + $0x5c] sm:$0xf]
        %v4526 = vld [vmem:[%s234 + $0x60] sm:$0xf]
        %v4527 = vld [vmem:[%s234 + $0x64] sm:$0xf]
        %v4528 = vld [vmem:[%s234 + $0x68] sm:$0xf]
        %v4529 = vld [vmem:[%s234 + $0x6c] sm:$0xf]
        %v4530 = vld [vmem:[%s234 + $0x70] sm:$0xf]
        %v4531 = vld [vmem:[%s234 + $0x74] sm:$0xf]
        %v4532 = vld [vmem:[%s234 + $0x78] sm:$0xf]
        %v4533 = vld [vmem:[%s234 + $0x7c] sm:$0x3]
        %v4544 = vrot.slane %v4524, 6
        %v4545 = vrot.slane %v4544, 4
        %v4546 = vrot.slane %v4525, 6
        %v4547 = vsel %vm1101, %v4545, %v4546
        %v4548 = vrot.slane %v4546, 4
        %v4549 = vrot.slane %v4526, 6
        %v4550 = vsel %vm1101, %v4548, %v4549
        %v4551 = vrot.slane %v4549, 4
        %v4552 = vrot.slane %v4527, 6
        %v4553 = vsel %vm1101, %v4551, %v4552
        %v4554 = vrot.slane %v4552, 4
        %v4555 = vrot.slane %v4528, 6
        %v4556 = vsel %vm1101, %v4554, %v4555
        %v4557 = vrot.slane %v4555, 4
        %v4558 = vrot.slane %v4529, 6
        %v4559 = vsel %vm1101, %v4557, %v4558
        %v4560 = vrot.slane %v4558, 4
        %v4561 = vrot.slane %v4530, 6
        %v4562 = vsel %vm1101, %v4560, %v4561
        %v4563 = vrot.slane %v4561, 4
        %v4564 = vrot.slane %v4531, 6
        %v4565 = vsel %vm1101, %v4563, %v4564
        %v4566 = vrot.slane %v4564, 4
        %v4567 = vrot.slane %v4532, 6
        %v4568 = vsel %vm1101, %v4566, %v4567
        %v4569 = vrot.slane %v4567, 4
        %v4570 = vrot.slane %v4533, 6
        %v4571 = vsel %vm1101, %v4569, %v4570
        %4581 = vst.msk [vmem:[#allocation2 + $0x8] sm:$0xf] %vm708, %v4547
        %4582 = vst.msk [vmem:[#allocation2 + $0x1c] sm:$0xf] %vm708, %v4550
        %4583 = vst.msk [vmem:[#allocation2 + $0x30] sm:$0xf] %vm708, %v4553
        %4584 = vst.msk [vmem:[#allocation2 + $0x44] sm:$0xf] %vm708, %v4556
        %4585 = vst.msk [vmem:[#allocation2 + $0x58] sm:$0xf] %vm708, %v4559
        %4586 = vst.msk [vmem:[#allocation2 + $0x6c] sm:$0xf] %vm708, %v4562
        %4587 = vst.msk [vmem:[#allocation2 + $0x80] sm:$0xf] %vm708, %v4565
        %4588 = vst.msk [vmem:[#allocation2 + $0x94] sm:$0xf] %vm708, %v4568
        %4589 = vst.msk [vmem:[#allocation2 + $0xa8] sm:$0xf] %vm708, %v4571
        %v4590 = vld [vmem:[%s234 + $0x58] sm:$0xc]
        %v4591 = vld [vmem:[%s234 + $0x5c] sm:$0xf]
        %v4592 = vld [vmem:[%s234 + $0x60] sm:$0xf]
        %v4593 = vld [vmem:[%s234 + $0x64] sm:$0xf]
        %v4594 = vld [vmem:[%s234 + $0x68] sm:$0xf]
        %v4595 = vld [vmem:[%s234 + $0x6c] sm:$0xf]
        %v4596 = vld [vmem:[%s234 + $0x70] sm:$0xf]
        %v4597 = vld [vmem:[%s234 + $0x74] sm:$0xf]
        %v4598 = vld [vmem:[%s234 + $0x78] sm:$0xf]
        %v4599 = vld [vmem:[%s234 + $0x7c] sm:$0x7]
        %v4601 = vshrl.u32 %v4590, 16
        %v4603 = vrot.slane %v4601, 6
        %v4604 = vshll.u32 %v4590, 16
        %v4606 = vrot.slane %v4604, 7
        %v4607 = vor.u32 %v4603, %v4606
        %v4608 = vrot.slane %v4607, 4
        %v4610 = vshrl.u32 %v4591, 16
        %v4612 = vrot.slane %v4610, 6
        %v4613 = vshll.u32 %v4591, 16
        %v4615 = vrot.slane %v4613, 7
        %v4616 = vor.u32 %v4612, %v4615
        %v4617 = vsel %vm1160, %v4608, %v4616
        %v4618 = vrot.slane %v4616, 4
        %v4620 = vshrl.u32 %v4592, 16
        %v4622 = vrot.slane %v4620, 6
        %v4623 = vshll.u32 %v4592, 16
        %v4625 = vrot.slane %v4623, 7
        %v4626 = vor.u32 %v4622, %v4625
        %v4627 = vsel %vm1160, %v4618, %v4626
        %v4628 = vrot.slane %v4626, 4
        %v4630 = vshrl.u32 %v4593, 16
        %v4632 = vrot.slane %v4630, 6
        %v4633 = vshll.u32 %v4593, 16
        %v4635 = vrot.slane %v4633, 7
        %v4636 = vor.u32 %v4632, %v4635
        %v4637 = vsel %vm1160, %v4628, %v4636
        %v4638 = vrot.slane %v4636, 4
        %v4640 = vshrl.u32 %v4594, 16
        %v4642 = vrot.slane %v4640, 6
        %v4643 = vshll.u32 %v4594, 16
        %v4645 = vrot.slane %v4643, 7
        %v4646 = vor.u32 %v4642, %v4645
        %v4647 = vsel %vm1160, %v4638, %v4646
        %v4648 = vrot.slane %v4646, 4
        %v4650 = vshrl.u32 %v4595, 16
        %v4652 = vrot.slane %v4650, 6
        %v4653 = vshll.u32 %v4595, 16
        %v4655 = vrot.slane %v4653, 7
        %v4656 = vor.u32 %v4652, %v4655
        %v4657 = vsel %vm1160, %v4648, %v4656
        %v4658 = vrot.slane %v4656, 4
        %v4660 = vshrl.u32 %v4596, 16
        %v4662 = vrot.slane %v4660, 6
        %v4663 = vshll.u32 %v4596, 16
        %v4665 = vrot.slane %v4663, 7
        %v4666 = vor.u32 %v4662, %v4665
        %v4667 = vsel %vm1160, %v4658, %v4666
        %v4668 = vrot.slane %v4666, 4
        %v4670 = vshrl.u32 %v4597, 16
        %v4672 = vrot.slane %v4670, 6
        %v4673 = vshll.u32 %v4597, 16
        %v4675 = vrot.slane %v4673, 7
        %v4676 = vor.u32 %v4672, %v4675
        %v4677 = vsel %vm1160, %v4668, %v4676
        %v4678 = vrot.slane %v4676, 4
        %v4680 = vshrl.u32 %v4598, 16
        %v4682 = vrot.slane %v4680, 6
        %v4683 = vshll.u32 %v4598, 16
        %v4685 = vrot.slane %v4683, 7
        %v4686 = vor.u32 %v4682, %v4685
        %v4687 = vsel %vm1160, %v4678, %v4686
        %v4688 = vrot.slane %v4686, 4
        %v4690 = vshrl.u32 %v4599, 16
        %v4692 = vrot.slane %v4690, 6
        %v4693 = vshll.u32 %v4599, 16
        %v4695 = vrot.slane %v4693, 7
        %v4696 = vor.u32 %v4692, %v4695
        %v4697 = vsel %vm1160, %v4688, %v4696
        %4698 = vrot.lane.b32.xlu0 %v4617, 64
        %v4699 = vpop.permute.xlu0 %4698
        %4700 = vrot.lane.b32.xlu0 %v4627, 64
        %v4701 = vpop.permute.xlu0 %4700
        %4702 = vrot.lane.b32.xlu0 %v4637, 64
        %v4703 = vpop.permute.xlu0 %4702
        %4704 = vrot.lane.b32.xlu0 %v4647, 64
        %v4705 = vpop.permute.xlu0 %4704
        %4706 = vrot.lane.b32.xlu0 %v4657, 64
        %v4707 = vpop.permute.xlu0 %4706
        %4708 = vrot.lane.b32.xlu0 %v4667, 64
        %v4709 = vpop.permute.xlu0 %4708
        %4710 = vrot.lane.b32.xlu0 %v4677, 64
        %v4711 = vpop.permute.xlu0 %4710
        %4712 = vrot.lane.b32.xlu0 %v4687, 64
        %v4713 = vpop.permute.xlu0 %4712
        %4714 = vrot.lane.b32.xlu0 %v4697, 64
        %v4715 = vpop.permute.xlu0 %4714
        %4725 = vst.msk [vmem:[#allocation2 + $0x8] sm:$0xf] %vm796, %v4699
        %4726 = vst.msk [vmem:[#allocation2 + $0x1c] sm:$0xf] %vm796, %v4701
        %4727 = vst.msk [vmem:[#allocation2 + $0x30] sm:$0xf] %vm796, %v4703
        %4728 = vst.msk [vmem:[#allocation2 + $0x44] sm:$0xf] %vm796, %v4705
        %4729 = vst.msk [vmem:[#allocation2 + $0x58] sm:$0xf] %vm796, %v4707
        %4730 = vst.msk [vmem:[#allocation2 + $0x6c] sm:$0xf] %vm796, %v4709
        %4731 = vst.msk [vmem:[#allocation2 + $0x80] sm:$0xf] %vm796, %v4711
        %4732 = vst.msk [vmem:[#allocation2 + $0x94] sm:$0xf] %vm796, %v4713
        %4733 = vst.msk [vmem:[#allocation2 + $0xa8] sm:$0xf] %vm796, %v4715
        %v4734 = vld [vmem:[%s234 + $0x60] sm:$0xc]
        %v4735 = vld [vmem:[%s234 + $0x64] sm:$0xf]
        %v4736 = vld [vmem:[%s234 + $0x68] sm:$0xf]
        %v4737 = vld [vmem:[%s234 + $0x6c] sm:$0xf]
        %v4738 = vld [vmem:[%s234 + $0x70] sm:$0xf]
        %v4739 = vld [vmem:[%s234 + $0x74] sm:$0xf]
        %v4740 = vld [vmem:[%s234 + $0x78] sm:$0xf]
        %v4741 = vld [vmem:[%s234 + $0x7c] sm:$0xf]
        %v4742 = vld [vmem:[%s234 + $0x80] sm:$0xf]
        %v4743 = vld [vmem:[%s234 + $0x84] sm:$0x7]
        %v4745 = vshrl.u32 %v4734, 16
        %v4747 = vrot.slane %v4745, 6
        %v4748 = vshll.u32 %v4734, 16
        %v4750 = vrot.slane %v4748, 7
        %v4751 = vor.u32 %v4747, %v4750
        %v4752 = vrot.slane %v4751, 4
        %v4754 = vshrl.u32 %v4735, 16
        %v4756 = vrot.slane %v4754, 6
        %v4757 = vshll.u32 %v4735, 16
        %v4759 = vrot.slane %v4757, 7
        %v4760 = vor.u32 %v4756, %v4759
        %v4761 = vsel %vm1160, %v4752, %v4760
        %v4762 = vrot.slane %v4760, 4
        %v4764 = vshrl.u32 %v4736, 16
        %v4766 = vrot.slane %v4764, 6
        %v4767 = vshll.u32 %v4736, 16
        %v4769 = vrot.slane %v4767, 7
        %v4770 = vor.u32 %v4766, %v4769
        %v4771 = vsel %vm1160, %v4762, %v4770
        %v4772 = vrot.slane %v4770, 4
        %v4774 = vshrl.u32 %v4737, 16
        %v4776 = vrot.slane %v4774, 6
        %v4777 = vshll.u32 %v4737, 16
        %v4779 = vrot.slane %v4777, 7
        %v4780 = vor.u32 %v4776, %v4779
        %v4781 = vsel %vm1160, %v4772, %v4780
        %v4782 = vrot.slane %v4780, 4
        %v4784 = vshrl.u32 %v4738, 16
        %v4786 = vrot.slane %v4784, 6
        %v4787 = vshll.u32 %v4738, 16
        %v4789 = vrot.slane %v4787, 7
        %v4790 = vor.u32 %v4786, %v4789
        %v4791 = vsel %vm1160, %v4782, %v4790
        %v4792 = vrot.slane %v4790, 4
        %v4794 = vshrl.u32 %v4739, 16
        %v4796 = vrot.slane %v4794, 6
        %v4797 = vshll.u32 %v4739, 16
        %v4799 = vrot.slane %v4797, 7
        %v4800 = vor.u32 %v4796, %v4799
        %v4801 = vsel %vm1160, %v4792, %v4800
        %v4802 = vrot.slane %v4800, 4
        %v4804 = vshrl.u32 %v4740, 16
        %v4806 = vrot.slane %v4804, 6
        %v4807 = vshll.u32 %v4740, 16
        %v4809 = vrot.slane %v4807, 7
        %v4810 = vor.u32 %v4806, %v4809
        %v4811 = vsel %vm1160, %v4802, %v4810
        %v4812 = vrot.slane %v4810, 4
        %v4814 = vshrl.u32 %v4741, 16
        %v4816 = vrot.slane %v4814, 6
        %v4817 = vshll.u32 %v4741, 16
        %v4819 = vrot.slane %v4817, 7
        %v4820 = vor.u32 %v4816, %v4819
        %v4821 = vsel %vm1160, %v4812, %v4820
        %v4822 = vrot.slane %v4820, 4
        %v4824 = vshrl.u32 %v4742, 16
        %v4826 = vrot.slane %v4824, 6
        %v4827 = vshll.u32 %v4742, 16
        %v4829 = vrot.slane %v4827, 7
        %v4830 = vor.u32 %v4826, %v4829
        %v4831 = vsel %vm1160, %v4822, %v4830
        %v4832 = vrot.slane %v4830, 4
        %v4834 = vshrl.u32 %v4743, 16
        %v4836 = vrot.slane %v4834, 6
        %v4837 = vshll.u32 %v4743, 16
        %v4839 = vrot.slane %v4837, 7
        %v4840 = vor.u32 %v4836, %v4839
        %v4841 = vsel %vm1160, %v4832, %v4840
        %4851 = vst.msk [vmem:[#allocation2 + $0xc] sm:$0xf] %vm708, %v4761
        %4852 = vst.msk [vmem:[#allocation2 + $0x20] sm:$0xf] %vm708, %v4771
        %4853 = vst.msk [vmem:[#allocation2 + $0x34] sm:$0xf] %vm708, %v4781
        %4854 = vst.msk [vmem:[#allocation2 + $0x48] sm:$0xf] %vm708, %v4791
        %4855 = vst.msk [vmem:[#allocation2 + $0x5c] sm:$0xf] %vm708, %v4801
        %4856 = vst.msk [vmem:[#allocation2 + $0x70] sm:$0xf] %vm708, %v4811
        %4857 = vst.msk [vmem:[#allocation2 + $0x84] sm:$0xf] %vm708, %v4821
        %4858 = vst.msk [vmem:[#allocation2 + $0x98] sm:$0xf] %vm708, %v4831
        %4859 = vst.msk [vmem:[#allocation2 + $0xac] sm:$0xf] %vm708, %v4841
        %v4860 = vld [vmem:[%s234 + $0x60] sm:$0x8]
        %v4861 = vld [vmem:[%s234 + $0x64] sm:$0xf]
        %v4862 = vld [vmem:[%s234 + $0x68] sm:$0xf]
        %v4863 = vld [vmem:[%s234 + $0x6c] sm:$0xf]
        %v4864 = vld [vmem:[%s234 + $0x70] sm:$0xf]
        %v4865 = vld [vmem:[%s234 + $0x74] sm:$0xf]
        %v4866 = vld [vmem:[%s234 + $0x78] sm:$0xf]
        %v4867 = vld [vmem:[%s234 + $0x7c] sm:$0xf]
        %v4868 = vld [vmem:[%s234 + $0x80] sm:$0xf]
        %v4869 = vld [vmem:[%s234 + $0x84] sm:$0x7]
        %v4880 = vrot.slane %v4860, 7
        %v4881 = vrot.slane %v4880, 4
        %v4882 = vrot.slane %v4861, 7
        %v4883 = vsel %vm1443, %v4881, %v4882
        %v4884 = vrot.slane %v4882, 4
        %v4885 = vrot.slane %v4862, 7
        %v4886 = vsel %vm1443, %v4884, %v4885
        %v4887 = vrot.slane %v4885, 4
        %v4888 = vrot.slane %v4863, 7
        %v4889 = vsel %vm1443, %v4887, %v4888
        %v4890 = vrot.slane %v4888, 4
        %v4891 = vrot.slane %v4864, 7
        %v4892 = vsel %vm1443, %v4890, %v4891
        %v4893 = vrot.slane %v4891, 4
        %v4894 = vrot.slane %v4865, 7
        %v4895 = vsel %vm1443, %v4893, %v4894
        %v4896 = vrot.slane %v4894, 4
        %v4897 = vrot.slane %v4866, 7
        %v4898 = vsel %vm1443, %v4896, %v4897
        %v4899 = vrot.slane %v4897, 4
        %v4900 = vrot.slane %v4867, 7
        %v4901 = vsel %vm1443, %v4899, %v4900
        %v4902 = vrot.slane %v4900, 4
        %v4903 = vrot.slane %v4868, 7
        %v4904 = vsel %vm1443, %v4902, %v4903
        %v4905 = vrot.slane %v4903, 4
        %v4906 = vrot.slane %v4869, 7
        %v4907 = vsel %vm1443, %v4905, %v4906
        %4908 = vrot.lane.b32.xlu0 %v4883, 64
        %v4909 = vpop.permute.xlu0 %4908
        %4910 = vrot.lane.b32.xlu0 %v4886, 64
        %v4911 = vpop.permute.xlu0 %4910
        %4912 = vrot.lane.b32.xlu0 %v4889, 64
        %v4913 = vpop.permute.xlu0 %4912
        %4914 = vrot.lane.b32.xlu0 %v4892, 64
        %v4915 = vpop.permute.xlu0 %4914
        %4916 = vrot.lane.b32.xlu0 %v4895, 64
        %v4917 = vpop.permute.xlu0 %4916
        %4918 = vrot.lane.b32.xlu0 %v4898, 64
        %v4919 = vpop.permute.xlu0 %4918
        %4920 = vrot.lane.b32.xlu0 %v4901, 64
        %v4921 = vpop.permute.xlu0 %4920
        %4922 = vrot.lane.b32.xlu0 %v4904, 64
        %v4923 = vpop.permute.xlu0 %4922
        %4924 = vrot.lane.b32.xlu0 %v4907, 64
        %v4925 = vpop.permute.xlu0 %4924
        %4935 = vst.msk [vmem:[#allocation2 + $0xc] sm:$0xf] %vm796, %v4909
        %4936 = vst.msk [vmem:[#allocation2 + $0x20] sm:$0xf] %vm796, %v4911
        %4937 = vst.msk [vmem:[#allocation2 + $0x34] sm:$0xf] %vm796, %v4913
        %4938 = vst.msk [vmem:[#allocation2 + $0x48] sm:$0xf] %vm796, %v4915
        %4939 = vst.msk [vmem:[#allocation2 + $0x5c] sm:$0xf] %vm796, %v4917
        %4940 = vst.msk [vmem:[#allocation2 + $0x70] sm:$0xf] %vm796, %v4919
        %4941 = vst.msk [vmem:[#allocation2 + $0x84] sm:$0xf] %vm796, %v4921
        %4942 = vst.msk [vmem:[#allocation2 + $0x98] sm:$0xf] %vm796, %v4923
        %4943 = vst.msk [vmem:[#allocation2 + $0xac] sm:$0xf] %vm796, %v4925
        %v4944 = vld [vmem:[%s234 + $0x60] sm:$0x8]
        %v4945 = vld [vmem:[%s234 + $0x64] sm:$0xf]
        %v4946 = vld [vmem:[%s234 + $0x68] sm:$0xf]
        %v4947 = vld [vmem:[%s234 + $0x6c] sm:$0xf]
        %v4948 = vld [vmem:[%s234 + $0x70] sm:$0xf]
        %v4949 = vld [vmem:[%s234 + $0x74] sm:$0xf]
        %v4950 = vld [vmem:[%s234 + $0x78] sm:$0xf]
        %v4951 = vld [vmem:[%s234 + $0x7c] sm:$0xf]
        %v4952 = vld [vmem:[%s234 + $0x80] sm:$0xf]
        %v4953 = vld [vmem:[%s234 + $0x84] sm:$0xf]
        %v4955 = vshrl.u32 %v4944, 16
        %v4957 = vrot.slane %v4955, 7
        %v4958 = vrot.slane %v4957, 4
        %v4960 = vshrl.u32 %v4945, 16
        %v4962 = vrot.slane %v4960, 7
        %v4963 = vshll.u32 %v4945, 16
        %v4965 = vor.u32 %v4962, %v4963
        %v4966 = vsel %vm1520, %v4958, %v4965
        %v4967 = vrot.slane %v4962, 4
        %v4969 = vshrl.u32 %v4946, 16
        %v4971 = vrot.slane %v4969, 7
        %v4972 = vshll.u32 %v4946, 16
        %v4974 = vor.u32 %v4971, %v4972
        %v4975 = vsel %vm1520, %v4967, %v4974
        %v4976 = vrot.slane %v4971, 4
        %v4978 = vshrl.u32 %v4947, 16
        %v4980 = vrot.slane %v4978, 7
        %v4981 = vshll.u32 %v4947, 16
        %v4983 = vor.u32 %v4980, %v4981
        %v4984 = vsel %vm1520, %v4976, %v4983
        %v4985 = vrot.slane %v4980, 4
        %v4987 = vshrl.u32 %v4948, 16
        %v4989 = vrot.slane %v4987, 7
        %v4990 = vshll.u32 %v4948, 16
        %v4992 = vor.u32 %v4989, %v4990
        %v4993 = vsel %vm1520, %v4985, %v4992
        %v4994 = vrot.slane %v4989, 4
        %v4996 = vshrl.u32 %v4949, 16
        %v4998 = vrot.slane %v4996, 7
        %v4999 = vshll.u32 %v4949, 16
        %v5001 = vor.u32 %v4998, %v4999
        %v5002 = vsel %vm1520, %v4994, %v5001
        %v5003 = vrot.slane %v4998, 4
        %v5005 = vshrl.u32 %v4950, 16
        %v5007 = vrot.slane %v5005, 7
        %v5008 = vshll.u32 %v4950, 16
        %v5010 = vor.u32 %v5007, %v5008
        %v5011 = vsel %vm1520, %v5003, %v5010
        %v5012 = vrot.slane %v5007, 4
        %v5014 = vshrl.u32 %v4951, 16
        %v5016 = vrot.slane %v5014, 7
        %v5017 = vshll.u32 %v4951, 16
        %v5019 = vor.u32 %v5016, %v5017
        %v5020 = vsel %vm1520, %v5012, %v5019
        %v5021 = vrot.slane %v5016, 4
        %v5023 = vshrl.u32 %v4952, 16
        %v5025 = vrot.slane %v5023, 7
        %v5026 = vshll.u32 %v4952, 16
        %v5028 = vor.u32 %v5025, %v5026
        %v5029 = vsel %vm1520, %v5021, %v5028
        %v5030 = vrot.slane %v5025, 4
        %v5032 = vshrl.u32 %v4953, 16
        %v5034 = vrot.slane %v5032, 7
        %v5035 = vshll.u32 %v4953, 16
        %v5037 = vor.u32 %v5034, %v5035
        %v5038 = vsel %vm1520, %v5030, %v5037
        %5048 = vst.msk [vmem:[#allocation2 + $0x10] sm:$0xf] %vm708, %v4966
        %5049 = vst.msk [vmem:[#allocation2 + $0x24] sm:$0xf] %vm708, %v4975
        %5050 = vst.msk [vmem:[#allocation2 + $0x38] sm:$0xf] %vm708, %v4984
        %5051 = vst.msk [vmem:[#allocation2 + $0x4c] sm:$0xf] %vm708, %v4993
        %5052 = vst.msk [vmem:[#allocation2 + $0x60] sm:$0xf] %vm708, %v5002
        %5053 = vst.msk [vmem:[#allocation2 + $0x74] sm:$0xf] %vm708, %v5011
        %5054 = vst.msk [vmem:[#allocation2 + $0x88] sm:$0xf] %vm708, %v5020
        %5055 = vst.msk [vmem:[#allocation2 + $0x9c] sm:$0xf] %vm708, %v5029
        %5056 = vst.msk [vmem:[#allocation2 + $0xb0] sm:$0xf] %vm708, %v5038
        %v5057 = vld [vmem:[#allocation2] sm:$0xff]
        %v5058 = vld [vmem:[#allocation2 + $0x8] sm:$0xff]
        %v5059 = vld [vmem:[#allocation2 + $0x10] sm:$0xf]
        %v5060 = vld [vmem:[#allocation2 + $0x14] sm:$0xff]
        %v5061 = vld [vmem:[#allocation2 + $0x1c] sm:$0xff]
        %v5062 = vld [vmem:[#allocation2 + $0x24] sm:$0xf]
        %v5063 = vld [vmem:[#allocation2 + $0x28] sm:$0xff]
        %v5064 = vld [vmem:[#allocation2 + $0x30] sm:$0xff]
        %v5065 = vld [vmem:[#allocation2 + $0x38] sm:$0xf]
        %v5066 = vld [vmem:[#allocation2 + $0x3c] sm:$0xff]
        %v5067 = vld [vmem:[#allocation2 + $0x44] sm:$0xff]
        %v5068 = vld [vmem:[#allocation2 + $0x4c] sm:$0xf]
        %v5069 = vld [vmem:[#allocation2 + $0x50] sm:$0xff]
        %v5070 = vld [vmem:[#allocation2 + $0x58] sm:$0xff]
        %v5071 = vld [vmem:[#allocation2 + $0x60] sm:$0xf]
        %v5072 = vld [vmem:[#allocation2 + $0x64] sm:$0xff]
        %v5073 = vld [vmem:[#allocation2 + $0x6c] sm:$0xff]
        %v5074 = vld [vmem:[#allocation2 + $0x74] sm:$0xf]
        %v5075 = vld [vmem:[#allocation2 + $0x78] sm:$0xff]
        %v5076 = vld [vmem:[#allocation2 + $0x80] sm:$0xff]
        %v5077 = vld [vmem:[#allocation2 + $0x88] sm:$0xf]
        %v5078 = vld [vmem:[#allocation2 + $0x8c] sm:$0xff]
        %v5079 = vld [vmem:[#allocation2 + $0x94] sm:$0xff]
        %v5080 = vld [vmem:[#allocation2 + $0x9c] sm:$0xf]
        %v5081 = vld [vmem:[#allocation2 + $0xa0] sm:$0xff]
        %v5082 = vld [vmem:[#allocation2 + $0xa8] sm:$0xff]
        %v5083 = vld [vmem:[#allocation2 + $0xb0] sm:$0xf]
        %v5084 = vld [vmem:[%s198] sm:$0xf]
        %v5085 = vld [vmem:[%s198 + $0x4] sm:$0xf]
        %v5086 = vld [vmem:[%s198 + $0x8] sm:$0xf]
        %v5087 = vld [vmem:[%s198 + $0xc] sm:$0xf]
        %v5088 = vld [vmem:[%s198 + $0x10] sm:$0xf]
        %v5089 = vld [vmem:[%s198 + $0x14] sm:$0xf]
        %v5090 = vld [vmem:[%s198 + $0x18] sm:$0xf]
        %v5091 = vld [vmem:[%s198 + $0x1c] sm:$0xf]
        %v5092 = vld [vmem:[%s198 + $0x20] sm:$0xf]
        %v5093 = vld [vmem:[%s198 + $0x24] sm:$0xf]
        %v5094 = vld [vmem:[%s198 + $0x28] sm:$0xf]
        %v5095 = vld [vmem:[%s198 + $0x2c] sm:$0xf]
        %v5096 = vld [vmem:[%s198 + $0x30] sm:$0xf]
        %v5097 = vld [vmem:[%s198 + $0x34] sm:$0xf]
        %v5098 = vld [vmem:[%s198 + $0x38] sm:$0xf]
        %v5099 = vld [vmem:[%s198 + $0x3c] sm:$0xf]
        %v5100 = vld [vmem:[%s198 + $0x40] sm:$0xf]
        %v5101 = vld [vmem:[%s198 + $0x44] sm:$0xf]
        %v5102 = vld [vmem:[%s198 + $0x48] sm:$0xf]
        %v5103 = vld [vmem:[%s198 + $0x4c] sm:$0xf]
        %v5104 = vld [vmem:[%s198 + $0x50] sm:$0xf]
        %v5105 = vld [vmem:[%s198 + $0x54] sm:$0xf]
        %v5106 = vld [vmem:[%s198 + $0x58] sm:$0xf]
        %v5107 = vld [vmem:[%s198 + $0x5c] sm:$0xf]
        %v5108 = vld [vmem:[%s198 + $0x60] sm:$0xf]
        %v5109 = vld [vmem:[%s198 + $0x64] sm:$0xf]
        %v5110 = vld [vmem:[%s198 + $0x68] sm:$0xf]
        %v5111 = vld [vmem:[%s198 + $0x6c] sm:$0xf]
        %v5112 = vld [vmem:[%s198 + $0x70] sm:$0xf]
        %v5113 = vld [vmem:[%s198 + $0x74] sm:$0xf]
        %v5114 = vld [vmem:[%s198 + $0x78] sm:$0xf]
        %v5115 = vld [vmem:[%s198 + $0x7c] sm:$0xf]
        %v5116 = vld [vmem:[%s198 + $0x80] sm:$0xf]
        %v5117 = vld [vmem:[%s198 + $0x84] sm:$0xf]
        %v5118 = vld [vmem:[%s198 + $0x88] sm:$0xf]
        %v5119 = vld [vmem:[%s198 + $0x8c] sm:$0xf]
        %v5120 = vld [vmem:[%s198 + $0x90] sm:$0xf]
        %v5121 = vld [vmem:[%s198 + $0x94] sm:$0xf]
        %v5122 = vld [vmem:[%s198 + $0x98] sm:$0xf]
        %v5123 = vld [vmem:[%s198 + $0x9c] sm:$0xf]
        %v5124 = vld [vmem:[%s198 + $0xa0] sm:$0xf]
        %v5125 = vld [vmem:[%s198 + $0xa4] sm:$0xf]
        %v5126 = vld [vmem:[%s198 + $0xa8] sm:$0xf]
        %v5127 = vld [vmem:[%s198 + $0xac] sm:$0xf]
        %v5128 = vld [vmem:[%s198 + $0xb0] sm:$0xf]
        %v5129 = vld [vmem:[%s198 + $0xb4] sm:$0xf]
        %v5130 = vld [vmem:[%s198 + $0xb8] sm:$0xf]
        %v5131 = vld [vmem:[%s198 + $0xbc] sm:$0xf]
        %v5132 = vld [vmem:[%s198 + $0xc0] sm:$0xf]
        %v5133 = vld [vmem:[%s198 + $0xc4] sm:$0xf]
        %v5134 = vld [vmem:[%s198 + $0xc8] sm:$0xf]
        %v5135 = vld [vmem:[%s198 + $0xcc] sm:$0xf]
        %v5136 = vld [vmem:[%s198 + $0xd0] sm:$0xf]
        %v5137 = vld [vmem:[%s198 + $0xd4] sm:$0xf]
        %v5138 = vld [vmem:[%s198 + $0xd8] sm:$0xf]
        %v5139 = vld [vmem:[%s198 + $0xdc] sm:$0xf]
        %v5140 = vld [vmem:[%s198 + $0xe0] sm:$0xf]
        %v5141 = vld [vmem:[%s198 + $0xe4] sm:$0xf]
        %v5142 = vld [vmem:[%s198 + $0xe8] sm:$0xf]
        %v5143 = vld [vmem:[%s198 + $0xec] sm:$0xf]
        %v5144 = vld [vmem:[%s198 + $0xf0] sm:$0xf]
        %v5145 = vld [vmem:[%s198 + $0xf4] sm:$0xf]
        %v5146 = vld [vmem:[%s198 + $0xf8] sm:$0xf]
        %v5147 = vld [vmem:[%s198 + $0xfc] sm:$0xf]
        %v5148 = vld [vmem:[%s198 + $0x100] sm:$0xf]
        %v5149 = vld [vmem:[%s198 + $0x104] sm:$0xf]
        %v5150 = vld [vmem:[%s198 + $0x108] sm:$0xf]
        %v5151 = vld [vmem:[%s198 + $0x10c] sm:$0xf]
        %v5152 = vld [vmem:[%s198 + $0x110] sm:$0xf]
        %v5153 = vld [vmem:[%s198 + $0x114] sm:$0xf]
        %v5154 = vld [vmem:[%s198 + $0x118] sm:$0xf]
        %v5155 = vld [vmem:[%s198 + $0x11c] sm:$0xf]
        %v5156 = vld [vmem:[%s237] sm:$0x1]
        %v5158 = vperm.slane %v5156, 0
        %v5187 = vunpack.c.l.b16 %v5057
        %v5188 = vunpack.c.h.b16 %v5057
        %v5189 = vunpack.c.l.b16 %v5058
        %v5190 = vunpack.c.h.b16 %v5058
        %v5191 = vunpack.c.l.b16 %v5059
        %v5192 = vunpack.c.l.b16 %v5060
        %v5193 = vunpack.c.h.b16 %v5060
        %v5194 = vunpack.c.l.b16 %v5061
        %v5195 = vunpack.c.h.b16 %v5061
        %v5196 = vunpack.c.l.b16 %v5062
        %v5197 = vunpack.c.l.b16 %v5063
        %v5198 = vunpack.c.h.b16 %v5063
        %v5199 = vunpack.c.l.b16 %v5064
        %v5200 = vunpack.c.h.b16 %v5064
        %v5201 = vunpack.c.l.b16 %v5065
        %v5202 = vunpack.c.l.b16 %v5066
        %v5203 = vunpack.c.h.b16 %v5066
        %v5204 = vunpack.c.l.b16 %v5067
        %v5205 = vunpack.c.h.b16 %v5067
        %v5206 = vunpack.c.l.b16 %v5068
        %v5207 = vunpack.c.l.b16 %v5069
        %v5208 = vunpack.c.h.b16 %v5069
        %v5209 = vunpack.c.l.b16 %v5070
        %v5210 = vunpack.c.h.b16 %v5070
        %v5211 = vunpack.c.l.b16 %v5071
        %v5212 = vunpack.c.l.b16 %v5072
        %v5213 = vunpack.c.h.b16 %v5072
        %v5214 = vunpack.c.l.b16 %v5073
        %v5215 = vunpack.c.h.b16 %v5073
        %v5216 = vunpack.c.l.b16 %v5074
        %v5217 = vunpack.c.l.b16 %v5075
        %v5218 = vunpack.c.h.b16 %v5075
        %v5219 = vunpack.c.l.b16 %v5076
        %v5220 = vunpack.c.h.b16 %v5076
        %v5221 = vunpack.c.l.b16 %v5077
        %v5222 = vunpack.c.l.b16 %v5078
        %v5223 = vunpack.c.h.b16 %v5078
        %v5224 = vunpack.c.l.b16 %v5079
        %v5225 = vunpack.c.h.b16 %v5079
        %v5226 = vunpack.c.l.b16 %v5080
        %v5227 = vunpack.c.l.b16 %v5081
        %v5228 = vunpack.c.h.b16 %v5081
        %v5229 = vunpack.c.l.b16 %v5082
        %v5230 = vunpack.c.h.b16 %v5082
        %v5231 = vunpack.c.l.b16 %v5083
        %v5232 = vpack.c.b16 %v5192, %v5187
        %v5233 = vpack.c.b16 %v5193, %v5188
        %v5234 = vpack.c.b16 %v5194, %v5189
        %v5235 = vpack.c.b16 %v5195, %v5190
        %v5236 = vpack.c.b16 %v5196, %v5191
        %v5237 = vpack.c.b16 %v5202, %v5197
        %v5238 = vpack.c.b16 %v5203, %v5198
        %v5239 = vpack.c.b16 %v5204, %v5199
        %v5240 = vpack.c.b16 %v5205, %v5200
        %v5241 = vpack.c.b16 %v5206, %v5201
        %v5242 = vpack.c.b16 %v5212, %v5207
        %v5243 = vpack.c.b16 %v5213, %v5208
        %v5244 = vpack.c.b16 %v5214, %v5209
        %v5245 = vpack.c.b16 %v5215, %v5210
        %v5246 = vpack.c.b16 %v5216, %v5211
        %v5247 = vpack.c.b16 %v5222, %v5217
        %v5248 = vpack.c.b16 %v5223, %v5218
        %v5249 = vpack.c.b16 %v5224, %v5219
        %v5250 = vpack.c.b16 %v5225, %v5220
        %v5251 = vpack.c.b16 %v5226, %v5221
        %v5252 = vpack.c.b16 %v5227, %v5227
        %v5253 = vpack.c.b16 %v5228, %v5228
        %v5254 = vpack.c.b16 %v5229, %v5229
        %v5255 = vpack.c.b16 %v5230, %v5230
        %v5256 = vpack.c.b16 %v5231, %v5231
        %v5349 = vunpack.c.l.b16 %v5084
        %v5350 = vunpack.c.l.b16 %v5085
        %v5351 = vunpack.c.l.b16 %v5086
        %v5352 = vunpack.c.l.b16 %v5087
        %v5353 = vunpack.c.l.b16 %v5088
        %v5354 = vunpack.c.l.b16 %v5089
        %v5355 = vunpack.c.l.b16 %v5090
        %v5356 = vunpack.c.l.b16 %v5091
        %v5357 = vunpack.c.l.b16 %v5092
        %v5358 = vunpack.c.l.b16 %v5093
        %v5359 = vunpack.c.l.b16 %v5094
        %v5360 = vunpack.c.l.b16 %v5095
        %v5361 = vunpack.c.l.b16 %v5096
        %v5362 = vunpack.c.l.b16 %v5097
        %v5363 = vunpack.c.l.b16 %v5098
        %v5364 = vunpack.c.l.b16 %v5099
        %v5365 = vunpack.c.l.b16 %v5100
        %v5366 = vunpack.c.l.b16 %v5101
        %v5367 = vunpack.c.l.b16 %v5102
        %v5368 = vunpack.c.l.b16 %v5103
        %v5369 = vunpack.c.l.b16 %v5104
        %v5370 = vunpack.c.l.b16 %v5105
        %v5371 = vunpack.c.l.b16 %v5106
        %v5372 = vunpack.c.l.b16 %v5107
        %v5373 = vunpack.c.l.b16 %v5108
        %v5374 = vunpack.c.l.b16 %v5109
        %v5375 = vunpack.c.l.b16 %v5110
        %v5376 = vunpack.c.l.b16 %v5111
        %v5377 = vunpack.c.l.b16 %v5112
        %v5378 = vunpack.c.l.b16 %v5113
        %v5379 = vunpack.c.l.b16 %v5114
        %v5380 = vunpack.c.l.b16 %v5115
        %v5381 = vunpack.c.l.b16 %v5116
        %v5382 = vunpack.c.l.b16 %v5117
        %v5383 = vunpack.c.l.b16 %v5118
        %v5384 = vunpack.c.l.b16 %v5119
        %v5385 = vunpack.c.l.b16 %v5120
        %v5386 = vunpack.c.l.b16 %v5121
        %v5387 = vunpack.c.l.b16 %v5122
        %v5388 = vunpack.c.l.b16 %v5123
        %v5389 = vunpack.c.l.b16 %v5124
        %v5390 = vunpack.c.l.b16 %v5125
        %v5391 = vunpack.c.l.b16 %v5126
        %v5392 = vunpack.c.l.b16 %v5127
        %v5393 = vunpack.c.l.b16 %v5128
        %v5394 = vunpack.c.l.b16 %v5129
        %v5395 = vunpack.c.l.b16 %v5130
        %v5396 = vunpack.c.l.b16 %v5131
        %v5397 = vunpack.c.l.b16 %v5132
        %v5398 = vunpack.c.l.b16 %v5133
        %v5399 = vunpack.c.l.b16 %v5134
        %v5400 = vunpack.c.l.b16 %v5135
        %v5401 = vunpack.c.l.b16 %v5136
        %v5402 = vunpack.c.l.b16 %v5137
        %v5403 = vunpack.c.l.b16 %v5138
        %v5404 = vunpack.c.l.b16 %v5139
        %v5405 = vunpack.c.l.b16 %v5140
        %v5406 = vunpack.c.l.b16 %v5141
        %v5407 = vunpack.c.l.b16 %v5142
        %v5408 = vunpack.c.l.b16 %v5143
        %v5409 = vunpack.c.l.b16 %v5144
        %v5410 = vunpack.c.l.b16 %v5145
        %v5411 = vunpack.c.l.b16 %v5146
        %v5412 = vunpack.c.l.b16 %v5147
        %v5413 = vunpack.c.l.b16 %v5148
        %v5414 = vunpack.c.l.b16 %v5149
        %v5415 = vunpack.c.l.b16 %v5150
        %v5416 = vunpack.c.l.b16 %v5151
        %v5417 = vunpack.c.l.b16 %v5152
        %v5418 = vunpack.c.l.b16 %v5153
        %v5419 = vunpack.c.l.b16 %v5154
        %v5420 = vunpack.c.l.b16 %v5155
        %v5421 = vpack.c.b16 %v5350, %v5349
        %v5422 = vpack.c.b16 %v5352, %v5351
        %v5423 = vpack.c.b16 %v5354, %v5353
        %v5424 = vpack.c.b16 %v5356, %v5355
        %v5425 = vpack.c.b16 %v5358, %v5357
        %v5426 = vpack.c.b16 %v5360, %v5359
        %v5427 = vpack.c.b16 %v5362, %v5361
        %v5428 = vpack.c.b16 %v5364, %v5363
        %v5429 = vpack.c.b16 %v5366, %v5365
        %v5430 = vpack.c.b16 %v5368, %v5367
        %v5431 = vpack.c.b16 %v5370, %v5369
        %v5432 = vpack.c.b16 %v5372, %v5371
        %v5433 = vpack.c.b16 %v5374, %v5373
        %v5434 = vpack.c.b16 %v5376, %v5375
        %v5435 = vpack.c.b16 %v5378, %v5377
        %v5436 = vpack.c.b16 %v5380, %v5379
        %v5437 = vpack.c.b16 %v5382, %v5381
        %v5438 = vpack.c.b16 %v5384, %v5383
        %v5439 = vpack.c.b16 %v5386, %v5385
        %v5440 = vpack.c.b16 %v5388, %v5387
        %v5441 = vpack.c.b16 %v5390, %v5389
        %v5442 = vpack.c.b16 %v5392, %v5391
        %v5443 = vpack.c.b16 %v5394, %v5393
        %v5444 = vpack.c.b16 %v5396, %v5395
        %v5445 = vpack.c.b16 %v5398, %v5397
        %v5446 = vpack.c.b16 %v5400, %v5399
        %v5447 = vpack.c.b16 %v5402, %v5401
        %v5448 = vpack.c.b16 %v5404, %v5403
        %v5449 = vpack.c.b16 %v5406, %v5405
        %v5450 = vpack.c.b16 %v5408, %v5407
        %v5451 = vpack.c.b16 %v5410, %v5409
        %v5452 = vpack.c.b16 %v5412, %v5411
        %v5453 = vpack.c.b16 %v5414, %v5413
        %v5454 = vpack.c.b16 %v5416, %v5415
        %v5455 = vpack.c.b16 %v5418, %v5417
        %v5456 = vpack.c.b16 %v5420, %v5419
        %v5494 = vsel %vm2060, %v5236, 0
        %v5497 = vsel %vm2060, %v5241, 0
        %v5500 = vsel %vm2060, %v5246, 0
        %v5503 = vsel %vm2060, %v5251, 0
        %v5506 = vsel %vm2060, %v5256, 0
        %5508 = vmatpush.bf16.msra.mxu0 %v5428
        %5509 = vmatpush.bf16.msra.mxu0 %v5427
        %5510 = vmatpush.bf16.msra.mxu0 %v5426
        %5511 = vmatpush.bf16.msra.mxu0 %v5425
        %5512 = vmatpush.bf16.msra.mxu0 %v5424
        %5513 = vmatpush.bf16.msra.mxu0 %v5423
        %5514 = vmatpush.bf16.msra.mxu0 %v5422
        %5515 = vmatpush.bf16.msra.mxu0 %v5421
        %5516 = vmatmul.bf16.gmra.mxu0 %v5232
        %v5517 = vpop.f32.mrf.mxu0
        %v5518 = vadd.f32 %v5158, %v5517
        %v5519 = vpop.f32.mrf.mxu0
        %v5520 = vadd.f32 %v5158, %v5519
        %5521 = vmatmul.bf16.gmra.mxu0 %v5237
        %v5522 = vpop.f32.mrf.mxu0
        %v5523 = vadd.f32 %v5158, %v5522
        %v5524 = vpop.f32.mrf.mxu0
        %v5525 = vadd.f32 %v5158, %v5524
        %5526 = vmatmul.bf16.gmra.mxu0 %v5242
        %v5527 = vpop.f32.mrf.mxu0
        %v5528 = vadd.f32 %v5158, %v5527
        %v5529 = vpop.f32.mrf.mxu0
        %v5530 = vadd.f32 %v5158, %v5529
        %5531 = vmatmul.bf16.gmra.mxu0 %v5247
        %v5532 = vpop.f32.mrf.mxu0
        %v5533 = vadd.f32 %v5158, %v5532
        %v5534 = vpop.f32.mrf.mxu0
        %v5535 = vadd.f32 %v5158, %v5534
        %5536 = vmatmul.bf16.gmra.mxu0 %v5252
        %v5537 = vpop.f32.mrf.mxu0
        %v5538 = vadd.f32 %v5158, %v5537
        %v5539 = vpop.f32.mrf.mxu0
        %5540 = vdwg.mxu0
        %5541 = vmatpush.bf16.msra.mxu0 %v5436
        %5542 = vmatpush.bf16.msra.mxu0 %v5435
        %5543 = vmatpush.bf16.msra.mxu0 %v5434
        %5544 = vmatpush.bf16.msra.mxu0 %v5433
        %5545 = vmatpush.bf16.msra.mxu0 %v5432
        %5546 = vmatpush.bf16.msra.mxu0 %v5431
        %5547 = vmatpush.bf16.msra.mxu0 %v5430
        %5548 = vmatpush.bf16.msra.mxu0 %v5429
        %5549 = vmatmul.bf16.gmra.mxu0 %v5233
        %v5550 = vpop.f32.mrf.mxu0
        %v5551 = vadd.f32 %v5518, %v5550
        %v5552 = vpop.f32.mrf.mxu0
        %v5553 = vadd.f32 %v5520, %v5552
        %5554 = vmatmul.bf16.gmra.mxu0 %v5238
        %v5555 = vpop.f32.mrf.mxu0
        %v5556 = vadd.f32 %v5523, %v5555
        %v5557 = vpop.f32.mrf.mxu0
        %v5558 = vadd.f32 %v5525, %v5557
        %5559 = vmatmul.bf16.gmra.mxu0 %v5243
        %v5560 = vpop.f32.mrf.mxu0
        %v5561 = vadd.f32 %v5528, %v5560
        %v5562 = vpop.f32.mrf.mxu0
        %v5563 = vadd.f32 %v5530, %v5562
        %5564 = vmatmul.bf16.gmra.mxu0 %v5248
        %v5565 = vpop.f32.mrf.mxu0
        %v5566 = vadd.f32 %v5533, %v5565
        %v5567 = vpop.f32.mrf.mxu0
        %v5568 = vadd.f32 %v5535, %v5567
        %5569 = vmatmul.bf16.gmra.mxu0 %v5253
        %v5570 = vpop.f32.mrf.mxu0
        %v5571 = vadd.f32 %v5538, %v5570
        %v5572 = vpop.f32.mrf.mxu0
        %5573 = vdwg.mxu0
        %5574 = vmatpush.bf16.msra.mxu0 %v5444
        %5575 = vmatpush.bf16.msra.mxu0 %v5443
        %5576 = vmatpush.bf16.msra.mxu0 %v5442
        %5577 = vmatpush.bf16.msra.mxu0 %v5441
        %5578 = vmatpush.bf16.msra.mxu0 %v5440
        %5579 = vmatpush.bf16.msra.mxu0 %v5439
        %5580 = vmatpush.bf16.msra.mxu0 %v5438
        %5581 = vmatpush.bf16.msra.mxu0 %v5437
        %5582 = vmatmul.bf16.gmra.mxu0 %v5234
        %v5583 = vpop.f32.mrf.mxu0
        %v5584 = vadd.f32 %v5551, %v5583
        %v5585 = vpop.f32.mrf.mxu0
        %v5586 = vadd.f32 %v5553, %v5585
        %5587 = vmatmul.bf16.gmra.mxu0 %v5239
        %v5588 = vpop.f32.mrf.mxu0
        %v5589 = vadd.f32 %v5556, %v5588
        %v5590 = vpop.f32.mrf.mxu0
        %v5591 = vadd.f32 %v5558, %v5590
        %5592 = vmatmul.bf16.gmra.mxu0 %v5244
        %v5593 = vpop.f32.mrf.mxu0
        %v5594 = vadd.f32 %v5561, %v5593
        %v5595 = vpop.f32.mrf.mxu0
        %v5596 = vadd.f32 %v5563, %v5595
        %5597 = vmatmul.bf16.gmra.mxu0 %v5249
        %v5598 = vpop.f32.mrf.mxu0
        %v5599 = vadd.f32 %v5566, %v5598
        %v5600 = vpop.f32.mrf.mxu0
        %v5601 = vadd.f32 %v5568, %v5600
        %5602 = vmatmul.bf16.gmra.mxu0 %v5254
        %v5603 = vpop.f32.mrf.mxu0
        %v5604 = vadd.f32 %v5571, %v5603
        %v5605 = vpop.f32.mrf.mxu0
        %5606 = vdwg.mxu0
        %5607 = vmatpush.bf16.msra.mxu0 %v5452
        %5608 = vmatpush.bf16.msra.mxu0 %v5451
        %5609 = vmatpush.bf16.msra.mxu0 %v5450
        %5610 = vmatpush.bf16.msra.mxu0 %v5449
        %5611 = vmatpush.bf16.msra.mxu0 %v5448
        %5612 = vmatpush.bf16.msra.mxu0 %v5447
        %5613 = vmatpush.bf16.msra.mxu0 %v5446
        %5614 = vmatpush.bf16.msra.mxu0 %v5445
        %5615 = vmatmul.bf16.gmra.mxu0 %v5235
        %v5616 = vpop.f32.mrf.mxu0
        %v5617 = vadd.f32 %v5584, %v5616
        %v5618 = vpop.f32.mrf.mxu0
        %v5619 = vadd.f32 %v5586, %v5618
        %5620 = vmatmul.bf16.gmra.mxu0 %v5240
        %v5621 = vpop.f32.mrf.mxu0
        %v5622 = vadd.f32 %v5589, %v5621
        %v5623 = vpop.f32.mrf.mxu0
        %v5624 = vadd.f32 %v5591, %v5623
        %5625 = vmatmul.bf16.gmra.mxu0 %v5245
        %v5626 = vpop.f32.mrf.mxu0
        %v5627 = vadd.f32 %v5594, %v5626
        %v5628 = vpop.f32.mrf.mxu0
        %v5629 = vadd.f32 %v5596, %v5628
        %5630 = vmatmul.bf16.gmra.mxu0 %v5250
        %v5631 = vpop.f32.mrf.mxu0
        %v5632 = vadd.f32 %v5599, %v5631
        %v5633 = vpop.f32.mrf.mxu0
        %v5634 = vadd.f32 %v5601, %v5633
        %5635 = vmatmul.bf16.gmra.mxu0 %v5255
        %v5636 = vpop.f32.mrf.mxu0
        %v5637 = vadd.f32 %v5604, %v5636
        %v5638 = vpop.f32.mrf.mxu0
        %5639 = vdwg.mxu0
        %5640 = vmatpush.bf16.msra.mxu0 0
        %5641 = vmatpush.bf16.msra.mxu0 0
        %5642 = vmatpush.bf16.msra.mxu0 0
        %5643 = vmatpush.bf16.msra.mxu0 0
        %5644 = vmatpush.bf16.msra.mxu0 %v5456
        %5645 = vmatpush.bf16.msra.mxu0 %v5455
        %5646 = vmatpush.bf16.msra.mxu0 %v5454
        %5647 = vmatpush.bf16.msra.mxu0 %v5453
        %5648 = vmatmul.bf16.gmra.mxu0 %v5494
        %v5649 = vpop.f32.mrf.mxu0
        %v5650 = vadd.f32 %v5617, %v5649
        %v5651 = vpop.f32.mrf.mxu0
        %v5652 = vadd.f32 %v5619, %v5651
        %5653 = vmatmul.bf16.gmra.mxu0 %v5497
        %v5654 = vpop.f32.mrf.mxu0
        %v5655 = vadd.f32 %v5622, %v5654
        %v5656 = vpop.f32.mrf.mxu0
        %v5657 = vadd.f32 %v5624, %v5656
        %5658 = vmatmul.bf16.gmra.mxu0 %v5500
        %v5659 = vpop.f32.mrf.mxu0
        %v5660 = vadd.f32 %v5627, %v5659
        %v5661 = vpop.f32.mrf.mxu0
        %v5662 = vadd.f32 %v5629, %v5661
        %5663 = vmatmul.bf16.gmra.mxu0 %v5503
        %v5664 = vpop.f32.mrf.mxu0
        %v5665 = vadd.f32 %v5632, %v5664
        %v5666 = vpop.f32.mrf.mxu0
        %v5667 = vadd.f32 %v5634, %v5666
        %5668 = vmatmul.bf16.gmra.mxu0 %v5506
        %v5669 = vpop.f32.mrf.mxu0
        %v5670 = vadd.f32 %v5637, %v5669
        %v5671 = vpop.f32.mrf.mxu0
        %5672 = vdwg.mxu0
        %v5673 = vmax.f32 %v5650, 0.0
        %v5674 = vmax.f32 %v5652, 0.0
        %v5675 = vmax.f32 %v5655, 0.0
        %v5676 = vmax.f32 %v5657, 0.0
        %v5677 = vmax.f32 %v5660, 0.0
        %v5678 = vmax.f32 %v5662, 0.0
        %v5679 = vmax.f32 %v5665, 0.0
        %v5680 = vmax.f32 %v5667, 0.0
        %v5681 = vmax.f32 %v5670, 0.0
        %v5682 = vsel %vm2259, %v5673, 0.0
        %v5683 = vsel %vm2260, %v5674, 0.0
        %v5684 = vsel %vm2261, %v5675, 0.0
        %v5685 = vsel %vm2262, %v5676, 0.0
        %v5686 = vsel %vm2263, %v5677, 0.0
        %v5687 = vsel %vm2264, %v5678, 0.0
        %v5688 = vsel %vm2265, %v5679, 0.0
        %v5689 = vsel %vm2266, %v5680, 0.0
        %v5690 = vsel %vm2267, %v5681, 0.0
        %v5691 = vpack.c.bf16 %v5682, %v5682
        %v5692 = vpack.c.bf16 %v5683, %v5683
        %v5693 = vpack.c.bf16 %v5684, %v5684
        %v5694 = vpack.c.bf16 %v5685, %v5685
        %v5695 = vpack.c.bf16 %v5686, %v5686
        %v5696 = vpack.c.bf16 %v5687, %v5687
        %v5697 = vpack.c.bf16 %v5688, %v5688
        %v5698 = vpack.c.bf16 %v5689, %v5689
        %v5699 = vpack.c.bf16 %v5690, %v5690
        %v5709 = vrot.slane %v5691, 6
        %v5710 = vrot.slane %v5709, 4
        %v5711 = vrot.slane %v5692, 6
        %v5712 = vsel %vm1101, %v5710, %v5711
        %v5713 = vrot.slane %v5711, 4
        %v5714 = vrot.slane %v5693, 6
        %v5715 = vsel %vm1101, %v5713, %v5714
        %v5716 = vrot.slane %v5714, 4
        %v5717 = vrot.slane %v5694, 6
        %v5718 = vsel %vm1101, %v5716, %v5717
        %v5719 = vrot.slane %v5717, 4
        %v5720 = vrot.slane %v5695, 6
        %v5721 = vsel %vm1101, %v5719, %v5720
        %v5722 = vrot.slane %v5720, 4
        %v5723 = vrot.slane %v5696, 6
        %v5724 = vsel %vm1101, %v5722, %v5723
        %v5725 = vrot.slane %v5723, 4
        %v5726 = vrot.slane %v5697, 6
        %v5727 = vsel %vm1101, %v5725, %v5726
        %v5728 = vrot.slane %v5726, 4
        %v5729 = vrot.slane %v5698, 6
        %v5730 = vsel %vm1101, %v5728, %v5729
        %v5731 = vrot.slane %v5729, 4
        %v5732 = vrot.slane %v5699, 6
        %v5733 = vsel %vm1101, %v5731, %v5732
        %v5734 = vrot.slane %v5732, 4
        %5745 = vst [vmem:[%s229 + $0x58] sm:$0xc] %v5709
        %5746 = vst [vmem:[%s229 + $0x5c] sm:$0xf] %v5712
        %5747 = vst [vmem:[%s229 + $0x60] sm:$0xf] %v5715
        %5748 = vst [vmem:[%s229 + $0x64] sm:$0xf] %v5718
        %5749 = vst [vmem:[%s229 + $0x68] sm:$0xf] %v5721
        %5750 = vst [vmem:[%s229 + $0x6c] sm:$0xf] %v5724
        %5751 = vst [vmem:[%s229 + $0x70] sm:$0xf] %v5727
        %5752 = vst [vmem:[%s229 + $0x74] sm:$0xf] %v5730
        %5753 = vst [vmem:[%s229 + $0x78] sm:$0xf] %v5733
        %5754 = vst [vmem:[%s229 + $0x7c] sm:$0x3] %v5734
        %v5755 = vld [vmem:[%s234 + $0x74] sm:$0xf]
        %v5756 = vld [vmem:[%s234 + $0x78] sm:$0xf]
        %v5757 = vld [vmem:[%s234 + $0x7c] sm:$0xf]
        %v5758 = vld [vmem:[%s234 + $0x80] sm:$0xf]
        %v5759 = vld [vmem:[%s234 + $0x84] sm:$0xf]
        %v5760 = vld [vmem:[%s234 + $0x88] sm:$0xf]
        %v5761 = vld [vmem:[%s234 + $0x8c] sm:$0xf]
        %v5762 = vld [vmem:[%s234 + $0x90] sm:$0xf]
        %v5763 = vld [vmem:[%s234 + $0x94] sm:$0xf]
        %v5764 = vld [vmem:[%s234 + $0x98] sm:$0x1]
        %v5766 = vshrl.u32 %v5755, 16
        %v5768 = vrot.slane %v5766, 4
        %v5769 = vshll.u32 %v5755, 16
        %v5771 = vrot.slane %v5769, 5
        %v5772 = vor.u32 %v5768, %v5771
        %v5773 = vrot.slane %v5772, 4
        %v5775 = vshll.u32 %v5756, 16
        %v5777 = vrot.slane %v5775, 5
        %v5778 = vsel %vm604, %v5773, %v5777
        %v5779 = vshrl.u32 %v5756, 16
        %v5781 = vrot.slane %v5779, 4
        %v5782 = vor.u32 %v5781, %v5777
        %v5783 = vrot.slane %v5782, 4
        %v5785 = vshll.u32 %v5757, 16
        %v5787 = vrot.slane %v5785, 5
        %v5788 = vsel %vm604, %v5783, %v5787
        %v5789 = vshrl.u32 %v5757, 16
        %v5791 = vrot.slane %v5789, 4
        %v5792 = vor.u32 %v5791, %v5787
        %v5793 = vrot.slane %v5792, 4
        %v5795 = vshll.u32 %v5758, 16
        %v5797 = vrot.slane %v5795, 5
        %v5798 = vsel %vm604, %v5793, %v5797
        %v5799 = vshrl.u32 %v5758, 16
        %v5801 = vrot.slane %v5799, 4
        %v5802 = vor.u32 %v5801, %v5797
        %v5803 = vrot.slane %v5802, 4
        %v5805 = vshll.u32 %v5759, 16
        %v5807 = vrot.slane %v5805, 5
        %v5808 = vsel %vm604, %v5803, %v5807
        %v5809 = vshrl.u32 %v5759, 16
        %v5811 = vrot.slane %v5809, 4
        %v5812 = vor.u32 %v5811, %v5807
        %v5813 = vrot.slane %v5812, 4
        %v5815 = vshll.u32 %v5760, 16
        %v5817 = vrot.slane %v5815, 5
        %v5818 = vsel %vm604, %v5813, %v5817
        %v5819 = vshrl.u32 %v5760, 16
        %v5821 = vrot.slane %v5819, 4
        %v5822 = vor.u32 %v5821, %v5817
        %v5823 = vrot.slane %v5822, 4
        %v5825 = vshll.u32 %v5761, 16
        %v5827 = vrot.slane %v5825, 5
        %v5828 = vsel %vm604, %v5823, %v5827
        %v5829 = vshrl.u32 %v5761, 16
        %v5831 = vrot.slane %v5829, 4
        %v5832 = vor.u32 %v5831, %v5827
        %v5833 = vrot.slane %v5832, 4
        %v5835 = vshll.u32 %v5762, 16
        %v5837 = vrot.slane %v5835, 5
        %v5838 = vsel %vm604, %v5833, %v5837
        %v5839 = vshrl.u32 %v5762, 16
        %v5841 = vrot.slane %v5839, 4
        %v5842 = vor.u32 %v5841, %v5837
        %v5843 = vrot.slane %v5842, 4
        %v5845 = vshll.u32 %v5763, 16
        %v5847 = vrot.slane %v5845, 5
        %v5848 = vsel %vm604, %v5843, %v5847
        %v5849 = vshrl.u32 %v5763, 16
        %v5851 = vrot.slane %v5849, 4
        %v5852 = vor.u32 %v5851, %v5847
        %v5853 = vrot.slane %v5852, 4
        %v5855 = vshll.u32 %v5764, 16
        %v5857 = vrot.slane %v5855, 5
        %v5858 = vsel %vm604, %v5853, %v5857
        %5868 = vst.msk [vmem:[#allocation2] sm:$0xf] %vm708, %v5778
        %5869 = vst.msk [vmem:[#allocation2 + $0x14] sm:$0xf] %vm708, %v5788
        %5870 = vst.msk [vmem:[#allocation2 + $0x28] sm:$0xf] %vm708, %v5798
        %5871 = vst.msk [vmem:[#allocation2 + $0x3c] sm:$0xf] %vm708, %v5808
        %5872 = vst.msk [vmem:[#allocation2 + $0x50] sm:$0xf] %vm708, %v5818
        %5873 = vst.msk [vmem:[#allocation2 + $0x64] sm:$0xf] %vm708, %v5828
        %5874 = vst.msk [vmem:[#allocation2 + $0x78] sm:$0xf] %vm708, %v5838
        %5875 = vst.msk [vmem:[#allocation2 + $0x8c] sm:$0xf] %vm708, %v5848
        %5876 = vst.msk [vmem:[#allocation2 + $0xa0] sm:$0xf] %vm708, %v5858
        %v5877 = vld [vmem:[%s234 + $0x74] sm:$0xe]
        %v5878 = vld [vmem:[%s234 + $0x78] sm:$0xf]
        %v5879 = vld [vmem:[%s234 + $0x7c] sm:$0xf]
        %v5880 = vld [vmem:[%s234 + $0x80] sm:$0xf]
        %v5881 = vld [vmem:[%s234 + $0x84] sm:$0xf]
        %v5882 = vld [vmem:[%s234 + $0x88] sm:$0xf]
        %v5883 = vld [vmem:[%s234 + $0x8c] sm:$0xf]
        %v5884 = vld [vmem:[%s234 + $0x90] sm:$0xf]
        %v5885 = vld [vmem:[%s234 + $0x94] sm:$0xf]
        %v5886 = vld [vmem:[%s234 + $0x98] sm:$0x1]
        %v5897 = vrot.slane %v5877, 5
        %v5898 = vrot.slane %v5897, 4
        %v5899 = vrot.slane %v5878, 5
        %v5900 = vsel %vm740, %v5898, %v5899
        %v5901 = vrot.slane %v5899, 4
        %v5902 = vrot.slane %v5879, 5
        %v5903 = vsel %vm740, %v5901, %v5902
        %v5904 = vrot.slane %v5902, 4
        %v5905 = vrot.slane %v5880, 5
        %v5906 = vsel %vm740, %v5904, %v5905
        %v5907 = vrot.slane %v5905, 4
        %v5908 = vrot.slane %v5881, 5
        %v5909 = vsel %vm740, %v5907, %v5908
        %v5910 = vrot.slane %v5908, 4
        %v5911 = vrot.slane %v5882, 5
        %v5912 = vsel %vm740, %v5910, %v5911
        %v5913 = vrot.slane %v5911, 4
        %v5914 = vrot.slane %v5883, 5
        %v5915 = vsel %vm740, %v5913, %v5914
        %v5916 = vrot.slane %v5914, 4
        %v5917 = vrot.slane %v5884, 5
        %v5918 = vsel %vm740, %v5916, %v5917
        %v5919 = vrot.slane %v5917, 4
        %v5920 = vrot.slane %v5885, 5
        %v5921 = vsel %vm740, %v5919, %v5920
        %v5922 = vrot.slane %v5920, 4
        %v5923 = vrot.slane %v5886, 5
        %v5924 = vsel %vm740, %v5922, %v5923
        %5925 = vrot.lane.b32.xlu0 %v5900, 64
        %v5926 = vpop.permute.xlu0 %5925
        %5927 = vrot.lane.b32.xlu0 %v5903, 64
        %v5928 = vpop.permute.xlu0 %5927
        %5929 = vrot.lane.b32.xlu0 %v5906, 64
        %v5930 = vpop.permute.xlu0 %5929
        %5931 = vrot.lane.b32.xlu0 %v5909, 64
        %v5932 = vpop.permute.xlu0 %5931
        %5933 = vrot.lane.b32.xlu0 %v5912, 64
        %v5934 = vpop.permute.xlu0 %5933
        %5935 = vrot.lane.b32.xlu0 %v5915, 64
        %v5936 = vpop.permute.xlu0 %5935
        %5937 = vrot.lane.b32.xlu0 %v5918, 64
        %v5938 = vpop.permute.xlu0 %5937
        %5939 = vrot.lane.b32.xlu0 %v5921, 64
        %v5940 = vpop.permute.xlu0 %5939
        %5941 = vrot.lane.b32.xlu0 %v5924, 64
        %v5942 = vpop.permute.xlu0 %5941
        %5952 = vst.msk [vmem:[#allocation2] sm:$0xf] %vm796, %v5926
        %5953 = vst.msk [vmem:[#allocation2 + $0x14] sm:$0xf] %vm796, %v5928
        %5954 = vst.msk [vmem:[#allocation2 + $0x28] sm:$0xf] %vm796, %v5930
        %5955 = vst.msk [vmem:[#allocation2 + $0x3c] sm:$0xf] %vm796, %v5932
        %5956 = vst.msk [vmem:[#allocation2 + $0x50] sm:$0xf] %vm796, %v5934
        %5957 = vst.msk [vmem:[#allocation2 + $0x64] sm:$0xf] %vm796, %v5936
        %5958 = vst.msk [vmem:[#allocation2 + $0x78] sm:$0xf] %vm796, %v5938
        %5959 = vst.msk [vmem:[#allocation2 + $0x8c] sm:$0xf] %vm796, %v5940
        %5960 = vst.msk [vmem:[#allocation2 + $0xa0] sm:$0xf] %vm796, %v5942
        %v5961 = vld [vmem:[%s234 + $0x74] sm:$0xe]
        %v5962 = vld [vmem:[%s234 + $0x78] sm:$0xf]
        %v5963 = vld [vmem:[%s234 + $0x7c] sm:$0xf]
        %v5964 = vld [vmem:[%s234 + $0x80] sm:$0xf]
        %v5965 = vld [vmem:[%s234 + $0x84] sm:$0xf]
        %v5966 = vld [vmem:[%s234 + $0x88] sm:$0xf]
        %v5967 = vld [vmem:[%s234 + $0x8c] sm:$0xf]
        %v5968 = vld [vmem:[%s234 + $0x90] sm:$0xf]
        %v5969 = vld [vmem:[%s234 + $0x94] sm:$0xf]
        %v5970 = vld [vmem:[%s234 + $0x98] sm:$0x3]
        %v5972 = vshrl.u32 %v5961, 16
        %v5974 = vrot.slane %v5972, 5
        %v5975 = vshll.u32 %v5961, 16
        %v5977 = vrot.slane %v5975, 6
        %v5978 = vor.u32 %v5974, %v5977
        %v5979 = vrot.slane %v5978, 4
        %v5981 = vshrl.u32 %v5962, 16
        %v5983 = vrot.slane %v5981, 5
        %v5984 = vshll.u32 %v5962, 16
        %v5986 = vrot.slane %v5984, 6
        %v5987 = vor.u32 %v5983, %v5986
        %v5988 = vsel %vm818, %v5979, %v5987
        %v5989 = vrot.slane %v5987, 4
        %v5991 = vshrl.u32 %v5963, 16
        %v5993 = vrot.slane %v5991, 5
        %v5994 = vshll.u32 %v5963, 16
        %v5996 = vrot.slane %v5994, 6
        %v5997 = vor.u32 %v5993, %v5996
        %v5998 = vsel %vm818, %v5989, %v5997
        %v5999 = vrot.slane %v5997, 4
        %v6001 = vshrl.u32 %v5964, 16
        %v6003 = vrot.slane %v6001, 5
        %v6004 = vshll.u32 %v5964, 16
        %v6006 = vrot.slane %v6004, 6
        %v6007 = vor.u32 %v6003, %v6006
        %v6008 = vsel %vm818, %v5999, %v6007
        %v6009 = vrot.slane %v6007, 4
        %v6011 = vshrl.u32 %v5965, 16
        %v6013 = vrot.slane %v6011, 5
        %v6014 = vshll.u32 %v5965, 16
        %v6016 = vrot.slane %v6014, 6
        %v6017 = vor.u32 %v6013, %v6016
        %v6018 = vsel %vm818, %v6009, %v6017
        %v6019 = vrot.slane %v6017, 4
        %v6021 = vshrl.u32 %v5966, 16
        %v6023 = vrot.slane %v6021, 5
        %v6024 = vshll.u32 %v5966, 16
        %v6026 = vrot.slane %v6024, 6
        %v6027 = vor.u32 %v6023, %v6026
        %v6028 = vsel %vm818, %v6019, %v6027
        %v6029 = vrot.slane %v6027, 4
        %v6031 = vshrl.u32 %v5967, 16
        %v6033 = vrot.slane %v6031, 5
        %v6034 = vshll.u32 %v5967, 16
        %v6036 = vrot.slane %v6034, 6
        %v6037 = vor.u32 %v6033, %v6036
        %v6038 = vsel %vm818, %v6029, %v6037
        %v6039 = vrot.slane %v6037, 4
        %v6041 = vshrl.u32 %v5968, 16
        %v6043 = vrot.slane %v6041, 5
        %v6044 = vshll.u32 %v5968, 16
        %v6046 = vrot.slane %v6044, 6
        %v6047 = vor.u32 %v6043, %v6046
        %v6048 = vsel %vm818, %v6039, %v6047
        %v6049 = vrot.slane %v6047, 4
        %v6051 = vshrl.u32 %v5969, 16
        %v6053 = vrot.slane %v6051, 5
        %v6054 = vshll.u32 %v5969, 16
        %v6056 = vrot.slane %v6054, 6
        %v6057 = vor.u32 %v6053, %v6056
        %v6058 = vsel %vm818, %v6049, %v6057
        %v6059 = vrot.slane %v6057, 4
        %v6061 = vshrl.u32 %v5970, 16
        %v6063 = vrot.slane %v6061, 5
        %v6064 = vshll.u32 %v5970, 16
        %v6066 = vrot.slane %v6064, 6
        %v6067 = vor.u32 %v6063, %v6066
        %v6068 = vsel %vm818, %v6059, %v6067
        %6078 = vst.msk [vmem:[#allocation2 + $0x4] sm:$0xf] %vm708, %v5988
        %6079 = vst.msk [vmem:[#allocation2 + $0x18] sm:$0xf] %vm708, %v5998
        %6080 = vst.msk [vmem:[#allocation2 + $0x2c] sm:$0xf] %vm708, %v6008
        %6081 = vst.msk [vmem:[#allocation2 + $0x40] sm:$0xf] %vm708, %v6018
        %6082 = vst.msk [vmem:[#allocation2 + $0x54] sm:$0xf] %vm708, %v6028
        %6083 = vst.msk [vmem:[#allocation2 + $0x68] sm:$0xf] %vm708, %v6038
        %6084 = vst.msk [vmem:[#allocation2 + $0x7c] sm:$0xf] %vm708, %v6048
        %6085 = vst.msk [vmem:[#allocation2 + $0x90] sm:$0xf] %vm708, %v6058
        %6086 = vst.msk [vmem:[#allocation2 + $0xa4] sm:$0xf] %vm708, %v6068
        %v6087 = vld [vmem:[%s234 + $0x7c] sm:$0xe]
        %v6088 = vld [vmem:[%s234 + $0x80] sm:$0xf]
        %v6089 = vld [vmem:[%s234 + $0x84] sm:$0xf]
        %v6090 = vld [vmem:[%s234 + $0x88] sm:$0xf]
        %v6091 = vld [vmem:[%s234 + $0x8c] sm:$0xf]
        %v6092 = vld [vmem:[%s234 + $0x90] sm:$0xf]
        %v6093 = vld [vmem:[%s234 + $0x94] sm:$0xf]
        %v6094 = vld [vmem:[%s234 + $0x98] sm:$0xf]
        %v6095 = vld [vmem:[%s234 + $0x9c] sm:$0xf]
        %v6096 = vld [vmem:[%s234 + $0xa0] sm:$0x3]
        %v6098 = vshrl.u32 %v6087, 16
        %v6100 = vrot.slane %v6098, 5
        %v6101 = vshll.u32 %v6087, 16
        %v6103 = vrot.slane %v6101, 6
        %v6104 = vor.u32 %v6100, %v6103
        %v6105 = vrot.slane %v6104, 4
        %v6107 = vshrl.u32 %v6088, 16
        %v6109 = vrot.slane %v6107, 5
        %v6110 = vshll.u32 %v6088, 16
        %v6112 = vrot.slane %v6110, 6
        %v6113 = vor.u32 %v6109, %v6112
        %v6114 = vsel %vm818, %v6105, %v6113
        %v6115 = vrot.slane %v6113, 4
        %v6117 = vshrl.u32 %v6089, 16
        %v6119 = vrot.slane %v6117, 5
        %v6120 = vshll.u32 %v6089, 16
        %v6122 = vrot.slane %v6120, 6
        %v6123 = vor.u32 %v6119, %v6122
        %v6124 = vsel %vm818, %v6115, %v6123
        %v6125 = vrot.slane %v6123, 4
        %v6127 = vshrl.u32 %v6090, 16
        %v6129 = vrot.slane %v6127, 5
        %v6130 = vshll.u32 %v6090, 16
        %v6132 = vrot.slane %v6130, 6
        %v6133 = vor.u32 %v6129, %v6132
        %v6134 = vsel %vm818, %v6125, %v6133
        %v6135 = vrot.slane %v6133, 4
        %v6137 = vshrl.u32 %v6091, 16
        %v6139 = vrot.slane %v6137, 5
        %v6140 = vshll.u32 %v6091, 16
        %v6142 = vrot.slane %v6140, 6
        %v6143 = vor.u32 %v6139, %v6142
        %v6144 = vsel %vm818, %v6135, %v6143
        %v6145 = vrot.slane %v6143, 4
        %v6147 = vshrl.u32 %v6092, 16
        %v6149 = vrot.slane %v6147, 5
        %v6150 = vshll.u32 %v6092, 16
        %v6152 = vrot.slane %v6150, 6
        %v6153 = vor.u32 %v6149, %v6152
        %v6154 = vsel %vm818, %v6145, %v6153
        %v6155 = vrot.slane %v6153, 4
        %v6157 = vshrl.u32 %v6093, 16
        %v6159 = vrot.slane %v6157, 5
        %v6160 = vshll.u32 %v6093, 16
        %v6162 = vrot.slane %v6160, 6
        %v6163 = vor.u32 %v6159, %v6162
        %v6164 = vsel %vm818, %v6155, %v6163
        %v6165 = vrot.slane %v6163, 4
        %v6167 = vshrl.u32 %v6094, 16
        %v6169 = vrot.slane %v6167, 5
        %v6170 = vshll.u32 %v6094, 16
        %v6172 = vrot.slane %v6170, 6
        %v6173 = vor.u32 %v6169, %v6172
        %v6174 = vsel %vm818, %v6165, %v6173
        %v6175 = vrot.slane %v6173, 4
        %v6177 = vshrl.u32 %v6095, 16
        %v6179 = vrot.slane %v6177, 5
        %v6180 = vshll.u32 %v6095, 16
        %v6182 = vrot.slane %v6180, 6
        %v6183 = vor.u32 %v6179, %v6182
        %v6184 = vsel %vm818, %v6175, %v6183
        %v6185 = vrot.slane %v6183, 4
        %v6187 = vshrl.u32 %v6096, 16
        %v6189 = vrot.slane %v6187, 5
        %v6190 = vshll.u32 %v6096, 16
        %v6192 = vrot.slane %v6190, 6
        %v6193 = vor.u32 %v6189, %v6192
        %v6194 = vsel %vm818, %v6185, %v6193
        %6195 = vrot.lane.b32.xlu0 %v6114, 64
        %v6196 = vpop.permute.xlu0 %6195
        %6197 = vrot.lane.b32.xlu0 %v6124, 64
        %v6198 = vpop.permute.xlu0 %6197
        %6199 = vrot.lane.b32.xlu0 %v6134, 64
        %v6200 = vpop.permute.xlu0 %6199
        %6201 = vrot.lane.b32.xlu0 %v6144, 64
        %v6202 = vpop.permute.xlu0 %6201
        %6203 = vrot.lane.b32.xlu0 %v6154, 64
        %v6204 = vpop.permute.xlu0 %6203
        %6205 = vrot.lane.b32.xlu0 %v6164, 64
        %v6206 = vpop.permute.xlu0 %6205
        %6207 = vrot.lane.b32.xlu0 %v6174, 64
        %v6208 = vpop.permute.xlu0 %6207
        %6209 = vrot.lane.b32.xlu0 %v6184, 64
        %v6210 = vpop.permute.xlu0 %6209
        %6211 = vrot.lane.b32.xlu0 %v6194, 64
        %v6212 = vpop.permute.xlu0 %6211
        %6222 = vst.msk [vmem:[#allocation2 + $0x4] sm:$0xf] %vm796, %v6196
        %6223 = vst.msk [vmem:[#allocation2 + $0x18] sm:$0xf] %vm796, %v6198
        %6224 = vst.msk [vmem:[#allocation2 + $0x2c] sm:$0xf] %vm796, %v6200
        %6225 = vst.msk [vmem:[#allocation2 + $0x40] sm:$0xf] %vm796, %v6202
        %6226 = vst.msk [vmem:[#allocation2 + $0x54] sm:$0xf] %vm796, %v6204
        %6227 = vst.msk [vmem:[#allocation2 + $0x68] sm:$0xf] %vm796, %v6206
        %6228 = vst.msk [vmem:[#allocation2 + $0x7c] sm:$0xf] %vm796, %v6208
        %6229 = vst.msk [vmem:[#allocation2 + $0x90] sm:$0xf] %vm796, %v6210
        %6230 = vst.msk [vmem:[#allocation2 + $0xa4] sm:$0xf] %vm796, %v6212
        %v6231 = vld [vmem:[%s234 + $0x7c] sm:$0xc]
        %v6232 = vld [vmem:[%s234 + $0x80] sm:$0xf]
        %v6233 = vld [vmem:[%s234 + $0x84] sm:$0xf]
        %v6234 = vld [vmem:[%s234 + $0x88] sm:$0xf]
        %v6235 = vld [vmem:[%s234 + $0x8c] sm:$0xf]
        %v6236 = vld [vmem:[%s234 + $0x90] sm:$0xf]
        %v6237 = vld [vmem:[%s234 + $0x94] sm:$0xf]
        %v6238 = vld [vmem:[%s234 + $0x98] sm:$0xf]
        %v6239 = vld [vmem:[%s234 + $0x9c] sm:$0xf]
        %v6240 = vld [vmem:[%s234 + $0xa0] sm:$0x3]
        %v6251 = vrot.slane %v6231, 6
        %v6252 = vrot.slane %v6251, 4
        %v6253 = vrot.slane %v6232, 6
        %v6254 = vsel %vm1101, %v6252, %v6253
        %v6255 = vrot.slane %v6253, 4
        %v6256 = vrot.slane %v6233, 6
        %v6257 = vsel %vm1101, %v6255, %v6256
        %v6258 = vrot.slane %v6256, 4
        %v6259 = vrot.slane %v6234, 6
        %v6260 = vsel %vm1101, %v6258, %v6259
        %v6261 = vrot.slane %v6259, 4
        %v6262 = vrot.slane %v6235, 6
        %v6263 = vsel %vm1101, %v6261, %v6262
        %v6264 = vrot.slane %v6262, 4
        %v6265 = vrot.slane %v6236, 6
        %v6266 = vsel %vm1101, %v6264, %v6265
        %v6267 = vrot.slane %v6265, 4
        %v6268 = vrot.slane %v6237, 6
        %v6269 = vsel %vm1101, %v6267, %v6268
        %v6270 = vrot.slane %v6268, 4
        %v6271 = vrot.slane %v6238, 6
        %v6272 = vsel %vm1101, %v6270, %v6271
        %v6273 = vrot.slane %v6271, 4
        %v6274 = vrot.slane %v6239, 6
        %v6275 = vsel %vm1101, %v6273, %v6274
        %v6276 = vrot.slane %v6274, 4
        %v6277 = vrot.slane %v6240, 6
        %v6278 = vsel %vm1101, %v6276, %v6277
        %6288 = vst.msk [vmem:[#allocation2 + $0x8] sm:$0xf] %vm708, %v6254
        %6289 = vst.msk [vmem:[#allocation2 + $0x1c] sm:$0xf] %vm708, %v6257
        %6290 = vst.msk [vmem:[#allocation2 + $0x30] sm:$0xf] %vm708, %v6260
        %6291 = vst.msk [vmem:[#allocation2 + $0x44] sm:$0xf] %vm708, %v6263
        %6292 = vst.msk [vmem:[#allocation2 + $0x58] sm:$0xf] %vm708, %v6266
        %6293 = vst.msk [vmem:[#allocation2 + $0x6c] sm:$0xf] %vm708, %v6269
        %6294 = vst.msk [vmem:[#allocation2 + $0x80] sm:$0xf] %vm708, %v6272
        %6295 = vst.msk [vmem:[#allocation2 + $0x94] sm:$0xf] %vm708, %v6275
        %6296 = vst.msk [vmem:[#allocation2 + $0xa8] sm:$0xf] %vm708, %v6278
        %v6297 = vld [vmem:[%s234 + $0x7c] sm:$0xc]
        %v6298 = vld [vmem:[%s234 + $0x80] sm:$0xf]
        %v6299 = vld [vmem:[%s234 + $0x84] sm:$0xf]
        %v6300 = vld [vmem:[%s234 + $0x88] sm:$0xf]
        %v6301 = vld [vmem:[%s234 + $0x8c] sm:$0xf]
        %v6302 = vld [vmem:[%s234 + $0x90] sm:$0xf]
        %v6303 = vld [vmem:[%s234 + $0x94] sm:$0xf]
        %v6304 = vld [vmem:[%s234 + $0x98] sm:$0xf]
        %v6305 = vld [vmem:[%s234 + $0x9c] sm:$0xf]
        %v6306 = vld [vmem:[%s234 + $0xa0] sm:$0x7]
        %v6308 = vshrl.u32 %v6297, 16
        %v6310 = vrot.slane %v6308, 6
        %v6311 = vshll.u32 %v6297, 16
        %v6313 = vrot.slane %v6311, 7
        %v6314 = vor.u32 %v6310, %v6313
        %v6315 = vrot.slane %v6314, 4
        %v6317 = vshrl.u32 %v6298, 16
        %v6319 = vrot.slane %v6317, 6
        %v6320 = vshll.u32 %v6298, 16
        %v6322 = vrot.slane %v6320, 7
        %v6323 = vor.u32 %v6319, %v6322
        %v6324 = vsel %vm1160, %v6315, %v6323
        %v6325 = vrot.slane %v6323, 4
        %v6327 = vshrl.u32 %v6299, 16
        %v6329 = vrot.slane %v6327, 6
        %v6330 = vshll.u32 %v6299, 16
        %v6332 = vrot.slane %v6330, 7
        %v6333 = vor.u32 %v6329, %v6332
        %v6334 = vsel %vm1160, %v6325, %v6333
        %v6335 = vrot.slane %v6333, 4
        %v6337 = vshrl.u32 %v6300, 16
        %v6339 = vrot.slane %v6337, 6
        %v6340 = vshll.u32 %v6300, 16
        %v6342 = vrot.slane %v6340, 7
        %v6343 = vor.u32 %v6339, %v6342
        %v6344 = vsel %vm1160, %v6335, %v6343
        %v6345 = vrot.slane %v6343, 4
        %v6347 = vshrl.u32 %v6301, 16
        %v6349 = vrot.slane %v6347, 6
        %v6350 = vshll.u32 %v6301, 16
        %v6352 = vrot.slane %v6350, 7
        %v6353 = vor.u32 %v6349, %v6352
        %v6354 = vsel %vm1160, %v6345, %v6353
        %v6355 = vrot.slane %v6353, 4
        %v6357 = vshrl.u32 %v6302, 16
        %v6359 = vrot.slane %v6357, 6
        %v6360 = vshll.u32 %v6302, 16
        %v6362 = vrot.slane %v6360, 7
        %v6363 = vor.u32 %v6359, %v6362
        %v6364 = vsel %vm1160, %v6355, %v6363
        %v6365 = vrot.slane %v6363, 4
        %v6367 = vshrl.u32 %v6303, 16
        %v6369 = vrot.slane %v6367, 6
        %v6370 = vshll.u32 %v6303, 16
        %v6372 = vrot.slane %v6370, 7
        %v6373 = vor.u32 %v6369, %v6372
        %v6374 = vsel %vm1160, %v6365, %v6373
        %v6375 = vrot.slane %v6373, 4
        %v6377 = vshrl.u32 %v6304, 16
        %v6379 = vrot.slane %v6377, 6
        %v6380 = vshll.u32 %v6304, 16
        %v6382 = vrot.slane %v6380, 7
        %v6383 = vor.u32 %v6379, %v6382
        %v6384 = vsel %vm1160, %v6375, %v6383
        %v6385 = vrot.slane %v6383, 4
        %v6387 = vshrl.u32 %v6305, 16
        %v6389 = vrot.slane %v6387, 6
        %v6390 = vshll.u32 %v6305, 16
        %v6392 = vrot.slane %v6390, 7
        %v6393 = vor.u32 %v6389, %v6392
        %v6394 = vsel %vm1160, %v6385, %v6393
        %v6395 = vrot.slane %v6393, 4
        %v6397 = vshrl.u32 %v6306, 16
        %v6399 = vrot.slane %v6397, 6
        %v6400 = vshll.u32 %v6306, 16
        %v6402 = vrot.slane %v6400, 7
        %v6403 = vor.u32 %v6399, %v6402
        %v6404 = vsel %vm1160, %v6395, %v6403
        %6405 = vrot.lane.b32.xlu0 %v6324, 64
        %v6406 = vpop.permute.xlu0 %6405
        %6407 = vrot.lane.b32.xlu0 %v6334, 64
        %v6408 = vpop.permute.xlu0 %6407
        %6409 = vrot.lane.b32.xlu0 %v6344, 64
        %v6410 = vpop.permute.xlu0 %6409
        %6411 = vrot.lane.b32.xlu0 %v6354, 64
        %v6412 = vpop.permute.xlu0 %6411
        %6413 = vrot.lane.b32.xlu0 %v6364, 64
        %v6414 = vpop.permute.xlu0 %6413
        %6415 = vrot.lane.b32.xlu0 %v6374, 64
        %v6416 = vpop.permute.xlu0 %6415
        %6417 = vrot.lane.b32.xlu0 %v6384, 64
        %v6418 = vpop.permute.xlu0 %6417
        %6419 = vrot.lane.b32.xlu0 %v6394, 64
        %v6420 = vpop.permute.xlu0 %6419
        %6421 = vrot.lane.b32.xlu0 %v6404, 64
        %v6422 = vpop.permute.xlu0 %6421
        %6432 = vst.msk [vmem:[#allocation2 + $0x8] sm:$0xf] %vm796, %v6406
        %6433 = vst.msk [vmem:[#allocation2 + $0x1c] sm:$0xf] %vm796, %v6408
        %6434 = vst.msk [vmem:[#allocation2 + $0x30] sm:$0xf] %vm796, %v6410
        %6435 = vst.msk [vmem:[#allocation2 + $0x44] sm:$0xf] %vm796, %v6412
        %6436 = vst.msk [vmem:[#allocation2 + $0x58] sm:$0xf] %vm796, %v6414
        %6437 = vst.msk [vmem:[#allocation2 + $0x6c] sm:$0xf] %vm796, %v6416
        %6438 = vst.msk [vmem:[#allocation2 + $0x80] sm:$0xf] %vm796, %v6418
        %6439 = vst.msk [vmem:[#allocation2 + $0x94] sm:$0xf] %vm796, %v6420
        %6440 = vst.msk [vmem:[#allocation2 + $0xa8] sm:$0xf] %vm796, %v6422
        %v6441 = vld [vmem:[%s234 + $0x84] sm:$0xc]
        %v6442 = vld [vmem:[%s234 + $0x88] sm:$0xf]
        %v6443 = vld [vmem:[%s234 + $0x8c] sm:$0xf]
        %v6444 = vld [vmem:[%s234 + $0x90] sm:$0xf]
        %v6445 = vld [vmem:[%s234 + $0x94] sm:$0xf]
        %v6446 = vld [vmem:[%s234 + $0x98] sm:$0xf]
        %v6447 = vld [vmem:[%s234 + $0x9c] sm:$0xf]
        %v6448 = vld [vmem:[%s234 + $0xa0] sm:$0xf]
        %v6449 = vld [vmem:[%s234 + $0xa4] sm:$0xf]
        %v6450 = vld [vmem:[%s234 + $0xa8] sm:$0x7]
        %v6452 = vshrl.u32 %v6441, 16
        %v6454 = vrot.slane %v6452, 6
        %v6455 = vshll.u32 %v6441, 16
        %v6457 = vrot.slane %v6455, 7
        %v6458 = vor.u32 %v6454, %v6457
        %v6459 = vrot.slane %v6458, 4
        %v6461 = vshrl.u32 %v6442, 16
        %v6463 = vrot.slane %v6461, 6
        %v6464 = vshll.u32 %v6442, 16
        %v6466 = vrot.slane %v6464, 7
        %v6467 = vor.u32 %v6463, %v6466
        %v6468 = vsel %vm1160, %v6459, %v6467
        %v6469 = vrot.slane %v6467, 4
        %v6471 = vshrl.u32 %v6443, 16
        %v6473 = vrot.slane %v6471, 6
        %v6474 = vshll.u32 %v6443, 16
        %v6476 = vrot.slane %v6474, 7
        %v6477 = vor.u32 %v6473, %v6476
        %v6478 = vsel %vm1160, %v6469, %v6477
        %v6479 = vrot.slane %v6477, 4
        %v6481 = vshrl.u32 %v6444, 16
        %v6483 = vrot.slane %v6481, 6
        %v6484 = vshll.u32 %v6444, 16
        %v6486 = vrot.slane %v6484, 7
        %v6487 = vor.u32 %v6483, %v6486
        %v6488 = vsel %vm1160, %v6479, %v6487
        %v6489 = vrot.slane %v6487, 4
        %v6491 = vshrl.u32 %v6445, 16
        %v6493 = vrot.slane %v6491, 6
        %v6494 = vshll.u32 %v6445, 16
        %v6496 = vrot.slane %v6494, 7
        %v6497 = vor.u32 %v6493, %v6496
        %v6498 = vsel %vm1160, %v6489, %v6497
        %v6499 = vrot.slane %v6497, 4
        %v6501 = vshrl.u32 %v6446, 16
        %v6503 = vrot.slane %v6501, 6
        %v6504 = vshll.u32 %v6446, 16
        %v6506 = vrot.slane %v6504, 7
        %v6507 = vor.u32 %v6503, %v6506
        %v6508 = vsel %vm1160, %v6499, %v6507
        %v6509 = vrot.slane %v6507, 4
        %v6511 = vshrl.u32 %v6447, 16
        %v6513 = vrot.slane %v6511, 6
        %v6514 = vshll.u32 %v6447, 16
        %v6516 = vrot.slane %v6514, 7
        %v6517 = vor.u32 %v6513, %v6516
        %v6518 = vsel %vm1160, %v6509, %v6517
        %v6519 = vrot.slane %v6517, 4
        %v6521 = vshrl.u32 %v6448, 16
        %v6523 = vrot.slane %v6521, 6
        %v6524 = vshll.u32 %v6448, 16
        %v6526 = vrot.slane %v6524, 7
        %v6527 = vor.u32 %v6523, %v6526
        %v6528 = vsel %vm1160, %v6519, %v6527
        %v6529 = vrot.slane %v6527, 4
        %v6531 = vshrl.u32 %v6449, 16
        %v6533 = vrot.slane %v6531, 6
        %v6534 = vshll.u32 %v6449, 16
        %v6536 = vrot.slane %v6534, 7
        %v6537 = vor.u32 %v6533, %v6536
        %v6538 = vsel %vm1160, %v6529, %v6537
        %v6539 = vrot.slane %v6537, 4
        %v6541 = vshrl.u32 %v6450, 16
        %v6543 = vrot.slane %v6541, 6
        %v6544 = vshll.u32 %v6450, 16
        %v6546 = vrot.slane %v6544, 7
        %v6547 = vor.u32 %v6543, %v6546
        %v6548 = vsel %vm1160, %v6539, %v6547
        %6558 = vst.msk [vmem:[#allocation2 + $0xc] sm:$0xf] %vm708, %v6468
        %6559 = vst.msk [vmem:[#allocation2 + $0x20] sm:$0xf] %vm708, %v6478
        %6560 = vst.msk [vmem:[#allocation2 + $0x34] sm:$0xf] %vm708, %v6488
        %6561 = vst.msk [vmem:[#allocation2 + $0x48] sm:$0xf] %vm708, %v6498
        %6562 = vst.msk [vmem:[#allocation2 + $0x5c] sm:$0xf] %vm708, %v6508
        %6563 = vst.msk [vmem:[#allocation2 + $0x70] sm:$0xf] %vm708, %v6518
        %6564 = vst.msk [vmem:[#allocation2 + $0x84] sm:$0xf] %vm708, %v6528
        %6565 = vst.msk [vmem:[#allocation2 + $0x98] sm:$0xf] %vm708, %v6538
        %6566 = vst.msk [vmem:[#allocation2 + $0xac] sm:$0xf] %vm708, %v6548
        %v6567 = vld [vmem:[%s234 + $0x84] sm:$0x8]
        %v6568 = vld [vmem:[%s234 + $0x88] sm:$0xf]
        %v6569 = vld [vmem:[%s234 + $0x8c] sm:$0xf]
        %v6570 = vld [vmem:[%s234 + $0x90] sm:$0xf]
        %v6571 = vld [vmem:[%s234 + $0x94] sm:$0xf]
        %v6572 = vld [vmem:[%s234 + $0x98] sm:$0xf]
        %v6573 = vld [vmem:[%s234 + $0x9c] sm:$0xf]
        %v6574 = vld [vmem:[%s234 + $0xa0] sm:$0xf]
        %v6575 = vld [vmem:[%s234 + $0xa4] sm:$0xf]
        %v6576 = vld [vmem:[%s234 + $0xa8] sm:$0x7]
        %v6587 = vrot.slane %v6567, 7
        %v6588 = vrot.slane %v6587, 4
        %v6589 = vrot.slane %v6568, 7
        %v6590 = vsel %vm1443, %v6588, %v6589
        %v6591 = vrot.slane %v6589, 4
        %v6592 = vrot.slane %v6569, 7
        %v6593 = vsel %vm1443, %v6591, %v6592
        %v6594 = vrot.slane %v6592, 4
        %v6595 = vrot.slane %v6570, 7
        %v6596 = vsel %vm1443, %v6594, %v6595
        %v6597 = vrot.slane %v6595, 4
        %v6598 = vrot.slane %v6571, 7
        %v6599 = vsel %vm1443, %v6597, %v6598
        %v6600 = vrot.slane %v6598, 4
        %v6601 = vrot.slane %v6572, 7
        %v6602 = vsel %vm1443, %v6600, %v6601
        %v6603 = vrot.slane %v6601, 4
        %v6604 = vrot.slane %v6573, 7
        %v6605 = vsel %vm1443, %v6603, %v6604
        %v6606 = vrot.slane %v6604, 4
        %v6607 = vrot.slane %v6574, 7
        %v6608 = vsel %vm1443, %v6606, %v6607
        %v6609 = vrot.slane %v6607, 4
        %v6610 = vrot.slane %v6575, 7
        %v6611 = vsel %vm1443, %v6609, %v6610
        %v6612 = vrot.slane %v6610, 4
        %v6613 = vrot.slane %v6576, 7
        %v6614 = vsel %vm1443, %v6612, %v6613
        %6615 = vrot.lane.b32.xlu0 %v6590, 64
        %v6616 = vpop.permute.xlu0 %6615
        %6617 = vrot.lane.b32.xlu0 %v6593, 64
        %v6618 = vpop.permute.xlu0 %6617
        %6619 = vrot.lane.b32.xlu0 %v6596, 64
        %v6620 = vpop.permute.xlu0 %6619
        %6621 = vrot.lane.b32.xlu0 %v6599, 64
        %v6622 = vpop.permute.xlu0 %6621
        %6623 = vrot.lane.b32.xlu0 %v6602, 64
        %v6624 = vpop.permute.xlu0 %6623
        %6625 = vrot.lane.b32.xlu0 %v6605, 64
        %v6626 = vpop.permute.xlu0 %6625
        %6627 = vrot.lane.b32.xlu0 %v6608, 64
        %v6628 = vpop.permute.xlu0 %6627
        %6629 = vrot.lane.b32.xlu0 %v6611, 64
        %v6630 = vpop.permute.xlu0 %6629
        %6631 = vrot.lane.b32.xlu0 %v6614, 64
        %v6632 = vpop.permute.xlu0 %6631
        %6642 = vst.msk [vmem:[#allocation2 + $0xc] sm:$0xf] %vm796, %v6616
        %6643 = vst.msk [vmem:[#allocation2 + $0x20] sm:$0xf] %vm796, %v6618
        %6644 = vst.msk [vmem:[#allocation2 + $0x34] sm:$0xf] %vm796, %v6620
        %6645 = vst.msk [vmem:[#allocation2 + $0x48] sm:$0xf] %vm796, %v6622
        %6646 = vst.msk [vmem:[#allocation2 + $0x5c] sm:$0xf] %vm796, %v6624
        %6647 = vst.msk [vmem:[#allocation2 + $0x70] sm:$0xf] %vm796, %v6626
        %6648 = vst.msk [vmem:[#allocation2 + $0x84] sm:$0xf] %vm796, %v6628
        %6649 = vst.msk [vmem:[#allocation2 + $0x98] sm:$0xf] %vm796, %v6630
        %6650 = vst.msk [vmem:[#allocation2 + $0xac] sm:$0xf] %vm796, %v6632
        %v6651 = vld [vmem:[%s234 + $0x84] sm:$0x8]
        %v6652 = vld [vmem:[%s234 + $0x88] sm:$0xf]
        %v6653 = vld [vmem:[%s234 + $0x8c] sm:$0xf]
        %v6654 = vld [vmem:[%s234 + $0x90] sm:$0xf]
        %v6655 = vld [vmem:[%s234 + $0x94] sm:$0xf]
        %v6656 = vld [vmem:[%s234 + $0x98] sm:$0xf]
        %v6657 = vld [vmem:[%s234 + $0x9c] sm:$0xf]
        %v6658 = vld [vmem:[%s234 + $0xa0] sm:$0xf]
        %v6659 = vld [vmem:[%s234 + $0xa4] sm:$0xf]
        %v6660 = vld [vmem:[%s234 + $0xa8] sm:$0xf]
        %v6662 = vshrl.u32 %v6651, 16
        %v6664 = vrot.slane %v6662, 7
        %v6665 = vrot.slane %v6664, 4
        %v6667 = vshrl.u32 %v6652, 16
        %v6669 = vrot.slane %v6667, 7
        %v6670 = vshll.u32 %v6652, 16
        %v6672 = vor.u32 %v6669, %v6670
        %v6673 = vsel %vm1520, %v6665, %v6672
        %v6674 = vrot.slane %v6669, 4
        %v6676 = vshrl.u32 %v6653, 16
        %v6678 = vrot.slane %v6676, 7
        %v6679 = vshll.u32 %v6653, 16
        %v6681 = vor.u32 %v6678, %v6679
        %v6682 = vsel %vm1520, %v6674, %v6681
        %v6683 = vrot.slane %v6678, 4
        %v6685 = vshrl.u32 %v6654, 16
        %v6687 = vrot.slane %v6685, 7
        %v6688 = vshll.u32 %v6654, 16
        %v6690 = vor.u32 %v6687, %v6688
        %v6691 = vsel %vm1520, %v6683, %v6690
        %v6692 = vrot.slane %v6687, 4
        %v6694 = vshrl.u32 %v6655, 16
        %v6696 = vrot.slane %v6694, 7
        %v6697 = vshll.u32 %v6655, 16
        %v6699 = vor.u32 %v6696, %v6697
        %v6700 = vsel %vm1520, %v6692, %v6699
        %v6701 = vrot.slane %v6696, 4
        %v6703 = vshrl.u32 %v6656, 16
        %v6705 = vrot.slane %v6703, 7
        %v6706 = vshll.u32 %v6656, 16
        %v6708 = vor.u32 %v6705, %v6706
        %v6709 = vsel %vm1520, %v6701, %v6708
        %v6710 = vrot.slane %v6705, 4
        %v6712 = vshrl.u32 %v6657, 16
        %v6714 = vrot.slane %v6712, 7
        %v6715 = vshll.u32 %v6657, 16
        %v6717 = vor.u32 %v6714, %v6715
        %v6718 = vsel %vm1520, %v6710, %v6717
        %v6719 = vrot.slane %v6714, 4
        %v6721 = vshrl.u32 %v6658, 16
        %v6723 = vrot.slane %v6721, 7
        %v6724 = vshll.u32 %v6658, 16
        %v6726 = vor.u32 %v6723, %v6724
        %v6727 = vsel %vm1520, %v6719, %v6726
        %v6728 = vrot.slane %v6723, 4
        %v6730 = vshrl.u32 %v6659, 16
        %v6732 = vrot.slane %v6730, 7
        %v6733 = vshll.u32 %v6659, 16
        %v6735 = vor.u32 %v6732, %v6733
        %v6736 = vsel %vm1520, %v6728, %v6735
        %v6737 = vrot.slane %v6732, 4
        %v6739 = vshrl.u32 %v6660, 16
        %v6741 = vrot.slane %v6739, 7
        %v6742 = vshll.u32 %v6660, 16
        %v6744 = vor.u32 %v6741, %v6742
        %v6745 = vsel %vm1520, %v6737, %v6744
        %6755 = vst.msk [vmem:[#allocation2 + $0x10] sm:$0xf] %vm708, %v6673
        %6756 = vst.msk [vmem:[#allocation2 + $0x24] sm:$0xf] %vm708, %v6682
        %6757 = vst.msk [vmem:[#allocation2 + $0x38] sm:$0xf] %vm708, %v6691
        %6758 = vst.msk [vmem:[#allocation2 + $0x4c] sm:$0xf] %vm708, %v6700
        %6759 = vst.msk [vmem:[#allocation2 + $0x60] sm:$0xf] %vm708, %v6709
        %6760 = vst.msk [vmem:[#allocation2 + $0x74] sm:$0xf] %vm708, %v6718
        %6761 = vst.msk [vmem:[#allocation2 + $0x88] sm:$0xf] %vm708, %v6727
        %6762 = vst.msk [vmem:[#allocation2 + $0x9c] sm:$0xf] %vm708, %v6736
        %6763 = vst.msk [vmem:[#allocation2 + $0xb0] sm:$0xf] %vm708, %v6745
        %v6764 = vld [vmem:[#allocation2] sm:$0xff]
        %v6765 = vld [vmem:[#allocation2 + $0x8] sm:$0xff]
        %v6766 = vld [vmem:[#allocation2 + $0x10] sm:$0xf]
        %v6767 = vld [vmem:[#allocation2 + $0x14] sm:$0xff]
        %v6768 = vld [vmem:[#allocation2 + $0x1c] sm:$0xff]
        %v6769 = vld [vmem:[#allocation2 + $0x24] sm:$0xf]
        %v6770 = vld [vmem:[#allocation2 + $0x28] sm:$0xff]
        %v6771 = vld [vmem:[#allocation2 + $0x30] sm:$0xff]
        %v6772 = vld [vmem:[#allocation2 + $0x38] sm:$0xf]
        %v6773 = vld [vmem:[#allocation2 + $0x3c] sm:$0xff]
        %v6774 = vld [vmem:[#allocation2 + $0x44] sm:$0xff]
        %v6775 = vld [vmem:[#allocation2 + $0x4c] sm:$0xf]
        %v6776 = vld [vmem:[#allocation2 + $0x50] sm:$0xff]
        %v6777 = vld [vmem:[#allocation2 + $0x58] sm:$0xff]
        %v6778 = vld [vmem:[#allocation2 + $0x60] sm:$0xf]
        %v6779 = vld [vmem:[#allocation2 + $0x64] sm:$0xff]
        %v6780 = vld [vmem:[#allocation2 + $0x6c] sm:$0xff]
        %v6781 = vld [vmem:[#allocation2 + $0x74] sm:$0xf]
        %v6782 = vld [vmem:[#allocation2 + $0x78] sm:$0xff]
        %v6783 = vld [vmem:[#allocation2 + $0x80] sm:$0xff]
        %v6784 = vld [vmem:[#allocation2 + $0x88] sm:$0xf]
        %v6785 = vld [vmem:[#allocation2 + $0x8c] sm:$0xff]
        %v6786 = vld [vmem:[#allocation2 + $0x94] sm:$0xff]
        %v6787 = vld [vmem:[#allocation2 + $0x9c] sm:$0xf]
        %v6788 = vld [vmem:[#allocation2 + $0xa0] sm:$0xff]
        %v6789 = vld [vmem:[#allocation2 + $0xa8] sm:$0xff]
        %v6790 = vld [vmem:[#allocation2 + $0xb0] sm:$0xf]
        %v6791 = vld [vmem:[%s198] sm:$0xf]
        %v6792 = vld [vmem:[%s198 + $0x4] sm:$0xf]
        %v6793 = vld [vmem:[%s198 + $0x8] sm:$0xf]
        %v6794 = vld [vmem:[%s198 + $0xc] sm:$0xf]
        %v6795 = vld [vmem:[%s198 + $0x10] sm:$0xf]
        %v6796 = vld [vmem:[%s198 + $0x14] sm:$0xf]
        %v6797 = vld [vmem:[%s198 + $0x18] sm:$0xf]
        %v6798 = vld [vmem:[%s198 + $0x1c] sm:$0xf]
        %v6799 = vld [vmem:[%s198 + $0x20] sm:$0xf]
        %v6800 = vld [vmem:[%s198 + $0x24] sm:$0xf]
        %v6801 = vld [vmem:[%s198 + $0x28] sm:$0xf]
        %v6802 = vld [vmem:[%s198 + $0x2c] sm:$0xf]
        %v6803 = vld [vmem:[%s198 + $0x30] sm:$0xf]
        %v6804 = vld [vmem:[%s198 + $0x34] sm:$0xf]
        %v6805 = vld [vmem:[%s198 + $0x38] sm:$0xf]
        %v6806 = vld [vmem:[%s198 + $0x3c] sm:$0xf]
        %v6807 = vld [vmem:[%s198 + $0x40] sm:$0xf]
        %v6808 = vld [vmem:[%s198 + $0x44] sm:$0xf]
        %v6809 = vld [vmem:[%s198 + $0x48] sm:$0xf]
        %v6810 = vld [vmem:[%s198 + $0x4c] sm:$0xf]
        %v6811 = vld [vmem:[%s198 + $0x50] sm:$0xf]
        %v6812 = vld [vmem:[%s198 + $0x54] sm:$0xf]
        %v6813 = vld [vmem:[%s198 + $0x58] sm:$0xf]
        %v6814 = vld [vmem:[%s198 + $0x5c] sm:$0xf]
        %v6815 = vld [vmem:[%s198 + $0x60] sm:$0xf]
        %v6816 = vld [vmem:[%s198 + $0x64] sm:$0xf]
        %v6817 = vld [vmem:[%s198 + $0x68] sm:$0xf]
        %v6818 = vld [vmem:[%s198 + $0x6c] sm:$0xf]
        %v6819 = vld [vmem:[%s198 + $0x70] sm:$0xf]
        %v6820 = vld [vmem:[%s198 + $0x74] sm:$0xf]
        %v6821 = vld [vmem:[%s198 + $0x78] sm:$0xf]
        %v6822 = vld [vmem:[%s198 + $0x7c] sm:$0xf]
        %v6823 = vld [vmem:[%s198 + $0x80] sm:$0xf]
        %v6824 = vld [vmem:[%s198 + $0x84] sm:$0xf]
        %v6825 = vld [vmem:[%s198 + $0x88] sm:$0xf]
        %v6826 = vld [vmem:[%s198 + $0x8c] sm:$0xf]
        %v6827 = vld [vmem:[%s198 + $0x90] sm:$0xf]
        %v6828 = vld [vmem:[%s198 + $0x94] sm:$0xf]
        %v6829 = vld [vmem:[%s198 + $0x98] sm:$0xf]
        %v6830 = vld [vmem:[%s198 + $0x9c] sm:$0xf]
        %v6831 = vld [vmem:[%s198 + $0xa0] sm:$0xf]
        %v6832 = vld [vmem:[%s198 + $0xa4] sm:$0xf]
        %v6833 = vld [vmem:[%s198 + $0xa8] sm:$0xf]
        %v6834 = vld [vmem:[%s198 + $0xac] sm:$0xf]
        %v6835 = vld [vmem:[%s198 + $0xb0] sm:$0xf]
        %v6836 = vld [vmem:[%s198 + $0xb4] sm:$0xf]
        %v6837 = vld [vmem:[%s198 + $0xb8] sm:$0xf]
        %v6838 = vld [vmem:[%s198 + $0xbc] sm:$0xf]
        %v6839 = vld [vmem:[%s198 + $0xc0] sm:$0xf]
        %v6840 = vld [vmem:[%s198 + $0xc4] sm:$0xf]
        %v6841 = vld [vmem:[%s198 + $0xc8] sm:$0xf]
        %v6842 = vld [vmem:[%s198 + $0xcc] sm:$0xf]
        %v6843 = vld [vmem:[%s198 + $0xd0] sm:$0xf]
        %v6844 = vld [vmem:[%s198 + $0xd4] sm:$0xf]
        %v6845 = vld [vmem:[%s198 + $0xd8] sm:$0xf]
        %v6846 = vld [vmem:[%s198 + $0xdc] sm:$0xf]
        %v6847 = vld [vmem:[%s198 + $0xe0] sm:$0xf]
        %v6848 = vld [vmem:[%s198 + $0xe4] sm:$0xf]
        %v6849 = vld [vmem:[%s198 + $0xe8] sm:$0xf]
        %v6850 = vld [vmem:[%s198 + $0xec] sm:$0xf]
        %v6851 = vld [vmem:[%s198 + $0xf0] sm:$0xf]
        %v6852 = vld [vmem:[%s198 + $0xf4] sm:$0xf]
        %v6853 = vld [vmem:[%s198 + $0xf8] sm:$0xf]
        %v6854 = vld [vmem:[%s198 + $0xfc] sm:$0xf]
        %v6855 = vld [vmem:[%s198 + $0x100] sm:$0xf]
        %v6856 = vld [vmem:[%s198 + $0x104] sm:$0xf]
        %v6857 = vld [vmem:[%s198 + $0x108] sm:$0xf]
        %v6858 = vld [vmem:[%s198 + $0x10c] sm:$0xf]
        %v6859 = vld [vmem:[%s198 + $0x110] sm:$0xf]
        %v6860 = vld [vmem:[%s198 + $0x114] sm:$0xf]
        %v6861 = vld [vmem:[%s198 + $0x118] sm:$0xf]
        %v6862 = vld [vmem:[%s198 + $0x11c] sm:$0xf]
        %v6863 = vld [vmem:[%s237] sm:$0x1]
        %v6865 = vperm.slane %v6863, 0
        %v6894 = vunpack.c.l.b16 %v6764
        %v6895 = vunpack.c.h.b16 %v6764
        %v6896 = vunpack.c.l.b16 %v6765
        %v6897 = vunpack.c.h.b16 %v6765
        %v6898 = vunpack.c.l.b16 %v6766
        %v6899 = vunpack.c.l.b16 %v6767
        %v6900 = vunpack.c.h.b16 %v6767
        %v6901 = vunpack.c.l.b16 %v6768
        %v6902 = vunpack.c.h.b16 %v6768
        %v6903 = vunpack.c.l.b16 %v6769
        %v6904 = vunpack.c.l.b16 %v6770
        %v6905 = vunpack.c.h.b16 %v6770
        %v6906 = vunpack.c.l.b16 %v6771
        %v6907 = vunpack.c.h.b16 %v6771
        %v6908 = vunpack.c.l.b16 %v6772
        %v6909 = vunpack.c.l.b16 %v6773
        %v6910 = vunpack.c.h.b16 %v6773
        %v6911 = vunpack.c.l.b16 %v6774
        %v6912 = vunpack.c.h.b16 %v6774
        %v6913 = vunpack.c.l.b16 %v6775
        %v6914 = vunpack.c.l.b16 %v6776
        %v6915 = vunpack.c.h.b16 %v6776
        %v6916 = vunpack.c.l.b16 %v6777
        %v6917 = vunpack.c.h.b16 %v6777
        %v6918 = vunpack.c.l.b16 %v6778
        %v6919 = vunpack.c.l.b16 %v6779
        %v6920 = vunpack.c.h.b16 %v6779
        %v6921 = vunpack.c.l.b16 %v6780
        %v6922 = vunpack.c.h.b16 %v6780
        %v6923 = vunpack.c.l.b16 %v6781
        %v6924 = vunpack.c.l.b16 %v6782
        %v6925 = vunpack.c.h.b16 %v6782
        %v6926 = vunpack.c.l.b16 %v6783
        %v6927 = vunpack.c.h.b16 %v6783
        %v6928 = vunpack.c.l.b16 %v6784
        %v6929 = vunpack.c.l.b16 %v6785
        %v6930 = vunpack.c.h.b16 %v6785
        %v6931 = vunpack.c.l.b16 %v6786
        %v6932 = vunpack.c.h.b16 %v6786
        %v6933 = vunpack.c.l.b16 %v6787
        %v6934 = vunpack.c.l.b16 %v6788
        %v6935 = vunpack.c.h.b16 %v6788
        %v6936 = vunpack.c.l.b16 %v6789
        %v6937 = vunpack.c.h.b16 %v6789
        %v6938 = vunpack.c.l.b16 %v6790
        %v6939 = vpack.c.b16 %v6899, %v6894
        %v6940 = vpack.c.b16 %v6900, %v6895
        %v6941 = vpack.c.b16 %v6901, %v6896
        %v6942 = vpack.c.b16 %v6902, %v6897
        %v6943 = vpack.c.b16 %v6903, %v6898
        %v6944 = vpack.c.b16 %v6909, %v6904
        %v6945 = vpack.c.b16 %v6910, %v6905
        %v6946 = vpack.c.b16 %v6911, %v6906
        %v6947 = vpack.c.b16 %v6912, %v6907
        %v6948 = vpack.c.b16 %v6913, %v6908
        %v6949 = vpack.c.b16 %v6919, %v6914
        %v6950 = vpack.c.b16 %v6920, %v6915
        %v6951 = vpack.c.b16 %v6921, %v6916
        %v6952 = vpack.c.b16 %v6922, %v6917
        %v6953 = vpack.c.b16 %v6923, %v6918
        %v6954 = vpack.c.b16 %v6929, %v6924
        %v6955 = vpack.c.b16 %v6930, %v6925
        %v6956 = vpack.c.b16 %v6931, %v6926
        %v6957 = vpack.c.b16 %v6932, %v6927
        %v6958 = vpack.c.b16 %v6933, %v6928
        %v6959 = vpack.c.b16 %v6934, %v6934
        %v6960 = vpack.c.b16 %v6935, %v6935
        %v6961 = vpack.c.b16 %v6936, %v6936
        %v6962 = vpack.c.b16 %v6937, %v6937
        %v6963 = vpack.c.b16 %v6938, %v6938
        %v7056 = vunpack.c.l.b16 %v6791
        %v7057 = vunpack.c.l.b16 %v6792
        %v7058 = vunpack.c.l.b16 %v6793
        %v7059 = vunpack.c.l.b16 %v6794
        %v7060 = vunpack.c.l.b16 %v6795
        %v7061 = vunpack.c.l.b16 %v6796
        %v7062 = vunpack.c.l.b16 %v6797
        %v7063 = vunpack.c.l.b16 %v6798
        %v7064 = vunpack.c.l.b16 %v6799
        %v7065 = vunpack.c.l.b16 %v6800
        %v7066 = vunpack.c.l.b16 %v6801
        %v7067 = vunpack.c.l.b16 %v6802
        %v7068 = vunpack.c.l.b16 %v6803
        %v7069 = vunpack.c.l.b16 %v6804
        %v7070 = vunpack.c.l.b16 %v6805
        %v7071 = vunpack.c.l.b16 %v6806
        %v7072 = vunpack.c.l.b16 %v6807
        %v7073 = vunpack.c.l.b16 %v6808
        %v7074 = vunpack.c.l.b16 %v6809
        %v7075 = vunpack.c.l.b16 %v6810
        %v7076 = vunpack.c.l.b16 %v6811
        %v7077 = vunpack.c.l.b16 %v6812
        %v7078 = vunpack.c.l.b16 %v6813
        %v7079 = vunpack.c.l.b16 %v6814
        %v7080 = vunpack.c.l.b16 %v6815
        %v7081 = vunpack.c.l.b16 %v6816
        %v7082 = vunpack.c.l.b16 %v6817
        %v7083 = vunpack.c.l.b16 %v6818
        %v7084 = vunpack.c.l.b16 %v6819
        %v7085 = vunpack.c.l.b16 %v6820
        %v7086 = vunpack.c.l.b16 %v6821
        %v7087 = vunpack.c.l.b16 %v6822
        %v7088 = vunpack.c.l.b16 %v6823
        %v7089 = vunpack.c.l.b16 %v6824
        %v7090 = vunpack.c.l.b16 %v6825
        %v7091 = vunpack.c.l.b16 %v6826
        %v7092 = vunpack.c.l.b16 %v6827
        %v7093 = vunpack.c.l.b16 %v6828
        %v7094 = vunpack.c.l.b16 %v6829
        %v7095 = vunpack.c.l.b16 %v6830
        %v7096 = vunpack.c.l.b16 %v6831
        %v7097 = vunpack.c.l.b16 %v6832
        %v7098 = vunpack.c.l.b16 %v6833
        %v7099 = vunpack.c.l.b16 %v6834
        %v7100 = vunpack.c.l.b16 %v6835
        %v7101 = vunpack.c.l.b16 %v6836
        %v7102 = vunpack.c.l.b16 %v6837
        %v7103 = vunpack.c.l.b16 %v6838
        %v7104 = vunpack.c.l.b16 %v6839
        %v7105 = vunpack.c.l.b16 %v6840
        %v7106 = vunpack.c.l.b16 %v6841
        %v7107 = vunpack.c.l.b16 %v6842
        %v7108 = vunpack.c.l.b16 %v6843
        %v7109 = vunpack.c.l.b16 %v6844
        %v7110 = vunpack.c.l.b16 %v6845
        %v7111 = vunpack.c.l.b16 %v6846
        %v7112 = vunpack.c.l.b16 %v6847
        %v7113 = vunpack.c.l.b16 %v6848
        %v7114 = vunpack.c.l.b16 %v6849
        %v7115 = vunpack.c.l.b16 %v6850
        %v7116 = vunpack.c.l.b16 %v6851
        %v7117 = vunpack.c.l.b16 %v6852
        %v7118 = vunpack.c.l.b16 %v6853
        %v7119 = vunpack.c.l.b16 %v6854
        %v7120 = vunpack.c.l.b16 %v6855
        %v7121 = vunpack.c.l.b16 %v6856
        %v7122 = vunpack.c.l.b16 %v6857
        %v7123 = vunpack.c.l.b16 %v6858
        %v7124 = vunpack.c.l.b16 %v6859
        %v7125 = vunpack.c.l.b16 %v6860
        %v7126 = vunpack.c.l.b16 %v6861
        %v7127 = vunpack.c.l.b16 %v6862
        %v7128 = vpack.c.b16 %v7057, %v7056
        %v7129 = vpack.c.b16 %v7059, %v7058
        %v7130 = vpack.c.b16 %v7061, %v7060
        %v7131 = vpack.c.b16 %v7063, %v7062
        %v7132 = vpack.c.b16 %v7065, %v7064
        %v7133 = vpack.c.b16 %v7067, %v7066
        %v7134 = vpack.c.b16 %v7069, %v7068
        %v7135 = vpack.c.b16 %v7071, %v7070
        %v7136 = vpack.c.b16 %v7073, %v7072
        %v7137 = vpack.c.b16 %v7075, %v7074
        %v7138 = vpack.c.b16 %v7077, %v7076
        %v7139 = vpack.c.b16 %v7079, %v7078
        %v7140 = vpack.c.b16 %v7081, %v7080
        %v7141 = vpack.c.b16 %v7083, %v7082
        %v7142 = vpack.c.b16 %v7085, %v7084
        %v7143 = vpack.c.b16 %v7087, %v7086
        %v7144 = vpack.c.b16 %v7089, %v7088
        %v7145 = vpack.c.b16 %v7091, %v7090
        %v7146 = vpack.c.b16 %v7093, %v7092
        %v7147 = vpack.c.b16 %v7095, %v7094
        %v7148 = vpack.c.b16 %v7097, %v7096
        %v7149 = vpack.c.b16 %v7099, %v7098
        %v7150 = vpack.c.b16 %v7101, %v7100
        %v7151 = vpack.c.b16 %v7103, %v7102
        %v7152 = vpack.c.b16 %v7105, %v7104
        %v7153 = vpack.c.b16 %v7107, %v7106
        %v7154 = vpack.c.b16 %v7109, %v7108
        %v7155 = vpack.c.b16 %v7111, %v7110
        %v7156 = vpack.c.b16 %v7113, %v7112
        %v7157 = vpack.c.b16 %v7115, %v7114
        %v7158 = vpack.c.b16 %v7117, %v7116
        %v7159 = vpack.c.b16 %v7119, %v7118
        %v7160 = vpack.c.b16 %v7121, %v7120
        %v7161 = vpack.c.b16 %v7123, %v7122
        %v7162 = vpack.c.b16 %v7125, %v7124
        %v7163 = vpack.c.b16 %v7127, %v7126
        %v7201 = vsel %vm2060, %v6943, 0
        %v7204 = vsel %vm2060, %v6948, 0
        %v7207 = vsel %vm2060, %v6953, 0
        %v7210 = vsel %vm2060, %v6958, 0
        %v7213 = vsel %vm2060, %v6963, 0
        %7215 = vmatpush.bf16.msra.mxu0 %v7135
        %7216 = vmatpush.bf16.msra.mxu0 %v7134
        %7217 = vmatpush.bf16.msra.mxu0 %v7133
        %7218 = vmatpush.bf16.msra.mxu0 %v7132
        %7219 = vmatpush.bf16.msra.mxu0 %v7131
        %7220 = vmatpush.bf16.msra.mxu0 %v7130
        %7221 = vmatpush.bf16.msra.mxu0 %v7129
        %7222 = vmatpush.bf16.msra.mxu0 %v7128
        %7223 = vmatmul.bf16.gmra.mxu0 %v6939
        %v7224 = vpop.f32.mrf.mxu0
        %v7225 = vadd.f32 %v6865, %v7224
        %v7226 = vpop.f32.mrf.mxu0
        %v7227 = vadd.f32 %v6865, %v7226
        %7228 = vmatmul.bf16.gmra.mxu0 %v6944
        %v7229 = vpop.f32.mrf.mxu0
        %v7230 = vadd.f32 %v6865, %v7229
        %v7231 = vpop.f32.mrf.mxu0
        %v7232 = vadd.f32 %v6865, %v7231
        %7233 = vmatmul.bf16.gmra.mxu0 %v6949
        %v7234 = vpop.f32.mrf.mxu0
        %v7235 = vadd.f32 %v6865, %v7234
        %v7236 = vpop.f32.mrf.mxu0
        %v7237 = vadd.f32 %v6865, %v7236
        %7238 = vmatmul.bf16.gmra.mxu0 %v6954
        %v7239 = vpop.f32.mrf.mxu0
        %v7240 = vadd.f32 %v6865, %v7239
        %v7241 = vpop.f32.mrf.mxu0
        %v7242 = vadd.f32 %v6865, %v7241
        %7243 = vmatmul.bf16.gmra.mxu0 %v6959
        %v7244 = vpop.f32.mrf.mxu0
        %v7245 = vadd.f32 %v6865, %v7244
        %v7246 = vpop.f32.mrf.mxu0
        %7247 = vdwg.mxu0
        %7248 = vmatpush.bf16.msra.mxu0 %v7143
        %7249 = vmatpush.bf16.msra.mxu0 %v7142
        %7250 = vmatpush.bf16.msra.mxu0 %v7141
        %7251 = vmatpush.bf16.msra.mxu0 %v7140
        %7252 = vmatpush.bf16.msra.mxu0 %v7139
        %7253 = vmatpush.bf16.msra.mxu0 %v7138
        %7254 = vmatpush.bf16.msra.mxu0 %v7137
        %7255 = vmatpush.bf16.msra.mxu0 %v7136
        %7256 = vmatmul.bf16.gmra.mxu0 %v6940
        %v7257 = vpop.f32.mrf.mxu0
        %v7258 = vadd.f32 %v7225, %v7257
        %v7259 = vpop.f32.mrf.mxu0
        %v7260 = vadd.f32 %v7227, %v7259
        %7261 = vmatmul.bf16.gmra.mxu0 %v6945
        %v7262 = vpop.f32.mrf.mxu0
        %v7263 = vadd.f32 %v7230, %v7262
        %v7264 = vpop.f32.mrf.mxu0
        %v7265 = vadd.f32 %v7232, %v7264
        %7266 = vmatmul.bf16.gmra.mxu0 %v6950
        %v7267 = vpop.f32.mrf.mxu0
        %v7268 = vadd.f32 %v7235, %v7267
        %v7269 = vpop.f32.mrf.mxu0
        %v7270 = vadd.f32 %v7237, %v7269
        %7271 = vmatmul.bf16.gmra.mxu0 %v6955
        %v7272 = vpop.f32.mrf.mxu0
        %v7273 = vadd.f32 %v7240, %v7272
        %v7274 = vpop.f32.mrf.mxu0
        %v7275 = vadd.f32 %v7242, %v7274
        %7276 = vmatmul.bf16.gmra.mxu0 %v6960
        %v7277 = vpop.f32.mrf.mxu0
        %v7278 = vadd.f32 %v7245, %v7277
        %v7279 = vpop.f32.mrf.mxu0
        %7280 = vdwg.mxu0
        %7281 = vmatpush.bf16.msra.mxu0 %v7151
        %7282 = vmatpush.bf16.msra.mxu0 %v7150
        %7283 = vmatpush.bf16.msra.mxu0 %v7149
        %7284 = vmatpush.bf16.msra.mxu0 %v7148
        %7285 = vmatpush.bf16.msra.mxu0 %v7147
        %7286 = vmatpush.bf16.msra.mxu0 %v7146
        %7287 = vmatpush.bf16.msra.mxu0 %v7145
        %7288 = vmatpush.bf16.msra.mxu0 %v7144
        %7289 = vmatmul.bf16.gmra.mxu0 %v6941
        %v7290 = vpop.f32.mrf.mxu0
        %v7291 = vadd.f32 %v7258, %v7290
        %v7292 = vpop.f32.mrf.mxu0
        %v7293 = vadd.f32 %v7260, %v7292
        %7294 = vmatmul.bf16.gmra.mxu0 %v6946
        %v7295 = vpop.f32.mrf.mxu0
        %v7296 = vadd.f32 %v7263, %v7295
        %v7297 = vpop.f32.mrf.mxu0
        %v7298 = vadd.f32 %v7265, %v7297
        %7299 = vmatmul.bf16.gmra.mxu0 %v6951
        %v7300 = vpop.f32.mrf.mxu0
        %v7301 = vadd.f32 %v7268, %v7300
        %v7302 = vpop.f32.mrf.mxu0
        %v7303 = vadd.f32 %v7270, %v7302
        %7304 = vmatmul.bf16.gmra.mxu0 %v6956
        %v7305 = vpop.f32.mrf.mxu0
        %v7306 = vadd.f32 %v7273, %v7305
        %v7307 = vpop.f32.mrf.mxu0
        %v7308 = vadd.f32 %v7275, %v7307
        %7309 = vmatmul.bf16.gmra.mxu0 %v6961
        %v7310 = vpop.f32.mrf.mxu0
        %v7311 = vadd.f32 %v7278, %v7310
        %v7312 = vpop.f32.mrf.mxu0
        %7313 = vdwg.mxu0
        %7314 = vmatpush.bf16.msra.mxu0 %v7159
        %7315 = vmatpush.bf16.msra.mxu0 %v7158
        %7316 = vmatpush.bf16.msra.mxu0 %v7157
        %7317 = vmatpush.bf16.msra.mxu0 %v7156
        %7318 = vmatpush.bf16.msra.mxu0 %v7155
        %7319 = vmatpush.bf16.msra.mxu0 %v7154
        %7320 = vmatpush.bf16.msra.mxu0 %v7153
        %7321 = vmatpush.bf16.msra.mxu0 %v7152
        %7322 = vmatmul.bf16.gmra.mxu0 %v6942
        %v7323 = vpop.f32.mrf.mxu0
        %v7324 = vadd.f32 %v7291, %v7323
        %v7325 = vpop.f32.mrf.mxu0
        %v7326 = vadd.f32 %v7293, %v7325
        %7327 = vmatmul.bf16.gmra.mxu0 %v6947
        %v7328 = vpop.f32.mrf.mxu0
        %v7329 = vadd.f32 %v7296, %v7328
        %v7330 = vpop.f32.mrf.mxu0
        %v7331 = vadd.f32 %v7298, %v7330
        %7332 = vmatmul.bf16.gmra.mxu0 %v6952
        %v7333 = vpop.f32.mrf.mxu0
        %v7334 = vadd.f32 %v7301, %v7333
        %v7335 = vpop.f32.mrf.mxu0
        %v7336 = vadd.f32 %v7303, %v7335
        %7337 = vmatmul.bf16.gmra.mxu0 %v6957
        %v7338 = vpop.f32.mrf.mxu0
        %v7339 = vadd.f32 %v7306, %v7338
        %v7340 = vpop.f32.mrf.mxu0
        %v7341 = vadd.f32 %v7308, %v7340
        %7342 = vmatmul.bf16.gmra.mxu0 %v6962
        %v7343 = vpop.f32.mrf.mxu0
        %v7344 = vadd.f32 %v7311, %v7343
        %v7345 = vpop.f32.mrf.mxu0
        %7346 = vdwg.mxu0
        %7347 = vmatpush.bf16.msra.mxu0 0
        %7348 = vmatpush.bf16.msra.mxu0 0
        %7349 = vmatpush.bf16.msra.mxu0 0
        %7350 = vmatpush.bf16.msra.mxu0 0
        %7351 = vmatpush.bf16.msra.mxu0 %v7163
        %7352 = vmatpush.bf16.msra.mxu0 %v7162
        %7353 = vmatpush.bf16.msra.mxu0 %v7161
        %7354 = vmatpush.bf16.msra.mxu0 %v7160
        %7355 = vmatmul.bf16.gmra.mxu0 %v7201
        %v7356 = vpop.f32.mrf.mxu0
        %v7357 = vadd.f32 %v7324, %v7356
        %v7358 = vpop.f32.mrf.mxu0
        %v7359 = vadd.f32 %v7326, %v7358
        %7360 = vmatmul.bf16.gmra.mxu0 %v7204
        %v7361 = vpop.f32.mrf.mxu0
        %v7362 = vadd.f32 %v7329, %v7361
        %v7363 = vpop.f32.mrf.mxu0
        %v7364 = vadd.f32 %v7331, %v7363
        %7365 = vmatmul.bf16.gmra.mxu0 %v7207
        %v7366 = vpop.f32.mrf.mxu0
        %v7367 = vadd.f32 %v7334, %v7366
        %v7368 = vpop.f32.mrf.mxu0
        %v7369 = vadd.f32 %v7336, %v7368
        %7370 = vmatmul.bf16.gmra.mxu0 %v7210
        %v7371 = vpop.f32.mrf.mxu0
        %v7372 = vadd.f32 %v7339, %v7371
        %v7373 = vpop.f32.mrf.mxu0
        %v7374 = vadd.f32 %v7341, %v7373
        %7375 = vmatmul.bf16.gmra.mxu0 %v7213
        %v7376 = vpop.f32.mrf.mxu0
        %v7377 = vadd.f32 %v7344, %v7376
        %v7378 = vpop.f32.mrf.mxu0
        %7379 = vdwg.mxu0
        %v7380 = vmax.f32 %v7357, 0.0
        %v7381 = vmax.f32 %v7359, 0.0
        %v7382 = vmax.f32 %v7362, 0.0
        %v7383 = vmax.f32 %v7364, 0.0
        %v7384 = vmax.f32 %v7367, 0.0
        %v7385 = vmax.f32 %v7369, 0.0
        %v7386 = vmax.f32 %v7372, 0.0
        %v7387 = vmax.f32 %v7374, 0.0
        %v7388 = vmax.f32 %v7377, 0.0
        %v7389 = vsel %vm2259, %v7380, 0.0
        %v7390 = vsel %vm2260, %v7381, 0.0
        %v7391 = vsel %vm2261, %v7382, 0.0
        %v7392 = vsel %vm2262, %v7383, 0.0
        %v7393 = vsel %vm2263, %v7384, 0.0
        %v7394 = vsel %vm2264, %v7385, 0.0
        %v7395 = vsel %vm2265, %v7386, 0.0
        %v7396 = vsel %vm2266, %v7387, 0.0
        %v7397 = vsel %vm2267, %v7388, 0.0
        %v7398 = vpack.c.bf16 %v7389, %v7389
        %v7399 = vpack.c.bf16 %v7390, %v7390
        %v7400 = vpack.c.bf16 %v7391, %v7391
        %v7401 = vpack.c.bf16 %v7392, %v7392
        %v7402 = vpack.c.bf16 %v7393, %v7393
        %v7403 = vpack.c.bf16 %v7394, %v7394
        %v7404 = vpack.c.bf16 %v7395, %v7395
        %v7405 = vpack.c.bf16 %v7396, %v7396
        %v7406 = vpack.c.bf16 %v7397, %v7397
        %v7416 = vrot.slane %v7398, 6
        %v7417 = vrot.slane %v7416, 4
        %v7418 = vrot.slane %v7399, 6
        %v7419 = vsel %vm1101, %v7417, %v7418
        %v7420 = vrot.slane %v7418, 4
        %v7421 = vrot.slane %v7400, 6
        %v7422 = vsel %vm1101, %v7420, %v7421
        %v7423 = vrot.slane %v7421, 4
        %v7424 = vrot.slane %v7401, 6
        %v7425 = vsel %vm1101, %v7423, %v7424
        %v7426 = vrot.slane %v7424, 4
        %v7427 = vrot.slane %v7402, 6
        %v7428 = vsel %vm1101, %v7426, %v7427
        %v7429 = vrot.slane %v7427, 4
        %v7430 = vrot.slane %v7403, 6
        %v7431 = vsel %vm1101, %v7429, %v7430
        %v7432 = vrot.slane %v7430, 4
        %v7433 = vrot.slane %v7404, 6
        %v7434 = vsel %vm1101, %v7432, %v7433
        %v7435 = vrot.slane %v7433, 4
        %v7436 = vrot.slane %v7405, 6
        %v7437 = vsel %vm1101, %v7435, %v7436
        %v7438 = vrot.slane %v7436, 4
        %v7439 = vrot.slane %v7406, 6
        %v7440 = vsel %vm1101, %v7438, %v7439
        %v7441 = vrot.slane %v7439, 4
        %7452 = vst [vmem:[%s229 + $0x7c] sm:$0xc] %v7416
        %7453 = vst [vmem:[%s229 + $0x80] sm:$0xf] %v7419
        %7454 = vst [vmem:[%s229 + $0x84] sm:$0xf] %v7422
        %7455 = vst [vmem:[%s229 + $0x88] sm:$0xf] %v7425
        %7456 = vst [vmem:[%s229 + $0x8c] sm:$0xf] %v7428
        %7457 = vst [vmem:[%s229 + $0x90] sm:$0xf] %v7431
        %7458 = vst [vmem:[%s229 + $0x94] sm:$0xf] %v7434
        %7459 = vst [vmem:[%s229 + $0x98] sm:$0xf] %v7437
        %7460 = vst [vmem:[%s229 + $0x9c] sm:$0xf] %v7440
        %7461 = vst [vmem:[%s229 + $0xa0] sm:$0x3] %v7441
        %s7462 = sand.u32 %s120, 1
        %s7463 = scalar_lea.sflag [#allocation5], %s7462
        %s7464 = sand.u32 %s120, 1
        %s7465 = smul.addr %s7464, 180
        %s7466 = scalar_lea.vmem [#allocation6], %s7465
        // Predicated region
        $region37: #{tpu_custom_call.1} parent=31 // pred_check
          %p7467 = pneg %p130
        $region38: #{tpu_custom_call.1} parent=31 // pred_check_branch
          %7469 = sbr.rel (%p7467) target = $region40
        $region39: #{tpu_custom_call.1} parent=31 // pred_region
          %7471 = vsyncadd %s7463, 0
          %s7472 = smul.addr %s24, 90
          %s7473 = sadd.s32 %s25, %s7472
          %s7474 = smul.addr %s7473, 4
          %s7475 = scalar_lea.hbm %s3, %s7474
          %s7476 = sshll.u32 %s7466, 4
          %s7477 = int_to_ptr.vmem [resolvable:$true] %s7476
          %s7478 = sshll.u32 %s7475, 4
          %s7479 = int_to_ptr.hbm [resolvable:$true] %s7478
          %7484 = dma.vmem_to_hbm [thread:$0]  %s7477, 2880, %s7479, %s7463, 64, 128, 4
        $region40: #{tpu_custom_call.1} parent=31 // pred_fallthru
          _
      $region32: #{tpu_custom_call.1} parent=5 // pred_fallthru
        _
      %p7485 = scmp.le.s32.totalorder 2, %s15
      // Predicated region
      $region41: #{tpu_custom_call.1} parent=5 // pred_check
        %p7486 = pneg %p7485
      $region42: #{tpu_custom_call.1} parent=5 // pred_check_branch
        %7488 = sbr.rel (%p7486) target = $region44
      $region43: #{tpu_custom_call.1} parent=5 // pred_region
        %s7489 = ssub.s32 %s15, 2
        // Predicated region
        $region45: #{tpu_custom_call.1} parent=43 // pred_check
          %p7490 = pneg %p136
        $region46: #{tpu_custom_call.1} parent=43 // pred_check_branch
          %7492 = sbr.rel (%p7490) target = $region48
        $region47: #{tpu_custom_call.1} parent=43 // pred_region
          %s7493 = sand.u32 %s121, 1
          %s7494 = scalar_lea.sflag [#allocation5], %s7493
          %s7495 = sand.u32 %s121, 1
          %s7496 = smul.addr %s7495, 180
          %s7497 = scalar_lea.vmem [#allocation6], %s7496
          %7499 = dma.done %s7494, 2880
        $region48: #{tpu_custom_call.1} parent=43 // pred_fallthru
          _
      $region44: #{tpu_custom_call.1} parent=5 // pred_fallthru
        _
    $region6: #{tpu_custom_call.1} parent=1 // loop_footer
      %s19 = sadd.s32 1, %s15
    $region7: #{tpu_custom_call.1} parent=1 // loop_footer_branch
      %14 = sbr.rel target = $region3
    $region8: #{tpu_custom_call.1} parent=1 // loop_exit
      _
    %7500 = vsyncpa [#allocation4], 1
    %s7501 = scalar_lea.sflag [#allocation4], 1
    %7502 = vsyncpa %s7501, 1
    %7503 = vsyncpa [#allocation5], 1
    %s7504 = scalar_lea.sflag [#allocation5], 1
    %7505 = vsyncpa %s7504, 1

</llo_original>
